<compile_context>
chip_gen: v6e
topology: v6e:2x2x1
jax: 0.10.0
libtpu: 0.0.40
codegen_flags: <defaults>
</compile_context>

<pallas_src>
import functools

import jax
import jax.numpy as jnp
import numpy as np
from jax import lax
from jax.experimental import pallas as pl
from jax.experimental.pallas import tpu as pltpu

LANE = 128


def _round_up(x, m):
    return (x + m - 1) // m * m


def _doubleconv_kernel(x_ref, w1_ref, b1_ref, w2_ref, b2_ref, o_ref,
                       xpad_ref, h1pad_ref, acc_ref):
    """Fused DoubleConv for one batch element (NHWC, channels padded to 128).

    x_ref:     (H, W, Cin_p)          unpadded input tile
    w1_ref:    (3, 3, Cin_p, Cout_p)  conv1 weights, BN1 scale pre-folded
    b1_ref:    (1, Cout_p)            conv1 bias + BN1 shift (folded)
    w2_ref:    (3, 3, Cout_p, Cout_p) conv2 weights, BN2 scale pre-folded
    b2_ref:    (1, Cout_p)
    o_ref:     (H, W, Cout_p)
    xpad_ref:  (H+2, W+2, Cin_p)      VMEM scratch; zero border = spatial padding
    h1pad_ref: (H+2, W+2, Cout_p)     VMEM scratch for intermediate activation
    acc_ref:   (H, W, Cout_p) f32     VMEM accumulator, reused by both convs
    """
    H, W, _ = o_ref.shape

    def zero_border(ref):
        hp2, wp2, c = ref.shape
        row = jnp.zeros((1, wp2, c), ref.dtype)
        col = jnp.zeros((hp2, 1, c), ref.dtype)
        ref[0:1, :, :] = row
        ref[hp2 - 1:hp2, :, :] = row
        ref[:, 0:1, :] = col
        ref[:, wp2 - 1:wp2, :] = col

    # Only the 1-pixel borders need zeroing; interiors are fully overwritten below.
    zero_border(xpad_ref)
    zero_border(h1pad_ref)

    # Place the input tile inside the zero border (cheap VMEM copy).
    xpad_ref[1:H + 1, 1:W + 1, :] = x_ref[...]

    def conv3x3(src_ref, w_ref):
        # 9 shifted (H*W, K) x (K, Cout_p) MXU matmuls accumulated in f32 VMEM.
        for kh in range(3):
            for kw in range(3):
                part = jnp.einsum(
                    "hwc,co->hwo",
                    src_ref[kh:kh + H, kw:kw + W, :],
                    w_ref[kh, kw],
                    preferred_element_type=jnp.float32,
                )
                if kh == 0 and kw == 0:
                    acc_ref[...] = part
                else:
                    acc_ref[...] += part

    # ---- conv1 + folded-BN bias + ReLU -> padded intermediate ----
    conv3x3(xpad_ref, w1_ref)
    h1 = jnp.maximum(acc_ref[...] + b1_ref[...], 0.0)
    h1pad_ref[1:H + 1, 1:W + 1, :] = h1.astype(h1pad_ref.dtype)

    # ---- conv2 + folded-BN bias + ReLU -> output ----
    conv3x3(h1pad_ref, w2_ref)
    o_ref[...] = jnp.maximum(acc_ref[...] + b2_ref[...], 0.0).astype(o_ref.dtype)


@functools.partial(jax.jit, static_argnames=("out_ch",))
def double_conv_pallas(x_nchw, w1p, b1p, w2p, b2p, *, out_ch):
    """x_nchw: (N, Cin, H, W); w*/b*: folded + channel-padded params."""
    N, Cin, H, W = x_nchw.shape
    Cin_p, Cout_p = w1p.shape[2], w1p.shape[3]
    itemsize = jnp.dtype(x_nchw.dtype).itemsize

    # NCHW -> NHWC, zero-pad the channel (lane) dim to a multiple of 128.
    x = jnp.transpose(x_nchw, (0, 2, 3, 1))
    if Cin_p != Cin:
        x = jnp.pad(x, ((0, 0), (0, 0), (0, 0), (0, Cin_p - Cin)))

    # Explicit scoped-VMEM budget: double-buffered in/out blocks + weights + scratch.
    est = (2 * H * W * Cin_p * itemsize
           + 2 * H * W * Cout_p * itemsize
           + 2 * 9 * Cin_p * Cout_p * jnp.dtype(w1p.dtype).itemsize
           + 2 * 9 * Cout_p * Cout_p * jnp.dtype(w2p.dtype).itemsize
           + (H + 2) * (W + 2) * (Cin_p + Cout_p) * itemsize
           + H * W * Cout_p * 4)
    vmem_limit = int(min(max(2 * est, 16 * 1024 * 1024), 64 * 1024 * 1024))

    out_nhwc = pl.pallas_call(
        _doubleconv_kernel,
        out_shape=jax.ShapeDtypeStruct((N, H, W, Cout_p), x_nchw.dtype),
        grid_spec=pltpu.PrefetchScalarGridSpec(
            num_scalar_prefetch=0,
            grid=(N,),
            in_specs=[
                pl.BlockSpec((None, H, W, Cin_p), lambda n: (n, 0, 0, 0)),
                pl.BlockSpec((3, 3, Cin_p, Cout_p), lambda n: (0, 0, 0, 0)),
                pl.BlockSpec((1, Cout_p), lambda n: (0, 0)),
                pl.BlockSpec((3, 3, Cout_p, Cout_p), lambda n: (0, 0, 0, 0)),
                pl.BlockSpec((1, Cout_p), lambda n: (0, 0)),
            ],
            out_specs=pl.BlockSpec((None, H, W, Cout_p), lambda n: (n, 0, 0, 0)),
            scratch_shapes=[
                pltpu.VMEM((H + 2, W + 2, Cin_p), x.dtype),
                pltpu.VMEM((H + 2, W + 2, Cout_p), x.dtype),
                pltpu.VMEM((H, W, Cout_p), jnp.float32),
            ],
        ),
        compiler_params=pltpu.CompilerParams(
            dimension_semantics=("parallel",),
            vmem_limit_bytes=vmem_limit,
        ),
    )(x, w1p, b1p, w2p, b2p)

    # Drop the channel padding and return in PyTorch NCHW layout.
    return jnp.transpose(out_nhwc[..., :out_ch], (0, 3, 1, 2))


# ---------------------------------------------------------------------------
# Parameter setup / folding (mirrors nn.Conv2d + nn.BatchNorm2d, eval mode)
# ---------------------------------------------------------------------------
def make_params(key, in_ch, out_ch):
    ks = jax.random.split(key, 12)

    def conv_bn(keys, cin, cout):
        k0, k1, k2, k3, k4, k5 = keys
        w_oihw = 0.2 * jax.random.normal(k0, (cout, cin, 3, 3), jnp.float32)
        b_conv = 0.1 * jax.random.normal(k1, (cout,), jnp.float32)
        gamma = 0.5 + jax.random.uniform(k2, (cout,), jnp.float32)
        beta = 0.1 * jax.random.normal(k3, (cout,), jnp.float32)
        rmean = 0.1 * jax.random.normal(k4, (cout,), jnp.float32)
        rvar = 0.5 + jax.random.uniform(k5, (cout,), jnp.float32)
        return (w_oihw, b_conv, gamma, beta, rmean, rvar)

    raw1 = conv_bn(ks[0:6], in_ch, out_ch)
    raw2 = conv_bn(ks[6:12], out_ch, out_ch)
    return raw1, raw2


def fold_and_pad_params(raw, cin_pad, cout_pad, eps=1e-5):
    """Fold eval-mode BN (scale into weights, shift into bias), pad channels to 128."""
    w_oihw, b_conv, gamma, beta, rmean, rvar = raw
    cout, cin = w_oihw.shape[0], w_oihw.shape[1]
    scale = gamma / jnp.sqrt(rvar + eps)                       # (cout,)
    bias = (b_conv - rmean) * scale + beta                     # (cout,)
    # PyTorch (O,I,kH,kW) -> (kH,kW,I,O), BN scale folded into output channels.
    w_hwio = jnp.transpose(w_oihw, (2, 3, 1, 0)) * scale[None, None, None, :]
    w_pad = jnp.zeros((3, 3, cin_pad, cout_pad), w_hwio.dtype)
    w_pad = w_pad.at[:, :, :cin, :cout].set(w_hwio)
    b_pad = jnp.zeros((1, cout_pad), bias.dtype).at[:, :cout].set(bias)
    return w_pad, b_pad


def reference_double_conv(x_nchw, raw1, raw2, eps=1e-5):
    """Pure-JAX reference (eval-mode BN), NCHW in/out."""
    def block(x, raw):
        w_oihw, b, gamma, beta, rmean, rvar = raw
        y = lax.conv_general_dilated(
            x, w_oihw, window_strides=(1, 1), padding=((1, 1), (1, 1)),
            dimension_numbers=("NCHW", "OIHW", "NCHW"))
        y = y + b[None, :, None, None]
        y = (y - rmean[None, :, None, None]) / jnp.sqrt(rvar[None, :, None, None] + eps)
        y = y * gamma[None, :, None, None] + beta[None, :, None, None]
        return jnp.maximum(y, 0.0)

    return block(block(x_nchw, raw1), raw2)


if __name__ == "__main__":
    key = jax.random.PRNGKey(0)
    k_x, k_p = jax.random.split(key)

    N, in_ch, H, W = 2, 4, 16, 16
    out_ch = 8
    x = jax.random.normal(k_x, (N, in_ch, H, W), jnp.float32)

    raw1, raw2 = make_params(k_p, in_ch, out_ch)
    cin_pad = _round_up(in_ch, LANE)
    cout_pad = _round_up(out_ch, LANE)
    w1p, b1p = fold_and_pad_params(raw1, cin_pad, cout_pad)
    w2p, b2p = fold_and_pad_params(raw2, cout_pad, cout_pad)

    out = double_conv_pallas(x, w1p, b1p, w2p, b2p, out_ch=out_ch)
    out = jax.block_until_ready(out)

    ref = jax.block_until_ready(reference_double_conv(x, raw1, raw2))
    assert out.shape == (N, out_ch, H, W), out.shape
    np.testing.assert_allclose(np.asarray(out), np.asarray(ref), rtol=1e-3, atol=1e-3)

    print("KERNEL_OK")
</pallas_src>

<mosaic_0001>
module attributes {stable_mosaic.version = 11 : i64} {
  func.func @_doubleconv_kernel(%arg0: i32, %arg1: memref<1x16x16x128xf32, #tpu.memory_space<vmem>>, %arg2: memref<3x3x128x128xf32, #tpu.memory_space<vmem>>, %arg3: memref<1x128xf32, #tpu.memory_space<vmem>>, %arg4: memref<3x3x128x128xf32, #tpu.memory_space<vmem>>, %arg5: memref<1x128xf32, #tpu.memory_space<vmem>>, %arg6: memref<1x16x16x128xf32, #tpu.memory_space<vmem>>, %arg7: memref<18x18x128xf32, #tpu.memory_space<vmem>>, %arg8: memref<18x18x128xf32, #tpu.memory_space<vmem>>, %arg9: memref<16x16x128xf32, #tpu.memory_space<vmem>>) attributes {dimension_semantics = [#tpu.dimension_semantics<parallel>], iteration_bounds = array<i64: 2>, scalar_prefetch = 0 : i64, scratch_operands = 3 : i64, tpu.core_type = #tpu.core_type<tc>, window_params = [{transform_indices = @transform_0, window_bounds = array<i64: 1, 16, 16, 128>}, {pipeline_mode = #tpu.pipeline_mode<synchronous>, transform_indices = @transform_1, window_bounds = array<i64: 3, 3, 128, 128>}, {pipeline_mode = #tpu.pipeline_mode<synchronous>, transform_indices = @transform_2, window_bounds = array<i64: 1, 128>}, {pipeline_mode = #tpu.pipeline_mode<synchronous>, transform_indices = @transform_3, window_bounds = array<i64: 3, 3, 128, 128>}, {pipeline_mode = #tpu.pipeline_mode<synchronous>, transform_indices = @transform_4, window_bounds = array<i64: 1, 128>}, {transform_indices = @transform_5, window_bounds = array<i64: 1, 16, 16, 128>}]} {
    %cst = arith.constant 0.000000e+00 : f32
    %0 = vector.broadcast %cst : f32 to vector<1x18x128xf32>
    %cst_0 = arith.constant 0.000000e+00 : f32
    %1 = vector.broadcast %cst_0 : f32 to vector<18x1x128xf32>
    %c0 = arith.constant 0 : index
    %c0_1 = arith.constant 0 : index
    %c0_2 = arith.constant 0 : index
    %2 = vector.load %arg7[%c0, %c0_1, %c0_2] : memref<18x18x128xf32, #tpu.memory_space<vmem>>, vector<1x18x128xf32>
    tpu.vector_store %arg7[%c0, %c0_1, %c0_2], %0 {strides = array<i32>} : memref<18x18x128xf32, #tpu.memory_space<vmem>>, vector<1x18x128xf32>,
    %c17 = arith.constant 17 : index
    %c0_3 = arith.constant 0 : index
    %c0_4 = arith.constant 0 : index
    %3 = vector.load %arg7[%c17, %c0_3, %c0_4] : memref<18x18x128xf32, #tpu.memory_space<vmem>>, vector<1x18x128xf32>
    tpu.vector_store %arg7[%c17, %c0_3, %c0_4], %0 {strides = array<i32>} : memref<18x18x128xf32, #tpu.memory_space<vmem>>, vector<1x18x128xf32>,
    %c0_5 = arith.constant 0 : index
    %c0_6 = arith.constant 0 : index
    %c0_7 = arith.constant 0 : index
    %4 = vector.load %arg7[%c0_5, %c0_6, %c0_7] : memref<18x18x128xf32, #tpu.memory_space<vmem>>, vector<18x1x128xf32>
    tpu.vector_store %arg7[%c0_5, %c0_6, %c0_7], %1 {strides = array<i32>} : memref<18x18x128xf32, #tpu.memory_space<vmem>>, vector<18x1x128xf32>,
    %c0_8 = arith.constant 0 : index
    %c17_9 = arith.constant 17 : index
    %c0_10 = arith.constant 0 : index
    %5 = vector.load %arg7[%c0_8, %c17_9, %c0_10] : memref<18x18x128xf32, #tpu.memory_space<vmem>>, vector<18x1x128xf32>
    tpu.vector_store %arg7[%c0_8, %c17_9, %c0_10], %1 {strides = array<i32>} : memref<18x18x128xf32, #tpu.memory_space<vmem>>, vector<18x1x128xf32>,
    %cst_11 = arith.constant 0.000000e+00 : f32
    %6 = vector.broadcast %cst_11 : f32 to vector<1x18x128xf32>
    %cst_12 = arith.constant 0.000000e+00 : f32
    %7 = vector.broadcast %cst_12 : f32 to vector<18x1x128xf32>
    %c0_13 = arith.constant 0 : index
    %c0_14 = arith.constant 0 : index
    %c0_15 = arith.constant 0 : index
    %8 = vector.load %arg8[%c0_13, %c0_14, %c0_15] : memref<18x18x128xf32, #tpu.memory_space<vmem>>, vector<1x18x128xf32>
    tpu.vector_store %arg8[%c0_13, %c0_14, %c0_15], %6 {strides = array<i32>} : memref<18x18x128xf32, #tpu.memory_space<vmem>>, vector<1x18x128xf32>,
    %c17_16 = arith.constant 17 : index
    %c0_17 = arith.constant 0 : index
    %c0_18 = arith.constant 0 : index
    %9 = vector.load %arg8[%c17_16, %c0_17, %c0_18] : memref<18x18x128xf32, #tpu.memory_space<vmem>>, vector<1x18x128xf32>
    tpu.vector_store %arg8[%c17_16, %c0_17, %c0_18], %6 {strides = array<i32>} : memref<18x18x128xf32, #tpu.memory_space<vmem>>, vector<1x18x128xf32>,
    %c0_19 = arith.constant 0 : index
    %c0_20 = arith.constant 0 : index
    %c0_21 = arith.constant 0 : index
    %10 = vector.load %arg8[%c0_19, %c0_20, %c0_21] : memref<18x18x128xf32, #tpu.memory_space<vmem>>, vector<18x1x128xf32>
    tpu.vector_store %arg8[%c0_19, %c0_20, %c0_21], %7 {strides = array<i32>} : memref<18x18x128xf32, #tpu.memory_space<vmem>>, vector<18x1x128xf32>,
    %c0_22 = arith.constant 0 : index
    %c17_23 = arith.constant 17 : index
    %c0_24 = arith.constant 0 : index
    %11 = vector.load %arg8[%c0_22, %c17_23, %c0_24] : memref<18x18x128xf32, #tpu.memory_space<vmem>>, vector<18x1x128xf32>
    tpu.vector_store %arg8[%c0_22, %c17_23, %c0_24], %7 {strides = array<i32>} : memref<18x18x128xf32, #tpu.memory_space<vmem>>, vector<18x1x128xf32>,
    %c0_25 = arith.constant 0 : index
    %c0_26 = arith.constant 0 : index
    %c0_27 = arith.constant 0 : index
    %c0_28 = arith.constant 0 : index
    %12 = vector.load %arg1[%c0_25, %c0_26, %c0_27, %c0_28] : memref<1x16x16x128xf32, #tpu.memory_space<vmem>>, vector<1x16x16x128xf32>
    %13 = vector.shape_cast %12 : vector<1x16x16x128xf32> to vector<16x16x128xf32>
    %c1 = arith.constant 1 : index
    %c1_29 = arith.constant 1 : index
    %c0_30 = arith.constant 0 : index
    %14 = vector.load %arg7[%c1, %c1_29, %c0_30] : memref<18x18x128xf32, #tpu.memory_space<vmem>>, vector<16x16x128xf32>
    tpu.vector_store %arg7[%c1, %c1_29, %c0_30], %13 {strides = array<i32>} : memref<18x18x128xf32, #tpu.memory_space<vmem>>, vector<16x16x128xf32>,
    %c0_31 = arith.constant 0 : index
    %c0_32 = arith.constant 0 : index
    %c0_33 = arith.constant 0 : index
    %15 = vector.load %arg7[%c0_31, %c0_32, %c0_33] : memref<18x18x128xf32, #tpu.memory_space<vmem>>, vector<16x16x128xf32>
    %c0_34 = arith.constant 0 : index
    %c0_35 = arith.constant 0 : index
    %c0_36 = arith.constant 0 : index
    %c0_37 = arith.constant 0 : index
    %16 = vector.load %arg2[%c0_34, %c0_35, %c0_36, %c0_37] : memref<3x3x128x128xf32, #tpu.memory_space<vmem>>, vector<1x1x128x128xf32>
    %17 = vector.shape_cast %16 : vector<1x1x128x128xf32> to vector<128x128xf32>
    "tpu.trace_start"() <{level = 10 : i32, message = "hwc,co->hwo"}> : () -> ()
    %cst_38 = arith.constant dense<0.000000e+00> : vector<16x16x128xf32>
    %18 = tpu.matmul %15, %17, %cst_38 {dimension_numbers = #tpu.dot_dimension_numbers<[2], [0], [0, 1], [1], [0, 0, 0, 1, 1, 1], [], []>} : vector<16x16x128xf32>, vector<128x128xf32>, vector<16x16x128xf32> -> vector<16x16x128xf32>
    "tpu.trace_stop"() : () -> ()
    %c0_39 = arith.constant 0 : index
    %c0_40 = arith.constant 0 : index
    %c0_41 = arith.constant 0 : index
    %19 = vector.load %arg9[%c0_39, %c0_40, %c0_41] : memref<16x16x128xf32, #tpu.memory_space<vmem>>, vector<16x16x128xf32>
    tpu.vector_store %arg9[%c0_39, %c0_40, %c0_41], %18 {strides = array<i32>} : memref<16x16x128xf32, #tpu.memory_space<vmem>>, vector<16x16x128xf32>,
    %c0_42 = arith.constant 0 : index
    %c1_43 = arith.constant 1 : index
    %c0_44 = arith.constant 0 : index
    %20 = vector.load %arg7[%c0_42, %c1_43, %c0_44] : memref<18x18x128xf32, #tpu.memory_space<vmem>>, vector<16x16x128xf32>
    %c0_45 = arith.constant 0 : index
    %c1_46 = arith.constant 1 : index
    %c0_47 = arith.constant 0 : index
    %c0_48 = arith.constant 0 : index
    %21 = vector.load %arg2[%c0_45, %c1_46, %c0_47, %c0_48] : memref<3x3x128x128xf32, #tpu.memory_space<vmem>>, vector<1x1x128x128xf32>
    %22 = vector.shape_cast %21 : vector<1x1x128x128xf32> to vector<128x128xf32>
    "tpu.trace_start"() <{level = 10 : i32, message = "hwc,co->hwo"}> : () -> ()
    %cst_49 = arith.constant dense<0.000000e+00> : vector<16x16x128xf32>
    %23 = tpu.matmul %20, %22, %cst_49 {dimension_numbers = #tpu.dot_dimension_numbers<[2], [0], [0, 1], [1], [0, 0, 0, 1, 1, 1], [], []>} : vector<16x16x128xf32>, vector<128x128xf32>, vector<16x16x128xf32> -> vector<16x16x128xf32>
    "tpu.trace_stop"() : () -> ()
    %c0_50 = arith.constant 0 : index
    %c0_51 = arith.constant 0 : index
    %c0_52 = arith.constant 0 : index
    %24 = vector.load %arg9[%c0_50, %c0_51, %c0_52] : memref<16x16x128xf32, #tpu.memory_space<vmem>>, vector<16x16x128xf32>
    %25 = arith.addf %24, %23 : vector<16x16x128xf32>
    %c0_53 = arith.constant 0 : index
    %c0_54 = arith.constant 0 : index
    %c0_55 = arith.constant 0 : index
    %26 = vector.load %arg9[%c0_53, %c0_54, %c0_55] : memref<16x16x128xf32, #tpu.memory_space<vmem>>, vector<16x16x128xf32>
    tpu.vector_store %arg9[%c0_53, %c0_54, %c0_55], %25 {strides = array<i32>} : memref<16x16x128xf32, #tpu.memory_space<vmem>>, vector<16x16x128xf32>,
    %c0_56 = arith.constant 0 : index
    %c2 = arith.constant 2 : index
    %c0_57 = arith.constant 0 : index
    %27 = vector.load %arg7[%c0_56, %c2, %c0_57] : memref<18x18x128xf32, #tpu.memory_space<vmem>>, vector<16x16x128xf32>
    %c0_58 = arith.constant 0 : index
    %c2_59 = arith.constant 2 : index
    %c0_60 = arith.constant 0 : index
    %c0_61 = arith.constant 0 : index
    %28 = vector.load %arg2[%c0_58, %c2_59, %c0_60, %c0_61] : memref<3x3x128x128xf32, #tpu.memory_space<vmem>>, vector<1x1x128x128xf32>
    %29 = vector.shape_cast %28 : vector<1x1x128x128xf32> to vector<128x128xf32>
    "tpu.trace_start"() <{level = 10 : i32, message = "hwc,co->hwo"}> : () -> ()
    %cst_62 = arith.constant dense<0.000000e+00> : vector<16x16x128xf32>
    %30 = tpu.matmul %27, %29, %cst_62 {dimension_numbers = #tpu.dot_dimension_numbers<[2], [0], [0, 1], [1], [0, 0, 0, 1, 1, 1], [], []>} : vector<16x16x128xf32>, vector<128x128xf32>, vector<16x16x128xf32> -> vector<16x16x128xf32>
    "tpu.trace_stop"() : () -> ()
    %c0_63 = arith.constant 0 : index
    %c0_64 = arith.constant 0 : index
    %c0_65 = arith.constant 0 : index
    %31 = vector.load %arg9[%c0_63, %c0_64, %c0_65] : memref<16x16x128xf32, #tpu.memory_space<vmem>>, vector<16x16x128xf32>
    %32 = arith.addf %31, %30 : vector<16x16x128xf32>
    %c0_66 = arith.constant 0 : index
    %c0_67 = arith.constant 0 : index
    %c0_68 = arith.constant 0 : index
    %33 = vector.load %arg9[%c0_66, %c0_67, %c0_68] : memref<16x16x128xf32, #tpu.memory_space<vmem>>, vector<16x16x128xf32>
    tpu.vector_store %arg9[%c0_66, %c0_67, %c0_68], %32 {strides = array<i32>} : memref<16x16x128xf32, #tpu.memory_space<vmem>>, vector<16x16x128xf32>,
    %c1_69 = arith.constant 1 : index
    %c0_70 = arith.constant 0 : index
    %c0_71 = arith.constant 0 : index
    %34 = vector.load %arg7[%c1_69, %c0_70, %c0_71] : memref<18x18x128xf32, #tpu.memory_space<vmem>>, vector<16x16x128xf32>
    %c1_72 = arith.constant 1 : index
    %c0_73 = arith.constant 0 : index
    %c0_74 = arith.constant 0 : index
    %c0_75 = arith.constant 0 : index
    %35 = vector.load %arg2[%c1_72, %c0_73, %c0_74, %c0_75] : memref<3x3x128x128xf32, #tpu.memory_space<vmem>>, vector<1x1x128x128xf32>
    %36 = vector.shape_cast %35 : vector<1x1x128x128xf32> to vector<128x128xf32>
    "tpu.trace_start"() <{level = 10 : i32, message = "hwc,co->hwo"}> : () -> ()
    %cst_76 = arith.constant dense<0.000000e+00> : vector<16x16x128xf32>
    %37 = tpu.matmul %34, %36, %cst_76 {dimension_numbers = #tpu.dot_dimension_numbers<[2], [0], [0, 1], [1], [0, 0, 0, 1, 1, 1], [], []>} : vector<16x16x128xf32>, vector<128x128xf32>, vector<16x16x128xf32> -> vector<16x16x128xf32>
    "tpu.trace_stop"() : () -> ()
    %c0_77 = arith.constant 0 : index
    %c0_78 = arith.constant 0 : index
    %c0_79 = arith.constant 0 : index
    %38 = vector.load %arg9[%c0_77, %c0_78, %c0_79] : memref<16x16x128xf32, #tpu.memory_space<vmem>>, vector<16x16x128xf32>
    %39 = arith.addf %38, %37 : vector<16x16x128xf32>
    %c0_80 = arith.constant 0 : index
    %c0_81 = arith.constant 0 : index
    %c0_82 = arith.constant 0 : index
    %40 = vector.load %arg9[%c0_80, %c0_81, %c0_82] : memref<16x16x128xf32, #tpu.memory_space<vmem>>, vector<16x16x128xf32>
    tpu.vector_store %arg9[%c0_80, %c0_81, %c0_82], %39 {strides = array<i32>} : memref<16x16x128xf32, #tpu.memory_space<vmem>>, vector<16x16x128xf32>,
    %c1_83 = arith.constant 1 : index
    %c1_84 = arith.constant 1 : index
    %c0_85 = arith.constant 0 : index
    %41 = vector.load %arg7[%c1_83, %c1_84, %c0_85] : memref<18x18x128xf32, #tpu.memory_space<vmem>>, vector<16x16x128xf32>
    %c1_86 = arith.constant 1 : index
    %c1_87 = arith.constant 1 : index
    %c0_88 = arith.constant 0 : index
    %c0_89 = arith.constant 0 : index
    %42 = vector.load %arg2[%c1_86, %c1_87, %c0_88, %c0_89] : memref<3x3x128x128xf32, #tpu.memory_space<vmem>>, vector<1x1x128x128xf32>
    %43 = vector.shape_cast %42 : vector<1x1x128x128xf32> to vector<128x128xf32>
    "tpu.trace_start"() <{level = 10 : i32, message = "hwc,co->hwo"}> : () -> ()
    %cst_90 = arith.constant dense<0.000000e+00> : vector<16x16x128xf32>
    %44 = tpu.matmul %41, %43, %cst_90 {dimension_numbers = #tpu.dot_dimension_numbers<[2], [0], [0, 1], [1], [0, 0, 0, 1, 1, 1], [], []>} : vector<16x16x128xf32>, vector<128x128xf32>, vector<16x16x128xf32> -> vector<16x16x128xf32>
    "tpu.trace_stop"() : () -> ()
    %c0_91 = arith.constant 0 : index
    %c0_92 = arith.constant 0 : index
    %c0_93 = arith.constant 0 : index
    %45 = vector.load %arg9[%c0_91, %c0_92, %c0_93] : memref<16x16x128xf32, #tpu.memory_space<vmem>>, vector<16x16x128xf32>
    %46 = arith.addf %45, %44 : vector<16x16x128xf32>
    %c0_94 = arith.constant 0 : index
    %c0_95 = arith.constant 0 : index
    %c0_96 = arith.constant 0 : index
    %47 = vector.load %arg9[%c0_94, %c0_95, %c0_96] : memref<16x16x128xf32, #tpu.memory_space<vmem>>, vector<16x16x128xf32>
    tpu.vector_store %arg9[%c0_94, %c0_95, %c0_96], %46 {strides = array<i32>} : memref<16x16x128xf32, #tpu.memory_space<vmem>>, vector<16x16x128xf32>,
    %c1_97 = arith.constant 1 : index
    %c2_98 = arith.constant 2 : index
    %c0_99 = arith.constant 0 : index
    %48 = vector.load %arg7[%c1_97, %c2_98, %c0_99] : memref<18x18x128xf32, #tpu.memory_space<vmem>>, vector<16x16x128xf32>
    %c1_100 = arith.constant 1 : index
    %c2_101 = arith.constant 2 : index
    %c0_102 = arith.constant 0 : index
    %c0_103 = arith.constant 0 : index
    %49 = vector.load %arg2[%c1_100, %c2_101, %c0_102, %c0_103] : memref<3x3x128x128xf32, #tpu.memory_space<vmem>>, vector<1x1x128x128xf32>
    %50 = vector.shape_cast %49 : vector<1x1x128x128xf32> to vector<128x128xf32>
    "tpu.trace_start"() <{level = 10 : i32, message = "hwc,co->hwo"}> : () -> ()
    %cst_104 = arith.constant dense<0.000000e+00> : vector<16x16x128xf32>
    %51 = tpu.matmul %48, %50, %cst_104 {dimension_numbers = #tpu.dot_dimension_numbers<[2], [0], [0, 1], [1], [0, 0, 0, 1, 1, 1], [], []>} : vector<16x16x128xf32>, vector<128x128xf32>, vector<16x16x128xf32> -> vector<16x16x128xf32>
    "tpu.trace_stop"() : () -> ()
    %c0_105 = arith.constant 0 : index
    %c0_106 = arith.constant 0 : index
    %c0_107 = arith.constant 0 : index
    %52 = vector.load %arg9[%c0_105, %c0_106, %c0_107] : memref<16x16x128xf32, #tpu.memory_space<vmem>>, vector<16x16x128xf32>
    %53 = arith.addf %52, %51 : vector<16x16x128xf32>
    %c0_108 = arith.constant 0 : index
    %c0_109 = arith.constant 0 : index
    %c0_110 = arith.constant 0 : index
    %54 = vector.load %arg9[%c0_108, %c0_109, %c0_110] : memref<16x16x128xf32, #tpu.memory_space<vmem>>, vector<16x16x128xf32>
    tpu.vector_store %arg9[%c0_108, %c0_109, %c0_110], %53 {strides = array<i32>} : memref<16x16x128xf32, #tpu.memory_space<vmem>>, vector<16x16x128xf32>,
    %c2_111 = arith.constant 2 : index
    %c0_112 = arith.constant 0 : index
    %c0_113 = arith.constant 0 : index
    %55 = vector.load %arg7[%c2_111, %c0_112, %c0_113] : memref<18x18x128xf32, #tpu.memory_space<vmem>>, vector<16x16x128xf32>
    %c2_114 = arith.constant 2 : index
    %c0_115 = arith.constant 0 : index
    %c0_116 = arith.constant 0 : index
    %c0_117 = arith.constant 0 : index
    %56 = vector.load %arg2[%c2_114, %c0_115, %c0_116, %c0_117] : memref<3x3x128x128xf32, #tpu.memory_space<vmem>>, vector<1x1x128x128xf32>
    %57 = vector.shape_cast %56 : vector<1x1x128x128xf32> to vector<128x128xf32>
    "tpu.trace_start"() <{level = 10 : i32, message = "hwc,co->hwo"}> : () -> ()
    %cst_118 = arith.constant dense<0.000000e+00> : vector<16x16x128xf32>
    %58 = tpu.matmul %55, %57, %cst_118 {dimension_numbers = #tpu.dot_dimension_numbers<[2], [0], [0, 1], [1], [0, 0, 0, 1, 1, 1], [], []>} : vector<16x16x128xf32>, vector<128x128xf32>, vector<16x16x128xf32> -> vector<16x16x128xf32>
    "tpu.trace_stop"() : () -> ()
    %c0_119 = arith.constant 0 : index
    %c0_120 = arith.constant 0 : index
    %c0_121 = arith.constant 0 : index
    %59 = vector.load %arg9[%c0_119, %c0_120, %c0_121] : memref<16x16x128xf32, #tpu.memory_space<vmem>>, vector<16x16x128xf32>
    %60 = arith.addf %59, %58 : vector<16x16x128xf32>
    %c0_122 = arith.constant 0 : index
    %c0_123 = arith.constant 0 : index
    %c0_124 = arith.constant 0 : index
    %61 = vector.load %arg9[%c0_122, %c0_123, %c0_124] : memref<16x16x128xf32, #tpu.memory_space<vmem>>, vector<16x16x128xf32>
    tpu.vector_store %arg9[%c0_122, %c0_123, %c0_124], %60 {strides = array<i32>} : memref<16x16x128xf32, #tpu.memory_space<vmem>>, vector<16x16x128xf32>,
    %c2_125 = arith.constant 2 : index
    %c1_126 = arith.constant 1 : index
    %c0_127 = arith.constant 0 : index
    %62 = vector.load %arg7[%c2_125, %c1_126, %c0_127] : memref<18x18x128xf32, #tpu.memory_space<vmem>>, vector<16x16x128xf32>
    %c2_128 = arith.constant 2 : index
    %c1_129 = arith.constant 1 : index
    %c0_130 = arith.constant 0 : index
    %c0_131 = arith.constant 0 : index
    %63 = vector.load %arg2[%c2_128, %c1_129, %c0_130, %c0_131] : memref<3x3x128x128xf32, #tpu.memory_space<vmem>>, vector<1x1x128x128xf32>
    %64 = vector.shape_cast %63 : vector<1x1x128x128xf32> to vector<128x128xf32>
    "tpu.trace_start"() <{level = 10 : i32, message = "hwc,co->hwo"}> : () -> ()
    %cst_132 = arith.constant dense<0.000000e+00> : vector<16x16x128xf32>
    %65 = tpu.matmul %62, %64, %cst_132 {dimension_numbers = #tpu.dot_dimension_numbers<[2], [0], [0, 1], [1], [0, 0, 0, 1, 1, 1], [], []>} : vector<16x16x128xf32>, vector<128x128xf32>, vector<16x16x128xf32> -> vector<16x16x128xf32>
    "tpu.trace_stop"() : () -> ()
    %c0_133 = arith.constant 0 : index
    %c0_134 = arith.constant 0 : index
    %c0_135 = arith.constant 0 : index
    %66 = vector.load %arg9[%c0_133, %c0_134, %c0_135] : memref<16x16x128xf32, #tpu.memory_space<vmem>>, vector<16x16x128xf32>
    %67 = arith.addf %66, %65 : vector<16x16x128xf32>
    %c0_136 = arith.constant 0 : index
    %c0_137 = arith.constant 0 : index
    %c0_138 = arith.constant 0 : index
    %68 = vector.load %arg9[%c0_136, %c0_137, %c0_138] : memref<16x16x128xf32, #tpu.memory_space<vmem>>, vector<16x16x128xf32>
    tpu.vector_store %arg9[%c0_136, %c0_137, %c0_138], %67 {strides = array<i32>} : memref<16x16x128xf32, #tpu.memory_space<vmem>>, vector<16x16x128xf32>,
    %c2_139 = arith.constant 2 : index
    %c2_140 = arith.constant 2 : index
    %c0_141 = arith.constant 0 : index
    %69 = vector.load %arg7[%c2_139, %c2_140, %c0_141] : memref<18x18x128xf32, #tpu.memory_space<vmem>>, vector<16x16x128xf32>
    %c2_142 = arith.constant 2 : index
    %c2_143 = arith.constant 2 : index
    %c0_144 = arith.constant 0 : index
    %c0_145 = arith.constant 0 : index
    %70 = vector.load %arg2[%c2_142, %c2_143, %c0_144, %c0_145] : memref<3x3x128x128xf32, #tpu.memory_space<vmem>>, vector<1x1x128x128xf32>
    %71 = vector.shape_cast %70 : vector<1x1x128x128xf32> to vector<128x128xf32>
    "tpu.trace_start"() <{level = 10 : i32, message = "hwc,co->hwo"}> : () -> ()
    %cst_146 = arith.constant dense<0.000000e+00> : vector<16x16x128xf32>
    %72 = tpu.matmul %69, %71, %cst_146 {dimension_numbers = #tpu.dot_dimension_numbers<[2], [0], [0, 1], [1], [0, 0, 0, 1, 1, 1], [], []>} : vector<16x16x128xf32>, vector<128x128xf32>, vector<16x16x128xf32> -> vector<16x16x128xf32>
    "tpu.trace_stop"() : () -> ()
    %c0_147 = arith.constant 0 : index
    %c0_148 = arith.constant 0 : index
    %c0_149 = arith.constant 0 : index
    %73 = vector.load %arg9[%c0_147, %c0_148, %c0_149] : memref<16x16x128xf32, #tpu.memory_space<vmem>>, vector<16x16x128xf32>
    %74 = arith.addf %73, %72 : vector<16x16x128xf32>
    %c0_150 = arith.constant 0 : index
    %c0_151 = arith.constant 0 : index
    %c0_152 = arith.constant 0 : index
    %75 = vector.load %arg9[%c0_150, %c0_151, %c0_152] : memref<16x16x128xf32, #tpu.memory_space<vmem>>, vector<16x16x128xf32>
    tpu.vector_store %arg9[%c0_150, %c0_151, %c0_152], %74 {strides = array<i32>} : memref<16x16x128xf32, #tpu.memory_space<vmem>>, vector<16x16x128xf32>,
    %c0_153 = arith.constant 0 : index
    %c0_154 = arith.constant 0 : index
    %c0_155 = arith.constant 0 : index
    %76 = vector.load %arg9[%c0_153, %c0_154, %c0_155] : memref<16x16x128xf32, #tpu.memory_space<vmem>>, vector<16x16x128xf32>
    %c0_156 = arith.constant 0 : index
    %c0_157 = arith.constant 0 : index
    %77 = vector.load %arg3[%c0_156, %c0_157] : memref<1x128xf32, #tpu.memory_space<vmem>>, vector<1x128xf32>
    %78 = vector.shape_cast %77 : vector<1x128xf32> to vector<1x1x128xf32>
    %79 = vector.broadcast %78 : vector<1x1x128xf32> to vector<16x16x128xf32>
    %80 = arith.addf %76, %79 : vector<16x16x128xf32>
    %cst_158 = arith.constant 0.000000e+00 : f32
    %81 = vector.broadcast %cst_158 : f32 to vector<16x16x128xf32>
    %82 = arith.maximumf %80, %81 : vector<16x16x128xf32>
    %c1_159 = arith.constant 1 : index
    %c1_160 = arith.constant 1 : index
    %c0_161 = arith.constant 0 : index
    %83 = vector.load %arg8[%c1_159, %c1_160, %c0_161] : memref<18x18x128xf32, #tpu.memory_space<vmem>>, vector<16x16x128xf32>
    tpu.vector_store %arg8[%c1_159, %c1_160, %c0_161], %82 {strides = array<i32>} : memref<18x18x128xf32, #tpu.memory_space<vmem>>, vector<16x16x128xf32>,
    %c0_162 = arith.constant 0 : index
    %c0_163 = arith.constant 0 : index
    %c0_164 = arith.constant 0 : index
    %84 = vector.load %arg8[%c0_162, %c0_163, %c0_164] : memref<18x18x128xf32, #tpu.memory_space<vmem>>, vector<16x16x128xf32>
    %c0_165 = arith.constant 0 : index
    %c0_166 = arith.constant 0 : index
    %c0_167 = arith.constant 0 : index
    %c0_168 = arith.constant 0 : index
    %85 = vector.load %arg4[%c0_165, %c0_166, %c0_167, %c0_168] : memref<3x3x128x128xf32, #tpu.memory_space<vmem>>, vector<1x1x128x128xf32>
    %86 = vector.shape_cast %85 : vector<1x1x128x128xf32> to vector<128x128xf32>
    "tpu.trace_start"() <{level = 10 : i32, message = "hwc,co->hwo"}> : () -> ()
    %cst_169 = arith.constant dense<0.000000e+00> : vector<16x16x128xf32>
    %87 = tpu.matmul %84, %86, %cst_169 {dimension_numbers = #tpu.dot_dimension_numbers<[2], [0], [0, 1], [1], [0, 0, 0, 1, 1, 1], [], []>} : vector<16x16x128xf32>, vector<128x128xf32>, vector<16x16x128xf32> -> vector<16x16x128xf32>
    "tpu.trace_stop"() : () -> ()
    %c0_170 = arith.constant 0 : index
    %c0_171 = arith.constant 0 : index
    %c0_172 = arith.constant 0 : index
    %88 = vector.load %arg9[%c0_170, %c0_171, %c0_172] : memref<16x16x128xf32, #tpu.memory_space<vmem>>, vector<16x16x128xf32>
    tpu.vector_store %arg9[%c0_170, %c0_171, %c0_172], %87 {strides = array<i32>} : memref<16x16x128xf32, #tpu.memory_space<vmem>>, vector<16x16x128xf32>,
    %c0_173 = arith.constant 0 : index
    %c1_174 = arith.constant 1 : index
    %c0_175 = arith.constant 0 : index
    %89 = vector.load %arg8[%c0_173, %c1_174, %c0_175] : memref<18x18x128xf32, #tpu.memory_space<vmem>>, vector<16x16x128xf32>
    %c0_176 = arith.constant 0 : index
    %c1_177 = arith.constant 1 : index
    %c0_178 = arith.constant 0 : index
    %c0_179 = arith.constant 0 : index
    %90 = vector.load %arg4[%c0_176, %c1_177, %c0_178, %c0_179] : memref<3x3x128x128xf32, #tpu.memory_space<vmem>>, vector<1x1x128x128xf32>
    %91 = vector.shape_cast %90 : vector<1x1x128x128xf32> to vector<128x128xf32>
    "tpu.trace_start"() <{level = 10 : i32, message = "hwc,co->hwo"}> : () -> ()
    %cst_180 = arith.constant dense<0.000000e+00> : vector<16x16x128xf32>
    %92 = tpu.matmul %89, %91, %cst_180 {dimension_numbers = #tpu.dot_dimension_numbers<[2], [0], [0, 1], [1], [0, 0, 0, 1, 1, 1], [], []>} : vector<16x16x128xf32>, vector<128x128xf32>, vector<16x16x128xf32> -> vector<16x16x128xf32>
    "tpu.trace_stop"() : () -> ()
    %c0_181 = arith.constant 0 : index
    %c0_182 = arith.constant 0 : index
    %c0_183 = arith.constant 0 : index
    %93 = vector.load %arg9[%c0_181, %c0_182, %c0_183] : memref<16x16x128xf32, #tpu.memory_space<vmem>>, vector<16x16x128xf32>
    %94 = arith.addf %93, %92 : vector<16x16x128xf32>
    %c0_184 = arith.constant 0 : index
    %c0_185 = arith.constant 0 : index
    %c0_186 = arith.constant 0 : index
    %95 = vector.load %arg9[%c0_184, %c0_185, %c0_186] : memref<16x16x128xf32, #tpu.memory_space<vmem>>, vector<16x16x128xf32>
    tpu.vector_store %arg9[%c0_184, %c0_185, %c0_186], %94 {strides = array<i32>} : memref<16x16x128xf32, #tpu.memory_space<vmem>>, vector<16x16x128xf32>,
    %c0_187 = arith.constant 0 : index
    %c2_188 = arith.constant 2 : index
    %c0_189 = arith.constant 0 : index
    %96 = vector.load %arg8[%c0_187, %c2_188, %c0_189] : memref<18x18x128xf32, #tpu.memory_space<vmem>>, vector<16x16x128xf32>
    %c0_190 = arith.constant 0 : index
    %c2_191 = arith.constant 2 : index
    %c0_192 = arith.constant 0 : index
    %c0_193 = arith.constant 0 : index
    %97 = vector.load %arg4[%c0_190, %c2_191, %c0_192, %c0_193] : memref<3x3x128x128xf32, #tpu.memory_space<vmem>>, vector<1x1x128x128xf32>
    %98 = vector.shape_cast %97 : vector<1x1x128x128xf32> to vector<128x128xf32>
    "tpu.trace_start"() <{level = 10 : i32, message = "hwc,co->hwo"}> : () -> ()
    %cst_194 = arith.constant dense<0.000000e+00> : vector<16x16x128xf32>
    %99 = tpu.matmul %96, %98, %cst_194 {dimension_numbers = #tpu.dot_dimension_numbers<[2], [0], [0, 1], [1], [0, 0, 0, 1, 1, 1], [], []>} : vector<16x16x128xf32>, vector<128x128xf32>, vector<16x16x128xf32> -> vector<16x16x128xf32>
    "tpu.trace_stop"() : () -> ()
    %c0_195 = arith.constant 0 : index
    %c0_196 = arith.constant 0 : index
    %c0_197 = arith.constant 0 : index
    %100 = vector.load %arg9[%c0_195, %c0_196, %c0_197] : memref<16x16x128xf32, #tpu.memory_space<vmem>>, vector<16x16x128xf32>
    %101 = arith.addf %100, %99 : vector<16x16x128xf32>
    %c0_198 = arith.constant 0 : index
    %c0_199 = arith.constant 0 : index
    %c0_200 = arith.constant 0 : index
    %102 = vector.load %arg9[%c0_198, %c0_199, %c0_200] : memref<16x16x128xf32, #tpu.memory_space<vmem>>, vector<16x16x128xf32>
    tpu.vector_store %arg9[%c0_198, %c0_199, %c0_200], %101 {strides = array<i32>} : memref<16x16x128xf32, #tpu.memory_space<vmem>>, vector<16x16x128xf32>,
    %c1_201 = arith.constant 1 : index
    %c0_202 = arith.constant 0 : index
    %c0_203 = arith.constant 0 : index
    %103 = vector.load %arg8[%c1_201, %c0_202, %c0_203] : memref<18x18x128xf32, #tpu.memory_space<vmem>>, vector<16x16x128xf32>
    %c1_204 = arith.constant 1 : index
    %c0_205 = arith.constant 0 : index
    %c0_206 = arith.constant 0 : index
    %c0_207 = arith.constant 0 : index
    %104 = vector.load %arg4[%c1_204, %c0_205, %c0_206, %c0_207] : memref<3x3x128x128xf32, #tpu.memory_space<vmem>>, vector<1x1x128x128xf32>
    %105 = vector.shape_cast %104 : vector<1x1x128x128xf32> to vector<128x128xf32>
    "tpu.trace_start"() <{level = 10 : i32, message = "hwc,co->hwo"}> : () -> ()
    %cst_208 = arith.constant dense<0.000000e+00> : vector<16x16x128xf32>
    %106 = tpu.matmul %103, %105, %cst_208 {dimension_numbers = #tpu.dot_dimension_numbers<[2], [0], [0, 1], [1], [0, 0, 0, 1, 1, 1], [], []>} : vector<16x16x128xf32>, vector<128x128xf32>, vector<16x16x128xf32> -> vector<16x16x128xf32>
    "tpu.trace_stop"() : () -> ()
    %c0_209 = arith.constant 0 : index
    %c0_210 = arith.constant 0 : index
    %c0_211 = arith.constant 0 : index
    %107 = vector.load %arg9[%c0_209, %c0_210, %c0_211] : memref<16x16x128xf32, #tpu.memory_space<vmem>>, vector<16x16x128xf32>
    %108 = arith.addf %107, %106 : vector<16x16x128xf32>
    %c0_212 = arith.constant 0 : index
    %c0_213 = arith.constant 0 : index
    %c0_214 = arith.constant 0 : index
    %109 = vector.load %arg9[%c0_212, %c0_213, %c0_214] : memref<16x16x128xf32, #tpu.memory_space<vmem>>, vector<16x16x128xf32>
    tpu.vector_store %arg9[%c0_212, %c0_213, %c0_214], %108 {strides = array<i32>} : memref<16x16x128xf32, #tpu.memory_space<vmem>>, vector<16x16x128xf32>,
    %c1_215 = arith.constant 1 : index
    %c1_216 = arith.constant 1 : index
    %c0_217 = arith.constant 0 : index
    %110 = vector.load %arg8[%c1_215, %c1_216, %c0_217] : memref<18x18x128xf32, #tpu.memory_space<vmem>>, vector<16x16x128xf32>
    %c1_218 = arith.constant 1 : index
    %c1_219 = arith.constant 1 : index
    %c0_220 = arith.constant 0 : index
    %c0_221 = arith.constant 0 : index
    %111 = vector.load %arg4[%c1_218, %c1_219, %c0_220, %c0_221] : memref<3x3x128x128xf32, #tpu.memory_space<vmem>>, vector<1x1x128x128xf32>
    %112 = vector.shape_cast %111 : vector<1x1x128x128xf32> to vector<128x128xf32>
    "tpu.trace_start"() <{level = 10 : i32, message = "hwc,co->hwo"}> : () -> ()
    %cst_222 = arith.constant dense<0.000000e+00> : vector<16x16x128xf32>
    %113 = tpu.matmul %110, %112, %cst_222 {dimension_numbers = #tpu.dot_dimension_numbers<[2], [0], [0, 1], [1], [0, 0, 0, 1, 1, 1], [], []>} : vector<16x16x128xf32>, vector<128x128xf32>, vector<16x16x128xf32> -> vector<16x16x128xf32>
    "tpu.trace_stop"() : () -> ()
    %c0_223 = arith.constant 0 : index
    %c0_224 = arith.constant 0 : index
    %c0_225 = arith.constant 0 : index
    %114 = vector.load %arg9[%c0_223, %c0_224, %c0_225] : memref<16x16x128xf32, #tpu.memory_space<vmem>>, vector<16x16x128xf32>
    %115 = arith.addf %114, %113 : vector<16x16x128xf32>
    %c0_226 = arith.constant 0 : index
    %c0_227 = arith.constant 0 : index
    %c0_228 = arith.constant 0 : index
    %116 = vector.load %arg9[%c0_226, %c0_227, %c0_228] : memref<16x16x128xf32, #tpu.memory_space<vmem>>, vector<16x16x128xf32>
    tpu.vector_store %arg9[%c0_226, %c0_227, %c0_228], %115 {strides = array<i32>} : memref<16x16x128xf32, #tpu.memory_space<vmem>>, vector<16x16x128xf32>,
    %c1_229 = arith.constant 1 : index
    %c2_230 = arith.constant 2 : index
    %c0_231 = arith.constant 0 : index
    %117 = vector.load %arg8[%c1_229, %c2_230, %c0_231] : memref<18x18x128xf32, #tpu.memory_space<vmem>>, vector<16x16x128xf32>
    %c1_232 = arith.constant 1 : index
    %c2_233 = arith.constant 2 : index
    %c0_234 = arith.constant 0 : index
    %c0_235 = arith.constant 0 : index
    %118 = vector.load %arg4[%c1_232, %c2_233, %c0_234, %c0_235] : memref<3x3x128x128xf32, #tpu.memory_space<vmem>>, vector<1x1x128x128xf32>
    %119 = vector.shape_cast %118 : vector<1x1x128x128xf32> to vector<128x128xf32>
    "tpu.trace_start"() <{level = 10 : i32, message = "hwc,co->hwo"}> : () -> ()
    %cst_236 = arith.constant dense<0.000000e+00> : vector<16x16x128xf32>
    %120 = tpu.matmul %117, %119, %cst_236 {dimension_numbers = #tpu.dot_dimension_numbers<[2], [0], [0, 1], [1], [0, 0, 0, 1, 1, 1], [], []>} : vector<16x16x128xf32>, vector<128x128xf32>, vector<16x16x128xf32> -> vector<16x16x128xf32>
    "tpu.trace_stop"() : () -> ()
    %c0_237 = arith.constant 0 : index
    %c0_238 = arith.constant 0 : index
    %c0_239 = arith.constant 0 : index
    %121 = vector.load %arg9[%c0_237, %c0_238, %c0_239] : memref<16x16x128xf32, #tpu.memory_space<vmem>>, vector<16x16x128xf32>
    %122 = arith.addf %121, %120 : vector<16x16x128xf32>
    %c0_240 = arith.constant 0 : index
    %c0_241 = arith.constant 0 : index
    %c0_242 = arith.constant 0 : index
    %123 = vector.load %arg9[%c0_240, %c0_241, %c0_242] : memref<16x16x128xf32, #tpu.memory_space<vmem>>, vector<16x16x128xf32>
    tpu.vector_store %arg9[%c0_240, %c0_241, %c0_242], %122 {strides = array<i32>} : memref<16x16x128xf32, #tpu.memory_space<vmem>>, vector<16x16x128xf32>,
    %c2_243 = arith.constant 2 : index
    %c0_244 = arith.constant 0 : index
    %c0_245 = arith.constant 0 : index
    %124 = vector.load %arg8[%c2_243, %c0_244, %c0_245] : memref<18x18x128xf32, #tpu.memory_space<vmem>>, vector<16x16x128xf32>
    %c2_246 = arith.constant 2 : index
    %c0_247 = arith.constant 0 : index
    %c0_248 = arith.constant 0 : index
    %c0_249 = arith.constant 0 : index
    %125 = vector.load %arg4[%c2_246, %c0_247, %c0_248, %c0_249] : memref<3x3x128x128xf32, #tpu.memory_space<vmem>>, vector<1x1x128x128xf32>
    %126 = vector.shape_cast %125 : vector<1x1x128x128xf32> to vector<128x128xf32>
    "tpu.trace_start"() <{level = 10 : i32, message = "hwc,co->hwo"}> : () -> ()
    %cst_250 = arith.constant dense<0.000000e+00> : vector<16x16x128xf32>
    %127 = tpu.matmul %124, %126, %cst_250 {dimension_numbers = #tpu.dot_dimension_numbers<[2], [0], [0, 1], [1], [0, 0, 0, 1, 1, 1], [], []>} : vector<16x16x128xf32>, vector<128x128xf32>, vector<16x16x128xf32> -> vector<16x16x128xf32>
    "tpu.trace_stop"() : () -> ()
    %c0_251 = arith.constant 0 : index
    %c0_252 = arith.constant 0 : index
    %c0_253 = arith.constant 0 : index
    %128 = vector.load %arg9[%c0_251, %c0_252, %c0_253] : memref<16x16x128xf32, #tpu.memory_space<vmem>>, vector<16x16x128xf32>
    %129 = arith.addf %128, %127 : vector<16x16x128xf32>
    %c0_254 = arith.constant 0 : index
    %c0_255 = arith.constant 0 : index
    %c0_256 = arith.constant 0 : index
    %130 = vector.load %arg9[%c0_254, %c0_255, %c0_256] : memref<16x16x128xf32, #tpu.memory_space<vmem>>, vector<16x16x128xf32>
    tpu.vector_store %arg9[%c0_254, %c0_255, %c0_256], %129 {strides = array<i32>} : memref<16x16x128xf32, #tpu.memory_space<vmem>>, vector<16x16x128xf32>,
    %c2_257 = arith.constant 2 : index
    %c1_258 = arith.constant 1 : index
    %c0_259 = arith.constant 0 : index
    %131 = vector.load %arg8[%c2_257, %c1_258, %c0_259] : memref<18x18x128xf32, #tpu.memory_space<vmem>>, vector<16x16x128xf32>
    %c2_260 = arith.constant 2 : index
    %c1_261 = arith.constant 1 : index
    %c0_262 = arith.constant 0 : index
    %c0_263 = arith.constant 0 : index
    %132 = vector.load %arg4[%c2_260, %c1_261, %c0_262, %c0_263] : memref<3x3x128x128xf32, #tpu.memory_space<vmem>>, vector<1x1x128x128xf32>
    %133 = vector.shape_cast %132 : vector<1x1x128x128xf32> to vector<128x128xf32>
    "tpu.trace_start"() <{level = 10 : i32, message = "hwc,co->hwo"}> : () -> ()
    %cst_264 = arith.constant dense<0.000000e+00> : vector<16x16x128xf32>
    %134 = tpu.matmul %131, %133, %cst_264 {dimension_numbers = #tpu.dot_dimension_numbers<[2], [0], [0, 1], [1], [0, 0, 0, 1, 1, 1], [], []>} : vector<16x16x128xf32>, vector<128x128xf32>, vector<16x16x128xf32> -> vector<16x16x128xf32>
    "tpu.trace_stop"() : () -> ()
    %c0_265 = arith.constant 0 : index
    %c0_266 = arith.constant 0 : index
    %c0_267 = arith.constant 0 : index
    %135 = vector.load %arg9[%c0_265, %c0_266, %c0_267] : memref<16x16x128xf32, #tpu.memory_space<vmem>>, vector<16x16x128xf32>
    %136 = arith.addf %135, %134 : vector<16x16x128xf32>
    %c0_268 = arith.constant 0 : index
    %c0_269 = arith.constant 0 : index
    %c0_270 = arith.constant 0 : index
    %137 = vector.load %arg9[%c0_268, %c0_269, %c0_270] : memref<16x16x128xf32, #tpu.memory_space<vmem>>, vector<16x16x128xf32>
    tpu.vector_store %arg9[%c0_268, %c0_269, %c0_270], %136 {strides = array<i32>} : memref<16x16x128xf32, #tpu.memory_space<vmem>>, vector<16x16x128xf32>,
    %c2_271 = arith.constant 2 : index
    %c2_272 = arith.constant 2 : index
    %c0_273 = arith.constant 0 : index
    %138 = vector.load %arg8[%c2_271, %c2_272, %c0_273] : memref<18x18x128xf32, #tpu.memory_space<vmem>>, vector<16x16x128xf32>
    %c2_274 = arith.constant 2 : index
    %c2_275 = arith.constant 2 : index
    %c0_276 = arith.constant 0 : index
    %c0_277 = arith.constant 0 : index
    %139 = vector.load %arg4[%c2_274, %c2_275, %c0_276, %c0_277] : memref<3x3x128x128xf32, #tpu.memory_space<vmem>>, vector<1x1x128x128xf32>
    %140 = vector.shape_cast %139 : vector<1x1x128x128xf32> to vector<128x128xf32>
    "tpu.trace_start"() <{level = 10 : i32, message = "hwc,co->hwo"}> : () -> ()
    %cst_278 = arith.constant dense<0.000000e+00> : vector<16x16x128xf32>
    %141 = tpu.matmul %138, %140, %cst_278 {dimension_numbers = #tpu.dot_dimension_numbers<[2], [0], [0, 1], [1], [0, 0, 0, 1, 1, 1], [], []>} : vector<16x16x128xf32>, vector<128x128xf32>, vector<16x16x128xf32> -> vector<16x16x128xf32>
    "tpu.trace_stop"() : () -> ()
    %c0_279 = arith.constant 0 : index
    %c0_280 = arith.constant 0 : index
    %c0_281 = arith.constant 0 : index
    %142 = vector.load %arg9[%c0_279, %c0_280, %c0_281] : memref<16x16x128xf32, #tpu.memory_space<vmem>>, vector<16x16x128xf32>
    %143 = arith.addf %142, %141 : vector<16x16x128xf32>
    %c0_282 = arith.constant 0 : index
    %c0_283 = arith.constant 0 : index
    %c0_284 = arith.constant 0 : index
    %144 = vector.load %arg9[%c0_282, %c0_283, %c0_284] : memref<16x16x128xf32, #tpu.memory_space<vmem>>, vector<16x16x128xf32>
    tpu.vector_store %arg9[%c0_282, %c0_283, %c0_284], %143 {strides = array<i32>} : memref<16x16x128xf32, #tpu.memory_space<vmem>>, vector<16x16x128xf32>,
    %c0_285 = arith.constant 0 : index
    %c0_286 = arith.constant 0 : index
    %c0_287 = arith.constant 0 : index
    %145 = vector.load %arg9[%c0_285, %c0_286, %c0_287] : memref<16x16x128xf32, #tpu.memory_space<vmem>>, vector<16x16x128xf32>
    %c0_288 = arith.constant 0 : index
    %c0_289 = arith.constant 0 : index
    %146 = vector.load %arg5[%c0_288, %c0_289] : memref<1x128xf32, #tpu.memory_space<vmem>>, vector<1x128xf32>
    %147 = vector.shape_cast %146 : vector<1x128xf32> to vector<1x1x128xf32>
    %148 = vector.broadcast %147 : vector<1x1x128xf32> to vector<16x16x128xf32>
    %149 = arith.addf %145, %148 : vector<16x16x128xf32>
    %cst_290 = arith.constant 0.000000e+00 : f32
    %150 = vector.broadcast %cst_290 : f32 to vector<16x16x128xf32>
    %151 = arith.maximumf %149, %150 : vector<16x16x128xf32>
    %c0_291 = arith.constant 0 : index
    %c0_292 = arith.constant 0 : index
    %c0_293 = arith.constant 0 : index
    %c0_294 = arith.constant 0 : index
    %152 = vector.load %arg6[%c0_291, %c0_292, %c0_293, %c0_294] : memref<1x16x16x128xf32, #tpu.memory_space<vmem>>, vector<1x16x16x128xf32>
    %153 = vector.shape_cast %152 : vector<1x16x16x128xf32> to vector<16x16x128xf32>
    %154 = vector.shape_cast %151 : vector<16x16x128xf32> to vector<1x16x16x128xf32>
    tpu.vector_store %arg6[%c0_291, %c0_292, %c0_293, %c0_294], %154 {strides = array<i32>} : memref<1x16x16x128xf32, #tpu.memory_space<vmem>>, vector<1x16x16x128xf32>,
    return
  }
  func.func @transform_0(%arg0: i32) -> (i32, i32, i32, i32) {
    %c0_i32 = arith.constant 0 : i32
    %c0_i32_0 = arith.constant 0 : i32
    %c0_i32_1 = arith.constant 0 : i32
    %c0_i32_2 = arith.constant 0 : i32
    return %arg0, %c0_i32, %c0_i32_0, %c0_i32_1 : i32, i32, i32, i32
  }
  func.func @transform_1(%arg0: i32) -> (i32, i32, i32, i32) {
    %c0_i32 = arith.constant 0 : i32
    %c0_i32_0 = arith.constant 0 : i32
    %c0_i32_1 = arith.constant 0 : i32
    %c0_i32_2 = arith.constant 0 : i32
    %c0_i32_3 = arith.constant 0 : i32
    return %c0_i32, %c0_i32_0, %c0_i32_1, %c0_i32_2 : i32, i32, i32, i32
  }
  func.func @transform_2(%arg0: i32) -> (i32, i32) {
    %c0_i32 = arith.constant 0 : i32
    %c0_i32_0 = arith.constant 0 : i32
    %c0_i32_1 = arith.constant 0 : i32
    return %c0_i32, %c0_i32_0 : i32, i32
  }
  func.func @transform_3(%arg0: i32) -> (i32, i32, i32, i32) {
    %c0_i32 = arith.constant 0 : i32
    %c0_i32_0 = arith.constant 0 : i32
    %c0_i32_1 = arith.constant 0 : i32
    %c0_i32_2 = arith.constant 0 : i32
    %c0_i32_3 = arith.constant 0 : i32
    return %c0_i32, %c0_i32_0, %c0_i32_1, %c0_i32_2 : i32, i32, i32, i32
  }
  func.func @transform_4(%arg0: i32) -> (i32, i32) {
    %c0_i32 = arith.constant 0 : i32
    %c0_i32_0 = arith.constant 0 : i32
    %c0_i32_1 = arith.constant 0 : i32
    return %c0_i32, %c0_i32_0 : i32, i32
  }
  func.func @transform_5(%arg0: i32) -> (i32, i32, i32, i32) {
    %c0_i32 = arith.constant 0 : i32
    %c0_i32_0 = arith.constant 0 : i32
    %c0_i32_1 = arith.constant 0 : i32
    %c0_i32_2 = arith.constant 0 : i32
    return %arg0, %c0_i32, %c0_i32_0, %c0_i32_1 : i32, i32, i32, i32
  }
}

</mosaic_0001>

<llo_original>
// kernel: double_conv_pallas.1
$region0: #{double_conv_pallas.1}
  #allocation0 [shape = 'u32[]', space=smem, size = 0x4, offset = 0x4, fixed_abs, tag = 'smem constant byte address 0x4 - core index']
  #allocation1 [shape = 'u32[144,128]{1,0:T(1,128)}', space=vmem, size = 0x12000, scoped, tag = 'internal scratch']
  #allocation2 [shape = 'f32[18,18,128]{2,1,0:T(8,128)}', space=vmem, size = 0x36000, scoped, tag = 'scratch operand']
  #allocation3 [shape = 'f32[18,18,128]{2,1,0:T(8,128)}', space=vmem, size = 0x36000, scoped, tag = 'scratch operand']
  #allocation4 [shape = 'f32[16,16,128]{2,1,0:T(8,128)}', space=vmem, size = 0x20000, scoped, tag = 'scratch operand']
  %s0 = inlined_call_operand.vmem [shape: f32[2,16,16,128], index: 0, kind: input, shape index: {}]
  %s1 = inlined_call_operand.vmem [shape: f32[3,3,128,128], index: 1, kind: input, shape index: {}]
  %s2 = inlined_call_operand.vmem [shape: f32[1,128], index: 2, kind: input, shape index: {}]
  %s3 = inlined_call_operand.hbm [shape: f32[3,3,128,128], index: 3, kind: input, shape index: {}]
  %s4 = inlined_call_operand.vmem [shape: f32[1,128], index: 4, kind: input, shape index: {}]
  %s5 = inlined_call_operand.vmem [shape: f32[2,16,16,128], index: 5, kind: output, shape index: {}]
  %s6 = sld [smem:[#allocation0]]
  $region57: #{double_conv_pallas.1} parent=0
    _
  %s8 = ssub.s32 1, %s6
  %s9 = scalar_select 0, %s8, %s6
  $region1: #{double_conv_pallas.1} parent=0
    #allocation5 [shape = 'u8[589824]{0}', space=vmem, size = 0x90000, scoped, tag = 'input window, operand 3, single buffered']
    #allocation6 [shape = 's32[2]{0}', space=sflag, size = 0x8, scoped, tag = 'scoped memory for double_conv_pallas.1']
    %10 = vsyncpa [#allocation6], 0
    loop: start=0, step=1, limit=4
    $region2: #{double_conv_pallas.1} parent=1 // loop_pre_header
      _
    $region3: #{double_conv_pallas.1} parent=1 // loop_header
      %s12 = sphi 0, %s16
      %p13 = scmp.ge.s32.totalorder %s12, 4
      %s22 = sphi 0, %s24
      %s25 = sphi 0, %s22
      %s26 = sphi 0, %s25
      %s42 = sphi 0, %s26
      %s46 = sphi 0, %s46
      %s48 = sphi 0, %s46
      %s49 = sphi 0, %s48
      %s63 = sphi 0, %s49
      %s67 = sphi 0, %s67
      %s69 = sphi 0, %s67
      %s70 = sphi 0, %s69
      %s84 = sphi 0, %s70
      %s88 = sphi 0, %s88
      %s90 = sphi 0, %s88
      %s91 = sphi 0, %s90
      %s105 = sphi 0, %s91
      %s109 = sphi 0, %s109
      %s111 = sphi 0, %s109
      %s112 = sphi 0, %s111
      %s126 = sphi 0, %s112
      %s132 = sphi 0, %s134
      %s135 = sphi 0, %s132
      %s136 = sphi 0, %s135
      %s152 = sphi 0, %s136
    $region4: #{double_conv_pallas.1} parent=1 // loop_header_branch
      %15 = sbr.rel (%p13) target = $region8
    $region5: #{double_conv_pallas.1} parent=1 // loop_body
      %s17 = ssub.s32 %s12, 1
      %s18 = ssub.s32 %s12, 2
      %s19 = sadd.s32 %s12, 1
      %s20 = ssub.s32 %s12, %s19
      %p21 = scmp.eq.s32.totalorder %s20, 0
      %s23 = sadd.s32 %s22, 1
      %s24 = scalar_select %p21, %s22, %s23
      %p27 = pneg %p21
      %p28 = scmp.eq.s32.totalorder %s12, 1
      %p29 = por %p27, %p28
      %p30 = scmp.ne.s32.totalorder %s22, %s25
      %p31 = scmp.eq.s32.totalorder %s12, 0
      %p32 = por %p30, %p31
      %p33 = scmp.ne.s32.totalorder %s22, %s25
      %p34 = scmp.eq.s32.totalorder %s17, 1
      %p35 = por %p33, %p34
      %p36 = scmp.ne.s32.totalorder %s25, %s26
      %p37 = scmp.eq.s32.totalorder %s17, 0
      %p38 = por %p36, %p37
      %p39 = scmp.ne.s32.totalorder %s25, %s26
      %p40 = scmp.eq.s32.totalorder %s18, 1
      %p41 = por %p39, %p40
      %p43 = scmp.ne.s32.totalorder %s26, %s42
      %p44 = scmp.eq.s32.totalorder %s18, 0
      %p45 = por %p43, %p44
      %s47 = sadd.s32 %s46, 1
      %p50 = scmp.eq.s32.totalorder %s12, 1
      %p51 = scmp.ne.s32.totalorder %s46, %s48
      %p52 = scmp.eq.s32.totalorder %s12, 0
      %p53 = por %p51, %p52
      %p54 = scmp.ne.s32.totalorder %s46, %s48
      %p55 = scmp.eq.s32.totalorder %s17, 1
      %p56 = por %p54, %p55
      %p57 = scmp.ne.s32.totalorder %s48, %s49
      %p58 = scmp.eq.s32.totalorder %s17, 0
      %p59 = por %p57, %p58
      %p60 = scmp.ne.s32.totalorder %s48, %s49
      %p61 = scmp.eq.s32.totalorder %s18, 1
      %p62 = por %p60, %p61
      %p64 = scmp.ne.s32.totalorder %s49, %s63
      %p65 = scmp.eq.s32.totalorder %s18, 0
      %p66 = por %p64, %p65
      %s68 = sadd.s32 %s67, 1
      %p71 = scmp.eq.s32.totalorder %s12, 1
      %p72 = scmp.ne.s32.totalorder %s67, %s69
      %p73 = scmp.eq.s32.totalorder %s12, 0
      %p74 = por %p72, %p73
      %p75 = scmp.ne.s32.totalorder %s67, %s69
      %p76 = scmp.eq.s32.totalorder %s17, 1
      %p77 = por %p75, %p76
      %p78 = scmp.ne.s32.totalorder %s69, %s70
      %p79 = scmp.eq.s32.totalorder %s17, 0
      %p80 = por %p78, %p79
      %p81 = scmp.ne.s32.totalorder %s69, %s70
      %p82 = scmp.eq.s32.totalorder %s18, 1
      %p83 = por %p81, %p82
      %p85 = scmp.ne.s32.totalorder %s70, %s84
      %p86 = scmp.eq.s32.totalorder %s18, 0
      %p87 = por %p85, %p86
      %s89 = sadd.s32 %s88, 1
      %p92 = scmp.eq.s32.totalorder %s12, 1
      %p93 = scmp.ne.s32.totalorder %s88, %s90
      %p94 = scmp.eq.s32.totalorder %s12, 0
      %p95 = por %p93, %p94
      %p96 = scmp.ne.s32.totalorder %s88, %s90
      %p97 = scmp.eq.s32.totalorder %s17, 1
      %p98 = por %p96, %p97
      %p99 = scmp.ne.s32.totalorder %s90, %s91
      %p100 = scmp.eq.s32.totalorder %s17, 0
      %p101 = por %p99, %p100
      %p102 = scmp.ne.s32.totalorder %s90, %s91
      %p103 = scmp.eq.s32.totalorder %s18, 1
      %p104 = por %p102, %p103
      %p106 = scmp.ne.s32.totalorder %s91, %s105
      %p107 = scmp.eq.s32.totalorder %s18, 0
      %p108 = por %p106, %p107
      %s110 = sadd.s32 %s109, 1
      %p113 = scmp.eq.s32.totalorder %s12, 1
      %p114 = scmp.ne.s32.totalorder %s109, %s111
      %p115 = scmp.eq.s32.totalorder %s12, 0
      %p116 = por %p114, %p115
      %p117 = scmp.ne.s32.totalorder %s109, %s111
      %p118 = scmp.eq.s32.totalorder %s17, 1
      %p119 = por %p117, %p118
      %p120 = scmp.ne.s32.totalorder %s111, %s112
      %p121 = scmp.eq.s32.totalorder %s17, 0
      %p122 = por %p120, %p121
      %p123 = scmp.ne.s32.totalorder %s111, %s112
      %p124 = scmp.eq.s32.totalorder %s18, 1
      %p125 = por %p123, %p124
      %p127 = scmp.ne.s32.totalorder %s112, %s126
      %p128 = scmp.eq.s32.totalorder %s18, 0
      %p129 = por %p127, %p128
      %s130 = ssub.s32 %s12, %s19
      %p131 = scmp.eq.s32.totalorder %s130, 0
      %s133 = sadd.s32 %s132, 1
      %s134 = scalar_select %p131, %s132, %s133
      %p137 = pneg %p131
      %p138 = scmp.eq.s32.totalorder %s12, 1
      %p139 = por %p137, %p138
      %p140 = scmp.ne.s32.totalorder %s132, %s135
      %p141 = scmp.eq.s32.totalorder %s12, 0
      %p142 = por %p140, %p141
      %p143 = scmp.ne.s32.totalorder %s132, %s135
      %p144 = scmp.eq.s32.totalorder %s17, 1
      %p145 = por %p143, %p144
      %p146 = scmp.ne.s32.totalorder %s135, %s136
      %p147 = scmp.eq.s32.totalorder %s17, 0
      %p148 = por %p146, %p147
      %p149 = scmp.ne.s32.totalorder %s135, %s136
      %p150 = scmp.eq.s32.totalorder %s18, 1
      %p151 = por %p149, %p150
      %p153 = scmp.ne.s32.totalorder %s136, %s152
      %p154 = scmp.eq.s32.totalorder %s18, 0
      %p155 = por %p153, %p154
      %p156 = scmp.le.s32.totalorder 1, %s12
      %p157 = scmp.lt.s32.totalorder %s12, 3
      %p158 = pnand %p156, %p157
      %p159 = pneg %p158
      // Predicated region
      $region9: #{double_conv_pallas.1} parent=5 // pred_check
        _
      $region10: #{double_conv_pallas.1} parent=5 // pred_check_branch
        %161 = sbr.rel (%p158) target = $region12
      $region11: #{double_conv_pallas.1} parent=5 // pred_region
        %s162 = ssub.s32 %s12, 1
        // Predicated region
        $region13: #{double_conv_pallas.1} parent=11 // pred_check
          %p163 = pneg %p59
        $region14: #{double_conv_pallas.1} parent=11 // pred_check_branch
          %165 = sbr.rel (%p163) target = $region16
        $region15: #{double_conv_pallas.1} parent=11 // pred_region
          _
        $region16: #{double_conv_pallas.1} parent=11 // pred_fallthru
          _
        // Predicated region
        $region17: #{double_conv_pallas.1} parent=11 // pred_check
          %p166 = pneg %p80
        $region18: #{double_conv_pallas.1} parent=11 // pred_check_branch
          %168 = sbr.rel (%p166) target = $region20
        $region19: #{double_conv_pallas.1} parent=11 // pred_region
          _
        $region20: #{double_conv_pallas.1} parent=11 // pred_fallthru
          _
        // Predicated region
        $region21: #{double_conv_pallas.1} parent=11 // pred_check
          %p169 = pneg %p101
        $region22: #{double_conv_pallas.1} parent=11 // pred_check_branch
          %171 = sbr.rel (%p169) target = $region24
        $region23: #{double_conv_pallas.1} parent=11 // pred_region
          %s173 = ssub.s32 18432, 18432
          %174 = vsyncadd [#allocation6], %s173
          %s175 = sshll.u32 [#allocation5], 4
          %s176 = int_to_ptr.vmem [resolvable:$true] %s175
          %181 = dma.hbm_to_vmem [thread:$0]  %s3, 18432, %s176, [#allocation6], 128, 128, 8
        $region24: #{double_conv_pallas.1} parent=11 // pred_fallthru
          _
        // Predicated region
        $region25: #{double_conv_pallas.1} parent=11 // pred_check
          %p182 = pneg %p122
        $region26: #{double_conv_pallas.1} parent=11 // pred_check_branch
          %184 = sbr.rel (%p182) target = $region28
        $region27: #{double_conv_pallas.1} parent=11 // pred_region
          _
        $region28: #{double_conv_pallas.1} parent=11 // pred_fallthru
          _
      $region12: #{double_conv_pallas.1} parent=5 // pred_fallthru
        _
      %p185 = scmp.lt.s32.totalorder %s12, 2
      // Predicated region
      $region29: #{double_conv_pallas.1} parent=5 // pred_check
        %p186 = pneg %p185
      $region30: #{double_conv_pallas.1} parent=5 // pred_check_branch
        %188 = sbr.rel (%p186) target = $region32
      $region31: #{double_conv_pallas.1} parent=5 // pred_region
        // Predicated region
        $region33: #{double_conv_pallas.1} parent=31 // pred_check
          %p189 = pneg %p32
        $region34: #{double_conv_pallas.1} parent=31 // pred_check_branch
          %191 = sbr.rel (%p189) target = $region36
        $region35: #{double_conv_pallas.1} parent=31 // pred_region
          %p192 = scmp.lt.s32.totalorder %s12, 1
          %s193 = scalar_select %p192, %s12, 1
          %s194 = smul.addr %s193, 32
          %s195 = smul.addr %s194, 8
          %s196 = scalar_lea.vmem %s0, %s195
        $region36: #{double_conv_pallas.1} parent=31 // pred_fallthru
          _
      $region32: #{double_conv_pallas.1} parent=5 // pred_fallthru
        _
      %p197 = scmp.le.s32.totalorder 1, %s12
      %p198 = scmp.lt.s32.totalorder %s12, 3
      %p199 = pnand %p197, %p198
      %p200 = pneg %p199
      // Predicated region
      $region37: #{double_conv_pallas.1} parent=5 // pred_check
        _
      $region38: #{double_conv_pallas.1} parent=5 // pred_check_branch
        %202 = sbr.rel (%p199) target = $region40
      $region39: #{double_conv_pallas.1} parent=5 // pred_region
        %s203 = ssub.s32 %s12, 1
        // Predicated region
        $region41: #{double_conv_pallas.1} parent=39 // pred_check
          %p204 = pneg %p101
        $region42: #{double_conv_pallas.1} parent=39 // pred_check_branch
          %206 = sbr.rel (%p204) target = $region44
        $region43: #{double_conv_pallas.1} parent=39 // pred_region
          %207 = dma.done [#allocation6], 18432
        $region44: #{double_conv_pallas.1} parent=39 // pred_fallthru
          _
        %p208 = scmp.lt.s32.totalorder %s17, 1
        %s209 = scalar_select %p208, %s17, 1
        %s210 = smul.addr %s209, 32
        %s211 = smul.addr %s210, 8
        %s212 = scalar_lea.vmem %s0, %s211
        %p213 = pneg %p38
        %p214 = pneg %p35
        %p215 = pneg %p59
        %p216 = pneg %p56
        %p217 = pneg %p80
        %p218 = pneg %p77
        %p219 = pneg %p101
        %p220 = pneg %p98
        %p221 = pneg %p122
        %p222 = pneg %p119
        %p223 = pneg %p148
        %p224 = pneg %p145
        %p225 = scmp.lt.s32.totalorder %s17, 1
        %s226 = scalar_select %p225, %s17, 1
        %s227 = smul.addr %s226, 32
        %s228 = smul.addr %s227, 8
        %s229 = scalar_lea.vmem %s5, %s228
        %p230 = scmp.lt.s32.totalorder %s17, 1
        %s231 = scalar_select %p230, %s17, 1
        %s232 = smul.addr %s231, 32
        %s233 = smul.addr %s232, 8
        %s234 = scalar_lea.vmem %s0, %s233
        %p235 = scmp.lt.s32.totalorder %s17, 1
        %s236 = scalar_select %p235, %s17, 1
        %s237 = smul.addr %s236, 32
        %s238 = smul.addr %s237, 8
        %s239 = scalar_lea.vmem %s5, %s238
        %240 = vst [vmem:[#allocation2] sm:$0xff] 0.0
        %241 = vst [vmem:[#allocation2 + $0x8] sm:$0xff] 0.0
        %242 = vst [vmem:[#allocation2 + $0x10] sm:$0x3] 0.0
        %s243 = scalar_lea.vmem [#allocation2], 408
        %244 = vst [vmem:[%s243] sm:$0xff] 0.0
        %245 = vst [vmem:[%s243 + $0x8] sm:$0xff] 0.0
        %246 = vst [vmem:[%s243 + $0x10] sm:$0x3] 0.0
        %247 = vst [vmem:[#allocation2] sm:$0x1] 0.0
        %248 = vst [vmem:[#allocation2 + $0x18] sm:$0x1] 0.0
        %249 = vst [vmem:[#allocation2 + $0x30] sm:$0x1] 0.0
        %250 = vst [vmem:[#allocation2 + $0x48] sm:$0x1] 0.0
        %251 = vst [vmem:[#allocation2 + $0x60] sm:$0x1] 0.0
        %252 = vst [vmem:[#allocation2 + $0x78] sm:$0x1] 0.0
        %253 = vst [vmem:[#allocation2 + $0x90] sm:$0x1] 0.0
        %254 = vst [vmem:[#allocation2 + $0xa8] sm:$0x1] 0.0
        %255 = vst [vmem:[#allocation2 + $0xc0] sm:$0x1] 0.0
        %256 = vst [vmem:[#allocation2 + $0xd8] sm:$0x1] 0.0
        %257 = vst [vmem:[#allocation2 + $0xf0] sm:$0x1] 0.0
        %258 = vst [vmem:[#allocation2 + $0x108] sm:$0x1] 0.0
        %259 = vst [vmem:[#allocation2 + $0x120] sm:$0x1] 0.0
        %260 = vst [vmem:[#allocation2 + $0x138] sm:$0x1] 0.0
        %261 = vst [vmem:[#allocation2 + $0x150] sm:$0x1] 0.0
        %262 = vst [vmem:[#allocation2 + $0x168] sm:$0x1] 0.0
        %263 = vst [vmem:[#allocation2 + $0x180] sm:$0x1] 0.0
        %264 = vst [vmem:[#allocation2 + $0x198] sm:$0x1] 0.0
        %265 = vst [vmem:[#allocation2 + $0x11] sm:$0x1] 0.0
        %266 = vst [vmem:[#allocation2 + $0x29] sm:$0x1] 0.0
        %267 = vst [vmem:[#allocation2 + $0x41] sm:$0x1] 0.0
        %268 = vst [vmem:[#allocation2 + $0x59] sm:$0x1] 0.0
        %269 = vst [vmem:[#allocation2 + $0x71] sm:$0x1] 0.0
        %270 = vst [vmem:[#allocation2 + $0x89] sm:$0x1] 0.0
        %271 = vst [vmem:[#allocation2 + $0xa1] sm:$0x1] 0.0
        %272 = vst [vmem:[#allocation2 + $0xb9] sm:$0x1] 0.0
        %273 = vst [vmem:[#allocation2 + $0xd1] sm:$0x1] 0.0
        %274 = vst [vmem:[#allocation2 + $0xe9] sm:$0x1] 0.0
        %275 = vst [vmem:[#allocation2 + $0x101] sm:$0x1] 0.0
        %276 = vst [vmem:[#allocation2 + $0x119] sm:$0x1] 0.0
        %277 = vst [vmem:[#allocation2 + $0x131] sm:$0x1] 0.0
        %278 = vst [vmem:[#allocation2 + $0x149] sm:$0x1] 0.0
        %279 = vst [vmem:[#allocation2 + $0x161] sm:$0x1] 0.0
        %280 = vst [vmem:[#allocation2 + $0x179] sm:$0x1] 0.0
        %281 = vst [vmem:[#allocation2 + $0x191] sm:$0x1] 0.0
        %282 = vst [vmem:[#allocation2 + $0x1a9] sm:$0x1] 0.0
        %283 = vst [vmem:[#allocation3] sm:$0xff] 0.0
        %284 = vst [vmem:[#allocation3 + $0x8] sm:$0xff] 0.0
        %285 = vst [vmem:[#allocation3 + $0x10] sm:$0x3] 0.0
        %s286 = scalar_lea.vmem [#allocation3], 408
        %287 = vst [vmem:[%s286] sm:$0xff] 0.0
        %288 = vst [vmem:[%s286 + $0x8] sm:$0xff] 0.0
        %289 = vst [vmem:[%s286 + $0x10] sm:$0x3] 0.0
        %290 = vst [vmem:[#allocation3] sm:$0x1] 0.0
        %291 = vst [vmem:[#allocation3 + $0x18] sm:$0x1] 0.0
        %292 = vst [vmem:[#allocation3 + $0x30] sm:$0x1] 0.0
        %293 = vst [vmem:[#allocation3 + $0x48] sm:$0x1] 0.0
        %294 = vst [vmem:[#allocation3 + $0x60] sm:$0x1] 0.0
        %295 = vst [vmem:[#allocation3 + $0x78] sm:$0x1] 0.0
        %296 = vst [vmem:[#allocation3 + $0x90] sm:$0x1] 0.0
        %297 = vst [vmem:[#allocation3 + $0xa8] sm:$0x1] 0.0
        %298 = vst [vmem:[#allocation3 + $0xc0] sm:$0x1] 0.0
        %299 = vst [vmem:[#allocation3 + $0xd8] sm:$0x1] 0.0
        %300 = vst [vmem:[#allocation3 + $0xf0] sm:$0x1] 0.0
        %301 = vst [vmem:[#allocation3 + $0x108] sm:$0x1] 0.0
        %302 = vst [vmem:[#allocation3 + $0x120] sm:$0x1] 0.0
        %303 = vst [vmem:[#allocation3 + $0x138] sm:$0x1] 0.0
        %304 = vst [vmem:[#allocation3 + $0x150] sm:$0x1] 0.0
        %305 = vst [vmem:[#allocation3 + $0x168] sm:$0x1] 0.0
        %306 = vst [vmem:[#allocation3 + $0x180] sm:$0x1] 0.0
        %307 = vst [vmem:[#allocation3 + $0x198] sm:$0x1] 0.0
        %308 = vst [vmem:[#allocation3 + $0x11] sm:$0x1] 0.0
        %309 = vst [vmem:[#allocation3 + $0x29] sm:$0x1] 0.0
        %310 = vst [vmem:[#allocation3 + $0x41] sm:$0x1] 0.0
        %311 = vst [vmem:[#allocation3 + $0x59] sm:$0x1] 0.0
        %312 = vst [vmem:[#allocation3 + $0x71] sm:$0x1] 0.0
        %313 = vst [vmem:[#allocation3 + $0x89] sm:$0x1] 0.0
        %314 = vst [vmem:[#allocation3 + $0xa1] sm:$0x1] 0.0
        %315 = vst [vmem:[#allocation3 + $0xb9] sm:$0x1] 0.0
        %316 = vst [vmem:[#allocation3 + $0xd1] sm:$0x1] 0.0
        %317 = vst [vmem:[#allocation3 + $0xe9] sm:$0x1] 0.0
        %318 = vst [vmem:[#allocation3 + $0x101] sm:$0x1] 0.0
        %319 = vst [vmem:[#allocation3 + $0x119] sm:$0x1] 0.0
        %320 = vst [vmem:[#allocation3 + $0x131] sm:$0x1] 0.0
        %321 = vst [vmem:[#allocation3 + $0x149] sm:$0x1] 0.0
        %322 = vst [vmem:[#allocation3 + $0x161] sm:$0x1] 0.0
        %323 = vst [vmem:[#allocation3 + $0x179] sm:$0x1] 0.0
        %324 = vst [vmem:[#allocation3 + $0x191] sm:$0x1] 0.0
        %325 = vst [vmem:[#allocation3 + $0x1a9] sm:$0x1] 0.0
        %v326 = vld [vmem:[%s234] sm:$0xff]
        %v327 = vld [vmem:[%s234 + $0x8] sm:$0xff]
        %v328 = vld [vmem:[%s234 + $0x10] sm:$0xff]
        %v329 = vld [vmem:[%s234 + $0x18] sm:$0xff]
        %v330 = vld [vmem:[%s234 + $0x20] sm:$0xff]
        %v331 = vld [vmem:[%s234 + $0x28] sm:$0xff]
        %v332 = vld [vmem:[%s234 + $0x30] sm:$0xff]
        %v333 = vld [vmem:[%s234 + $0x38] sm:$0xff]
        %v334 = vld [vmem:[%s234 + $0x40] sm:$0xff]
        %v335 = vld [vmem:[%s234 + $0x48] sm:$0xff]
        %v336 = vld [vmem:[%s234 + $0x50] sm:$0xff]
        %v337 = vld [vmem:[%s234 + $0x58] sm:$0xff]
        %v338 = vld [vmem:[%s234 + $0x60] sm:$0xff]
        %v339 = vld [vmem:[%s234 + $0x68] sm:$0xff]
        %v340 = vld [vmem:[%s234 + $0x70] sm:$0xff]
        %v341 = vld [vmem:[%s234 + $0x78] sm:$0xff]
        %v342 = vld [vmem:[%s234 + $0x80] sm:$0xff]
        %v343 = vld [vmem:[%s234 + $0x88] sm:$0xff]
        %v344 = vld [vmem:[%s234 + $0x90] sm:$0xff]
        %v345 = vld [vmem:[%s234 + $0x98] sm:$0xff]
        %v346 = vld [vmem:[%s234 + $0xa0] sm:$0xff]
        %v347 = vld [vmem:[%s234 + $0xa8] sm:$0xff]
        %v348 = vld [vmem:[%s234 + $0xb0] sm:$0xff]
        %v349 = vld [vmem:[%s234 + $0xb8] sm:$0xff]
        %v350 = vld [vmem:[%s234 + $0xc0] sm:$0xff]
        %v351 = vld [vmem:[%s234 + $0xc8] sm:$0xff]
        %v352 = vld [vmem:[%s234 + $0xd0] sm:$0xff]
        %v353 = vld [vmem:[%s234 + $0xd8] sm:$0xff]
        %v354 = vld [vmem:[%s234 + $0xe0] sm:$0xff]
        %v355 = vld [vmem:[%s234 + $0xe8] sm:$0xff]
        %v356 = vld [vmem:[%s234 + $0xf0] sm:$0xff]
        %v357 = vld [vmem:[%s234 + $0xf8] sm:$0xff]
        %s358 = scalar_lea.vmem [#allocation2], 24
        %359 = vst [vmem:[%s358 + $0x1] sm:$0xff] %v326
        %360 = vst [vmem:[%s358 + $0x9] sm:$0xff] %v327
        %361 = vst [vmem:[%s358 + $0x19] sm:$0xff] %v328
        %362 = vst [vmem:[%s358 + $0x21] sm:$0xff] %v329
        %363 = vst [vmem:[%s358 + $0x31] sm:$0xff] %v330
        %364 = vst [vmem:[%s358 + $0x39] sm:$0xff] %v331
        %365 = vst [vmem:[%s358 + $0x49] sm:$0xff] %v332
        %366 = vst [vmem:[%s358 + $0x51] sm:$0xff] %v333
        %367 = vst [vmem:[%s358 + $0x61] sm:$0xff] %v334
        %368 = vst [vmem:[%s358 + $0x69] sm:$0xff] %v335
        %369 = vst [vmem:[%s358 + $0x79] sm:$0xff] %v336
        %370 = vst [vmem:[%s358 + $0x81] sm:$0xff] %v337
        %371 = vst [vmem:[%s358 + $0x91] sm:$0xff] %v338
        %372 = vst [vmem:[%s358 + $0x99] sm:$0xff] %v339
        %373 = vst [vmem:[%s358 + $0xa9] sm:$0xff] %v340
        %374 = vst [vmem:[%s358 + $0xb1] sm:$0xff] %v341
        %375 = vst [vmem:[%s358 + $0xc1] sm:$0xff] %v342
        %376 = vst [vmem:[%s358 + $0xc9] sm:$0xff] %v343
        %377 = vst [vmem:[%s358 + $0xd9] sm:$0xff] %v344
        %378 = vst [vmem:[%s358 + $0xe1] sm:$0xff] %v345
        %379 = vst [vmem:[%s358 + $0xf1] sm:$0xff] %v346
        %380 = vst [vmem:[%s358 + $0xf9] sm:$0xff] %v347
        %381 = vst [vmem:[%s358 + $0x109] sm:$0xff] %v348
        %382 = vst [vmem:[%s358 + $0x111] sm:$0xff] %v349
        %383 = vst [vmem:[%s358 + $0x121] sm:$0xff] %v350
        %384 = vst [vmem:[%s358 + $0x129] sm:$0xff] %v351
        %385 = vst [vmem:[%s358 + $0x139] sm:$0xff] %v352
        %386 = vst [vmem:[%s358 + $0x141] sm:$0xff] %v353
        %387 = vst [vmem:[%s358 + $0x151] sm:$0xff] %v354
        %388 = vst [vmem:[%s358 + $0x159] sm:$0xff] %v355
        %389 = vst [vmem:[%s358 + $0x169] sm:$0xff] %v356
        %390 = vst [vmem:[%s358 + $0x171] sm:$0xff] %v357
        %v391 = vld [vmem:[#allocation2] sm:$0xff]
        %v392 = vld [vmem:[#allocation2 + $0x8] sm:$0xff]
        %v393 = vld [vmem:[#allocation2 + $0x18] sm:$0xff]
        %v394 = vld [vmem:[#allocation2 + $0x20] sm:$0xff]
        %v395 = vld [vmem:[#allocation2 + $0x30] sm:$0xff]
        %v396 = vld [vmem:[#allocation2 + $0x38] sm:$0xff]
        %v397 = vld [vmem:[#allocation2 + $0x48] sm:$0xff]
        %v398 = vld [vmem:[#allocation2 + $0x50] sm:$0xff]
        %v399 = vld [vmem:[#allocation2 + $0x60] sm:$0xff]
        %v400 = vld [vmem:[#allocation2 + $0x68] sm:$0xff]
        %v401 = vld [vmem:[#allocation2 + $0x78] sm:$0xff]
        %v402 = vld [vmem:[#allocation2 + $0x80] sm:$0xff]
        %v403 = vld [vmem:[#allocation2 + $0x90] sm:$0xff]
        %v404 = vld [vmem:[#allocation2 + $0x98] sm:$0xff]
        %v405 = vld [vmem:[#allocation2 + $0xa8] sm:$0xff]
        %v406 = vld [vmem:[#allocation2 + $0xb0] sm:$0xff]
        %v407 = vld [vmem:[#allocation2 + $0xc0] sm:$0xff]
        %v408 = vld [vmem:[#allocation2 + $0xc8] sm:$0xff]
        %v409 = vld [vmem:[#allocation2 + $0xd8] sm:$0xff]
        %v410 = vld [vmem:[#allocation2 + $0xe0] sm:$0xff]
        %v411 = vld [vmem:[#allocation2 + $0xf0] sm:$0xff]
        %v412 = vld [vmem:[#allocation2 + $0xf8] sm:$0xff]
        %v413 = vld [vmem:[#allocation2 + $0x108] sm:$0xff]
        %v414 = vld [vmem:[#allocation2 + $0x110] sm:$0xff]
        %v415 = vld [vmem:[#allocation2 + $0x120] sm:$0xff]
        %v416 = vld [vmem:[#allocation2 + $0x128] sm:$0xff]
        %v417 = vld [vmem:[#allocation2 + $0x138] sm:$0xff]
        %v418 = vld [vmem:[#allocation2 + $0x140] sm:$0xff]
        %v419 = vld [vmem:[#allocation2 + $0x150] sm:$0xff]
        %v420 = vld [vmem:[#allocation2 + $0x158] sm:$0xff]
        %v421 = vld [vmem:[#allocation2 + $0x168] sm:$0xff]
        %v422 = vld [vmem:[#allocation2 + $0x170] sm:$0xff]
        %v423 = vld [vmem:[%s1] sm:$0xff]
        %v424 = vld [vmem:[%s1 + $0x8] sm:$0xff]
        %v425 = vld [vmem:[%s1 + $0x10] sm:$0xff]
        %v426 = vld [vmem:[%s1 + $0x18] sm:$0xff]
        %v427 = vld [vmem:[%s1 + $0x20] sm:$0xff]
        %v428 = vld [vmem:[%s1 + $0x28] sm:$0xff]
        %v429 = vld [vmem:[%s1 + $0x30] sm:$0xff]
        %v430 = vld [vmem:[%s1 + $0x38] sm:$0xff]
        %v431 = vld [vmem:[%s1 + $0x40] sm:$0xff]
        %v432 = vld [vmem:[%s1 + $0x48] sm:$0xff]
        %v433 = vld [vmem:[%s1 + $0x50] sm:$0xff]
        %v434 = vld [vmem:[%s1 + $0x58] sm:$0xff]
        %v435 = vld [vmem:[%s1 + $0x60] sm:$0xff]
        %v436 = vld [vmem:[%s1 + $0x68] sm:$0xff]
        %v437 = vld [vmem:[%s1 + $0x70] sm:$0xff]
        %v438 = vld [vmem:[%s1 + $0x78] sm:$0xff]
        %439 = vmatprep.subr.mxu0 0.0
        %440 = vmatpush1.msra.mxu0 %v438
        %441 = vmatprep.subr.mxu0 0.0
        %442 = vmatpush1.msra.mxu0 %v437
        %443 = vmatprep.subr.mxu0 0.0
        %444 = vmatpush1.msra.mxu0 %v436
        %445 = vmatprep.subr.mxu0 0.0
        %446 = vmatpush1.msra.mxu0 %v435
        %447 = vmatprep.subr.mxu0 0.0
        %448 = vmatpush1.msra.mxu0 %v434
        %449 = vmatprep.subr.mxu0 0.0
        %450 = vmatpush1.msra.mxu0 %v433
        %451 = vmatprep.subr.mxu0 0.0
        %452 = vmatpush1.msra.mxu0 %v432
        %453 = vmatprep.subr.mxu0 0.0
        %454 = vmatpush1.msra.mxu0 %v431
        %455 = vmatprep.subr.mxu0 0.0
        %456 = vmatpush1.msra.mxu0 %v430
        %457 = vmatprep.subr.mxu0 0.0
        %458 = vmatpush1.msra.mxu0 %v429
        %459 = vmatprep.subr.mxu0 0.0
        %460 = vmatpush1.msra.mxu0 %v428
        %461 = vmatprep.subr.mxu0 0.0
        %462 = vmatpush1.msra.mxu0 %v427
        %463 = vmatprep.subr.mxu0 0.0
        %464 = vmatpush1.msra.mxu0 %v426
        %465 = vmatprep.subr.mxu0 0.0
        %466 = vmatpush1.msra.mxu0 %v425
        %467 = vmatprep.subr.mxu0 0.0
        %468 = vmatpush1.msra.mxu0 %v424
        %469 = vmatprep.subr.mxu0 0.0
        %470 = vmatpush1.msra.mxu0 %v423
        %471 = vmatprep.subr.mxu0 0.0
        %472 = vmatpush2.msra.mxu0 0.0
        %473 = vmatprep.subr.mxu0 0.0
        %474 = vmatpush2.msra.mxu0 0.0
        %475 = vmatprep.subr.mxu0 0.0
        %476 = vmatpush2.msra.mxu0 0.0
        %477 = vmatprep.subr.mxu0 0.0
        %478 = vmatpush2.msra.mxu0 0.0
        %479 = vmatprep.subr.mxu0 0.0
        %480 = vmatpush2.msra.mxu0 0.0
        %481 = vmatprep.subr.mxu0 0.0
        %482 = vmatpush2.msra.mxu0 0.0
        %483 = vmatprep.subr.mxu0 0.0
        %484 = vmatpush2.msra.mxu0 0.0
        %485 = vmatprep.subr.mxu0 0.0
        %486 = vmatpush2.msra.mxu0 0.0
        %487 = vmatprep.subr.mxu0 0.0
        %488 = vmatpush2.msra.mxu0 0.0
        %489 = vmatprep.subr.mxu0 0.0
        %490 = vmatpush2.msra.mxu0 0.0
        %491 = vmatprep.subr.mxu0 0.0
        %492 = vmatpush2.msra.mxu0 0.0
        %493 = vmatprep.subr.mxu0 0.0
        %494 = vmatpush2.msra.mxu0 0.0
        %495 = vmatprep.subr.mxu0 0.0
        %496 = vmatpush2.msra.mxu0 0.0
        %497 = vmatprep.subr.mxu0 0.0
        %498 = vmatpush2.msra.mxu0 0.0
        %499 = vmatprep.subr.mxu0 0.0
        %500 = vmatpush2.msra.mxu0 0.0
        %501 = vmatprep.subr.mxu0 0.0
        %502 = vmatpush2.msra.mxu0 0.0
        %503 = vmatprep.mubr.f32.mxu0 0.0
        %504 = vmatmul.mubr.f32.gmra.mxu0 %v391
        %v505 = vpop.f32.mrf.mxu0
        %v506 = vadd.f32 0.0, %v505
        %v507 = vpop.f32.mrf.mxu0
        %508 = vmatprep.mubr.f32.mxu0 0.0
        %509 = vmatmul.mubr.f32.gmra.mxu0 %v392
        %v510 = vpop.f32.mrf.mxu0
        %v511 = vadd.f32 0.0, %v510
        %v512 = vpop.f32.mrf.mxu0
        %513 = vmatprep.mubr.f32.mxu0 0.0
        %514 = vmatmul.mubr.f32.gmra.mxu0 %v393
        %v515 = vpop.f32.mrf.mxu0
        %v516 = vadd.f32 0.0, %v515
        %v517 = vpop.f32.mrf.mxu0
        %518 = vmatprep.mubr.f32.mxu0 0.0
        %519 = vmatmul.mubr.f32.gmra.mxu0 %v394
        %v520 = vpop.f32.mrf.mxu0
        %v521 = vadd.f32 0.0, %v520
        %v522 = vpop.f32.mrf.mxu0
        %523 = vmatprep.mubr.f32.mxu0 0.0
        %524 = vmatmul.mubr.f32.gmra.mxu0 %v395
        %v525 = vpop.f32.mrf.mxu0
        %v526 = vadd.f32 0.0, %v525
        %v527 = vpop.f32.mrf.mxu0
        %528 = vmatprep.mubr.f32.mxu0 0.0
        %529 = vmatmul.mubr.f32.gmra.mxu0 %v396
        %v530 = vpop.f32.mrf.mxu0
        %v531 = vadd.f32 0.0, %v530
        %v532 = vpop.f32.mrf.mxu0
        %533 = vmatprep.mubr.f32.mxu0 0.0
        %534 = vmatmul.mubr.f32.gmra.mxu0 %v397
        %v535 = vpop.f32.mrf.mxu0
        %v536 = vadd.f32 0.0, %v535
        %v537 = vpop.f32.mrf.mxu0
        %538 = vmatprep.mubr.f32.mxu0 0.0
        %539 = vmatmul.mubr.f32.gmra.mxu0 %v398
        %v540 = vpop.f32.mrf.mxu0
        %v541 = vadd.f32 0.0, %v540
        %v542 = vpop.f32.mrf.mxu0
        %543 = vmatprep.mubr.f32.mxu0 0.0
        %544 = vmatmul.mubr.f32.gmra.mxu0 %v399
        %v545 = vpop.f32.mrf.mxu0
        %v546 = vadd.f32 0.0, %v545
        %v547 = vpop.f32.mrf.mxu0
        %548 = vmatprep.mubr.f32.mxu0 0.0
        %549 = vmatmul.mubr.f32.gmra.mxu0 %v400
        %v550 = vpop.f32.mrf.mxu0
        %v551 = vadd.f32 0.0, %v550
        %v552 = vpop.f32.mrf.mxu0
        %553 = vmatprep.mubr.f32.mxu0 0.0
        %554 = vmatmul.mubr.f32.gmra.mxu0 %v401
        %v555 = vpop.f32.mrf.mxu0
        %v556 = vadd.f32 0.0, %v555
        %v557 = vpop.f32.mrf.mxu0
        %558 = vmatprep.mubr.f32.mxu0 0.0
        %559 = vmatmul.mubr.f32.gmra.mxu0 %v402
        %v560 = vpop.f32.mrf.mxu0
        %v561 = vadd.f32 0.0, %v560
        %v562 = vpop.f32.mrf.mxu0
        %563 = vmatprep.mubr.f32.mxu0 0.0
        %564 = vmatmul.mubr.f32.gmra.mxu0 %v403
        %v565 = vpop.f32.mrf.mxu0
        %v566 = vadd.f32 0.0, %v565
        %v567 = vpop.f32.mrf.mxu0
        %568 = vmatprep.mubr.f32.mxu0 0.0
        %569 = vmatmul.mubr.f32.gmra.mxu0 %v404
        %v570 = vpop.f32.mrf.mxu0
        %v571 = vadd.f32 0.0, %v570
        %v572 = vpop.f32.mrf.mxu0
        %573 = vmatprep.mubr.f32.mxu0 0.0
        %574 = vmatmul.mubr.f32.gmra.mxu0 %v405
        %v575 = vpop.f32.mrf.mxu0
        %v576 = vadd.f32 0.0, %v575
        %v577 = vpop.f32.mrf.mxu0
        %578 = vmatprep.mubr.f32.mxu0 0.0
        %579 = vmatmul.mubr.f32.gmra.mxu0 %v406
        %v580 = vpop.f32.mrf.mxu0
        %v581 = vadd.f32 0.0, %v580
        %v582 = vpop.f32.mrf.mxu0
        %583 = vmatprep.mubr.f32.mxu0 0.0
        %584 = vmatmul.mubr.f32.gmra.mxu0 %v407
        %v585 = vpop.f32.mrf.mxu0
        %v586 = vadd.f32 0.0, %v585
        %v587 = vpop.f32.mrf.mxu0
        %588 = vmatprep.mubr.f32.mxu0 0.0
        %589 = vmatmul.mubr.f32.gmra.mxu0 %v408
        %v590 = vpop.f32.mrf.mxu0
        %v591 = vadd.f32 0.0, %v590
        %v592 = vpop.f32.mrf.mxu0
        %593 = vmatprep.mubr.f32.mxu0 0.0
        %594 = vmatmul.mubr.f32.gmra.mxu0 %v409
        %v595 = vpop.f32.mrf.mxu0
        %v596 = vadd.f32 0.0, %v595
        %v597 = vpop.f32.mrf.mxu0
        %598 = vmatprep.mubr.f32.mxu0 0.0
        %599 = vmatmul.mubr.f32.gmra.mxu0 %v410
        %v600 = vpop.f32.mrf.mxu0
        %v601 = vadd.f32 0.0, %v600
        %v602 = vpop.f32.mrf.mxu0
        %603 = vmatprep.mubr.f32.mxu0 0.0
        %604 = vmatmul.mubr.f32.gmra.mxu0 %v411
        %v605 = vpop.f32.mrf.mxu0
        %v606 = vadd.f32 0.0, %v605
        %v607 = vpop.f32.mrf.mxu0
        %608 = vmatprep.mubr.f32.mxu0 0.0
        %609 = vmatmul.mubr.f32.gmra.mxu0 %v412
        %v610 = vpop.f32.mrf.mxu0
        %v611 = vadd.f32 0.0, %v610
        %v612 = vpop.f32.mrf.mxu0
        %613 = vmatprep.mubr.f32.mxu0 0.0
        %614 = vmatmul.mubr.f32.gmra.mxu0 %v413
        %v615 = vpop.f32.mrf.mxu0
        %v616 = vadd.f32 0.0, %v615
        %v617 = vpop.f32.mrf.mxu0
        %618 = vmatprep.mubr.f32.mxu0 0.0
        %619 = vmatmul.mubr.f32.gmra.mxu0 %v414
        %v620 = vpop.f32.mrf.mxu0
        %v621 = vadd.f32 0.0, %v620
        %v622 = vpop.f32.mrf.mxu0
        %623 = vmatprep.mubr.f32.mxu0 0.0
        %624 = vmatmul.mubr.f32.gmra.mxu0 %v415
        %v625 = vpop.f32.mrf.mxu0
        %v626 = vadd.f32 0.0, %v625
        %v627 = vpop.f32.mrf.mxu0
        %628 = vmatprep.mubr.f32.mxu0 0.0
        %629 = vmatmul.mubr.f32.gmra.mxu0 %v416
        %v630 = vpop.f32.mrf.mxu0
        %v631 = vadd.f32 0.0, %v630
        %v632 = vpop.f32.mrf.mxu0
        %633 = vmatprep.mubr.f32.mxu0 0.0
        %634 = vmatmul.mubr.f32.gmra.mxu0 %v417
        %v635 = vpop.f32.mrf.mxu0
        %v636 = vadd.f32 0.0, %v635
        %v637 = vpop.f32.mrf.mxu0
        %638 = vmatprep.mubr.f32.mxu0 0.0
        %639 = vmatmul.mubr.f32.gmra.mxu0 %v418
        %v640 = vpop.f32.mrf.mxu0
        %v641 = vadd.f32 0.0, %v640
        %v642 = vpop.f32.mrf.mxu0
        %643 = vmatprep.mubr.f32.mxu0 0.0
        %644 = vmatmul.mubr.f32.gmra.mxu0 %v419
        %v645 = vpop.f32.mrf.mxu0
        %v646 = vadd.f32 0.0, %v645
        %v647 = vpop.f32.mrf.mxu0
        %648 = vmatprep.mubr.f32.mxu0 0.0
        %649 = vmatmul.mubr.f32.gmra.mxu0 %v420
        %v650 = vpop.f32.mrf.mxu0
        %v651 = vadd.f32 0.0, %v650
        %v652 = vpop.f32.mrf.mxu0
        %653 = vmatprep.mubr.f32.mxu0 0.0
        %654 = vmatmul.mubr.f32.gmra.mxu0 %v421
        %v655 = vpop.f32.mrf.mxu0
        %v656 = vadd.f32 0.0, %v655
        %v657 = vpop.f32.mrf.mxu0
        %658 = vmatprep.mubr.f32.mxu0 0.0
        %659 = vmatmul.mubr.f32.gmra.mxu0 %v422
        %v660 = vpop.f32.mrf.mxu0
        %v661 = vadd.f32 0.0, %v660
        %v662 = vpop.f32.mrf.mxu0
        %663 = vdwg.mxu0
        %664 = vst [vmem:[#allocation4] sm:$0xff] %v506
        %665 = vst [vmem:[#allocation4 + $0x8] sm:$0xff] %v511
        %666 = vst [vmem:[#allocation4 + $0x10] sm:$0xff] %v516
        %667 = vst [vmem:[#allocation4 + $0x18] sm:$0xff] %v521
        %668 = vst [vmem:[#allocation4 + $0x20] sm:$0xff] %v526
        %669 = vst [vmem:[#allocation4 + $0x28] sm:$0xff] %v531
        %670 = vst [vmem:[#allocation4 + $0x30] sm:$0xff] %v536
        %671 = vst [vmem:[#allocation4 + $0x38] sm:$0xff] %v541
        %672 = vst [vmem:[#allocation4 + $0x40] sm:$0xff] %v546
        %673 = vst [vmem:[#allocation4 + $0x48] sm:$0xff] %v551
        %674 = vst [vmem:[#allocation4 + $0x50] sm:$0xff] %v556
        %675 = vst [vmem:[#allocation4 + $0x58] sm:$0xff] %v561
        %676 = vst [vmem:[#allocation4 + $0x60] sm:$0xff] %v566
        %677 = vst [vmem:[#allocation4 + $0x68] sm:$0xff] %v571
        %678 = vst [vmem:[#allocation4 + $0x70] sm:$0xff] %v576
        %679 = vst [vmem:[#allocation4 + $0x78] sm:$0xff] %v581
        %680 = vst [vmem:[#allocation4 + $0x80] sm:$0xff] %v586
        %681 = vst [vmem:[#allocation4 + $0x88] sm:$0xff] %v591
        %682 = vst [vmem:[#allocation4 + $0x90] sm:$0xff] %v596
        %683 = vst [vmem:[#allocation4 + $0x98] sm:$0xff] %v601
        %684 = vst [vmem:[#allocation4 + $0xa0] sm:$0xff] %v606
        %685 = vst [vmem:[#allocation4 + $0xa8] sm:$0xff] %v611
        %686 = vst [vmem:[#allocation4 + $0xb0] sm:$0xff] %v616
        %687 = vst [vmem:[#allocation4 + $0xb8] sm:$0xff] %v621
        %688 = vst [vmem:[#allocation4 + $0xc0] sm:$0xff] %v626
        %689 = vst [vmem:[#allocation4 + $0xc8] sm:$0xff] %v631
        %690 = vst [vmem:[#allocation4 + $0xd0] sm:$0xff] %v636
        %691 = vst [vmem:[#allocation4 + $0xd8] sm:$0xff] %v641
        %692 = vst [vmem:[#allocation4 + $0xe0] sm:$0xff] %v646
        %693 = vst [vmem:[#allocation4 + $0xe8] sm:$0xff] %v651
        %694 = vst [vmem:[#allocation4 + $0xf0] sm:$0xff] %v656
        %695 = vst [vmem:[#allocation4 + $0xf8] sm:$0xff] %v661
        %v696 = vld [vmem:[#allocation2 + $0x1] sm:$0xff]
        %v697 = vld [vmem:[#allocation2 + $0x9] sm:$0xff]
        %v698 = vld [vmem:[#allocation2 + $0x19] sm:$0xff]
        %v699 = vld [vmem:[#allocation2 + $0x21] sm:$0xff]
        %v700 = vld [vmem:[#allocation2 + $0x31] sm:$0xff]
        %v701 = vld [vmem:[#allocation2 + $0x39] sm:$0xff]
        %v702 = vld [vmem:[#allocation2 + $0x49] sm:$0xff]
        %v703 = vld [vmem:[#allocation2 + $0x51] sm:$0xff]
        %v704 = vld [vmem:[#allocation2 + $0x61] sm:$0xff]
        %v705 = vld [vmem:[#allocation2 + $0x69] sm:$0xff]
        %v706 = vld [vmem:[#allocation2 + $0x79] sm:$0xff]
        %v707 = vld [vmem:[#allocation2 + $0x81] sm:$0xff]
        %v708 = vld [vmem:[#allocation2 + $0x91] sm:$0xff]
        %v709 = vld [vmem:[#allocation2 + $0x99] sm:$0xff]
        %v710 = vld [vmem:[#allocation2 + $0xa9] sm:$0xff]
        %v711 = vld [vmem:[#allocation2 + $0xb1] sm:$0xff]
        %v712 = vld [vmem:[#allocation2 + $0xc1] sm:$0xff]
        %v713 = vld [vmem:[#allocation2 + $0xc9] sm:$0xff]
        %v714 = vld [vmem:[#allocation2 + $0xd9] sm:$0xff]
        %v715 = vld [vmem:[#allocation2 + $0xe1] sm:$0xff]
        %v716 = vld [vmem:[#allocation2 + $0xf1] sm:$0xff]
        %v717 = vld [vmem:[#allocation2 + $0xf9] sm:$0xff]
        %v718 = vld [vmem:[#allocation2 + $0x109] sm:$0xff]
        %v719 = vld [vmem:[#allocation2 + $0x111] sm:$0xff]
        %v720 = vld [vmem:[#allocation2 + $0x121] sm:$0xff]
        %v721 = vld [vmem:[#allocation2 + $0x129] sm:$0xff]
        %v722 = vld [vmem:[#allocation2 + $0x139] sm:$0xff]
        %v723 = vld [vmem:[#allocation2 + $0x141] sm:$0xff]
        %v724 = vld [vmem:[#allocation2 + $0x151] sm:$0xff]
        %v725 = vld [vmem:[#allocation2 + $0x159] sm:$0xff]
        %v726 = vld [vmem:[#allocation2 + $0x169] sm:$0xff]
        %v727 = vld [vmem:[#allocation2 + $0x171] sm:$0xff]
        %s728 = scalar_lea.vmem %s1, 128
        %v729 = vld [vmem:[%s728] sm:$0xff]
        %v730 = vld [vmem:[%s728 + $0x8] sm:$0xff]
        %v731 = vld [vmem:[%s728 + $0x10] sm:$0xff]
        %v732 = vld [vmem:[%s728 + $0x18] sm:$0xff]
        %v733 = vld [vmem:[%s728 + $0x20] sm:$0xff]
        %v734 = vld [vmem:[%s728 + $0x28] sm:$0xff]
        %v735 = vld [vmem:[%s728 + $0x30] sm:$0xff]
        %v736 = vld [vmem:[%s728 + $0x38] sm:$0xff]
        %v737 = vld [vmem:[%s728 + $0x40] sm:$0xff]
        %v738 = vld [vmem:[%s728 + $0x48] sm:$0xff]
        %v739 = vld [vmem:[%s728 + $0x50] sm:$0xff]
        %v740 = vld [vmem:[%s728 + $0x58] sm:$0xff]
        %v741 = vld [vmem:[%s728 + $0x60] sm:$0xff]
        %v742 = vld [vmem:[%s728 + $0x68] sm:$0xff]
        %v743 = vld [vmem:[%s728 + $0x70] sm:$0xff]
        %v744 = vld [vmem:[%s728 + $0x78] sm:$0xff]
        %745 = vmatprep.subr.mxu0 0.0
        %746 = vmatpush1.msra.mxu0 %v744
        %747 = vmatprep.subr.mxu0 0.0
        %748 = vmatpush1.msra.mxu0 %v743
        %749 = vmatprep.subr.mxu0 0.0
        %750 = vmatpush1.msra.mxu0 %v742
        %751 = vmatprep.subr.mxu0 0.0
        %752 = vmatpush1.msra.mxu0 %v741
        %753 = vmatprep.subr.mxu0 0.0
        %754 = vmatpush1.msra.mxu0 %v740
        %755 = vmatprep.subr.mxu0 0.0
        %756 = vmatpush1.msra.mxu0 %v739
        %757 = vmatprep.subr.mxu0 0.0
        %758 = vmatpush1.msra.mxu0 %v738
        %759 = vmatprep.subr.mxu0 0.0
        %760 = vmatpush1.msra.mxu0 %v737
        %761 = vmatprep.subr.mxu0 0.0
        %762 = vmatpush1.msra.mxu0 %v736
        %763 = vmatprep.subr.mxu0 0.0
        %764 = vmatpush1.msra.mxu0 %v735
        %765 = vmatprep.subr.mxu0 0.0
        %766 = vmatpush1.msra.mxu0 %v734
        %767 = vmatprep.subr.mxu0 0.0
        %768 = vmatpush1.msra.mxu0 %v733
        %769 = vmatprep.subr.mxu0 0.0
        %770 = vmatpush1.msra.mxu0 %v732
        %771 = vmatprep.subr.mxu0 0.0
        %772 = vmatpush1.msra.mxu0 %v731
        %773 = vmatprep.subr.mxu0 0.0
        %774 = vmatpush1.msra.mxu0 %v730
        %775 = vmatprep.subr.mxu0 0.0
        %776 = vmatpush1.msra.mxu0 %v729
        %777 = vmatprep.subr.mxu0 0.0
        %778 = vmatpush2.msra.mxu0 0.0
        %779 = vmatprep.subr.mxu0 0.0
        %780 = vmatpush2.msra.mxu0 0.0
        %781 = vmatprep.subr.mxu0 0.0
        %782 = vmatpush2.msra.mxu0 0.0
        %783 = vmatprep.subr.mxu0 0.0
        %784 = vmatpush2.msra.mxu0 0.0
        %785 = vmatprep.subr.mxu0 0.0
        %786 = vmatpush2.msra.mxu0 0.0
        %787 = vmatprep.subr.mxu0 0.0
        %788 = vmatpush2.msra.mxu0 0.0
        %789 = vmatprep.subr.mxu0 0.0
        %790 = vmatpush2.msra.mxu0 0.0
        %791 = vmatprep.subr.mxu0 0.0
        %792 = vmatpush2.msra.mxu0 0.0
        %793 = vmatprep.subr.mxu0 0.0
        %794 = vmatpush2.msra.mxu0 0.0
        %795 = vmatprep.subr.mxu0 0.0
        %796 = vmatpush2.msra.mxu0 0.0
        %797 = vmatprep.subr.mxu0 0.0
        %798 = vmatpush2.msra.mxu0 0.0
        %799 = vmatprep.subr.mxu0 0.0
        %800 = vmatpush2.msra.mxu0 0.0
        %801 = vmatprep.subr.mxu0 0.0
        %802 = vmatpush2.msra.mxu0 0.0
        %803 = vmatprep.subr.mxu0 0.0
        %804 = vmatpush2.msra.mxu0 0.0
        %805 = vmatprep.subr.mxu0 0.0
        %806 = vmatpush2.msra.mxu0 0.0
        %807 = vmatprep.subr.mxu0 0.0
        %808 = vmatpush2.msra.mxu0 0.0
        %809 = vmatprep.mubr.f32.mxu0 0.0
        %810 = vmatmul.mubr.f32.gmra.mxu0 %v696
        %v811 = vpop.f32.mrf.mxu0
        %v812 = vadd.f32 0.0, %v811
        %v813 = vpop.f32.mrf.mxu0
        %814 = vmatprep.mubr.f32.mxu0 0.0
        %815 = vmatmul.mubr.f32.gmra.mxu0 %v697
        %v816 = vpop.f32.mrf.mxu0
        %v817 = vadd.f32 0.0, %v816
        %v818 = vpop.f32.mrf.mxu0
        %819 = vmatprep.mubr.f32.mxu0 0.0
        %820 = vmatmul.mubr.f32.gmra.mxu0 %v698
        %v821 = vpop.f32.mrf.mxu0
        %v822 = vadd.f32 0.0, %v821
        %v823 = vpop.f32.mrf.mxu0
        %824 = vmatprep.mubr.f32.mxu0 0.0
        %825 = vmatmul.mubr.f32.gmra.mxu0 %v699
        %v826 = vpop.f32.mrf.mxu0
        %v827 = vadd.f32 0.0, %v826
        %v828 = vpop.f32.mrf.mxu0
        %829 = vmatprep.mubr.f32.mxu0 0.0
        %830 = vmatmul.mubr.f32.gmra.mxu0 %v700
        %v831 = vpop.f32.mrf.mxu0
        %v832 = vadd.f32 0.0, %v831
        %v833 = vpop.f32.mrf.mxu0
        %834 = vmatprep.mubr.f32.mxu0 0.0
        %835 = vmatmul.mubr.f32.gmra.mxu0 %v701
        %v836 = vpop.f32.mrf.mxu0
        %v837 = vadd.f32 0.0, %v836
        %v838 = vpop.f32.mrf.mxu0
        %839 = vmatprep.mubr.f32.mxu0 0.0
        %840 = vmatmul.mubr.f32.gmra.mxu0 %v702
        %v841 = vpop.f32.mrf.mxu0
        %v842 = vadd.f32 0.0, %v841
        %v843 = vpop.f32.mrf.mxu0
        %844 = vmatprep.mubr.f32.mxu0 0.0
        %845 = vmatmul.mubr.f32.gmra.mxu0 %v703
        %v846 = vpop.f32.mrf.mxu0
        %v847 = vadd.f32 0.0, %v846
        %v848 = vpop.f32.mrf.mxu0
        %849 = vmatprep.mubr.f32.mxu0 0.0
        %850 = vmatmul.mubr.f32.gmra.mxu0 %v704
        %v851 = vpop.f32.mrf.mxu0
        %v852 = vadd.f32 0.0, %v851
        %v853 = vpop.f32.mrf.mxu0
        %854 = vmatprep.mubr.f32.mxu0 0.0
        %855 = vmatmul.mubr.f32.gmra.mxu0 %v705
        %v856 = vpop.f32.mrf.mxu0
        %v857 = vadd.f32 0.0, %v856
        %v858 = vpop.f32.mrf.mxu0
        %859 = vmatprep.mubr.f32.mxu0 0.0
        %860 = vmatmul.mubr.f32.gmra.mxu0 %v706
        %v861 = vpop.f32.mrf.mxu0
        %v862 = vadd.f32 0.0, %v861
        %v863 = vpop.f32.mrf.mxu0
        %864 = vmatprep.mubr.f32.mxu0 0.0
        %865 = vmatmul.mubr.f32.gmra.mxu0 %v707
        %v866 = vpop.f32.mrf.mxu0
        %v867 = vadd.f32 0.0, %v866
        %v868 = vpop.f32.mrf.mxu0
        %869 = vmatprep.mubr.f32.mxu0 0.0
        %870 = vmatmul.mubr.f32.gmra.mxu0 %v708
        %v871 = vpop.f32.mrf.mxu0
        %v872 = vadd.f32 0.0, %v871
        %v873 = vpop.f32.mrf.mxu0
        %874 = vmatprep.mubr.f32.mxu0 0.0
        %875 = vmatmul.mubr.f32.gmra.mxu0 %v709
        %v876 = vpop.f32.mrf.mxu0
        %v877 = vadd.f32 0.0, %v876
        %v878 = vpop.f32.mrf.mxu0
        %879 = vmatprep.mubr.f32.mxu0 0.0
        %880 = vmatmul.mubr.f32.gmra.mxu0 %v710
        %v881 = vpop.f32.mrf.mxu0
        %v882 = vadd.f32 0.0, %v881
        %v883 = vpop.f32.mrf.mxu0
        %884 = vmatprep.mubr.f32.mxu0 0.0
        %885 = vmatmul.mubr.f32.gmra.mxu0 %v711
        %v886 = vpop.f32.mrf.mxu0
        %v887 = vadd.f32 0.0, %v886
        %v888 = vpop.f32.mrf.mxu0
        %889 = vmatprep.mubr.f32.mxu0 0.0
        %890 = vmatmul.mubr.f32.gmra.mxu0 %v712
        %v891 = vpop.f32.mrf.mxu0
        %v892 = vadd.f32 0.0, %v891
        %v893 = vpop.f32.mrf.mxu0
        %894 = vmatprep.mubr.f32.mxu0 0.0
        %895 = vmatmul.mubr.f32.gmra.mxu0 %v713
        %v896 = vpop.f32.mrf.mxu0
        %v897 = vadd.f32 0.0, %v896
        %v898 = vpop.f32.mrf.mxu0
        %899 = vmatprep.mubr.f32.mxu0 0.0
        %900 = vmatmul.mubr.f32.gmra.mxu0 %v714
        %v901 = vpop.f32.mrf.mxu0
        %v902 = vadd.f32 0.0, %v901
        %v903 = vpop.f32.mrf.mxu0
        %904 = vmatprep.mubr.f32.mxu0 0.0
        %905 = vmatmul.mubr.f32.gmra.mxu0 %v715
        %v906 = vpop.f32.mrf.mxu0
        %v907 = vadd.f32 0.0, %v906
        %v908 = vpop.f32.mrf.mxu0
        %909 = vmatprep.mubr.f32.mxu0 0.0
        %910 = vmatmul.mubr.f32.gmra.mxu0 %v716
        %v911 = vpop.f32.mrf.mxu0
        %v912 = vadd.f32 0.0, %v911
        %v913 = vpop.f32.mrf.mxu0
        %914 = vmatprep.mubr.f32.mxu0 0.0
        %915 = vmatmul.mubr.f32.gmra.mxu0 %v717
        %v916 = vpop.f32.mrf.mxu0
        %v917 = vadd.f32 0.0, %v916
        %v918 = vpop.f32.mrf.mxu0
        %919 = vmatprep.mubr.f32.mxu0 0.0
        %920 = vmatmul.mubr.f32.gmra.mxu0 %v718
        %v921 = vpop.f32.mrf.mxu0
        %v922 = vadd.f32 0.0, %v921
        %v923 = vpop.f32.mrf.mxu0
        %924 = vmatprep.mubr.f32.mxu0 0.0
        %925 = vmatmul.mubr.f32.gmra.mxu0 %v719
        %v926 = vpop.f32.mrf.mxu0
        %v927 = vadd.f32 0.0, %v926
        %v928 = vpop.f32.mrf.mxu0
        %929 = vmatprep.mubr.f32.mxu0 0.0
        %930 = vmatmul.mubr.f32.gmra.mxu0 %v720
        %v931 = vpop.f32.mrf.mxu0
        %v932 = vadd.f32 0.0, %v931
        %v933 = vpop.f32.mrf.mxu0
        %934 = vmatprep.mubr.f32.mxu0 0.0
        %935 = vmatmul.mubr.f32.gmra.mxu0 %v721
        %v936 = vpop.f32.mrf.mxu0
        %v937 = vadd.f32 0.0, %v936
        %v938 = vpop.f32.mrf.mxu0
        %939 = vmatprep.mubr.f32.mxu0 0.0
        %940 = vmatmul.mubr.f32.gmra.mxu0 %v722
        %v941 = vpop.f32.mrf.mxu0
        %v942 = vadd.f32 0.0, %v941
        %v943 = vpop.f32.mrf.mxu0
        %944 = vmatprep.mubr.f32.mxu0 0.0
        %945 = vmatmul.mubr.f32.gmra.mxu0 %v723
        %v946 = vpop.f32.mrf.mxu0
        %v947 = vadd.f32 0.0, %v946
        %v948 = vpop.f32.mrf.mxu0
        %949 = vmatprep.mubr.f32.mxu0 0.0
        %950 = vmatmul.mubr.f32.gmra.mxu0 %v724
        %v951 = vpop.f32.mrf.mxu0
        %v952 = vadd.f32 0.0, %v951
        %v953 = vpop.f32.mrf.mxu0
        %954 = vmatprep.mubr.f32.mxu0 0.0
        %955 = vmatmul.mubr.f32.gmra.mxu0 %v725
        %v956 = vpop.f32.mrf.mxu0
        %v957 = vadd.f32 0.0, %v956
        %v958 = vpop.f32.mrf.mxu0
        %959 = vmatprep.mubr.f32.mxu0 0.0
        %960 = vmatmul.mubr.f32.gmra.mxu0 %v726
        %v961 = vpop.f32.mrf.mxu0
        %v962 = vadd.f32 0.0, %v961
        %v963 = vpop.f32.mrf.mxu0
        %964 = vmatprep.mubr.f32.mxu0 0.0
        %965 = vmatmul.mubr.f32.gmra.mxu0 %v727
        %v966 = vpop.f32.mrf.mxu0
        %v967 = vadd.f32 0.0, %v966
        %v968 = vpop.f32.mrf.mxu0
        %969 = vdwg.mxu0
        %v970 = vld [vmem:[#allocation4] sm:$0xff]
        %v971 = vld [vmem:[#allocation4 + $0x8] sm:$0xff]
        %v972 = vld [vmem:[#allocation4 + $0x10] sm:$0xff]
        %v973 = vld [vmem:[#allocation4 + $0x18] sm:$0xff]
        %v974 = vld [vmem:[#allocation4 + $0x20] sm:$0xff]
        %v975 = vld [vmem:[#allocation4 + $0x28] sm:$0xff]
        %v976 = vld [vmem:[#allocation4 + $0x30] sm:$0xff]
        %v977 = vld [vmem:[#allocation4 + $0x38] sm:$0xff]
        %v978 = vld [vmem:[#allocation4 + $0x40] sm:$0xff]
        %v979 = vld [vmem:[#allocation4 + $0x48] sm:$0xff]
        %v980 = vld [vmem:[#allocation4 + $0x50] sm:$0xff]
        %v981 = vld [vmem:[#allocation4 + $0x58] sm:$0xff]
        %v982 = vld [vmem:[#allocation4 + $0x60] sm:$0xff]
        %v983 = vld [vmem:[#allocation4 + $0x68] sm:$0xff]
        %v984 = vld [vmem:[#allocation4 + $0x70] sm:$0xff]
        %v985 = vld [vmem:[#allocation4 + $0x78] sm:$0xff]
        %v986 = vld [vmem:[#allocation4 + $0x80] sm:$0xff]
        %v987 = vld [vmem:[#allocation4 + $0x88] sm:$0xff]
        %v988 = vld [vmem:[#allocation4 + $0x90] sm:$0xff]
        %v989 = vld [vmem:[#allocation4 + $0x98] sm:$0xff]
        %v990 = vld [vmem:[#allocation4 + $0xa0] sm:$0xff]
        %v991 = vld [vmem:[#allocation4 + $0xa8] sm:$0xff]
        %v992 = vld [vmem:[#allocation4 + $0xb0] sm:$0xff]
        %v993 = vld [vmem:[#allocation4 + $0xb8] sm:$0xff]
        %v994 = vld [vmem:[#allocation4 + $0xc0] sm:$0xff]
        %v995 = vld [vmem:[#allocation4 + $0xc8] sm:$0xff]
        %v996 = vld [vmem:[#allocation4 + $0xd0] sm:$0xff]
        %v997 = vld [vmem:[#allocation4 + $0xd8] sm:$0xff]
        %v998 = vld [vmem:[#allocation4 + $0xe0] sm:$0xff]
        %v999 = vld [vmem:[#allocation4 + $0xe8] sm:$0xff]
        %v1000 = vld [vmem:[#allocation4 + $0xf0] sm:$0xff]
        %v1001 = vld [vmem:[#allocation4 + $0xf8] sm:$0xff]
        %v1002 = vadd.f32 %v970, %v812
        %v1003 = vadd.f32 %v971, %v817
        %v1004 = vadd.f32 %v972, %v822
        %v1005 = vadd.f32 %v973, %v827
        %v1006 = vadd.f32 %v974, %v832
        %v1007 = vadd.f32 %v975, %v837
        %v1008 = vadd.f32 %v976, %v842
        %v1009 = vadd.f32 %v977, %v847
        %v1010 = vadd.f32 %v978, %v852
        %v1011 = vadd.f32 %v979, %v857
        %v1012 = vadd.f32 %v980, %v862
        %v1013 = vadd.f32 %v981, %v867
        %v1014 = vadd.f32 %v982, %v872
        %v1015 = vadd.f32 %v983, %v877
        %v1016 = vadd.f32 %v984, %v882
        %v1017 = vadd.f32 %v985, %v887
        %v1018 = vadd.f32 %v986, %v892
        %v1019 = vadd.f32 %v987, %v897
        %v1020 = vadd.f32 %v988, %v902
        %v1021 = vadd.f32 %v989, %v907
        %v1022 = vadd.f32 %v990, %v912
        %v1023 = vadd.f32 %v991, %v917
        %v1024 = vadd.f32 %v992, %v922
        %v1025 = vadd.f32 %v993, %v927
        %v1026 = vadd.f32 %v994, %v932
        %v1027 = vadd.f32 %v995, %v937
        %v1028 = vadd.f32 %v996, %v942
        %v1029 = vadd.f32 %v997, %v947
        %v1030 = vadd.f32 %v998, %v952
        %v1031 = vadd.f32 %v999, %v957
        %v1032 = vadd.f32 %v1000, %v962
        %v1033 = vadd.f32 %v1001, %v967
        %1034 = vst [vmem:[#allocation4] sm:$0xff] %v1002
        %1035 = vst [vmem:[#allocation4 + $0x8] sm:$0xff] %v1003
        %1036 = vst [vmem:[#allocation4 + $0x10] sm:$0xff] %v1004
        %1037 = vst [vmem:[#allocation4 + $0x18] sm:$0xff] %v1005
        %1038 = vst [vmem:[#allocation4 + $0x20] sm:$0xff] %v1006
        %1039 = vst [vmem:[#allocation4 + $0x28] sm:$0xff] %v1007
        %1040 = vst [vmem:[#allocation4 + $0x30] sm:$0xff] %v1008
        %1041 = vst [vmem:[#allocation4 + $0x38] sm:$0xff] %v1009
        %1042 = vst [vmem:[#allocation4 + $0x40] sm:$0xff] %v1010
        %1043 = vst [vmem:[#allocation4 + $0x48] sm:$0xff] %v1011
        %1044 = vst [vmem:[#allocation4 + $0x50] sm:$0xff] %v1012
        %1045 = vst [vmem:[#allocation4 + $0x58] sm:$0xff] %v1013
        %1046 = vst [vmem:[#allocation4 + $0x60] sm:$0xff] %v1014
        %1047 = vst [vmem:[#allocation4 + $0x68] sm:$0xff] %v1015
        %1048 = vst [vmem:[#allocation4 + $0x70] sm:$0xff] %v1016
        %1049 = vst [vmem:[#allocation4 + $0x78] sm:$0xff] %v1017
        %1050 = vst [vmem:[#allocation4 + $0x80] sm:$0xff] %v1018
        %1051 = vst [vmem:[#allocation4 + $0x88] sm:$0xff] %v1019
        %1052 = vst [vmem:[#allocation4 + $0x90] sm:$0xff] %v1020
        %1053 = vst [vmem:[#allocation4 + $0x98] sm:$0xff] %v1021
        %1054 = vst [vmem:[#allocation4 + $0xa0] sm:$0xff] %v1022
        %1055 = vst [vmem:[#allocation4 + $0xa8] sm:$0xff] %v1023
        %1056 = vst [vmem:[#allocation4 + $0xb0] sm:$0xff] %v1024
        %1057 = vst [vmem:[#allocation4 + $0xb8] sm:$0xff] %v1025
        %1058 = vst [vmem:[#allocation4 + $0xc0] sm:$0xff] %v1026
        %1059 = vst [vmem:[#allocation4 + $0xc8] sm:$0xff] %v1027
        %1060 = vst [vmem:[#allocation4 + $0xd0] sm:$0xff] %v1028
        %1061 = vst [vmem:[#allocation4 + $0xd8] sm:$0xff] %v1029
        %1062 = vst [vmem:[#allocation4 + $0xe0] sm:$0xff] %v1030
        %1063 = vst [vmem:[#allocation4 + $0xe8] sm:$0xff] %v1031
        %1064 = vst [vmem:[#allocation4 + $0xf0] sm:$0xff] %v1032
        %1065 = vst [vmem:[#allocation4 + $0xf8] sm:$0xff] %v1033
        %v1066 = vld [vmem:[#allocation2 + $0x2] sm:$0xff]
        %v1067 = vld [vmem:[#allocation2 + $0xa] sm:$0xff]
        %v1068 = vld [vmem:[#allocation2 + $0x1a] sm:$0xff]
        %v1069 = vld [vmem:[#allocation2 + $0x22] sm:$0xff]
        %v1070 = vld [vmem:[#allocation2 + $0x32] sm:$0xff]
        %v1071 = vld [vmem:[#allocation2 + $0x3a] sm:$0xff]
        %v1072 = vld [vmem:[#allocation2 + $0x4a] sm:$0xff]
        %v1073 = vld [vmem:[#allocation2 + $0x52] sm:$0xff]
        %v1074 = vld [vmem:[#allocation2 + $0x62] sm:$0xff]
        %v1075 = vld [vmem:[#allocation2 + $0x6a] sm:$0xff]
        %v1076 = vld [vmem:[#allocation2 + $0x7a] sm:$0xff]
        %v1077 = vld [vmem:[#allocation2 + $0x82] sm:$0xff]
        %v1078 = vld [vmem:[#allocation2 + $0x92] sm:$0xff]
        %v1079 = vld [vmem:[#allocation2 + $0x9a] sm:$0xff]
        %v1080 = vld [vmem:[#allocation2 + $0xaa] sm:$0xff]
        %v1081 = vld [vmem:[#allocation2 + $0xb2] sm:$0xff]
        %v1082 = vld [vmem:[#allocation2 + $0xc2] sm:$0xff]
        %v1083 = vld [vmem:[#allocation2 + $0xca] sm:$0xff]
        %v1084 = vld [vmem:[#allocation2 + $0xda] sm:$0xff]
        %v1085 = vld [vmem:[#allocation2 + $0xe2] sm:$0xff]
        %v1086 = vld [vmem:[#allocation2 + $0xf2] sm:$0xff]
        %v1087 = vld [vmem:[#allocation2 + $0xfa] sm:$0xff]
        %v1088 = vld [vmem:[#allocation2 + $0x10a] sm:$0xff]
        %v1089 = vld [vmem:[#allocation2 + $0x112] sm:$0xff]
        %v1090 = vld [vmem:[#allocation2 + $0x122] sm:$0xff]
        %v1091 = vld [vmem:[#allocation2 + $0x12a] sm:$0xff]
        %v1092 = vld [vmem:[#allocation2 + $0x13a] sm:$0xff]
        %v1093 = vld [vmem:[#allocation2 + $0x142] sm:$0xff]
        %v1094 = vld [vmem:[#allocation2 + $0x152] sm:$0xff]
        %v1095 = vld [vmem:[#allocation2 + $0x15a] sm:$0xff]
        %v1096 = vld [vmem:[#allocation2 + $0x16a] sm:$0xff]
        %v1097 = vld [vmem:[#allocation2 + $0x172] sm:$0xff]
        %s1098 = scalar_lea.vmem %s1, 256
        %v1099 = vld [vmem:[%s1098] sm:$0xff]
        %v1100 = vld [vmem:[%s1098 + $0x8] sm:$0xff]
        %v1101 = vld [vmem:[%s1098 + $0x10] sm:$0xff]
        %v1102 = vld [vmem:[%s1098 + $0x18] sm:$0xff]
        %v1103 = vld [vmem:[%s1098 + $0x20] sm:$0xff]
        %v1104 = vld [vmem:[%s1098 + $0x28] sm:$0xff]
        %v1105 = vld [vmem:[%s1098 + $0x30] sm:$0xff]
        %v1106 = vld [vmem:[%s1098 + $0x38] sm:$0xff]
        %v1107 = vld [vmem:[%s1098 + $0x40] sm:$0xff]
        %v1108 = vld [vmem:[%s1098 + $0x48] sm:$0xff]
        %v1109 = vld [vmem:[%s1098 + $0x50] sm:$0xff]
        %v1110 = vld [vmem:[%s1098 + $0x58] sm:$0xff]
        %v1111 = vld [vmem:[%s1098 + $0x60] sm:$0xff]
        %v1112 = vld [vmem:[%s1098 + $0x68] sm:$0xff]
        %v1113 = vld [vmem:[%s1098 + $0x70] sm:$0xff]
        %v1114 = vld [vmem:[%s1098 + $0x78] sm:$0xff]
        %1115 = vmatprep.subr.mxu0 0.0
        %1116 = vmatpush1.msra.mxu0 %v1114
        %1117 = vmatprep.subr.mxu0 0.0
        %1118 = vmatpush1.msra.mxu0 %v1113
        %1119 = vmatprep.subr.mxu0 0.0
        %1120 = vmatpush1.msra.mxu0 %v1112
        %1121 = vmatprep.subr.mxu0 0.0
        %1122 = vmatpush1.msra.mxu0 %v1111
        %1123 = vmatprep.subr.mxu0 0.0
        %1124 = vmatpush1.msra.mxu0 %v1110
        %1125 = vmatprep.subr.mxu0 0.0
        %1126 = vmatpush1.msra.mxu0 %v1109
        %1127 = vmatprep.subr.mxu0 0.0
        %1128 = vmatpush1.msra.mxu0 %v1108
        %1129 = vmatprep.subr.mxu0 0.0
        %1130 = vmatpush1.msra.mxu0 %v1107
        %1131 = vmatprep.subr.mxu0 0.0
        %1132 = vmatpush1.msra.mxu0 %v1106
        %1133 = vmatprep.subr.mxu0 0.0
        %1134 = vmatpush1.msra.mxu0 %v1105
        %1135 = vmatprep.subr.mxu0 0.0
        %1136 = vmatpush1.msra.mxu0 %v1104
        %1137 = vmatprep.subr.mxu0 0.0
        %1138 = vmatpush1.msra.mxu0 %v1103
        %1139 = vmatprep.subr.mxu0 0.0
        %1140 = vmatpush1.msra.mxu0 %v1102
        %1141 = vmatprep.subr.mxu0 0.0
        %1142 = vmatpush1.msra.mxu0 %v1101
        %1143 = vmatprep.subr.mxu0 0.0
        %1144 = vmatpush1.msra.mxu0 %v1100
        %1145 = vmatprep.subr.mxu0 0.0
        %1146 = vmatpush1.msra.mxu0 %v1099
        %1147 = vmatprep.subr.mxu0 0.0
        %1148 = vmatpush2.msra.mxu0 0.0
        %1149 = vmatprep.subr.mxu0 0.0
        %1150 = vmatpush2.msra.mxu0 0.0
        %1151 = vmatprep.subr.mxu0 0.0
        %1152 = vmatpush2.msra.mxu0 0.0
        %1153 = vmatprep.subr.mxu0 0.0
        %1154 = vmatpush2.msra.mxu0 0.0
        %1155 = vmatprep.subr.mxu0 0.0
        %1156 = vmatpush2.msra.mxu0 0.0
        %1157 = vmatprep.subr.mxu0 0.0
        %1158 = vmatpush2.msra.mxu0 0.0
        %1159 = vmatprep.subr.mxu0 0.0
        %1160 = vmatpush2.msra.mxu0 0.0
        %1161 = vmatprep.subr.mxu0 0.0
        %1162 = vmatpush2.msra.mxu0 0.0
        %1163 = vmatprep.subr.mxu0 0.0
        %1164 = vmatpush2.msra.mxu0 0.0
        %1165 = vmatprep.subr.mxu0 0.0
        %1166 = vmatpush2.msra.mxu0 0.0
        %1167 = vmatprep.subr.mxu0 0.0
        %1168 = vmatpush2.msra.mxu0 0.0
        %1169 = vmatprep.subr.mxu0 0.0
        %1170 = vmatpush2.msra.mxu0 0.0
        %1171 = vmatprep.subr.mxu0 0.0
        %1172 = vmatpush2.msra.mxu0 0.0
        %1173 = vmatprep.subr.mxu0 0.0
        %1174 = vmatpush2.msra.mxu0 0.0
        %1175 = vmatprep.subr.mxu0 0.0
        %1176 = vmatpush2.msra.mxu0 0.0
        %1177 = vmatprep.subr.mxu0 0.0
        %1178 = vmatpush2.msra.mxu0 0.0
        %1179 = vmatprep.mubr.f32.mxu0 0.0
        %1180 = vmatmul.mubr.f32.gmra.mxu0 %v1066
        %v1181 = vpop.f32.mrf.mxu0
        %v1182 = vadd.f32 0.0, %v1181
        %v1183 = vpop.f32.mrf.mxu0
        %1184 = vmatprep.mubr.f32.mxu0 0.0
        %1185 = vmatmul.mubr.f32.gmra.mxu0 %v1067
        %v1186 = vpop.f32.mrf.mxu0
        %v1187 = vadd.f32 0.0, %v1186
        %v1188 = vpop.f32.mrf.mxu0
        %1189 = vmatprep.mubr.f32.mxu0 0.0
        %1190 = vmatmul.mubr.f32.gmra.mxu0 %v1068
        %v1191 = vpop.f32.mrf.mxu0
        %v1192 = vadd.f32 0.0, %v1191
        %v1193 = vpop.f32.mrf.mxu0
        %1194 = vmatprep.mubr.f32.mxu0 0.0
        %1195 = vmatmul.mubr.f32.gmra.mxu0 %v1069
        %v1196 = vpop.f32.mrf.mxu0
        %v1197 = vadd.f32 0.0, %v1196
        %v1198 = vpop.f32.mrf.mxu0
        %1199 = vmatprep.mubr.f32.mxu0 0.0
        %1200 = vmatmul.mubr.f32.gmra.mxu0 %v1070
        %v1201 = vpop.f32.mrf.mxu0
        %v1202 = vadd.f32 0.0, %v1201
        %v1203 = vpop.f32.mrf.mxu0
        %1204 = vmatprep.mubr.f32.mxu0 0.0
        %1205 = vmatmul.mubr.f32.gmra.mxu0 %v1071
        %v1206 = vpop.f32.mrf.mxu0
        %v1207 = vadd.f32 0.0, %v1206
        %v1208 = vpop.f32.mrf.mxu0
        %1209 = vmatprep.mubr.f32.mxu0 0.0
        %1210 = vmatmul.mubr.f32.gmra.mxu0 %v1072
        %v1211 = vpop.f32.mrf.mxu0
        %v1212 = vadd.f32 0.0, %v1211
        %v1213 = vpop.f32.mrf.mxu0
        %1214 = vmatprep.mubr.f32.mxu0 0.0
        %1215 = vmatmul.mubr.f32.gmra.mxu0 %v1073
        %v1216 = vpop.f32.mrf.mxu0
        %v1217 = vadd.f32 0.0, %v1216
        %v1218 = vpop.f32.mrf.mxu0
        %1219 = vmatprep.mubr.f32.mxu0 0.0
        %1220 = vmatmul.mubr.f32.gmra.mxu0 %v1074
        %v1221 = vpop.f32.mrf.mxu0
        %v1222 = vadd.f32 0.0, %v1221
        %v1223 = vpop.f32.mrf.mxu0
        %1224 = vmatprep.mubr.f32.mxu0 0.0
        %1225 = vmatmul.mubr.f32.gmra.mxu0 %v1075
        %v1226 = vpop.f32.mrf.mxu0
        %v1227 = vadd.f32 0.0, %v1226
        %v1228 = vpop.f32.mrf.mxu0
        %1229 = vmatprep.mubr.f32.mxu0 0.0
        %1230 = vmatmul.mubr.f32.gmra.mxu0 %v1076
        %v1231 = vpop.f32.mrf.mxu0
        %v1232 = vadd.f32 0.0, %v1231
        %v1233 = vpop.f32.mrf.mxu0
        %1234 = vmatprep.mubr.f32.mxu0 0.0
        %1235 = vmatmul.mubr.f32.gmra.mxu0 %v1077
        %v1236 = vpop.f32.mrf.mxu0
        %v1237 = vadd.f32 0.0, %v1236
        %v1238 = vpop.f32.mrf.mxu0
        %1239 = vmatprep.mubr.f32.mxu0 0.0
        %1240 = vmatmul.mubr.f32.gmra.mxu0 %v1078
        %v1241 = vpop.f32.mrf.mxu0
        %v1242 = vadd.f32 0.0, %v1241
        %v1243 = vpop.f32.mrf.mxu0
        %1244 = vmatprep.mubr.f32.mxu0 0.0
        %1245 = vmatmul.mubr.f32.gmra.mxu0 %v1079
        %v1246 = vpop.f32.mrf.mxu0
        %v1247 = vadd.f32 0.0, %v1246
        %v1248 = vpop.f32.mrf.mxu0
        %1249 = vmatprep.mubr.f32.mxu0 0.0
        %1250 = vmatmul.mubr.f32.gmra.mxu0 %v1080
        %v1251 = vpop.f32.mrf.mxu0
        %v1252 = vadd.f32 0.0, %v1251
        %v1253 = vpop.f32.mrf.mxu0
        %1254 = vmatprep.mubr.f32.mxu0 0.0
        %1255 = vmatmul.mubr.f32.gmra.mxu0 %v1081
        %v1256 = vpop.f32.mrf.mxu0
        %v1257 = vadd.f32 0.0, %v1256
        %v1258 = vpop.f32.mrf.mxu0
        %1259 = vmatprep.mubr.f32.mxu0 0.0
        %1260 = vmatmul.mubr.f32.gmra.mxu0 %v1082
        %v1261 = vpop.f32.mrf.mxu0
        %v1262 = vadd.f32 0.0, %v1261
        %v1263 = vpop.f32.mrf.mxu0
        %1264 = vmatprep.mubr.f32.mxu0 0.0
        %1265 = vmatmul.mubr.f32.gmra.mxu0 %v1083
        %v1266 = vpop.f32.mrf.mxu0
        %v1267 = vadd.f32 0.0, %v1266
        %v1268 = vpop.f32.mrf.mxu0
        %1269 = vmatprep.mubr.f32.mxu0 0.0
        %1270 = vmatmul.mubr.f32.gmra.mxu0 %v1084
        %v1271 = vpop.f32.mrf.mxu0
        %v1272 = vadd.f32 0.0, %v1271
        %v1273 = vpop.f32.mrf.mxu0
        %1274 = vmatprep.mubr.f32.mxu0 0.0
        %1275 = vmatmul.mubr.f32.gmra.mxu0 %v1085
        %v1276 = vpop.f32.mrf.mxu0
        %v1277 = vadd.f32 0.0, %v1276
        %v1278 = vpop.f32.mrf.mxu0
        %1279 = vmatprep.mubr.f32.mxu0 0.0
        %1280 = vmatmul.mubr.f32.gmra.mxu0 %v1086
        %v1281 = vpop.f32.mrf.mxu0
        %v1282 = vadd.f32 0.0, %v1281
        %v1283 = vpop.f32.mrf.mxu0
        %1284 = vmatprep.mubr.f32.mxu0 0.0
        %1285 = vmatmul.mubr.f32.gmra.mxu0 %v1087
        %v1286 = vpop.f32.mrf.mxu0
        %v1287 = vadd.f32 0.0, %v1286
        %v1288 = vpop.f32.mrf.mxu0
        %1289 = vmatprep.mubr.f32.mxu0 0.0
        %1290 = vmatmul.mubr.f32.gmra.mxu0 %v1088
        %v1291 = vpop.f32.mrf.mxu0
        %v1292 = vadd.f32 0.0, %v1291
        %v1293 = vpop.f32.mrf.mxu0
        %1294 = vmatprep.mubr.f32.mxu0 0.0
        %1295 = vmatmul.mubr.f32.gmra.mxu0 %v1089
        %v1296 = vpop.f32.mrf.mxu0
        %v1297 = vadd.f32 0.0, %v1296
        %v1298 = vpop.f32.mrf.mxu0
        %1299 = vmatprep.mubr.f32.mxu0 0.0
        %1300 = vmatmul.mubr.f32.gmra.mxu0 %v1090
        %v1301 = vpop.f32.mrf.mxu0
        %v1302 = vadd.f32 0.0, %v1301
        %v1303 = vpop.f32.mrf.mxu0
        %1304 = vmatprep.mubr.f32.mxu0 0.0
        %1305 = vmatmul.mubr.f32.gmra.mxu0 %v1091
        %v1306 = vpop.f32.mrf.mxu0
        %v1307 = vadd.f32 0.0, %v1306
        %v1308 = vpop.f32.mrf.mxu0
        %1309 = vmatprep.mubr.f32.mxu0 0.0
        %1310 = vmatmul.mubr.f32.gmra.mxu0 %v1092
        %v1311 = vpop.f32.mrf.mxu0
        %v1312 = vadd.f32 0.0, %v1311
        %v1313 = vpop.f32.mrf.mxu0
        %1314 = vmatprep.mubr.f32.mxu0 0.0
        %1315 = vmatmul.mubr.f32.gmra.mxu0 %v1093
        %v1316 = vpop.f32.mrf.mxu0
        %v1317 = vadd.f32 0.0, %v1316
        %v1318 = vpop.f32.mrf.mxu0
        %1319 = vmatprep.mubr.f32.mxu0 0.0
        %1320 = vmatmul.mubr.f32.gmra.mxu0 %v1094
        %v1321 = vpop.f32.mrf.mxu0
        %v1322 = vadd.f32 0.0, %v1321
        %v1323 = vpop.f32.mrf.mxu0
        %1324 = vmatprep.mubr.f32.mxu0 0.0
        %1325 = vmatmul.mubr.f32.gmra.mxu0 %v1095
        %v1326 = vpop.f32.mrf.mxu0
        %v1327 = vadd.f32 0.0, %v1326
        %v1328 = vpop.f32.mrf.mxu0
        %1329 = vmatprep.mubr.f32.mxu0 0.0
        %1330 = vmatmul.mubr.f32.gmra.mxu0 %v1096
        %v1331 = vpop.f32.mrf.mxu0
        %v1332 = vadd.f32 0.0, %v1331
        %v1333 = vpop.f32.mrf.mxu0
        %1334 = vmatprep.mubr.f32.mxu0 0.0
        %1335 = vmatmul.mubr.f32.gmra.mxu0 %v1097
        %v1336 = vpop.f32.mrf.mxu0
        %v1337 = vadd.f32 0.0, %v1336
        %v1338 = vpop.f32.mrf.mxu0
        %1339 = vdwg.mxu0
        %v1340 = vld [vmem:[#allocation4] sm:$0xff]
        %v1341 = vld [vmem:[#allocation4 + $0x8] sm:$0xff]
        %v1342 = vld [vmem:[#allocation4 + $0x10] sm:$0xff]
        %v1343 = vld [vmem:[#allocation4 + $0x18] sm:$0xff]
        %v1344 = vld [vmem:[#allocation4 + $0x20] sm:$0xff]
        %v1345 = vld [vmem:[#allocation4 + $0x28] sm:$0xff]
        %v1346 = vld [vmem:[#allocation4 + $0x30] sm:$0xff]
        %v1347 = vld [vmem:[#allocation4 + $0x38] sm:$0xff]
        %v1348 = vld [vmem:[#allocation4 + $0x40] sm:$0xff]
        %v1349 = vld [vmem:[#allocation4 + $0x48] sm:$0xff]
        %v1350 = vld [vmem:[#allocation4 + $0x50] sm:$0xff]
        %v1351 = vld [vmem:[#allocation4 + $0x58] sm:$0xff]
        %v1352 = vld [vmem:[#allocation4 + $0x60] sm:$0xff]
        %v1353 = vld [vmem:[#allocation4 + $0x68] sm:$0xff]
        %v1354 = vld [vmem:[#allocation4 + $0x70] sm:$0xff]
        %v1355 = vld [vmem:[#allocation4 + $0x78] sm:$0xff]
        %v1356 = vld [vmem:[#allocation4 + $0x80] sm:$0xff]
        %v1357 = vld [vmem:[#allocation4 + $0x88] sm:$0xff]
        %v1358 = vld [vmem:[#allocation4 + $0x90] sm:$0xff]
        %v1359 = vld [vmem:[#allocation4 + $0x98] sm:$0xff]
        %v1360 = vld [vmem:[#allocation4 + $0xa0] sm:$0xff]
        %v1361 = vld [vmem:[#allocation4 + $0xa8] sm:$0xff]
        %v1362 = vld [vmem:[#allocation4 + $0xb0] sm:$0xff]
        %v1363 = vld [vmem:[#allocation4 + $0xb8] sm:$0xff]
        %v1364 = vld [vmem:[#allocation4 + $0xc0] sm:$0xff]
        %v1365 = vld [vmem:[#allocation4 + $0xc8] sm:$0xff]
        %v1366 = vld [vmem:[#allocation4 + $0xd0] sm:$0xff]
        %v1367 = vld [vmem:[#allocation4 + $0xd8] sm:$0xff]
        %v1368 = vld [vmem:[#allocation4 + $0xe0] sm:$0xff]
        %v1369 = vld [vmem:[#allocation4 + $0xe8] sm:$0xff]
        %v1370 = vld [vmem:[#allocation4 + $0xf0] sm:$0xff]
        %v1371 = vld [vmem:[#allocation4 + $0xf8] sm:$0xff]
        %v1372 = vadd.f32 %v1340, %v1182
        %v1373 = vadd.f32 %v1341, %v1187
        %v1374 = vadd.f32 %v1342, %v1192
        %v1375 = vadd.f32 %v1343, %v1197
        %v1376 = vadd.f32 %v1344, %v1202
        %v1377 = vadd.f32 %v1345, %v1207
        %v1378 = vadd.f32 %v1346, %v1212
        %v1379 = vadd.f32 %v1347, %v1217
        %v1380 = vadd.f32 %v1348, %v1222
        %v1381 = vadd.f32 %v1349, %v1227
        %v1382 = vadd.f32 %v1350, %v1232
        %v1383 = vadd.f32 %v1351, %v1237
        %v1384 = vadd.f32 %v1352, %v1242
        %v1385 = vadd.f32 %v1353, %v1247
        %v1386 = vadd.f32 %v1354, %v1252
        %v1387 = vadd.f32 %v1355, %v1257
        %v1388 = vadd.f32 %v1356, %v1262
        %v1389 = vadd.f32 %v1357, %v1267
        %v1390 = vadd.f32 %v1358, %v1272
        %v1391 = vadd.f32 %v1359, %v1277
        %v1392 = vadd.f32 %v1360, %v1282
        %v1393 = vadd.f32 %v1361, %v1287
        %v1394 = vadd.f32 %v1362, %v1292
        %v1395 = vadd.f32 %v1363, %v1297
        %v1396 = vadd.f32 %v1364, %v1302
        %v1397 = vadd.f32 %v1365, %v1307
        %v1398 = vadd.f32 %v1366, %v1312
        %v1399 = vadd.f32 %v1367, %v1317
        %v1400 = vadd.f32 %v1368, %v1322
        %v1401 = vadd.f32 %v1369, %v1327
        %v1402 = vadd.f32 %v1370, %v1332
        %v1403 = vadd.f32 %v1371, %v1337
        %1404 = vst [vmem:[#allocation4] sm:$0xff] %v1372
        %1405 = vst [vmem:[#allocation4 + $0x8] sm:$0xff] %v1373
        %1406 = vst [vmem:[#allocation4 + $0x10] sm:$0xff] %v1374
        %1407 = vst [vmem:[#allocation4 + $0x18] sm:$0xff] %v1375
        %1408 = vst [vmem:[#allocation4 + $0x20] sm:$0xff] %v1376
        %1409 = vst [vmem:[#allocation4 + $0x28] sm:$0xff] %v1377
        %1410 = vst [vmem:[#allocation4 + $0x30] sm:$0xff] %v1378
        %1411 = vst [vmem:[#allocation4 + $0x38] sm:$0xff] %v1379
        %1412 = vst [vmem:[#allocation4 + $0x40] sm:$0xff] %v1380
        %1413 = vst [vmem:[#allocation4 + $0x48] sm:$0xff] %v1381
        %1414 = vst [vmem:[#allocation4 + $0x50] sm:$0xff] %v1382
        %1415 = vst [vmem:[#allocation4 + $0x58] sm:$0xff] %v1383
        %1416 = vst [vmem:[#allocation4 + $0x60] sm:$0xff] %v1384
        %1417 = vst [vmem:[#allocation4 + $0x68] sm:$0xff] %v1385
        %1418 = vst [vmem:[#allocation4 + $0x70] sm:$0xff] %v1386
        %1419 = vst [vmem:[#allocation4 + $0x78] sm:$0xff] %v1387
        %1420 = vst [vmem:[#allocation4 + $0x80] sm:$0xff] %v1388
        %1421 = vst [vmem:[#allocation4 + $0x88] sm:$0xff] %v1389
        %1422 = vst [vmem:[#allocation4 + $0x90] sm:$0xff] %v1390
        %1423 = vst [vmem:[#allocation4 + $0x98] sm:$0xff] %v1391
        %1424 = vst [vmem:[#allocation4 + $0xa0] sm:$0xff] %v1392
        %1425 = vst [vmem:[#allocation4 + $0xa8] sm:$0xff] %v1393
        %1426 = vst [vmem:[#allocation4 + $0xb0] sm:$0xff] %v1394
        %1427 = vst [vmem:[#allocation4 + $0xb8] sm:$0xff] %v1395
        %1428 = vst [vmem:[#allocation4 + $0xc0] sm:$0xff] %v1396
        %1429 = vst [vmem:[#allocation4 + $0xc8] sm:$0xff] %v1397
        %1430 = vst [vmem:[#allocation4 + $0xd0] sm:$0xff] %v1398
        %1431 = vst [vmem:[#allocation4 + $0xd8] sm:$0xff] %v1399
        %1432 = vst [vmem:[#allocation4 + $0xe0] sm:$0xff] %v1400
        %1433 = vst [vmem:[#allocation4 + $0xe8] sm:$0xff] %v1401
        %1434 = vst [vmem:[#allocation4 + $0xf0] sm:$0xff] %v1402
        %1435 = vst [vmem:[#allocation4 + $0xf8] sm:$0xff] %v1403
        %v1436 = vld [vmem:[%s358] sm:$0xff]
        %v1437 = vld [vmem:[%s358 + $0x8] sm:$0xff]
        %v1438 = vld [vmem:[%s358 + $0x18] sm:$0xff]
        %v1439 = vld [vmem:[%s358 + $0x20] sm:$0xff]
        %v1440 = vld [vmem:[%s358 + $0x30] sm:$0xff]
        %v1441 = vld [vmem:[%s358 + $0x38] sm:$0xff]
        %v1442 = vld [vmem:[%s358 + $0x48] sm:$0xff]
        %v1443 = vld [vmem:[%s358 + $0x50] sm:$0xff]
        %v1444 = vld [vmem:[%s358 + $0x60] sm:$0xff]
        %v1445 = vld [vmem:[%s358 + $0x68] sm:$0xff]
        %v1446 = vld [vmem:[%s358 + $0x78] sm:$0xff]
        %v1447 = vld [vmem:[%s358 + $0x80] sm:$0xff]
        %v1448 = vld [vmem:[%s358 + $0x90] sm:$0xff]
        %v1449 = vld [vmem:[%s358 + $0x98] sm:$0xff]
        %v1450 = vld [vmem:[%s358 + $0xa8] sm:$0xff]
        %v1451 = vld [vmem:[%s358 + $0xb0] sm:$0xff]
        %v1452 = vld [vmem:[%s358 + $0xc0] sm:$0xff]
        %v1453 = vld [vmem:[%s358 + $0xc8] sm:$0xff]
        %v1454 = vld [vmem:[%s358 + $0xd8] sm:$0xff]
        %v1455 = vld [vmem:[%s358 + $0xe0] sm:$0xff]
        %v1456 = vld [vmem:[%s358 + $0xf0] sm:$0xff]
        %v1457 = vld [vmem:[%s358 + $0xf8] sm:$0xff]
        %v1458 = vld [vmem:[%s358 + $0x108] sm:$0xff]
        %v1459 = vld [vmem:[%s358 + $0x110] sm:$0xff]
        %v1460 = vld [vmem:[%s358 + $0x120] sm:$0xff]
        %v1461 = vld [vmem:[%s358 + $0x128] sm:$0xff]
        %v1462 = vld [vmem:[%s358 + $0x138] sm:$0xff]
        %v1463 = vld [vmem:[%s358 + $0x140] sm:$0xff]
        %v1464 = vld [vmem:[%s358 + $0x150] sm:$0xff]
        %v1465 = vld [vmem:[%s358 + $0x158] sm:$0xff]
        %v1466 = vld [vmem:[%s358 + $0x168] sm:$0xff]
        %v1467 = vld [vmem:[%s358 + $0x170] sm:$0xff]
        %s1468 = scalar_lea.vmem %s1, 384
        %v1469 = vld [vmem:[%s1468] sm:$0xff]
        %v1470 = vld [vmem:[%s1468 + $0x8] sm:$0xff]
        %v1471 = vld [vmem:[%s1468 + $0x10] sm:$0xff]
        %v1472 = vld [vmem:[%s1468 + $0x18] sm:$0xff]
        %v1473 = vld [vmem:[%s1468 + $0x20] sm:$0xff]
        %v1474 = vld [vmem:[%s1468 + $0x28] sm:$0xff]
        %v1475 = vld [vmem:[%s1468 + $0x30] sm:$0xff]
        %v1476 = vld [vmem:[%s1468 + $0x38] sm:$0xff]
        %v1477 = vld [vmem:[%s1468 + $0x40] sm:$0xff]
        %v1478 = vld [vmem:[%s1468 + $0x48] sm:$0xff]
        %v1479 = vld [vmem:[%s1468 + $0x50] sm:$0xff]
        %v1480 = vld [vmem:[%s1468 + $0x58] sm:$0xff]
        %v1481 = vld [vmem:[%s1468 + $0x60] sm:$0xff]
        %v1482 = vld [vmem:[%s1468 + $0x68] sm:$0xff]
        %v1483 = vld [vmem:[%s1468 + $0x70] sm:$0xff]
        %v1484 = vld [vmem:[%s1468 + $0x78] sm:$0xff]
        %1485 = vmatprep.subr.mxu0 0.0
        %1486 = vmatpush1.msra.mxu0 %v1484
        %1487 = vmatprep.subr.mxu0 0.0
        %1488 = vmatpush1.msra.mxu0 %v1483
        %1489 = vmatprep.subr.mxu0 0.0
        %1490 = vmatpush1.msra.mxu0 %v1482
        %1491 = vmatprep.subr.mxu0 0.0
        %1492 = vmatpush1.msra.mxu0 %v1481
        %1493 = vmatprep.subr.mxu0 0.0
        %1494 = vmatpush1.msra.mxu0 %v1480
        %1495 = vmatprep.subr.mxu0 0.0
        %1496 = vmatpush1.msra.mxu0 %v1479
        %1497 = vmatprep.subr.mxu0 0.0
        %1498 = vmatpush1.msra.mxu0 %v1478
        %1499 = vmatprep.subr.mxu0 0.0
        %1500 = vmatpush1.msra.mxu0 %v1477
        %1501 = vmatprep.subr.mxu0 0.0
        %1502 = vmatpush1.msra.mxu0 %v1476
        %1503 = vmatprep.subr.mxu0 0.0
        %1504 = vmatpush1.msra.mxu0 %v1475
        %1505 = vmatprep.subr.mxu0 0.0
        %1506 = vmatpush1.msra.mxu0 %v1474
        %1507 = vmatprep.subr.mxu0 0.0
        %1508 = vmatpush1.msra.mxu0 %v1473
        %1509 = vmatprep.subr.mxu0 0.0
        %1510 = vmatpush1.msra.mxu0 %v1472
        %1511 = vmatprep.subr.mxu0 0.0
        %1512 = vmatpush1.msra.mxu0 %v1471
        %1513 = vmatprep.subr.mxu0 0.0
        %1514 = vmatpush1.msra.mxu0 %v1470
        %1515 = vmatprep.subr.mxu0 0.0
        %1516 = vmatpush1.msra.mxu0 %v1469
        %1517 = vmatprep.subr.mxu0 0.0
        %1518 = vmatpush2.msra.mxu0 0.0
        %1519 = vmatprep.subr.mxu0 0.0
        %1520 = vmatpush2.msra.mxu0 0.0
        %1521 = vmatprep.subr.mxu0 0.0
        %1522 = vmatpush2.msra.mxu0 0.0
        %1523 = vmatprep.subr.mxu0 0.0
        %1524 = vmatpush2.msra.mxu0 0.0
        %1525 = vmatprep.subr.mxu0 0.0
        %1526 = vmatpush2.msra.mxu0 0.0
        %1527 = vmatprep.subr.mxu0 0.0
        %1528 = vmatpush2.msra.mxu0 0.0
        %1529 = vmatprep.subr.mxu0 0.0
        %1530 = vmatpush2.msra.mxu0 0.0
        %1531 = vmatprep.subr.mxu0 0.0
        %1532 = vmatpush2.msra.mxu0 0.0
        %1533 = vmatprep.subr.mxu0 0.0
        %1534 = vmatpush2.msra.mxu0 0.0
        %1535 = vmatprep.subr.mxu0 0.0
        %1536 = vmatpush2.msra.mxu0 0.0
        %1537 = vmatprep.subr.mxu0 0.0
        %1538 = vmatpush2.msra.mxu0 0.0
        %1539 = vmatprep.subr.mxu0 0.0
        %1540 = vmatpush2.msra.mxu0 0.0
        %1541 = vmatprep.subr.mxu0 0.0
        %1542 = vmatpush2.msra.mxu0 0.0
        %1543 = vmatprep.subr.mxu0 0.0
        %1544 = vmatpush2.msra.mxu0 0.0
        %1545 = vmatprep.subr.mxu0 0.0
        %1546 = vmatpush2.msra.mxu0 0.0
        %1547 = vmatprep.subr.mxu0 0.0
        %1548 = vmatpush2.msra.mxu0 0.0
        %1549 = vmatprep.mubr.f32.mxu0 0.0
        %1550 = vmatmul.mubr.f32.gmra.mxu0 %v1436
        %v1551 = vpop.f32.mrf.mxu0
        %v1552 = vadd.f32 0.0, %v1551
        %v1553 = vpop.f32.mrf.mxu0
        %1554 = vmatprep.mubr.f32.mxu0 0.0
        %1555 = vmatmul.mubr.f32.gmra.mxu0 %v1437
        %v1556 = vpop.f32.mrf.mxu0
        %v1557 = vadd.f32 0.0, %v1556
        %v1558 = vpop.f32.mrf.mxu0
        %1559 = vmatprep.mubr.f32.mxu0 0.0
        %1560 = vmatmul.mubr.f32.gmra.mxu0 %v1438
        %v1561 = vpop.f32.mrf.mxu0
        %v1562 = vadd.f32 0.0, %v1561
        %v1563 = vpop.f32.mrf.mxu0
        %1564 = vmatprep.mubr.f32.mxu0 0.0
        %1565 = vmatmul.mubr.f32.gmra.mxu0 %v1439
        %v1566 = vpop.f32.mrf.mxu0
        %v1567 = vadd.f32 0.0, %v1566
        %v1568 = vpop.f32.mrf.mxu0
        %1569 = vmatprep.mubr.f32.mxu0 0.0
        %1570 = vmatmul.mubr.f32.gmra.mxu0 %v1440
        %v1571 = vpop.f32.mrf.mxu0
        %v1572 = vadd.f32 0.0, %v1571
        %v1573 = vpop.f32.mrf.mxu0
        %1574 = vmatprep.mubr.f32.mxu0 0.0
        %1575 = vmatmul.mubr.f32.gmra.mxu0 %v1441
        %v1576 = vpop.f32.mrf.mxu0
        %v1577 = vadd.f32 0.0, %v1576
        %v1578 = vpop.f32.mrf.mxu0
        %1579 = vmatprep.mubr.f32.mxu0 0.0
        %1580 = vmatmul.mubr.f32.gmra.mxu0 %v1442
        %v1581 = vpop.f32.mrf.mxu0
        %v1582 = vadd.f32 0.0, %v1581
        %v1583 = vpop.f32.mrf.mxu0
        %1584 = vmatprep.mubr.f32.mxu0 0.0
        %1585 = vmatmul.mubr.f32.gmra.mxu0 %v1443
        %v1586 = vpop.f32.mrf.mxu0
        %v1587 = vadd.f32 0.0, %v1586
        %v1588 = vpop.f32.mrf.mxu0
        %1589 = vmatprep.mubr.f32.mxu0 0.0
        %1590 = vmatmul.mubr.f32.gmra.mxu0 %v1444
        %v1591 = vpop.f32.mrf.mxu0
        %v1592 = vadd.f32 0.0, %v1591
        %v1593 = vpop.f32.mrf.mxu0
        %1594 = vmatprep.mubr.f32.mxu0 0.0
        %1595 = vmatmul.mubr.f32.gmra.mxu0 %v1445
        %v1596 = vpop.f32.mrf.mxu0
        %v1597 = vadd.f32 0.0, %v1596
        %v1598 = vpop.f32.mrf.mxu0
        %1599 = vmatprep.mubr.f32.mxu0 0.0
        %1600 = vmatmul.mubr.f32.gmra.mxu0 %v1446
        %v1601 = vpop.f32.mrf.mxu0
        %v1602 = vadd.f32 0.0, %v1601
        %v1603 = vpop.f32.mrf.mxu0
        %1604 = vmatprep.mubr.f32.mxu0 0.0
        %1605 = vmatmul.mubr.f32.gmra.mxu0 %v1447
        %v1606 = vpop.f32.mrf.mxu0
        %v1607 = vadd.f32 0.0, %v1606
        %v1608 = vpop.f32.mrf.mxu0
        %1609 = vmatprep.mubr.f32.mxu0 0.0
        %1610 = vmatmul.mubr.f32.gmra.mxu0 %v1448
        %v1611 = vpop.f32.mrf.mxu0
        %v1612 = vadd.f32 0.0, %v1611
        %v1613 = vpop.f32.mrf.mxu0
        %1614 = vmatprep.mubr.f32.mxu0 0.0
        %1615 = vmatmul.mubr.f32.gmra.mxu0 %v1449
        %v1616 = vpop.f32.mrf.mxu0
        %v1617 = vadd.f32 0.0, %v1616
        %v1618 = vpop.f32.mrf.mxu0
        %1619 = vmatprep.mubr.f32.mxu0 0.0
        %1620 = vmatmul.mubr.f32.gmra.mxu0 %v1450
        %v1621 = vpop.f32.mrf.mxu0
        %v1622 = vadd.f32 0.0, %v1621
        %v1623 = vpop.f32.mrf.mxu0
        %1624 = vmatprep.mubr.f32.mxu0 0.0
        %1625 = vmatmul.mubr.f32.gmra.mxu0 %v1451
        %v1626 = vpop.f32.mrf.mxu0
        %v1627 = vadd.f32 0.0, %v1626
        %v1628 = vpop.f32.mrf.mxu0
        %1629 = vmatprep.mubr.f32.mxu0 0.0
        %1630 = vmatmul.mubr.f32.gmra.mxu0 %v1452
        %v1631 = vpop.f32.mrf.mxu0
        %v1632 = vadd.f32 0.0, %v1631
        %v1633 = vpop.f32.mrf.mxu0
        %1634 = vmatprep.mubr.f32.mxu0 0.0
        %1635 = vmatmul.mubr.f32.gmra.mxu0 %v1453
        %v1636 = vpop.f32.mrf.mxu0
        %v1637 = vadd.f32 0.0, %v1636
        %v1638 = vpop.f32.mrf.mxu0
        %1639 = vmatprep.mubr.f32.mxu0 0.0
        %1640 = vmatmul.mubr.f32.gmra.mxu0 %v1454
        %v1641 = vpop.f32.mrf.mxu0
        %v1642 = vadd.f32 0.0, %v1641
        %v1643 = vpop.f32.mrf.mxu0
        %1644 = vmatprep.mubr.f32.mxu0 0.0
        %1645 = vmatmul.mubr.f32.gmra.mxu0 %v1455
        %v1646 = vpop.f32.mrf.mxu0
        %v1647 = vadd.f32 0.0, %v1646
        %v1648 = vpop.f32.mrf.mxu0
        %1649 = vmatprep.mubr.f32.mxu0 0.0
        %1650 = vmatmul.mubr.f32.gmra.mxu0 %v1456
        %v1651 = vpop.f32.mrf.mxu0
        %v1652 = vadd.f32 0.0, %v1651
        %v1653 = vpop.f32.mrf.mxu0
        %1654 = vmatprep.mubr.f32.mxu0 0.0
        %1655 = vmatmul.mubr.f32.gmra.mxu0 %v1457
        %v1656 = vpop.f32.mrf.mxu0
        %v1657 = vadd.f32 0.0, %v1656
        %v1658 = vpop.f32.mrf.mxu0
        %1659 = vmatprep.mubr.f32.mxu0 0.0
        %1660 = vmatmul.mubr.f32.gmra.mxu0 %v1458
        %v1661 = vpop.f32.mrf.mxu0
        %v1662 = vadd.f32 0.0, %v1661
        %v1663 = vpop.f32.mrf.mxu0
        %1664 = vmatprep.mubr.f32.mxu0 0.0
        %1665 = vmatmul.mubr.f32.gmra.mxu0 %v1459
        %v1666 = vpop.f32.mrf.mxu0
        %v1667 = vadd.f32 0.0, %v1666
        %v1668 = vpop.f32.mrf.mxu0
        %1669 = vmatprep.mubr.f32.mxu0 0.0
        %1670 = vmatmul.mubr.f32.gmra.mxu0 %v1460
        %v1671 = vpop.f32.mrf.mxu0
        %v1672 = vadd.f32 0.0, %v1671
        %v1673 = vpop.f32.mrf.mxu0
        %1674 = vmatprep.mubr.f32.mxu0 0.0
        %1675 = vmatmul.mubr.f32.gmra.mxu0 %v1461
        %v1676 = vpop.f32.mrf.mxu0
        %v1677 = vadd.f32 0.0, %v1676
        %v1678 = vpop.f32.mrf.mxu0
        %1679 = vmatprep.mubr.f32.mxu0 0.0
        %1680 = vmatmul.mubr.f32.gmra.mxu0 %v1462
        %v1681 = vpop.f32.mrf.mxu0
        %v1682 = vadd.f32 0.0, %v1681
        %v1683 = vpop.f32.mrf.mxu0
        %1684 = vmatprep.mubr.f32.mxu0 0.0
        %1685 = vmatmul.mubr.f32.gmra.mxu0 %v1463
        %v1686 = vpop.f32.mrf.mxu0
        %v1687 = vadd.f32 0.0, %v1686
        %v1688 = vpop.f32.mrf.mxu0
        %1689 = vmatprep.mubr.f32.mxu0 0.0
        %1690 = vmatmul.mubr.f32.gmra.mxu0 %v1464
        %v1691 = vpop.f32.mrf.mxu0
        %v1692 = vadd.f32 0.0, %v1691
        %v1693 = vpop.f32.mrf.mxu0
        %1694 = vmatprep.mubr.f32.mxu0 0.0
        %1695 = vmatmul.mubr.f32.gmra.mxu0 %v1465
        %v1696 = vpop.f32.mrf.mxu0
        %v1697 = vadd.f32 0.0, %v1696
        %v1698 = vpop.f32.mrf.mxu0
        %1699 = vmatprep.mubr.f32.mxu0 0.0
        %1700 = vmatmul.mubr.f32.gmra.mxu0 %v1466
        %v1701 = vpop.f32.mrf.mxu0
        %v1702 = vadd.f32 0.0, %v1701
        %v1703 = vpop.f32.mrf.mxu0
        %1704 = vmatprep.mubr.f32.mxu0 0.0
        %1705 = vmatmul.mubr.f32.gmra.mxu0 %v1467
        %v1706 = vpop.f32.mrf.mxu0
        %v1707 = vadd.f32 0.0, %v1706
        %v1708 = vpop.f32.mrf.mxu0
        %1709 = vdwg.mxu0
        %v1710 = vld [vmem:[#allocation4] sm:$0xff]
        %v1711 = vld [vmem:[#allocation4 + $0x8] sm:$0xff]
        %v1712 = vld [vmem:[#allocation4 + $0x10] sm:$0xff]
        %v1713 = vld [vmem:[#allocation4 + $0x18] sm:$0xff]
        %v1714 = vld [vmem:[#allocation4 + $0x20] sm:$0xff]
        %v1715 = vld [vmem:[#allocation4 + $0x28] sm:$0xff]
        %v1716 = vld [vmem:[#allocation4 + $0x30] sm:$0xff]
        %v1717 = vld [vmem:[#allocation4 + $0x38] sm:$0xff]
        %v1718 = vld [vmem:[#allocation4 + $0x40] sm:$0xff]
        %v1719 = vld [vmem:[#allocation4 + $0x48] sm:$0xff]
        %v1720 = vld [vmem:[#allocation4 + $0x50] sm:$0xff]
        %v1721 = vld [vmem:[#allocation4 + $0x58] sm:$0xff]
        %v1722 = vld [vmem:[#allocation4 + $0x60] sm:$0xff]
        %v1723 = vld [vmem:[#allocation4 + $0x68] sm:$0xff]
        %v1724 = vld [vmem:[#allocation4 + $0x70] sm:$0xff]
        %v1725 = vld [vmem:[#allocation4 + $0x78] sm:$0xff]
        %v1726 = vld [vmem:[#allocation4 + $0x80] sm:$0xff]
        %v1727 = vld [vmem:[#allocation4 + $0x88] sm:$0xff]
        %v1728 = vld [vmem:[#allocation4 + $0x90] sm:$0xff]
        %v1729 = vld [vmem:[#allocation4 + $0x98] sm:$0xff]
        %v1730 = vld [vmem:[#allocation4 + $0xa0] sm:$0xff]
        %v1731 = vld [vmem:[#allocation4 + $0xa8] sm:$0xff]
        %v1732 = vld [vmem:[#allocation4 + $0xb0] sm:$0xff]
        %v1733 = vld [vmem:[#allocation4 + $0xb8] sm:$0xff]
        %v1734 = vld [vmem:[#allocation4 + $0xc0] sm:$0xff]
        %v1735 = vld [vmem:[#allocation4 + $0xc8] sm:$0xff]
        %v1736 = vld [vmem:[#allocation4 + $0xd0] sm:$0xff]
        %v1737 = vld [vmem:[#allocation4 + $0xd8] sm:$0xff]
        %v1738 = vld [vmem:[#allocation4 + $0xe0] sm:$0xff]
        %v1739 = vld [vmem:[#allocation4 + $0xe8] sm:$0xff]
        %v1740 = vld [vmem:[#allocation4 + $0xf0] sm:$0xff]
        %v1741 = vld [vmem:[#allocation4 + $0xf8] sm:$0xff]
        %v1742 = vadd.f32 %v1710, %v1552
        %v1743 = vadd.f32 %v1711, %v1557
        %v1744 = vadd.f32 %v1712, %v1562
        %v1745 = vadd.f32 %v1713, %v1567
        %v1746 = vadd.f32 %v1714, %v1572
        %v1747 = vadd.f32 %v1715, %v1577
        %v1748 = vadd.f32 %v1716, %v1582
        %v1749 = vadd.f32 %v1717, %v1587
        %v1750 = vadd.f32 %v1718, %v1592
        %v1751 = vadd.f32 %v1719, %v1597
        %v1752 = vadd.f32 %v1720, %v1602
        %v1753 = vadd.f32 %v1721, %v1607
        %v1754 = vadd.f32 %v1722, %v1612
        %v1755 = vadd.f32 %v1723, %v1617
        %v1756 = vadd.f32 %v1724, %v1622
        %v1757 = vadd.f32 %v1725, %v1627
        %v1758 = vadd.f32 %v1726, %v1632
        %v1759 = vadd.f32 %v1727, %v1637
        %v1760 = vadd.f32 %v1728, %v1642
        %v1761 = vadd.f32 %v1729, %v1647
        %v1762 = vadd.f32 %v1730, %v1652
        %v1763 = vadd.f32 %v1731, %v1657
        %v1764 = vadd.f32 %v1732, %v1662
        %v1765 = vadd.f32 %v1733, %v1667
        %v1766 = vadd.f32 %v1734, %v1672
        %v1767 = vadd.f32 %v1735, %v1677
        %v1768 = vadd.f32 %v1736, %v1682
        %v1769 = vadd.f32 %v1737, %v1687
        %v1770 = vadd.f32 %v1738, %v1692
        %v1771 = vadd.f32 %v1739, %v1697
        %v1772 = vadd.f32 %v1740, %v1702
        %v1773 = vadd.f32 %v1741, %v1707
        %1774 = vst [vmem:[#allocation4] sm:$0xff] %v1742
        %1775 = vst [vmem:[#allocation4 + $0x8] sm:$0xff] %v1743
        %1776 = vst [vmem:[#allocation4 + $0x10] sm:$0xff] %v1744
        %1777 = vst [vmem:[#allocation4 + $0x18] sm:$0xff] %v1745
        %1778 = vst [vmem:[#allocation4 + $0x20] sm:$0xff] %v1746
        %1779 = vst [vmem:[#allocation4 + $0x28] sm:$0xff] %v1747
        %1780 = vst [vmem:[#allocation4 + $0x30] sm:$0xff] %v1748
        %1781 = vst [vmem:[#allocation4 + $0x38] sm:$0xff] %v1749
        %1782 = vst [vmem:[#allocation4 + $0x40] sm:$0xff] %v1750
        %1783 = vst [vmem:[#allocation4 + $0x48] sm:$0xff] %v1751
        %1784 = vst [vmem:[#allocation4 + $0x50] sm:$0xff] %v1752
        %1785 = vst [vmem:[#allocation4 + $0x58] sm:$0xff] %v1753
        %1786 = vst [vmem:[#allocation4 + $0x60] sm:$0xff] %v1754
        %1787 = vst [vmem:[#allocation4 + $0x68] sm:$0xff] %v1755
        %1788 = vst [vmem:[#allocation4 + $0x70] sm:$0xff] %v1756
        %1789 = vst [vmem:[#allocation4 + $0x78] sm:$0xff] %v1757
        %1790 = vst [vmem:[#allocation4 + $0x80] sm:$0xff] %v1758
        %1791 = vst [vmem:[#allocation4 + $0x88] sm:$0xff] %v1759
        %1792 = vst [vmem:[#allocation4 + $0x90] sm:$0xff] %v1760
        %1793 = vst [vmem:[#allocation4 + $0x98] sm:$0xff] %v1761
        %1794 = vst [vmem:[#allocation4 + $0xa0] sm:$0xff] %v1762
        %1795 = vst [vmem:[#allocation4 + $0xa8] sm:$0xff] %v1763
        %1796 = vst [vmem:[#allocation4 + $0xb0] sm:$0xff] %v1764
        %1797 = vst [vmem:[#allocation4 + $0xb8] sm:$0xff] %v1765
        %1798 = vst [vmem:[#allocation4 + $0xc0] sm:$0xff] %v1766
        %1799 = vst [vmem:[#allocation4 + $0xc8] sm:$0xff] %v1767
        %1800 = vst [vmem:[#allocation4 + $0xd0] sm:$0xff] %v1768
        %1801 = vst [vmem:[#allocation4 + $0xd8] sm:$0xff] %v1769
        %1802 = vst [vmem:[#allocation4 + $0xe0] sm:$0xff] %v1770
        %1803 = vst [vmem:[#allocation4 + $0xe8] sm:$0xff] %v1771
        %1804 = vst [vmem:[#allocation4 + $0xf0] sm:$0xff] %v1772
        %1805 = vst [vmem:[#allocation4 + $0xf8] sm:$0xff] %v1773
        %v1806 = vld [vmem:[%s358 + $0x1] sm:$0xff]
        %v1807 = vld [vmem:[%s358 + $0x9] sm:$0xff]
        %v1808 = vld [vmem:[%s358 + $0x19] sm:$0xff]
        %v1809 = vld [vmem:[%s358 + $0x21] sm:$0xff]
        %v1810 = vld [vmem:[%s358 + $0x31] sm:$0xff]
        %v1811 = vld [vmem:[%s358 + $0x39] sm:$0xff]
        %v1812 = vld [vmem:[%s358 + $0x49] sm:$0xff]
        %v1813 = vld [vmem:[%s358 + $0x51] sm:$0xff]
        %v1814 = vld [vmem:[%s358 + $0x61] sm:$0xff]
        %v1815 = vld [vmem:[%s358 + $0x69] sm:$0xff]
        %v1816 = vld [vmem:[%s358 + $0x79] sm:$0xff]
        %v1817 = vld [vmem:[%s358 + $0x81] sm:$0xff]
        %v1818 = vld [vmem:[%s358 + $0x91] sm:$0xff]
        %v1819 = vld [vmem:[%s358 + $0x99] sm:$0xff]
        %v1820 = vld [vmem:[%s358 + $0xa9] sm:$0xff]
        %v1821 = vld [vmem:[%s358 + $0xb1] sm:$0xff]
        %v1822 = vld [vmem:[%s358 + $0xc1] sm:$0xff]
        %v1823 = vld [vmem:[%s358 + $0xc9] sm:$0xff]
        %v1824 = vld [vmem:[%s358 + $0xd9] sm:$0xff]
        %v1825 = vld [vmem:[%s358 + $0xe1] sm:$0xff]
        %v1826 = vld [vmem:[%s358 + $0xf1] sm:$0xff]
        %v1827 = vld [vmem:[%s358 + $0xf9] sm:$0xff]
        %v1828 = vld [vmem:[%s358 + $0x109] sm:$0xff]
        %v1829 = vld [vmem:[%s358 + $0x111] sm:$0xff]
        %v1830 = vld [vmem:[%s358 + $0x121] sm:$0xff]
        %v1831 = vld [vmem:[%s358 + $0x129] sm:$0xff]
        %v1832 = vld [vmem:[%s358 + $0x139] sm:$0xff]
        %v1833 = vld [vmem:[%s358 + $0x141] sm:$0xff]
        %v1834 = vld [vmem:[%s358 + $0x151] sm:$0xff]
        %v1835 = vld [vmem:[%s358 + $0x159] sm:$0xff]
        %v1836 = vld [vmem:[%s358 + $0x169] sm:$0xff]
        %v1837 = vld [vmem:[%s358 + $0x171] sm:$0xff]
        %s1838 = scalar_lea.vmem %s1, 512
        %v1839 = vld [vmem:[%s1838] sm:$0xff]
        %v1840 = vld [vmem:[%s1838 + $0x8] sm:$0xff]
        %v1841 = vld [vmem:[%s1838 + $0x10] sm:$0xff]
        %v1842 = vld [vmem:[%s1838 + $0x18] sm:$0xff]
        %v1843 = vld [vmem:[%s1838 + $0x20] sm:$0xff]
        %v1844 = vld [vmem:[%s1838 + $0x28] sm:$0xff]
        %v1845 = vld [vmem:[%s1838 + $0x30] sm:$0xff]
        %v1846 = vld [vmem:[%s1838 + $0x38] sm:$0xff]
        %v1847 = vld [vmem:[%s1838 + $0x40] sm:$0xff]
        %v1848 = vld [vmem:[%s1838 + $0x48] sm:$0xff]
        %v1849 = vld [vmem:[%s1838 + $0x50] sm:$0xff]
        %v1850 = vld [vmem:[%s1838 + $0x58] sm:$0xff]
        %v1851 = vld [vmem:[%s1838 + $0x60] sm:$0xff]
        %v1852 = vld [vmem:[%s1838 + $0x68] sm:$0xff]
        %v1853 = vld [vmem:[%s1838 + $0x70] sm:$0xff]
        %v1854 = vld [vmem:[%s1838 + $0x78] sm:$0xff]
        %1855 = vmatprep.subr.mxu0 0.0
        %1856 = vmatpush1.msra.mxu0 %v1854
        %1857 = vmatprep.subr.mxu0 0.0
        %1858 = vmatpush1.msra.mxu0 %v1853
        %1859 = vmatprep.subr.mxu0 0.0
        %1860 = vmatpush1.msra.mxu0 %v1852
        %1861 = vmatprep.subr.mxu0 0.0
        %1862 = vmatpush1.msra.mxu0 %v1851
        %1863 = vmatprep.subr.mxu0 0.0
        %1864 = vmatpush1.msra.mxu0 %v1850
        %1865 = vmatprep.subr.mxu0 0.0
        %1866 = vmatpush1.msra.mxu0 %v1849
        %1867 = vmatprep.subr.mxu0 0.0
        %1868 = vmatpush1.msra.mxu0 %v1848
        %1869 = vmatprep.subr.mxu0 0.0
        %1870 = vmatpush1.msra.mxu0 %v1847
        %1871 = vmatprep.subr.mxu0 0.0
        %1872 = vmatpush1.msra.mxu0 %v1846
        %1873 = vmatprep.subr.mxu0 0.0
        %1874 = vmatpush1.msra.mxu0 %v1845
        %1875 = vmatprep.subr.mxu0 0.0
        %1876 = vmatpush1.msra.mxu0 %v1844
        %1877 = vmatprep.subr.mxu0 0.0
        %1878 = vmatpush1.msra.mxu0 %v1843
        %1879 = vmatprep.subr.mxu0 0.0
        %1880 = vmatpush1.msra.mxu0 %v1842
        %1881 = vmatprep.subr.mxu0 0.0
        %1882 = vmatpush1.msra.mxu0 %v1841
        %1883 = vmatprep.subr.mxu0 0.0
        %1884 = vmatpush1.msra.mxu0 %v1840
        %1885 = vmatprep.subr.mxu0 0.0
        %1886 = vmatpush1.msra.mxu0 %v1839
        %1887 = vmatprep.subr.mxu0 0.0
        %1888 = vmatpush2.msra.mxu0 0.0
        %1889 = vmatprep.subr.mxu0 0.0
        %1890 = vmatpush2.msra.mxu0 0.0
        %1891 = vmatprep.subr.mxu0 0.0
        %1892 = vmatpush2.msra.mxu0 0.0
        %1893 = vmatprep.subr.mxu0 0.0
        %1894 = vmatpush2.msra.mxu0 0.0
        %1895 = vmatprep.subr.mxu0 0.0
        %1896 = vmatpush2.msra.mxu0 0.0
        %1897 = vmatprep.subr.mxu0 0.0
        %1898 = vmatpush2.msra.mxu0 0.0
        %1899 = vmatprep.subr.mxu0 0.0
        %1900 = vmatpush2.msra.mxu0 0.0
        %1901 = vmatprep.subr.mxu0 0.0
        %1902 = vmatpush2.msra.mxu0 0.0
        %1903 = vmatprep.subr.mxu0 0.0
        %1904 = vmatpush2.msra.mxu0 0.0
        %1905 = vmatprep.subr.mxu0 0.0
        %1906 = vmatpush2.msra.mxu0 0.0
        %1907 = vmatprep.subr.mxu0 0.0
        %1908 = vmatpush2.msra.mxu0 0.0
        %1909 = vmatprep.subr.mxu0 0.0
        %1910 = vmatpush2.msra.mxu0 0.0
        %1911 = vmatprep.subr.mxu0 0.0
        %1912 = vmatpush2.msra.mxu0 0.0
        %1913 = vmatprep.subr.mxu0 0.0
        %1914 = vmatpush2.msra.mxu0 0.0
        %1915 = vmatprep.subr.mxu0 0.0
        %1916 = vmatpush2.msra.mxu0 0.0
        %1917 = vmatprep.subr.mxu0 0.0
        %1918 = vmatpush2.msra.mxu0 0.0
        %1919 = vmatprep.mubr.f32.mxu0 0.0
        %1920 = vmatmul.mubr.f32.gmra.mxu0 %v1806
        %v1921 = vpop.f32.mrf.mxu0
        %v1922 = vadd.f32 0.0, %v1921
        %v1923 = vpop.f32.mrf.mxu0
        %1924 = vmatprep.mubr.f32.mxu0 0.0
        %1925 = vmatmul.mubr.f32.gmra.mxu0 %v1807
        %v1926 = vpop.f32.mrf.mxu0
        %v1927 = vadd.f32 0.0, %v1926
        %v1928 = vpop.f32.mrf.mxu0
        %1929 = vmatprep.mubr.f32.mxu0 0.0
        %1930 = vmatmul.mubr.f32.gmra.mxu0 %v1808
        %v1931 = vpop.f32.mrf.mxu0
        %v1932 = vadd.f32 0.0, %v1931
        %v1933 = vpop.f32.mrf.mxu0
        %1934 = vmatprep.mubr.f32.mxu0 0.0
        %1935 = vmatmul.mubr.f32.gmra.mxu0 %v1809
        %v1936 = vpop.f32.mrf.mxu0
        %v1937 = vadd.f32 0.0, %v1936
        %v1938 = vpop.f32.mrf.mxu0
        %1939 = vmatprep.mubr.f32.mxu0 0.0
        %1940 = vmatmul.mubr.f32.gmra.mxu0 %v1810
        %v1941 = vpop.f32.mrf.mxu0
        %v1942 = vadd.f32 0.0, %v1941
        %v1943 = vpop.f32.mrf.mxu0
        %1944 = vmatprep.mubr.f32.mxu0 0.0
        %1945 = vmatmul.mubr.f32.gmra.mxu0 %v1811
        %v1946 = vpop.f32.mrf.mxu0
        %v1947 = vadd.f32 0.0, %v1946
        %v1948 = vpop.f32.mrf.mxu0
        %1949 = vmatprep.mubr.f32.mxu0 0.0
        %1950 = vmatmul.mubr.f32.gmra.mxu0 %v1812
        %v1951 = vpop.f32.mrf.mxu0
        %v1952 = vadd.f32 0.0, %v1951
        %v1953 = vpop.f32.mrf.mxu0
        %1954 = vmatprep.mubr.f32.mxu0 0.0
        %1955 = vmatmul.mubr.f32.gmra.mxu0 %v1813
        %v1956 = vpop.f32.mrf.mxu0
        %v1957 = vadd.f32 0.0, %v1956
        %v1958 = vpop.f32.mrf.mxu0
        %1959 = vmatprep.mubr.f32.mxu0 0.0
        %1960 = vmatmul.mubr.f32.gmra.mxu0 %v1814
        %v1961 = vpop.f32.mrf.mxu0
        %v1962 = vadd.f32 0.0, %v1961
        %v1963 = vpop.f32.mrf.mxu0
        %1964 = vmatprep.mubr.f32.mxu0 0.0
        %1965 = vmatmul.mubr.f32.gmra.mxu0 %v1815
        %v1966 = vpop.f32.mrf.mxu0
        %v1967 = vadd.f32 0.0, %v1966
        %v1968 = vpop.f32.mrf.mxu0
        %1969 = vmatprep.mubr.f32.mxu0 0.0
        %1970 = vmatmul.mubr.f32.gmra.mxu0 %v1816
        %v1971 = vpop.f32.mrf.mxu0
        %v1972 = vadd.f32 0.0, %v1971
        %v1973 = vpop.f32.mrf.mxu0
        %1974 = vmatprep.mubr.f32.mxu0 0.0
        %1975 = vmatmul.mubr.f32.gmra.mxu0 %v1817
        %v1976 = vpop.f32.mrf.mxu0
        %v1977 = vadd.f32 0.0, %v1976
        %v1978 = vpop.f32.mrf.mxu0
        %1979 = vmatprep.mubr.f32.mxu0 0.0
        %1980 = vmatmul.mubr.f32.gmra.mxu0 %v1818
        %v1981 = vpop.f32.mrf.mxu0
        %v1982 = vadd.f32 0.0, %v1981
        %v1983 = vpop.f32.mrf.mxu0
        %1984 = vmatprep.mubr.f32.mxu0 0.0
        %1985 = vmatmul.mubr.f32.gmra.mxu0 %v1819
        %v1986 = vpop.f32.mrf.mxu0
        %v1987 = vadd.f32 0.0, %v1986
        %v1988 = vpop.f32.mrf.mxu0
        %1989 = vmatprep.mubr.f32.mxu0 0.0
        %1990 = vmatmul.mubr.f32.gmra.mxu0 %v1820
        %v1991 = vpop.f32.mrf.mxu0
        %v1992 = vadd.f32 0.0, %v1991
        %v1993 = vpop.f32.mrf.mxu0
        %1994 = vmatprep.mubr.f32.mxu0 0.0
        %1995 = vmatmul.mubr.f32.gmra.mxu0 %v1821
        %v1996 = vpop.f32.mrf.mxu0
        %v1997 = vadd.f32 0.0, %v1996
        %v1998 = vpop.f32.mrf.mxu0
        %1999 = vmatprep.mubr.f32.mxu0 0.0
        %2000 = vmatmul.mubr.f32.gmra.mxu0 %v1822
        %v2001 = vpop.f32.mrf.mxu0
        %v2002 = vadd.f32 0.0, %v2001
        %v2003 = vpop.f32.mrf.mxu0
        %2004 = vmatprep.mubr.f32.mxu0 0.0
        %2005 = vmatmul.mubr.f32.gmra.mxu0 %v1823
        %v2006 = vpop.f32.mrf.mxu0
        %v2007 = vadd.f32 0.0, %v2006
        %v2008 = vpop.f32.mrf.mxu0
        %2009 = vmatprep.mubr.f32.mxu0 0.0
        %2010 = vmatmul.mubr.f32.gmra.mxu0 %v1824
        %v2011 = vpop.f32.mrf.mxu0
        %v2012 = vadd.f32 0.0, %v2011
        %v2013 = vpop.f32.mrf.mxu0
        %2014 = vmatprep.mubr.f32.mxu0 0.0
        %2015 = vmatmul.mubr.f32.gmra.mxu0 %v1825
        %v2016 = vpop.f32.mrf.mxu0
        %v2017 = vadd.f32 0.0, %v2016
        %v2018 = vpop.f32.mrf.mxu0
        %2019 = vmatprep.mubr.f32.mxu0 0.0
        %2020 = vmatmul.mubr.f32.gmra.mxu0 %v1826
        %v2021 = vpop.f32.mrf.mxu0
        %v2022 = vadd.f32 0.0, %v2021
        %v2023 = vpop.f32.mrf.mxu0
        %2024 = vmatprep.mubr.f32.mxu0 0.0
        %2025 = vmatmul.mubr.f32.gmra.mxu0 %v1827
        %v2026 = vpop.f32.mrf.mxu0
        %v2027 = vadd.f32 0.0, %v2026
        %v2028 = vpop.f32.mrf.mxu0
        %2029 = vmatprep.mubr.f32.mxu0 0.0
        %2030 = vmatmul.mubr.f32.gmra.mxu0 %v1828
        %v2031 = vpop.f32.mrf.mxu0
        %v2032 = vadd.f32 0.0, %v2031
        %v2033 = vpop.f32.mrf.mxu0
        %2034 = vmatprep.mubr.f32.mxu0 0.0
        %2035 = vmatmul.mubr.f32.gmra.mxu0 %v1829
        %v2036 = vpop.f32.mrf.mxu0
        %v2037 = vadd.f32 0.0, %v2036
        %v2038 = vpop.f32.mrf.mxu0
        %2039 = vmatprep.mubr.f32.mxu0 0.0
        %2040 = vmatmul.mubr.f32.gmra.mxu0 %v1830
        %v2041 = vpop.f32.mrf.mxu0
        %v2042 = vadd.f32 0.0, %v2041
        %v2043 = vpop.f32.mrf.mxu0
        %2044 = vmatprep.mubr.f32.mxu0 0.0
        %2045 = vmatmul.mubr.f32.gmra.mxu0 %v1831
        %v2046 = vpop.f32.mrf.mxu0
        %v2047 = vadd.f32 0.0, %v2046
        %v2048 = vpop.f32.mrf.mxu0
        %2049 = vmatprep.mubr.f32.mxu0 0.0
        %2050 = vmatmul.mubr.f32.gmra.mxu0 %v1832
        %v2051 = vpop.f32.mrf.mxu0
        %v2052 = vadd.f32 0.0, %v2051
        %v2053 = vpop.f32.mrf.mxu0
        %2054 = vmatprep.mubr.f32.mxu0 0.0
        %2055 = vmatmul.mubr.f32.gmra.mxu0 %v1833
        %v2056 = vpop.f32.mrf.mxu0
        %v2057 = vadd.f32 0.0, %v2056
        %v2058 = vpop.f32.mrf.mxu0
        %2059 = vmatprep.mubr.f32.mxu0 0.0
        %2060 = vmatmul.mubr.f32.gmra.mxu0 %v1834
        %v2061 = vpop.f32.mrf.mxu0
        %v2062 = vadd.f32 0.0, %v2061
        %v2063 = vpop.f32.mrf.mxu0
        %2064 = vmatprep.mubr.f32.mxu0 0.0
        %2065 = vmatmul.mubr.f32.gmra.mxu0 %v1835
        %v2066 = vpop.f32.mrf.mxu0
        %v2067 = vadd.f32 0.0, %v2066
        %v2068 = vpop.f32.mrf.mxu0
        %2069 = vmatprep.mubr.f32.mxu0 0.0
        %2070 = vmatmul.mubr.f32.gmra.mxu0 %v1836
        %v2071 = vpop.f32.mrf.mxu0
        %v2072 = vadd.f32 0.0, %v2071
        %v2073 = vpop.f32.mrf.mxu0
        %2074 = vmatprep.mubr.f32.mxu0 0.0
        %2075 = vmatmul.mubr.f32.gmra.mxu0 %v1837
        %v2076 = vpop.f32.mrf.mxu0
        %v2077 = vadd.f32 0.0, %v2076
        %v2078 = vpop.f32.mrf.mxu0
        %2079 = vdwg.mxu0
        %v2080 = vld [vmem:[#allocation4] sm:$0xff]
        %v2081 = vld [vmem:[#allocation4 + $0x8] sm:$0xff]
        %v2082 = vld [vmem:[#allocation4 + $0x10] sm:$0xff]
        %v2083 = vld [vmem:[#allocation4 + $0x18] sm:$0xff]
        %v2084 = vld [vmem:[#allocation4 + $0x20] sm:$0xff]
        %v2085 = vld [vmem:[#allocation4 + $0x28] sm:$0xff]
        %v2086 = vld [vmem:[#allocation4 + $0x30] sm:$0xff]
        %v2087 = vld [vmem:[#allocation4 + $0x38] sm:$0xff]
        %v2088 = vld [vmem:[#allocation4 + $0x40] sm:$0xff]
        %v2089 = vld [vmem:[#allocation4 + $0x48] sm:$0xff]
        %v2090 = vld [vmem:[#allocation4 + $0x50] sm:$0xff]
        %v2091 = vld [vmem:[#allocation4 + $0x58] sm:$0xff]
        %v2092 = vld [vmem:[#allocation4 + $0x60] sm:$0xff]
        %v2093 = vld [vmem:[#allocation4 + $0x68] sm:$0xff]
        %v2094 = vld [vmem:[#allocation4 + $0x70] sm:$0xff]
        %v2095 = vld [vmem:[#allocation4 + $0x78] sm:$0xff]
        %v2096 = vld [vmem:[#allocation4 + $0x80] sm:$0xff]
        %v2097 = vld [vmem:[#allocation4 + $0x88] sm:$0xff]
        %v2098 = vld [vmem:[#allocation4 + $0x90] sm:$0xff]
        %v2099 = vld [vmem:[#allocation4 + $0x98] sm:$0xff]
        %v2100 = vld [vmem:[#allocation4 + $0xa0] sm:$0xff]
        %v2101 = vld [vmem:[#allocation4 + $0xa8] sm:$0xff]
        %v2102 = vld [vmem:[#allocation4 + $0xb0] sm:$0xff]
        %v2103 = vld [vmem:[#allocation4 + $0xb8] sm:$0xff]
        %v2104 = vld [vmem:[#allocation4 + $0xc0] sm:$0xff]
        %v2105 = vld [vmem:[#allocation4 + $0xc8] sm:$0xff]
        %v2106 = vld [vmem:[#allocation4 + $0xd0] sm:$0xff]
        %v2107 = vld [vmem:[#allocation4 + $0xd8] sm:$0xff]
        %v2108 = vld [vmem:[#allocation4 + $0xe0] sm:$0xff]
        %v2109 = vld [vmem:[#allocation4 + $0xe8] sm:$0xff]
        %v2110 = vld [vmem:[#allocation4 + $0xf0] sm:$0xff]
        %v2111 = vld [vmem:[#allocation4 + $0xf8] sm:$0xff]
        %v2112 = vadd.f32 %v2080, %v1922
        %v2113 = vadd.f32 %v2081, %v1927
        %v2114 = vadd.f32 %v2082, %v1932
        %v2115 = vadd.f32 %v2083, %v1937
        %v2116 = vadd.f32 %v2084, %v1942
        %v2117 = vadd.f32 %v2085, %v1947
        %v2118 = vadd.f32 %v2086, %v1952
        %v2119 = vadd.f32 %v2087, %v1957
        %v2120 = vadd.f32 %v2088, %v1962
        %v2121 = vadd.f32 %v2089, %v1967
        %v2122 = vadd.f32 %v2090, %v1972
        %v2123 = vadd.f32 %v2091, %v1977
        %v2124 = vadd.f32 %v2092, %v1982
        %v2125 = vadd.f32 %v2093, %v1987
        %v2126 = vadd.f32 %v2094, %v1992
        %v2127 = vadd.f32 %v2095, %v1997
        %v2128 = vadd.f32 %v2096, %v2002
        %v2129 = vadd.f32 %v2097, %v2007
        %v2130 = vadd.f32 %v2098, %v2012
        %v2131 = vadd.f32 %v2099, %v2017
        %v2132 = vadd.f32 %v2100, %v2022
        %v2133 = vadd.f32 %v2101, %v2027
        %v2134 = vadd.f32 %v2102, %v2032
        %v2135 = vadd.f32 %v2103, %v2037
        %v2136 = vadd.f32 %v2104, %v2042
        %v2137 = vadd.f32 %v2105, %v2047
        %v2138 = vadd.f32 %v2106, %v2052
        %v2139 = vadd.f32 %v2107, %v2057
        %v2140 = vadd.f32 %v2108, %v2062
        %v2141 = vadd.f32 %v2109, %v2067
        %v2142 = vadd.f32 %v2110, %v2072
        %v2143 = vadd.f32 %v2111, %v2077
        %2144 = vst [vmem:[#allocation4] sm:$0xff] %v2112
        %2145 = vst [vmem:[#allocation4 + $0x8] sm:$0xff] %v2113
        %2146 = vst [vmem:[#allocation4 + $0x10] sm:$0xff] %v2114
        %2147 = vst [vmem:[#allocation4 + $0x18] sm:$0xff] %v2115
        %2148 = vst [vmem:[#allocation4 + $0x20] sm:$0xff] %v2116
        %2149 = vst [vmem:[#allocation4 + $0x28] sm:$0xff] %v2117
        %2150 = vst [vmem:[#allocation4 + $0x30] sm:$0xff] %v2118
        %2151 = vst [vmem:[#allocation4 + $0x38] sm:$0xff] %v2119
        %2152 = vst [vmem:[#allocation4 + $0x40] sm:$0xff] %v2120
        %2153 = vst [vmem:[#allocation4 + $0x48] sm:$0xff] %v2121
        %2154 = vst [vmem:[#allocation4 + $0x50] sm:$0xff] %v2122
        %2155 = vst [vmem:[#allocation4 + $0x58] sm:$0xff] %v2123
        %2156 = vst [vmem:[#allocation4 + $0x60] sm:$0xff] %v2124
        %2157 = vst [vmem:[#allocation4 + $0x68] sm:$0xff] %v2125
        %2158 = vst [vmem:[#allocation4 + $0x70] sm:$0xff] %v2126
        %2159 = vst [vmem:[#allocation4 + $0x78] sm:$0xff] %v2127
        %2160 = vst [vmem:[#allocation4 + $0x80] sm:$0xff] %v2128
        %2161 = vst [vmem:[#allocation4 + $0x88] sm:$0xff] %v2129
        %2162 = vst [vmem:[#allocation4 + $0x90] sm:$0xff] %v2130
        %2163 = vst [vmem:[#allocation4 + $0x98] sm:$0xff] %v2131
        %2164 = vst [vmem:[#allocation4 + $0xa0] sm:$0xff] %v2132
        %2165 = vst [vmem:[#allocation4 + $0xa8] sm:$0xff] %v2133
        %2166 = vst [vmem:[#allocation4 + $0xb0] sm:$0xff] %v2134
        %2167 = vst [vmem:[#allocation4 + $0xb8] sm:$0xff] %v2135
        %2168 = vst [vmem:[#allocation4 + $0xc0] sm:$0xff] %v2136
        %2169 = vst [vmem:[#allocation4 + $0xc8] sm:$0xff] %v2137
        %2170 = vst [vmem:[#allocation4 + $0xd0] sm:$0xff] %v2138
        %2171 = vst [vmem:[#allocation4 + $0xd8] sm:$0xff] %v2139
        %2172 = vst [vmem:[#allocation4 + $0xe0] sm:$0xff] %v2140
        %2173 = vst [vmem:[#allocation4 + $0xe8] sm:$0xff] %v2141
        %2174 = vst [vmem:[#allocation4 + $0xf0] sm:$0xff] %v2142
        %2175 = vst [vmem:[#allocation4 + $0xf8] sm:$0xff] %v2143
        %v2176 = vld [vmem:[%s358 + $0x2] sm:$0xff]
        %v2177 = vld [vmem:[%s358 + $0xa] sm:$0xff]
        %v2178 = vld [vmem:[%s358 + $0x1a] sm:$0xff]
        %v2179 = vld [vmem:[%s358 + $0x22] sm:$0xff]
        %v2180 = vld [vmem:[%s358 + $0x32] sm:$0xff]
        %v2181 = vld [vmem:[%s358 + $0x3a] sm:$0xff]
        %v2182 = vld [vmem:[%s358 + $0x4a] sm:$0xff]
        %v2183 = vld [vmem:[%s358 + $0x52] sm:$0xff]
        %v2184 = vld [vmem:[%s358 + $0x62] sm:$0xff]
        %v2185 = vld [vmem:[%s358 + $0x6a] sm:$0xff]
        %v2186 = vld [vmem:[%s358 + $0x7a] sm:$0xff]
        %v2187 = vld [vmem:[%s358 + $0x82] sm:$0xff]
        %v2188 = vld [vmem:[%s358 + $0x92] sm:$0xff]
        %v2189 = vld [vmem:[%s358 + $0x9a] sm:$0xff]
        %v2190 = vld [vmem:[%s358 + $0xaa] sm:$0xff]
        %v2191 = vld [vmem:[%s358 + $0xb2] sm:$0xff]
        %v2192 = vld [vmem:[%s358 + $0xc2] sm:$0xff]
        %v2193 = vld [vmem:[%s358 + $0xca] sm:$0xff]
        %v2194 = vld [vmem:[%s358 + $0xda] sm:$0xff]
        %v2195 = vld [vmem:[%s358 + $0xe2] sm:$0xff]
        %v2196 = vld [vmem:[%s358 + $0xf2] sm:$0xff]
        %v2197 = vld [vmem:[%s358 + $0xfa] sm:$0xff]
        %v2198 = vld [vmem:[%s358 + $0x10a] sm:$0xff]
        %v2199 = vld [vmem:[%s358 + $0x112] sm:$0xff]
        %v2200 = vld [vmem:[%s358 + $0x122] sm:$0xff]
        %v2201 = vld [vmem:[%s358 + $0x12a] sm:$0xff]
        %v2202 = vld [vmem:[%s358 + $0x13a] sm:$0xff]
        %v2203 = vld [vmem:[%s358 + $0x142] sm:$0xff]
        %v2204 = vld [vmem:[%s358 + $0x152] sm:$0xff]
        %v2205 = vld [vmem:[%s358 + $0x15a] sm:$0xff]
        %v2206 = vld [vmem:[%s358 + $0x16a] sm:$0xff]
        %v2207 = vld [vmem:[%s358 + $0x172] sm:$0xff]
        %s2208 = scalar_lea.vmem %s1, 640
        %v2209 = vld [vmem:[%s2208] sm:$0xff]
        %v2210 = vld [vmem:[%s2208 + $0x8] sm:$0xff]
        %v2211 = vld [vmem:[%s2208 + $0x10] sm:$0xff]
        %v2212 = vld [vmem:[%s2208 + $0x18] sm:$0xff]
        %v2213 = vld [vmem:[%s2208 + $0x20] sm:$0xff]
        %v2214 = vld [vmem:[%s2208 + $0x28] sm:$0xff]
        %v2215 = vld [vmem:[%s2208 + $0x30] sm:$0xff]
        %v2216 = vld [vmem:[%s2208 + $0x38] sm:$0xff]
        %v2217 = vld [vmem:[%s2208 + $0x40] sm:$0xff]
        %v2218 = vld [vmem:[%s2208 + $0x48] sm:$0xff]
        %v2219 = vld [vmem:[%s2208 + $0x50] sm:$0xff]
        %v2220 = vld [vmem:[%s2208 + $0x58] sm:$0xff]
        %v2221 = vld [vmem:[%s2208 + $0x60] sm:$0xff]
        %v2222 = vld [vmem:[%s2208 + $0x68] sm:$0xff]
        %v2223 = vld [vmem:[%s2208 + $0x70] sm:$0xff]
        %v2224 = vld [vmem:[%s2208 + $0x78] sm:$0xff]
        %2225 = vmatprep.subr.mxu0 0.0
        %2226 = vmatpush1.msra.mxu0 %v2224
        %2227 = vmatprep.subr.mxu0 0.0
        %2228 = vmatpush1.msra.mxu0 %v2223
        %2229 = vmatprep.subr.mxu0 0.0
        %2230 = vmatpush1.msra.mxu0 %v2222
        %2231 = vmatprep.subr.mxu0 0.0
        %2232 = vmatpush1.msra.mxu0 %v2221
        %2233 = vmatprep.subr.mxu0 0.0
        %2234 = vmatpush1.msra.mxu0 %v2220
        %2235 = vmatprep.subr.mxu0 0.0
        %2236 = vmatpush1.msra.mxu0 %v2219
        %2237 = vmatprep.subr.mxu0 0.0
        %2238 = vmatpush1.msra.mxu0 %v2218
        %2239 = vmatprep.subr.mxu0 0.0
        %2240 = vmatpush1.msra.mxu0 %v2217
        %2241 = vmatprep.subr.mxu0 0.0
        %2242 = vmatpush1.msra.mxu0 %v2216
        %2243 = vmatprep.subr.mxu0 0.0
        %2244 = vmatpush1.msra.mxu0 %v2215
        %2245 = vmatprep.subr.mxu0 0.0
        %2246 = vmatpush1.msra.mxu0 %v2214
        %2247 = vmatprep.subr.mxu0 0.0
        %2248 = vmatpush1.msra.mxu0 %v2213
        %2249 = vmatprep.subr.mxu0 0.0
        %2250 = vmatpush1.msra.mxu0 %v2212
        %2251 = vmatprep.subr.mxu0 0.0
        %2252 = vmatpush1.msra.mxu0 %v2211
        %2253 = vmatprep.subr.mxu0 0.0
        %2254 = vmatpush1.msra.mxu0 %v2210
        %2255 = vmatprep.subr.mxu0 0.0
        %2256 = vmatpush1.msra.mxu0 %v2209
        %2257 = vmatprep.subr.mxu0 0.0
        %2258 = vmatpush2.msra.mxu0 0.0
        %2259 = vmatprep.subr.mxu0 0.0
        %2260 = vmatpush2.msra.mxu0 0.0
        %2261 = vmatprep.subr.mxu0 0.0
        %2262 = vmatpush2.msra.mxu0 0.0
        %2263 = vmatprep.subr.mxu0 0.0
        %2264 = vmatpush2.msra.mxu0 0.0
        %2265 = vmatprep.subr.mxu0 0.0
        %2266 = vmatpush2.msra.mxu0 0.0
        %2267 = vmatprep.subr.mxu0 0.0
        %2268 = vmatpush2.msra.mxu0 0.0
        %2269 = vmatprep.subr.mxu0 0.0
        %2270 = vmatpush2.msra.mxu0 0.0
        %2271 = vmatprep.subr.mxu0 0.0
        %2272 = vmatpush2.msra.mxu0 0.0
        %2273 = vmatprep.subr.mxu0 0.0
        %2274 = vmatpush2.msra.mxu0 0.0
        %2275 = vmatprep.subr.mxu0 0.0
        %2276 = vmatpush2.msra.mxu0 0.0
        %2277 = vmatprep.subr.mxu0 0.0
        %2278 = vmatpush2.msra.mxu0 0.0
        %2279 = vmatprep.subr.mxu0 0.0
        %2280 = vmatpush2.msra.mxu0 0.0
        %2281 = vmatprep.subr.mxu0 0.0
        %2282 = vmatpush2.msra.mxu0 0.0
        %2283 = vmatprep.subr.mxu0 0.0
        %2284 = vmatpush2.msra.mxu0 0.0
        %2285 = vmatprep.subr.mxu0 0.0
        %2286 = vmatpush2.msra.mxu0 0.0
        %2287 = vmatprep.subr.mxu0 0.0
        %2288 = vmatpush2.msra.mxu0 0.0
        %2289 = vmatprep.mubr.f32.mxu0 0.0
        %2290 = vmatmul.mubr.f32.gmra.mxu0 %v2176
        %v2291 = vpop.f32.mrf.mxu0
        %v2292 = vadd.f32 0.0, %v2291
        %v2293 = vpop.f32.mrf.mxu0
        %2294 = vmatprep.mubr.f32.mxu0 0.0
        %2295 = vmatmul.mubr.f32.gmra.mxu0 %v2177
        %v2296 = vpop.f32.mrf.mxu0
        %v2297 = vadd.f32 0.0, %v2296
        %v2298 = vpop.f32.mrf.mxu0
        %2299 = vmatprep.mubr.f32.mxu0 0.0
        %2300 = vmatmul.mubr.f32.gmra.mxu0 %v2178
        %v2301 = vpop.f32.mrf.mxu0
        %v2302 = vadd.f32 0.0, %v2301
        %v2303 = vpop.f32.mrf.mxu0
        %2304 = vmatprep.mubr.f32.mxu0 0.0
        %2305 = vmatmul.mubr.f32.gmra.mxu0 %v2179
        %v2306 = vpop.f32.mrf.mxu0
        %v2307 = vadd.f32 0.0, %v2306
        %v2308 = vpop.f32.mrf.mxu0
        %2309 = vmatprep.mubr.f32.mxu0 0.0
        %2310 = vmatmul.mubr.f32.gmra.mxu0 %v2180
        %v2311 = vpop.f32.mrf.mxu0
        %v2312 = vadd.f32 0.0, %v2311
        %v2313 = vpop.f32.mrf.mxu0
        %2314 = vmatprep.mubr.f32.mxu0 0.0
        %2315 = vmatmul.mubr.f32.gmra.mxu0 %v2181
        %v2316 = vpop.f32.mrf.mxu0
        %v2317 = vadd.f32 0.0, %v2316
        %v2318 = vpop.f32.mrf.mxu0
        %2319 = vmatprep.mubr.f32.mxu0 0.0
        %2320 = vmatmul.mubr.f32.gmra.mxu0 %v2182
        %v2321 = vpop.f32.mrf.mxu0
        %v2322 = vadd.f32 0.0, %v2321
        %v2323 = vpop.f32.mrf.mxu0
        %2324 = vmatprep.mubr.f32.mxu0 0.0
        %2325 = vmatmul.mubr.f32.gmra.mxu0 %v2183
        %v2326 = vpop.f32.mrf.mxu0
        %v2327 = vadd.f32 0.0, %v2326
        %v2328 = vpop.f32.mrf.mxu0
        %2329 = vmatprep.mubr.f32.mxu0 0.0
        %2330 = vmatmul.mubr.f32.gmra.mxu0 %v2184
        %v2331 = vpop.f32.mrf.mxu0
        %v2332 = vadd.f32 0.0, %v2331
        %v2333 = vpop.f32.mrf.mxu0
        %2334 = vmatprep.mubr.f32.mxu0 0.0
        %2335 = vmatmul.mubr.f32.gmra.mxu0 %v2185
        %v2336 = vpop.f32.mrf.mxu0
        %v2337 = vadd.f32 0.0, %v2336
        %v2338 = vpop.f32.mrf.mxu0
        %2339 = vmatprep.mubr.f32.mxu0 0.0
        %2340 = vmatmul.mubr.f32.gmra.mxu0 %v2186
        %v2341 = vpop.f32.mrf.mxu0
        %v2342 = vadd.f32 0.0, %v2341
        %v2343 = vpop.f32.mrf.mxu0
        %2344 = vmatprep.mubr.f32.mxu0 0.0
        %2345 = vmatmul.mubr.f32.gmra.mxu0 %v2187
        %v2346 = vpop.f32.mrf.mxu0
        %v2347 = vadd.f32 0.0, %v2346
        %v2348 = vpop.f32.mrf.mxu0
        %2349 = vmatprep.mubr.f32.mxu0 0.0
        %2350 = vmatmul.mubr.f32.gmra.mxu0 %v2188
        %v2351 = vpop.f32.mrf.mxu0
        %v2352 = vadd.f32 0.0, %v2351
        %v2353 = vpop.f32.mrf.mxu0
        %2354 = vmatprep.mubr.f32.mxu0 0.0
        %2355 = vmatmul.mubr.f32.gmra.mxu0 %v2189
        %v2356 = vpop.f32.mrf.mxu0
        %v2357 = vadd.f32 0.0, %v2356
        %v2358 = vpop.f32.mrf.mxu0
        %2359 = vmatprep.mubr.f32.mxu0 0.0
        %2360 = vmatmul.mubr.f32.gmra.mxu0 %v2190
        %v2361 = vpop.f32.mrf.mxu0
        %v2362 = vadd.f32 0.0, %v2361
        %v2363 = vpop.f32.mrf.mxu0
        %2364 = vmatprep.mubr.f32.mxu0 0.0
        %2365 = vmatmul.mubr.f32.gmra.mxu0 %v2191
        %v2366 = vpop.f32.mrf.mxu0
        %v2367 = vadd.f32 0.0, %v2366
        %v2368 = vpop.f32.mrf.mxu0
        %2369 = vmatprep.mubr.f32.mxu0 0.0
        %2370 = vmatmul.mubr.f32.gmra.mxu0 %v2192
        %v2371 = vpop.f32.mrf.mxu0
        %v2372 = vadd.f32 0.0, %v2371
        %v2373 = vpop.f32.mrf.mxu0
        %2374 = vmatprep.mubr.f32.mxu0 0.0
        %2375 = vmatmul.mubr.f32.gmra.mxu0 %v2193
        %v2376 = vpop.f32.mrf.mxu0
        %v2377 = vadd.f32 0.0, %v2376
        %v2378 = vpop.f32.mrf.mxu0
        %2379 = vmatprep.mubr.f32.mxu0 0.0
        %2380 = vmatmul.mubr.f32.gmra.mxu0 %v2194
        %v2381 = vpop.f32.mrf.mxu0
        %v2382 = vadd.f32 0.0, %v2381
        %v2383 = vpop.f32.mrf.mxu0
        %2384 = vmatprep.mubr.f32.mxu0 0.0
        %2385 = vmatmul.mubr.f32.gmra.mxu0 %v2195
        %v2386 = vpop.f32.mrf.mxu0
        %v2387 = vadd.f32 0.0, %v2386
        %v2388 = vpop.f32.mrf.mxu0
        %2389 = vmatprep.mubr.f32.mxu0 0.0
        %2390 = vmatmul.mubr.f32.gmra.mxu0 %v2196
        %v2391 = vpop.f32.mrf.mxu0
        %v2392 = vadd.f32 0.0, %v2391
        %v2393 = vpop.f32.mrf.mxu0
        %2394 = vmatprep.mubr.f32.mxu0 0.0
        %2395 = vmatmul.mubr.f32.gmra.mxu0 %v2197
        %v2396 = vpop.f32.mrf.mxu0
        %v2397 = vadd.f32 0.0, %v2396
        %v2398 = vpop.f32.mrf.mxu0
        %2399 = vmatprep.mubr.f32.mxu0 0.0
        %2400 = vmatmul.mubr.f32.gmra.mxu0 %v2198
        %v2401 = vpop.f32.mrf.mxu0
        %v2402 = vadd.f32 0.0, %v2401
        %v2403 = vpop.f32.mrf.mxu0
        %2404 = vmatprep.mubr.f32.mxu0 0.0
        %2405 = vmatmul.mubr.f32.gmra.mxu0 %v2199
        %v2406 = vpop.f32.mrf.mxu0
        %v2407 = vadd.f32 0.0, %v2406
        %v2408 = vpop.f32.mrf.mxu0
        %2409 = vmatprep.mubr.f32.mxu0 0.0
        %2410 = vmatmul.mubr.f32.gmra.mxu0 %v2200
        %v2411 = vpop.f32.mrf.mxu0
        %v2412 = vadd.f32 0.0, %v2411
        %v2413 = vpop.f32.mrf.mxu0
        %2414 = vmatprep.mubr.f32.mxu0 0.0
        %2415 = vmatmul.mubr.f32.gmra.mxu0 %v2201
        %v2416 = vpop.f32.mrf.mxu0
        %v2417 = vadd.f32 0.0, %v2416
        %v2418 = vpop.f32.mrf.mxu0
        %2419 = vmatprep.mubr.f32.mxu0 0.0
        %2420 = vmatmul.mubr.f32.gmra.mxu0 %v2202
        %v2421 = vpop.f32.mrf.mxu0
        %v2422 = vadd.f32 0.0, %v2421
        %v2423 = vpop.f32.mrf.mxu0
        %2424 = vmatprep.mubr.f32.mxu0 0.0
        %2425 = vmatmul.mubr.f32.gmra.mxu0 %v2203
        %v2426 = vpop.f32.mrf.mxu0
        %v2427 = vadd.f32 0.0, %v2426
        %v2428 = vpop.f32.mrf.mxu0
        %2429 = vmatprep.mubr.f32.mxu0 0.0
        %2430 = vmatmul.mubr.f32.gmra.mxu0 %v2204
        %v2431 = vpop.f32.mrf.mxu0
        %v2432 = vadd.f32 0.0, %v2431
        %v2433 = vpop.f32.mrf.mxu0
        %2434 = vmatprep.mubr.f32.mxu0 0.0
        %2435 = vmatmul.mubr.f32.gmra.mxu0 %v2205
        %v2436 = vpop.f32.mrf.mxu0
        %v2437 = vadd.f32 0.0, %v2436
        %v2438 = vpop.f32.mrf.mxu0
        %2439 = vmatprep.mubr.f32.mxu0 0.0
        %2440 = vmatmul.mubr.f32.gmra.mxu0 %v2206
        %v2441 = vpop.f32.mrf.mxu0
        %v2442 = vadd.f32 0.0, %v2441
        %v2443 = vpop.f32.mrf.mxu0
        %2444 = vmatprep.mubr.f32.mxu0 0.0
        %2445 = vmatmul.mubr.f32.gmra.mxu0 %v2207
        %v2446 = vpop.f32.mrf.mxu0
        %v2447 = vadd.f32 0.0, %v2446
        %v2448 = vpop.f32.mrf.mxu0
        %2449 = vdwg.mxu0
        %v2450 = vld [vmem:[#allocation4] sm:$0xff]
        %v2451 = vld [vmem:[#allocation4 + $0x8] sm:$0xff]
        %v2452 = vld [vmem:[#allocation4 + $0x10] sm:$0xff]
        %v2453 = vld [vmem:[#allocation4 + $0x18] sm:$0xff]
        %v2454 = vld [vmem:[#allocation4 + $0x20] sm:$0xff]
        %v2455 = vld [vmem:[#allocation4 + $0x28] sm:$0xff]
        %v2456 = vld [vmem:[#allocation4 + $0x30] sm:$0xff]
        %v2457 = vld [vmem:[#allocation4 + $0x38] sm:$0xff]
        %v2458 = vld [vmem:[#allocation4 + $0x40] sm:$0xff]
        %v2459 = vld [vmem:[#allocation4 + $0x48] sm:$0xff]
        %v2460 = vld [vmem:[#allocation4 + $0x50] sm:$0xff]
        %v2461 = vld [vmem:[#allocation4 + $0x58] sm:$0xff]
        %v2462 = vld [vmem:[#allocation4 + $0x60] sm:$0xff]
        %v2463 = vld [vmem:[#allocation4 + $0x68] sm:$0xff]
        %v2464 = vld [vmem:[#allocation4 + $0x70] sm:$0xff]
        %v2465 = vld [vmem:[#allocation4 + $0x78] sm:$0xff]
        %v2466 = vld [vmem:[#allocation4 + $0x80] sm:$0xff]
        %v2467 = vld [vmem:[#allocation4 + $0x88] sm:$0xff]
        %v2468 = vld [vmem:[#allocation4 + $0x90] sm:$0xff]
        %v2469 = vld [vmem:[#allocation4 + $0x98] sm:$0xff]
        %v2470 = vld [vmem:[#allocation4 + $0xa0] sm:$0xff]
        %v2471 = vld [vmem:[#allocation4 + $0xa8] sm:$0xff]
        %v2472 = vld [vmem:[#allocation4 + $0xb0] sm:$0xff]
        %v2473 = vld [vmem:[#allocation4 + $0xb8] sm:$0xff]
        %v2474 = vld [vmem:[#allocation4 + $0xc0] sm:$0xff]
        %v2475 = vld [vmem:[#allocation4 + $0xc8] sm:$0xff]
        %v2476 = vld [vmem:[#allocation4 + $0xd0] sm:$0xff]
        %v2477 = vld [vmem:[#allocation4 + $0xd8] sm:$0xff]
        %v2478 = vld [vmem:[#allocation4 + $0xe0] sm:$0xff]
        %v2479 = vld [vmem:[#allocation4 + $0xe8] sm:$0xff]
        %v2480 = vld [vmem:[#allocation4 + $0xf0] sm:$0xff]
        %v2481 = vld [vmem:[#allocation4 + $0xf8] sm:$0xff]
        %v2482 = vadd.f32 %v2450, %v2292
        %v2483 = vadd.f32 %v2451, %v2297
        %v2484 = vadd.f32 %v2452, %v2302
        %v2485 = vadd.f32 %v2453, %v2307
        %v2486 = vadd.f32 %v2454, %v2312
        %v2487 = vadd.f32 %v2455, %v2317
        %v2488 = vadd.f32 %v2456, %v2322
        %v2489 = vadd.f32 %v2457, %v2327
        %v2490 = vadd.f32 %v2458, %v2332
        %v2491 = vadd.f32 %v2459, %v2337
        %v2492 = vadd.f32 %v2460, %v2342
        %v2493 = vadd.f32 %v2461, %v2347
        %v2494 = vadd.f32 %v2462, %v2352
        %v2495 = vadd.f32 %v2463, %v2357
        %v2496 = vadd.f32 %v2464, %v2362
        %v2497 = vadd.f32 %v2465, %v2367
        %v2498 = vadd.f32 %v2466, %v2372
        %v2499 = vadd.f32 %v2467, %v2377
        %v2500 = vadd.f32 %v2468, %v2382
        %v2501 = vadd.f32 %v2469, %v2387
        %v2502 = vadd.f32 %v2470, %v2392
        %v2503 = vadd.f32 %v2471, %v2397
        %v2504 = vadd.f32 %v2472, %v2402
        %v2505 = vadd.f32 %v2473, %v2407
        %v2506 = vadd.f32 %v2474, %v2412
        %v2507 = vadd.f32 %v2475, %v2417
        %v2508 = vadd.f32 %v2476, %v2422
        %v2509 = vadd.f32 %v2477, %v2427
        %v2510 = vadd.f32 %v2478, %v2432
        %v2511 = vadd.f32 %v2479, %v2437
        %v2512 = vadd.f32 %v2480, %v2442
        %v2513 = vadd.f32 %v2481, %v2447
        %2514 = vst [vmem:[#allocation4] sm:$0xff] %v2482
        %2515 = vst [vmem:[#allocation4 + $0x8] sm:$0xff] %v2483
        %2516 = vst [vmem:[#allocation4 + $0x10] sm:$0xff] %v2484
        %2517 = vst [vmem:[#allocation4 + $0x18] sm:$0xff] %v2485
        %2518 = vst [vmem:[#allocation4 + $0x20] sm:$0xff] %v2486
        %2519 = vst [vmem:[#allocation4 + $0x28] sm:$0xff] %v2487
        %2520 = vst [vmem:[#allocation4 + $0x30] sm:$0xff] %v2488
        %2521 = vst [vmem:[#allocation4 + $0x38] sm:$0xff] %v2489
        %2522 = vst [vmem:[#allocation4 + $0x40] sm:$0xff] %v2490
        %2523 = vst [vmem:[#allocation4 + $0x48] sm:$0xff] %v2491
        %2524 = vst [vmem:[#allocation4 + $0x50] sm:$0xff] %v2492
        %2525 = vst [vmem:[#allocation4 + $0x58] sm:$0xff] %v2493
        %2526 = vst [vmem:[#allocation4 + $0x60] sm:$0xff] %v2494
        %2527 = vst [vmem:[#allocation4 + $0x68] sm:$0xff] %v2495
        %2528 = vst [vmem:[#allocation4 + $0x70] sm:$0xff] %v2496
        %2529 = vst [vmem:[#allocation4 + $0x78] sm:$0xff] %v2497
        %2530 = vst [vmem:[#allocation4 + $0x80] sm:$0xff] %v2498
        %2531 = vst [vmem:[#allocation4 + $0x88] sm:$0xff] %v2499
        %2532 = vst [vmem:[#allocation4 + $0x90] sm:$0xff] %v2500
        %2533 = vst [vmem:[#allocation4 + $0x98] sm:$0xff] %v2501
        %2534 = vst [vmem:[#allocation4 + $0xa0] sm:$0xff] %v2502
        %2535 = vst [vmem:[#allocation4 + $0xa8] sm:$0xff] %v2503
        %2536 = vst [vmem:[#allocation4 + $0xb0] sm:$0xff] %v2504
        %2537 = vst [vmem:[#allocation4 + $0xb8] sm:$0xff] %v2505
        %2538 = vst [vmem:[#allocation4 + $0xc0] sm:$0xff] %v2506
        %2539 = vst [vmem:[#allocation4 + $0xc8] sm:$0xff] %v2507
        %2540 = vst [vmem:[#allocation4 + $0xd0] sm:$0xff] %v2508
        %2541 = vst [vmem:[#allocation4 + $0xd8] sm:$0xff] %v2509
        %2542 = vst [vmem:[#allocation4 + $0xe0] sm:$0xff] %v2510
        %2543 = vst [vmem:[#allocation4 + $0xe8] sm:$0xff] %v2511
        %2544 = vst [vmem:[#allocation4 + $0xf0] sm:$0xff] %v2512
        %2545 = vst [vmem:[#allocation4 + $0xf8] sm:$0xff] %v2513
        %s2546 = scalar_lea.vmem [#allocation2], 48
        %v2547 = vld [vmem:[%s2546] sm:$0xff]
        %v2548 = vld [vmem:[%s2546 + $0x8] sm:$0xff]
        %v2549 = vld [vmem:[%s2546 + $0x18] sm:$0xff]
        %v2550 = vld [vmem:[%s2546 + $0x20] sm:$0xff]
        %v2551 = vld [vmem:[%s2546 + $0x30] sm:$0xff]
        %v2552 = vld [vmem:[%s2546 + $0x38] sm:$0xff]
        %v2553 = vld [vmem:[%s2546 + $0x48] sm:$0xff]
        %v2554 = vld [vmem:[%s2546 + $0x50] sm:$0xff]
        %v2555 = vld [vmem:[%s2546 + $0x60] sm:$0xff]
        %v2556 = vld [vmem:[%s2546 + $0x68] sm:$0xff]
        %v2557 = vld [vmem:[%s2546 + $0x78] sm:$0xff]
        %v2558 = vld [vmem:[%s2546 + $0x80] sm:$0xff]
        %v2559 = vld [vmem:[%s2546 + $0x90] sm:$0xff]
        %v2560 = vld [vmem:[%s2546 + $0x98] sm:$0xff]
        %v2561 = vld [vmem:[%s2546 + $0xa8] sm:$0xff]
        %v2562 = vld [vmem:[%s2546 + $0xb0] sm:$0xff]
        %v2563 = vld [vmem:[%s2546 + $0xc0] sm:$0xff]
        %v2564 = vld [vmem:[%s2546 + $0xc8] sm:$0xff]
        %v2565 = vld [vmem:[%s2546 + $0xd8] sm:$0xff]
        %v2566 = vld [vmem:[%s2546 + $0xe0] sm:$0xff]
        %v2567 = vld [vmem:[%s2546 + $0xf0] sm:$0xff]
        %v2568 = vld [vmem:[%s2546 + $0xf8] sm:$0xff]
        %v2569 = vld [vmem:[%s2546 + $0x108] sm:$0xff]
        %v2570 = vld [vmem:[%s2546 + $0x110] sm:$0xff]
        %v2571 = vld [vmem:[%s2546 + $0x120] sm:$0xff]
        %v2572 = vld [vmem:[%s2546 + $0x128] sm:$0xff]
        %v2573 = vld [vmem:[%s2546 + $0x138] sm:$0xff]
        %v2574 = vld [vmem:[%s2546 + $0x140] sm:$0xff]
        %v2575 = vld [vmem:[%s2546 + $0x150] sm:$0xff]
        %v2576 = vld [vmem:[%s2546 + $0x158] sm:$0xff]
        %v2577 = vld [vmem:[%s2546 + $0x168] sm:$0xff]
        %v2578 = vld [vmem:[%s2546 + $0x170] sm:$0xff]
        %s2579 = scalar_lea.vmem %s1, 768
        %v2580 = vld [vmem:[%s2579] sm:$0xff]
        %v2581 = vld [vmem:[%s2579 + $0x8] sm:$0xff]
        %v2582 = vld [vmem:[%s2579 + $0x10] sm:$0xff]
        %v2583 = vld [vmem:[%s2579 + $0x18] sm:$0xff]
        %v2584 = vld [vmem:[%s2579 + $0x20] sm:$0xff]
        %v2585 = vld [vmem:[%s2579 + $0x28] sm:$0xff]
        %v2586 = vld [vmem:[%s2579 + $0x30] sm:$0xff]
        %v2587 = vld [vmem:[%s2579 + $0x38] sm:$0xff]
        %v2588 = vld [vmem:[%s2579 + $0x40] sm:$0xff]
        %v2589 = vld [vmem:[%s2579 + $0x48] sm:$0xff]
        %v2590 = vld [vmem:[%s2579 + $0x50] sm:$0xff]
        %v2591 = vld [vmem:[%s2579 + $0x58] sm:$0xff]
        %v2592 = vld [vmem:[%s2579 + $0x60] sm:$0xff]
        %v2593 = vld [vmem:[%s2579 + $0x68] sm:$0xff]
        %v2594 = vld [vmem:[%s2579 + $0x70] sm:$0xff]
        %v2595 = vld [vmem:[%s2579 + $0x78] sm:$0xff]
        %2596 = vmatprep.subr.mxu0 0.0
        %2597 = vmatpush1.msra.mxu0 %v2595
        %2598 = vmatprep.subr.mxu0 0.0
        %2599 = vmatpush1.msra.mxu0 %v2594
        %2600 = vmatprep.subr.mxu0 0.0
        %2601 = vmatpush1.msra.mxu0 %v2593
        %2602 = vmatprep.subr.mxu0 0.0
        %2603 = vmatpush1.msra.mxu0 %v2592
        %2604 = vmatprep.subr.mxu0 0.0
        %2605 = vmatpush1.msra.mxu0 %v2591
        %2606 = vmatprep.subr.mxu0 0.0
        %2607 = vmatpush1.msra.mxu0 %v2590
        %2608 = vmatprep.subr.mxu0 0.0
        %2609 = vmatpush1.msra.mxu0 %v2589
        %2610 = vmatprep.subr.mxu0 0.0
        %2611 = vmatpush1.msra.mxu0 %v2588
        %2612 = vmatprep.subr.mxu0 0.0
        %2613 = vmatpush1.msra.mxu0 %v2587
        %2614 = vmatprep.subr.mxu0 0.0
        %2615 = vmatpush1.msra.mxu0 %v2586
        %2616 = vmatprep.subr.mxu0 0.0
        %2617 = vmatpush1.msra.mxu0 %v2585
        %2618 = vmatprep.subr.mxu0 0.0
        %2619 = vmatpush1.msra.mxu0 %v2584
        %2620 = vmatprep.subr.mxu0 0.0
        %2621 = vmatpush1.msra.mxu0 %v2583
        %2622 = vmatprep.subr.mxu0 0.0
        %2623 = vmatpush1.msra.mxu0 %v2582
        %2624 = vmatprep.subr.mxu0 0.0
        %2625 = vmatpush1.msra.mxu0 %v2581
        %2626 = vmatprep.subr.mxu0 0.0
        %2627 = vmatpush1.msra.mxu0 %v2580
        %2628 = vmatprep.subr.mxu0 0.0
        %2629 = vmatpush2.msra.mxu0 0.0
        %2630 = vmatprep.subr.mxu0 0.0
        %2631 = vmatpush2.msra.mxu0 0.0
        %2632 = vmatprep.subr.mxu0 0.0
        %2633 = vmatpush2.msra.mxu0 0.0
        %2634 = vmatprep.subr.mxu0 0.0
        %2635 = vmatpush2.msra.mxu0 0.0
        %2636 = vmatprep.subr.mxu0 0.0
        %2637 = vmatpush2.msra.mxu0 0.0
        %2638 = vmatprep.subr.mxu0 0.0
        %2639 = vmatpush2.msra.mxu0 0.0
        %2640 = vmatprep.subr.mxu0 0.0
        %2641 = vmatpush2.msra.mxu0 0.0
        %2642 = vmatprep.subr.mxu0 0.0
        %2643 = vmatpush2.msra.mxu0 0.0
        %2644 = vmatprep.subr.mxu0 0.0
        %2645 = vmatpush2.msra.mxu0 0.0
        %2646 = vmatprep.subr.mxu0 0.0
        %2647 = vmatpush2.msra.mxu0 0.0
        %2648 = vmatprep.subr.mxu0 0.0
        %2649 = vmatpush2.msra.mxu0 0.0
        %2650 = vmatprep.subr.mxu0 0.0
        %2651 = vmatpush2.msra.mxu0 0.0
        %2652 = vmatprep.subr.mxu0 0.0
        %2653 = vmatpush2.msra.mxu0 0.0
        %2654 = vmatprep.subr.mxu0 0.0
        %2655 = vmatpush2.msra.mxu0 0.0
        %2656 = vmatprep.subr.mxu0 0.0
        %2657 = vmatpush2.msra.mxu0 0.0
        %2658 = vmatprep.subr.mxu0 0.0
        %2659 = vmatpush2.msra.mxu0 0.0
        %2660 = vmatprep.mubr.f32.mxu0 0.0
        %2661 = vmatmul.mubr.f32.gmra.mxu0 %v2547
        %v2662 = vpop.f32.mrf.mxu0
        %v2663 = vadd.f32 0.0, %v2662
        %v2664 = vpop.f32.mrf.mxu0
        %2665 = vmatprep.mubr.f32.mxu0 0.0
        %2666 = vmatmul.mubr.f32.gmra.mxu0 %v2548
        %v2667 = vpop.f32.mrf.mxu0
        %v2668 = vadd.f32 0.0, %v2667
        %v2669 = vpop.f32.mrf.mxu0
        %2670 = vmatprep.mubr.f32.mxu0 0.0
        %2671 = vmatmul.mubr.f32.gmra.mxu0 %v2549
        %v2672 = vpop.f32.mrf.mxu0
        %v2673 = vadd.f32 0.0, %v2672
        %v2674 = vpop.f32.mrf.mxu0
        %2675 = vmatprep.mubr.f32.mxu0 0.0
        %2676 = vmatmul.mubr.f32.gmra.mxu0 %v2550
        %v2677 = vpop.f32.mrf.mxu0
        %v2678 = vadd.f32 0.0, %v2677
        %v2679 = vpop.f32.mrf.mxu0
        %2680 = vmatprep.mubr.f32.mxu0 0.0
        %2681 = vmatmul.mubr.f32.gmra.mxu0 %v2551
        %v2682 = vpop.f32.mrf.mxu0
        %v2683 = vadd.f32 0.0, %v2682
        %v2684 = vpop.f32.mrf.mxu0
        %2685 = vmatprep.mubr.f32.mxu0 0.0
        %2686 = vmatmul.mubr.f32.gmra.mxu0 %v2552
        %v2687 = vpop.f32.mrf.mxu0
        %v2688 = vadd.f32 0.0, %v2687
        %v2689 = vpop.f32.mrf.mxu0
        %2690 = vmatprep.mubr.f32.mxu0 0.0
        %2691 = vmatmul.mubr.f32.gmra.mxu0 %v2553
        %v2692 = vpop.f32.mrf.mxu0
        %v2693 = vadd.f32 0.0, %v2692
        %v2694 = vpop.f32.mrf.mxu0
        %2695 = vmatprep.mubr.f32.mxu0 0.0
        %2696 = vmatmul.mubr.f32.gmra.mxu0 %v2554
        %v2697 = vpop.f32.mrf.mxu0
        %v2698 = vadd.f32 0.0, %v2697
        %v2699 = vpop.f32.mrf.mxu0
        %2700 = vmatprep.mubr.f32.mxu0 0.0
        %2701 = vmatmul.mubr.f32.gmra.mxu0 %v2555
        %v2702 = vpop.f32.mrf.mxu0
        %v2703 = vadd.f32 0.0, %v2702
        %v2704 = vpop.f32.mrf.mxu0
        %2705 = vmatprep.mubr.f32.mxu0 0.0
        %2706 = vmatmul.mubr.f32.gmra.mxu0 %v2556
        %v2707 = vpop.f32.mrf.mxu0
        %v2708 = vadd.f32 0.0, %v2707
        %v2709 = vpop.f32.mrf.mxu0
        %2710 = vmatprep.mubr.f32.mxu0 0.0
        %2711 = vmatmul.mubr.f32.gmra.mxu0 %v2557
        %v2712 = vpop.f32.mrf.mxu0
        %v2713 = vadd.f32 0.0, %v2712
        %v2714 = vpop.f32.mrf.mxu0
        %2715 = vmatprep.mubr.f32.mxu0 0.0
        %2716 = vmatmul.mubr.f32.gmra.mxu0 %v2558
        %v2717 = vpop.f32.mrf.mxu0
        %v2718 = vadd.f32 0.0, %v2717
        %v2719 = vpop.f32.mrf.mxu0
        %2720 = vmatprep.mubr.f32.mxu0 0.0
        %2721 = vmatmul.mubr.f32.gmra.mxu0 %v2559
        %v2722 = vpop.f32.mrf.mxu0
        %v2723 = vadd.f32 0.0, %v2722
        %v2724 = vpop.f32.mrf.mxu0
        %2725 = vmatprep.mubr.f32.mxu0 0.0
        %2726 = vmatmul.mubr.f32.gmra.mxu0 %v2560
        %v2727 = vpop.f32.mrf.mxu0
        %v2728 = vadd.f32 0.0, %v2727
        %v2729 = vpop.f32.mrf.mxu0
        %2730 = vmatprep.mubr.f32.mxu0 0.0
        %2731 = vmatmul.mubr.f32.gmra.mxu0 %v2561
        %v2732 = vpop.f32.mrf.mxu0
        %v2733 = vadd.f32 0.0, %v2732
        %v2734 = vpop.f32.mrf.mxu0
        %2735 = vmatprep.mubr.f32.mxu0 0.0
        %2736 = vmatmul.mubr.f32.gmra.mxu0 %v2562
        %v2737 = vpop.f32.mrf.mxu0
        %v2738 = vadd.f32 0.0, %v2737
        %v2739 = vpop.f32.mrf.mxu0
        %2740 = vmatprep.mubr.f32.mxu0 0.0
        %2741 = vmatmul.mubr.f32.gmra.mxu0 %v2563
        %v2742 = vpop.f32.mrf.mxu0
        %v2743 = vadd.f32 0.0, %v2742
        %v2744 = vpop.f32.mrf.mxu0
        %2745 = vmatprep.mubr.f32.mxu0 0.0
        %2746 = vmatmul.mubr.f32.gmra.mxu0 %v2564
        %v2747 = vpop.f32.mrf.mxu0
        %v2748 = vadd.f32 0.0, %v2747
        %v2749 = vpop.f32.mrf.mxu0
        %2750 = vmatprep.mubr.f32.mxu0 0.0
        %2751 = vmatmul.mubr.f32.gmra.mxu0 %v2565
        %v2752 = vpop.f32.mrf.mxu0
        %v2753 = vadd.f32 0.0, %v2752
        %v2754 = vpop.f32.mrf.mxu0
        %2755 = vmatprep.mubr.f32.mxu0 0.0
        %2756 = vmatmul.mubr.f32.gmra.mxu0 %v2566
        %v2757 = vpop.f32.mrf.mxu0
        %v2758 = vadd.f32 0.0, %v2757
        %v2759 = vpop.f32.mrf.mxu0
        %2760 = vmatprep.mubr.f32.mxu0 0.0
        %2761 = vmatmul.mubr.f32.gmra.mxu0 %v2567
        %v2762 = vpop.f32.mrf.mxu0
        %v2763 = vadd.f32 0.0, %v2762
        %v2764 = vpop.f32.mrf.mxu0
        %2765 = vmatprep.mubr.f32.mxu0 0.0
        %2766 = vmatmul.mubr.f32.gmra.mxu0 %v2568
        %v2767 = vpop.f32.mrf.mxu0
        %v2768 = vadd.f32 0.0, %v2767
        %v2769 = vpop.f32.mrf.mxu0
        %2770 = vmatprep.mubr.f32.mxu0 0.0
        %2771 = vmatmul.mubr.f32.gmra.mxu0 %v2569
        %v2772 = vpop.f32.mrf.mxu0
        %v2773 = vadd.f32 0.0, %v2772
        %v2774 = vpop.f32.mrf.mxu0
        %2775 = vmatprep.mubr.f32.mxu0 0.0
        %2776 = vmatmul.mubr.f32.gmra.mxu0 %v2570
        %v2777 = vpop.f32.mrf.mxu0
        %v2778 = vadd.f32 0.0, %v2777
        %v2779 = vpop.f32.mrf.mxu0
        %2780 = vmatprep.mubr.f32.mxu0 0.0
        %2781 = vmatmul.mubr.f32.gmra.mxu0 %v2571
        %v2782 = vpop.f32.mrf.mxu0
        %v2783 = vadd.f32 0.0, %v2782
        %v2784 = vpop.f32.mrf.mxu0
        %2785 = vmatprep.mubr.f32.mxu0 0.0
        %2786 = vmatmul.mubr.f32.gmra.mxu0 %v2572
        %v2787 = vpop.f32.mrf.mxu0
        %v2788 = vadd.f32 0.0, %v2787
        %v2789 = vpop.f32.mrf.mxu0
        %2790 = vmatprep.mubr.f32.mxu0 0.0
        %2791 = vmatmul.mubr.f32.gmra.mxu0 %v2573
        %v2792 = vpop.f32.mrf.mxu0
        %v2793 = vadd.f32 0.0, %v2792
        %v2794 = vpop.f32.mrf.mxu0
        %2795 = vmatprep.mubr.f32.mxu0 0.0
        %2796 = vmatmul.mubr.f32.gmra.mxu0 %v2574
        %v2797 = vpop.f32.mrf.mxu0
        %v2798 = vadd.f32 0.0, %v2797
        %v2799 = vpop.f32.mrf.mxu0
        %2800 = vmatprep.mubr.f32.mxu0 0.0
        %2801 = vmatmul.mubr.f32.gmra.mxu0 %v2575
        %v2802 = vpop.f32.mrf.mxu0
        %v2803 = vadd.f32 0.0, %v2802
        %v2804 = vpop.f32.mrf.mxu0
        %2805 = vmatprep.mubr.f32.mxu0 0.0
        %2806 = vmatmul.mubr.f32.gmra.mxu0 %v2576
        %v2807 = vpop.f32.mrf.mxu0
        %v2808 = vadd.f32 0.0, %v2807
        %v2809 = vpop.f32.mrf.mxu0
        %2810 = vmatprep.mubr.f32.mxu0 0.0
        %2811 = vmatmul.mubr.f32.gmra.mxu0 %v2577
        %v2812 = vpop.f32.mrf.mxu0
        %v2813 = vadd.f32 0.0, %v2812
        %v2814 = vpop.f32.mrf.mxu0
        %2815 = vmatprep.mubr.f32.mxu0 0.0
        %2816 = vmatmul.mubr.f32.gmra.mxu0 %v2578
        %v2817 = vpop.f32.mrf.mxu0
        %v2818 = vadd.f32 0.0, %v2817
        %v2819 = vpop.f32.mrf.mxu0
        %2820 = vdwg.mxu0
        %v2821 = vld [vmem:[#allocation4] sm:$0xff]
        %v2822 = vld [vmem:[#allocation4 + $0x8] sm:$0xff]
        %v2823 = vld [vmem:[#allocation4 + $0x10] sm:$0xff]
        %v2824 = vld [vmem:[#allocation4 + $0x18] sm:$0xff]
        %v2825 = vld [vmem:[#allocation4 + $0x20] sm:$0xff]
        %v2826 = vld [vmem:[#allocation4 + $0x28] sm:$0xff]
        %v2827 = vld [vmem:[#allocation4 + $0x30] sm:$0xff]
        %v2828 = vld [vmem:[#allocation4 + $0x38] sm:$0xff]
        %v2829 = vld [vmem:[#allocation4 + $0x40] sm:$0xff]
        %v2830 = vld [vmem:[#allocation4 + $0x48] sm:$0xff]
        %v2831 = vld [vmem:[#allocation4 + $0x50] sm:$0xff]
        %v2832 = vld [vmem:[#allocation4 + $0x58] sm:$0xff]
        %v2833 = vld [vmem:[#allocation4 + $0x60] sm:$0xff]
        %v2834 = vld [vmem:[#allocation4 + $0x68] sm:$0xff]
        %v2835 = vld [vmem:[#allocation4 + $0x70] sm:$0xff]
        %v2836 = vld [vmem:[#allocation4 + $0x78] sm:$0xff]
        %v2837 = vld [vmem:[#allocation4 + $0x80] sm:$0xff]
        %v2838 = vld [vmem:[#allocation4 + $0x88] sm:$0xff]
        %v2839 = vld [vmem:[#allocation4 + $0x90] sm:$0xff]
        %v2840 = vld [vmem:[#allocation4 + $0x98] sm:$0xff]
        %v2841 = vld [vmem:[#allocation4 + $0xa0] sm:$0xff]
        %v2842 = vld [vmem:[#allocation4 + $0xa8] sm:$0xff]
        %v2843 = vld [vmem:[#allocation4 + $0xb0] sm:$0xff]
        %v2844 = vld [vmem:[#allocation4 + $0xb8] sm:$0xff]
        %v2845 = vld [vmem:[#allocation4 + $0xc0] sm:$0xff]
        %v2846 = vld [vmem:[#allocation4 + $0xc8] sm:$0xff]
        %v2847 = vld [vmem:[#allocation4 + $0xd0] sm:$0xff]
        %v2848 = vld [vmem:[#allocation4 + $0xd8] sm:$0xff]
        %v2849 = vld [vmem:[#allocation4 + $0xe0] sm:$0xff]
        %v2850 = vld [vmem:[#allocation4 + $0xe8] sm:$0xff]
        %v2851 = vld [vmem:[#allocation4 + $0xf0] sm:$0xff]
        %v2852 = vld [vmem:[#allocation4 + $0xf8] sm:$0xff]
        %v2853 = vadd.f32 %v2821, %v2663
        %v2854 = vadd.f32 %v2822, %v2668
        %v2855 = vadd.f32 %v2823, %v2673
        %v2856 = vadd.f32 %v2824, %v2678
        %v2857 = vadd.f32 %v2825, %v2683
        %v2858 = vadd.f32 %v2826, %v2688
        %v2859 = vadd.f32 %v2827, %v2693
        %v2860 = vadd.f32 %v2828, %v2698
        %v2861 = vadd.f32 %v2829, %v2703
        %v2862 = vadd.f32 %v2830, %v2708
        %v2863 = vadd.f32 %v2831, %v2713
        %v2864 = vadd.f32 %v2832, %v2718
        %v2865 = vadd.f32 %v2833, %v2723
        %v2866 = vadd.f32 %v2834, %v2728
        %v2867 = vadd.f32 %v2835, %v2733
        %v2868 = vadd.f32 %v2836, %v2738
        %v2869 = vadd.f32 %v2837, %v2743
        %v2870 = vadd.f32 %v2838, %v2748
        %v2871 = vadd.f32 %v2839, %v2753
        %v2872 = vadd.f32 %v2840, %v2758
        %v2873 = vadd.f32 %v2841, %v2763
        %v2874 = vadd.f32 %v2842, %v2768
        %v2875 = vadd.f32 %v2843, %v2773
        %v2876 = vadd.f32 %v2844, %v2778
        %v2877 = vadd.f32 %v2845, %v2783
        %v2878 = vadd.f32 %v2846, %v2788
        %v2879 = vadd.f32 %v2847, %v2793
        %v2880 = vadd.f32 %v2848, %v2798
        %v2881 = vadd.f32 %v2849, %v2803
        %v2882 = vadd.f32 %v2850, %v2808
        %v2883 = vadd.f32 %v2851, %v2813
        %v2884 = vadd.f32 %v2852, %v2818
        %2885 = vst [vmem:[#allocation4] sm:$0xff] %v2853
        %2886 = vst [vmem:[#allocation4 + $0x8] sm:$0xff] %v2854
        %2887 = vst [vmem:[#allocation4 + $0x10] sm:$0xff] %v2855
        %2888 = vst [vmem:[#allocation4 + $0x18] sm:$0xff] %v2856
        %2889 = vst [vmem:[#allocation4 + $0x20] sm:$0xff] %v2857
        %2890 = vst [vmem:[#allocation4 + $0x28] sm:$0xff] %v2858
        %2891 = vst [vmem:[#allocation4 + $0x30] sm:$0xff] %v2859
        %2892 = vst [vmem:[#allocation4 + $0x38] sm:$0xff] %v2860
        %2893 = vst [vmem:[#allocation4 + $0x40] sm:$0xff] %v2861
        %2894 = vst [vmem:[#allocation4 + $0x48] sm:$0xff] %v2862
        %2895 = vst [vmem:[#allocation4 + $0x50] sm:$0xff] %v2863
        %2896 = vst [vmem:[#allocation4 + $0x58] sm:$0xff] %v2864
        %2897 = vst [vmem:[#allocation4 + $0x60] sm:$0xff] %v2865
        %2898 = vst [vmem:[#allocation4 + $0x68] sm:$0xff] %v2866
        %2899 = vst [vmem:[#allocation4 + $0x70] sm:$0xff] %v2867
        %2900 = vst [vmem:[#allocation4 + $0x78] sm:$0xff] %v2868
        %2901 = vst [vmem:[#allocation4 + $0x80] sm:$0xff] %v2869
        %2902 = vst [vmem:[#allocation4 + $0x88] sm:$0xff] %v2870
        %2903 = vst [vmem:[#allocation4 + $0x90] sm:$0xff] %v2871
        %2904 = vst [vmem:[#allocation4 + $0x98] sm:$0xff] %v2872
        %2905 = vst [vmem:[#allocation4 + $0xa0] sm:$0xff] %v2873
        %2906 = vst [vmem:[#allocation4 + $0xa8] sm:$0xff] %v2874
        %2907 = vst [vmem:[#allocation4 + $0xb0] sm:$0xff] %v2875
        %2908 = vst [vmem:[#allocation4 + $0xb8] sm:$0xff] %v2876
        %2909 = vst [vmem:[#allocation4 + $0xc0] sm:$0xff] %v2877
        %2910 = vst [vmem:[#allocation4 + $0xc8] sm:$0xff] %v2878
        %2911 = vst [vmem:[#allocation4 + $0xd0] sm:$0xff] %v2879
        %2912 = vst [vmem:[#allocation4 + $0xd8] sm:$0xff] %v2880
        %2913 = vst [vmem:[#allocation4 + $0xe0] sm:$0xff] %v2881
        %2914 = vst [vmem:[#allocation4 + $0xe8] sm:$0xff] %v2882
        %2915 = vst [vmem:[#allocation4 + $0xf0] sm:$0xff] %v2883
        %2916 = vst [vmem:[#allocation4 + $0xf8] sm:$0xff] %v2884
        %v2917 = vld [vmem:[%s2546 + $0x1] sm:$0xff]
        %v2918 = vld [vmem:[%s2546 + $0x9] sm:$0xff]
        %v2919 = vld [vmem:[%s2546 + $0x19] sm:$0xff]
        %v2920 = vld [vmem:[%s2546 + $0x21] sm:$0xff]
        %v2921 = vld [vmem:[%s2546 + $0x31] sm:$0xff]
        %v2922 = vld [vmem:[%s2546 + $0x39] sm:$0xff]
        %v2923 = vld [vmem:[%s2546 + $0x49] sm:$0xff]
        %v2924 = vld [vmem:[%s2546 + $0x51] sm:$0xff]
        %v2925 = vld [vmem:[%s2546 + $0x61] sm:$0xff]
        %v2926 = vld [vmem:[%s2546 + $0x69] sm:$0xff]
        %v2927 = vld [vmem:[%s2546 + $0x79] sm:$0xff]
        %v2928 = vld [vmem:[%s2546 + $0x81] sm:$0xff]
        %v2929 = vld [vmem:[%s2546 + $0x91] sm:$0xff]
        %v2930 = vld [vmem:[%s2546 + $0x99] sm:$0xff]
        %v2931 = vld [vmem:[%s2546 + $0xa9] sm:$0xff]
        %v2932 = vld [vmem:[%s2546 + $0xb1] sm:$0xff]
        %v2933 = vld [vmem:[%s2546 + $0xc1] sm:$0xff]
        %v2934 = vld [vmem:[%s2546 + $0xc9] sm:$0xff]
        %v2935 = vld [vmem:[%s2546 + $0xd9] sm:$0xff]
        %v2936 = vld [vmem:[%s2546 + $0xe1] sm:$0xff]
        %v2937 = vld [vmem:[%s2546 + $0xf1] sm:$0xff]
        %v2938 = vld [vmem:[%s2546 + $0xf9] sm:$0xff]
        %v2939 = vld [vmem:[%s2546 + $0x109] sm:$0xff]
        %v2940 = vld [vmem:[%s2546 + $0x111] sm:$0xff]
        %v2941 = vld [vmem:[%s2546 + $0x121] sm:$0xff]
        %v2942 = vld [vmem:[%s2546 + $0x129] sm:$0xff]
        %v2943 = vld [vmem:[%s2546 + $0x139] sm:$0xff]
        %v2944 = vld [vmem:[%s2546 + $0x141] sm:$0xff]
        %v2945 = vld [vmem:[%s2546 + $0x151] sm:$0xff]
        %v2946 = vld [vmem:[%s2546 + $0x159] sm:$0xff]
        %v2947 = vld [vmem:[%s2546 + $0x169] sm:$0xff]
        %v2948 = vld [vmem:[%s2546 + $0x171] sm:$0xff]
        %s2949 = scalar_lea.vmem %s1, 896
        %v2950 = vld [vmem:[%s2949] sm:$0xff]
        %v2951 = vld [vmem:[%s2949 + $0x8] sm:$0xff]
        %v2952 = vld [vmem:[%s2949 + $0x10] sm:$0xff]
        %v2953 = vld [vmem:[%s2949 + $0x18] sm:$0xff]
        %v2954 = vld [vmem:[%s2949 + $0x20] sm:$0xff]
        %v2955 = vld [vmem:[%s2949 + $0x28] sm:$0xff]
        %v2956 = vld [vmem:[%s2949 + $0x30] sm:$0xff]
        %v2957 = vld [vmem:[%s2949 + $0x38] sm:$0xff]
        %v2958 = vld [vmem:[%s2949 + $0x40] sm:$0xff]
        %v2959 = vld [vmem:[%s2949 + $0x48] sm:$0xff]
        %v2960 = vld [vmem:[%s2949 + $0x50] sm:$0xff]
        %v2961 = vld [vmem:[%s2949 + $0x58] sm:$0xff]
        %v2962 = vld [vmem:[%s2949 + $0x60] sm:$0xff]
        %v2963 = vld [vmem:[%s2949 + $0x68] sm:$0xff]
        %v2964 = vld [vmem:[%s2949 + $0x70] sm:$0xff]
        %v2965 = vld [vmem:[%s2949 + $0x78] sm:$0xff]
        %2966 = vmatprep.subr.mxu0 0.0
        %2967 = vmatpush1.msra.mxu0 %v2965
        %2968 = vmatprep.subr.mxu0 0.0
        %2969 = vmatpush1.msra.mxu0 %v2964
        %2970 = vmatprep.subr.mxu0 0.0
        %2971 = vmatpush1.msra.mxu0 %v2963
        %2972 = vmatprep.subr.mxu0 0.0
        %2973 = vmatpush1.msra.mxu0 %v2962
        %2974 = vmatprep.subr.mxu0 0.0
        %2975 = vmatpush1.msra.mxu0 %v2961
        %2976 = vmatprep.subr.mxu0 0.0
        %2977 = vmatpush1.msra.mxu0 %v2960
        %2978 = vmatprep.subr.mxu0 0.0
        %2979 = vmatpush1.msra.mxu0 %v2959
        %2980 = vmatprep.subr.mxu0 0.0
        %2981 = vmatpush1.msra.mxu0 %v2958
        %2982 = vmatprep.subr.mxu0 0.0
        %2983 = vmatpush1.msra.mxu0 %v2957
        %2984 = vmatprep.subr.mxu0 0.0
        %2985 = vmatpush1.msra.mxu0 %v2956
        %2986 = vmatprep.subr.mxu0 0.0
        %2987 = vmatpush1.msra.mxu0 %v2955
        %2988 = vmatprep.subr.mxu0 0.0
        %2989 = vmatpush1.msra.mxu0 %v2954
        %2990 = vmatprep.subr.mxu0 0.0
        %2991 = vmatpush1.msra.mxu0 %v2953
        %2992 = vmatprep.subr.mxu0 0.0
        %2993 = vmatpush1.msra.mxu0 %v2952
        %2994 = vmatprep.subr.mxu0 0.0
        %2995 = vmatpush1.msra.mxu0 %v2951
        %2996 = vmatprep.subr.mxu0 0.0
        %2997 = vmatpush1.msra.mxu0 %v2950
        %2998 = vmatprep.subr.mxu0 0.0
        %2999 = vmatpush2.msra.mxu0 0.0
        %3000 = vmatprep.subr.mxu0 0.0
        %3001 = vmatpush2.msra.mxu0 0.0
        %3002 = vmatprep.subr.mxu0 0.0
        %3003 = vmatpush2.msra.mxu0 0.0
        %3004 = vmatprep.subr.mxu0 0.0
        %3005 = vmatpush2.msra.mxu0 0.0
        %3006 = vmatprep.subr.mxu0 0.0
        %3007 = vmatpush2.msra.mxu0 0.0
        %3008 = vmatprep.subr.mxu0 0.0
        %3009 = vmatpush2.msra.mxu0 0.0
        %3010 = vmatprep.subr.mxu0 0.0
        %3011 = vmatpush2.msra.mxu0 0.0
        %3012 = vmatprep.subr.mxu0 0.0
        %3013 = vmatpush2.msra.mxu0 0.0
        %3014 = vmatprep.subr.mxu0 0.0
        %3015 = vmatpush2.msra.mxu0 0.0
        %3016 = vmatprep.subr.mxu0 0.0
        %3017 = vmatpush2.msra.mxu0 0.0
        %3018 = vmatprep.subr.mxu0 0.0
        %3019 = vmatpush2.msra.mxu0 0.0
        %3020 = vmatprep.subr.mxu0 0.0
        %3021 = vmatpush2.msra.mxu0 0.0
        %3022 = vmatprep.subr.mxu0 0.0
        %3023 = vmatpush2.msra.mxu0 0.0
        %3024 = vmatprep.subr.mxu0 0.0
        %3025 = vmatpush2.msra.mxu0 0.0
        %3026 = vmatprep.subr.mxu0 0.0
        %3027 = vmatpush2.msra.mxu0 0.0
        %3028 = vmatprep.subr.mxu0 0.0
        %3029 = vmatpush2.msra.mxu0 0.0
        %3030 = vmatprep.mubr.f32.mxu0 0.0
        %3031 = vmatmul.mubr.f32.gmra.mxu0 %v2917
        %v3032 = vpop.f32.mrf.mxu0
        %v3033 = vadd.f32 0.0, %v3032
        %v3034 = vpop.f32.mrf.mxu0
        %3035 = vmatprep.mubr.f32.mxu0 0.0
        %3036 = vmatmul.mubr.f32.gmra.mxu0 %v2918
        %v3037 = vpop.f32.mrf.mxu0
        %v3038 = vadd.f32 0.0, %v3037
        %v3039 = vpop.f32.mrf.mxu0
        %3040 = vmatprep.mubr.f32.mxu0 0.0
        %3041 = vmatmul.mubr.f32.gmra.mxu0 %v2919
        %v3042 = vpop.f32.mrf.mxu0
        %v3043 = vadd.f32 0.0, %v3042
        %v3044 = vpop.f32.mrf.mxu0
        %3045 = vmatprep.mubr.f32.mxu0 0.0
        %3046 = vmatmul.mubr.f32.gmra.mxu0 %v2920
        %v3047 = vpop.f32.mrf.mxu0
        %v3048 = vadd.f32 0.0, %v3047
        %v3049 = vpop.f32.mrf.mxu0
        %3050 = vmatprep.mubr.f32.mxu0 0.0
        %3051 = vmatmul.mubr.f32.gmra.mxu0 %v2921
        %v3052 = vpop.f32.mrf.mxu0
        %v3053 = vadd.f32 0.0, %v3052
        %v3054 = vpop.f32.mrf.mxu0
        %3055 = vmatprep.mubr.f32.mxu0 0.0
        %3056 = vmatmul.mubr.f32.gmra.mxu0 %v2922
        %v3057 = vpop.f32.mrf.mxu0
        %v3058 = vadd.f32 0.0, %v3057
        %v3059 = vpop.f32.mrf.mxu0
        %3060 = vmatprep.mubr.f32.mxu0 0.0
        %3061 = vmatmul.mubr.f32.gmra.mxu0 %v2923
        %v3062 = vpop.f32.mrf.mxu0
        %v3063 = vadd.f32 0.0, %v3062
        %v3064 = vpop.f32.mrf.mxu0
        %3065 = vmatprep.mubr.f32.mxu0 0.0
        %3066 = vmatmul.mubr.f32.gmra.mxu0 %v2924
        %v3067 = vpop.f32.mrf.mxu0
        %v3068 = vadd.f32 0.0, %v3067
        %v3069 = vpop.f32.mrf.mxu0
        %3070 = vmatprep.mubr.f32.mxu0 0.0
        %3071 = vmatmul.mubr.f32.gmra.mxu0 %v2925
        %v3072 = vpop.f32.mrf.mxu0
        %v3073 = vadd.f32 0.0, %v3072
        %v3074 = vpop.f32.mrf.mxu0
        %3075 = vmatprep.mubr.f32.mxu0 0.0
        %3076 = vmatmul.mubr.f32.gmra.mxu0 %v2926
        %v3077 = vpop.f32.mrf.mxu0
        %v3078 = vadd.f32 0.0, %v3077
        %v3079 = vpop.f32.mrf.mxu0
        %3080 = vmatprep.mubr.f32.mxu0 0.0
        %3081 = vmatmul.mubr.f32.gmra.mxu0 %v2927
        %v3082 = vpop.f32.mrf.mxu0
        %v3083 = vadd.f32 0.0, %v3082
        %v3084 = vpop.f32.mrf.mxu0
        %3085 = vmatprep.mubr.f32.mxu0 0.0
        %3086 = vmatmul.mubr.f32.gmra.mxu0 %v2928
        %v3087 = vpop.f32.mrf.mxu0
        %v3088 = vadd.f32 0.0, %v3087
        %v3089 = vpop.f32.mrf.mxu0
        %3090 = vmatprep.mubr.f32.mxu0 0.0
        %3091 = vmatmul.mubr.f32.gmra.mxu0 %v2929
        %v3092 = vpop.f32.mrf.mxu0
        %v3093 = vadd.f32 0.0, %v3092
        %v3094 = vpop.f32.mrf.mxu0
        %3095 = vmatprep.mubr.f32.mxu0 0.0
        %3096 = vmatmul.mubr.f32.gmra.mxu0 %v2930
        %v3097 = vpop.f32.mrf.mxu0
        %v3098 = vadd.f32 0.0, %v3097
        %v3099 = vpop.f32.mrf.mxu0
        %3100 = vmatprep.mubr.f32.mxu0 0.0
        %3101 = vmatmul.mubr.f32.gmra.mxu0 %v2931
        %v3102 = vpop.f32.mrf.mxu0
        %v3103 = vadd.f32 0.0, %v3102
        %v3104 = vpop.f32.mrf.mxu0
        %3105 = vmatprep.mubr.f32.mxu0 0.0
        %3106 = vmatmul.mubr.f32.gmra.mxu0 %v2932
        %v3107 = vpop.f32.mrf.mxu0
        %v3108 = vadd.f32 0.0, %v3107
        %v3109 = vpop.f32.mrf.mxu0
        %3110 = vmatprep.mubr.f32.mxu0 0.0
        %3111 = vmatmul.mubr.f32.gmra.mxu0 %v2933
        %v3112 = vpop.f32.mrf.mxu0
        %v3113 = vadd.f32 0.0, %v3112
        %v3114 = vpop.f32.mrf.mxu0
        %3115 = vmatprep.mubr.f32.mxu0 0.0
        %3116 = vmatmul.mubr.f32.gmra.mxu0 %v2934
        %v3117 = vpop.f32.mrf.mxu0
        %v3118 = vadd.f32 0.0, %v3117
        %v3119 = vpop.f32.mrf.mxu0
        %3120 = vmatprep.mubr.f32.mxu0 0.0
        %3121 = vmatmul.mubr.f32.gmra.mxu0 %v2935
        %v3122 = vpop.f32.mrf.mxu0
        %v3123 = vadd.f32 0.0, %v3122
        %v3124 = vpop.f32.mrf.mxu0
        %3125 = vmatprep.mubr.f32.mxu0 0.0
        %3126 = vmatmul.mubr.f32.gmra.mxu0 %v2936
        %v3127 = vpop.f32.mrf.mxu0
        %v3128 = vadd.f32 0.0, %v3127
        %v3129 = vpop.f32.mrf.mxu0
        %3130 = vmatprep.mubr.f32.mxu0 0.0
        %3131 = vmatmul.mubr.f32.gmra.mxu0 %v2937
        %v3132 = vpop.f32.mrf.mxu0
        %v3133 = vadd.f32 0.0, %v3132
        %v3134 = vpop.f32.mrf.mxu0
        %3135 = vmatprep.mubr.f32.mxu0 0.0
        %3136 = vmatmul.mubr.f32.gmra.mxu0 %v2938
        %v3137 = vpop.f32.mrf.mxu0
        %v3138 = vadd.f32 0.0, %v3137
        %v3139 = vpop.f32.mrf.mxu0
        %3140 = vmatprep.mubr.f32.mxu0 0.0
        %3141 = vmatmul.mubr.f32.gmra.mxu0 %v2939
        %v3142 = vpop.f32.mrf.mxu0
        %v3143 = vadd.f32 0.0, %v3142
        %v3144 = vpop.f32.mrf.mxu0
        %3145 = vmatprep.mubr.f32.mxu0 0.0
        %3146 = vmatmul.mubr.f32.gmra.mxu0 %v2940
        %v3147 = vpop.f32.mrf.mxu0
        %v3148 = vadd.f32 0.0, %v3147
        %v3149 = vpop.f32.mrf.mxu0
        %3150 = vmatprep.mubr.f32.mxu0 0.0
        %3151 = vmatmul.mubr.f32.gmra.mxu0 %v2941
        %v3152 = vpop.f32.mrf.mxu0
        %v3153 = vadd.f32 0.0, %v3152
        %v3154 = vpop.f32.mrf.mxu0
        %3155 = vmatprep.mubr.f32.mxu0 0.0
        %3156 = vmatmul.mubr.f32.gmra.mxu0 %v2942
        %v3157 = vpop.f32.mrf.mxu0
        %v3158 = vadd.f32 0.0, %v3157
        %v3159 = vpop.f32.mrf.mxu0
        %3160 = vmatprep.mubr.f32.mxu0 0.0
        %3161 = vmatmul.mubr.f32.gmra.mxu0 %v2943
        %v3162 = vpop.f32.mrf.mxu0
        %v3163 = vadd.f32 0.0, %v3162
        %v3164 = vpop.f32.mrf.mxu0
        %3165 = vmatprep.mubr.f32.mxu0 0.0
        %3166 = vmatmul.mubr.f32.gmra.mxu0 %v2944
        %v3167 = vpop.f32.mrf.mxu0
        %v3168 = vadd.f32 0.0, %v3167
        %v3169 = vpop.f32.mrf.mxu0
        %3170 = vmatprep.mubr.f32.mxu0 0.0
        %3171 = vmatmul.mubr.f32.gmra.mxu0 %v2945
        %v3172 = vpop.f32.mrf.mxu0
        %v3173 = vadd.f32 0.0, %v3172
        %v3174 = vpop.f32.mrf.mxu0
        %3175 = vmatprep.mubr.f32.mxu0 0.0
        %3176 = vmatmul.mubr.f32.gmra.mxu0 %v2946
        %v3177 = vpop.f32.mrf.mxu0
        %v3178 = vadd.f32 0.0, %v3177
        %v3179 = vpop.f32.mrf.mxu0
        %3180 = vmatprep.mubr.f32.mxu0 0.0
        %3181 = vmatmul.mubr.f32.gmra.mxu0 %v2947
        %v3182 = vpop.f32.mrf.mxu0
        %v3183 = vadd.f32 0.0, %v3182
        %v3184 = vpop.f32.mrf.mxu0
        %3185 = vmatprep.mubr.f32.mxu0 0.0
        %3186 = vmatmul.mubr.f32.gmra.mxu0 %v2948
        %v3187 = vpop.f32.mrf.mxu0
        %v3188 = vadd.f32 0.0, %v3187
        %v3189 = vpop.f32.mrf.mxu0
        %3190 = vdwg.mxu0
        %v3191 = vld [vmem:[#allocation4] sm:$0xff]
        %v3192 = vld [vmem:[#allocation4 + $0x8] sm:$0xff]
        %v3193 = vld [vmem:[#allocation4 + $0x10] sm:$0xff]
        %v3194 = vld [vmem:[#allocation4 + $0x18] sm:$0xff]
        %v3195 = vld [vmem:[#allocation4 + $0x20] sm:$0xff]
        %v3196 = vld [vmem:[#allocation4 + $0x28] sm:$0xff]
        %v3197 = vld [vmem:[#allocation4 + $0x30] sm:$0xff]
        %v3198 = vld [vmem:[#allocation4 + $0x38] sm:$0xff]
        %v3199 = vld [vmem:[#allocation4 + $0x40] sm:$0xff]
        %v3200 = vld [vmem:[#allocation4 + $0x48] sm:$0xff]
        %v3201 = vld [vmem:[#allocation4 + $0x50] sm:$0xff]
        %v3202 = vld [vmem:[#allocation4 + $0x58] sm:$0xff]
        %v3203 = vld [vmem:[#allocation4 + $0x60] sm:$0xff]
        %v3204 = vld [vmem:[#allocation4 + $0x68] sm:$0xff]
        %v3205 = vld [vmem:[#allocation4 + $0x70] sm:$0xff]
        %v3206 = vld [vmem:[#allocation4 + $0x78] sm:$0xff]
        %v3207 = vld [vmem:[#allocation4 + $0x80] sm:$0xff]
        %v3208 = vld [vmem:[#allocation4 + $0x88] sm:$0xff]
        %v3209 = vld [vmem:[#allocation4 + $0x90] sm:$0xff]
        %v3210 = vld [vmem:[#allocation4 + $0x98] sm:$0xff]
        %v3211 = vld [vmem:[#allocation4 + $0xa0] sm:$0xff]
        %v3212 = vld [vmem:[#allocation4 + $0xa8] sm:$0xff]
        %v3213 = vld [vmem:[#allocation4 + $0xb0] sm:$0xff]
        %v3214 = vld [vmem:[#allocation4 + $0xb8] sm:$0xff]
        %v3215 = vld [vmem:[#allocation4 + $0xc0] sm:$0xff]
        %v3216 = vld [vmem:[#allocation4 + $0xc8] sm:$0xff]
        %v3217 = vld [vmem:[#allocation4 + $0xd0] sm:$0xff]
        %v3218 = vld [vmem:[#allocation4 + $0xd8] sm:$0xff]
        %v3219 = vld [vmem:[#allocation4 + $0xe0] sm:$0xff]
        %v3220 = vld [vmem:[#allocation4 + $0xe8] sm:$0xff]
        %v3221 = vld [vmem:[#allocation4 + $0xf0] sm:$0xff]
        %v3222 = vld [vmem:[#allocation4 + $0xf8] sm:$0xff]
        %v3223 = vadd.f32 %v3191, %v3033
        %v3224 = vadd.f32 %v3192, %v3038
        %v3225 = vadd.f32 %v3193, %v3043
        %v3226 = vadd.f32 %v3194, %v3048
        %v3227 = vadd.f32 %v3195, %v3053
        %v3228 = vadd.f32 %v3196, %v3058
        %v3229 = vadd.f32 %v3197, %v3063
        %v3230 = vadd.f32 %v3198, %v3068
        %v3231 = vadd.f32 %v3199, %v3073
        %v3232 = vadd.f32 %v3200, %v3078
        %v3233 = vadd.f32 %v3201, %v3083
        %v3234 = vadd.f32 %v3202, %v3088
        %v3235 = vadd.f32 %v3203, %v3093
        %v3236 = vadd.f32 %v3204, %v3098
        %v3237 = vadd.f32 %v3205, %v3103
        %v3238 = vadd.f32 %v3206, %v3108
        %v3239 = vadd.f32 %v3207, %v3113
        %v3240 = vadd.f32 %v3208, %v3118
        %v3241 = vadd.f32 %v3209, %v3123
        %v3242 = vadd.f32 %v3210, %v3128
        %v3243 = vadd.f32 %v3211, %v3133
        %v3244 = vadd.f32 %v3212, %v3138
        %v3245 = vadd.f32 %v3213, %v3143
        %v3246 = vadd.f32 %v3214, %v3148
        %v3247 = vadd.f32 %v3215, %v3153
        %v3248 = vadd.f32 %v3216, %v3158
        %v3249 = vadd.f32 %v3217, %v3163
        %v3250 = vadd.f32 %v3218, %v3168
        %v3251 = vadd.f32 %v3219, %v3173
        %v3252 = vadd.f32 %v3220, %v3178
        %v3253 = vadd.f32 %v3221, %v3183
        %v3254 = vadd.f32 %v3222, %v3188
        %3255 = vst [vmem:[#allocation4] sm:$0xff] %v3223
        %3256 = vst [vmem:[#allocation4 + $0x8] sm:$0xff] %v3224
        %3257 = vst [vmem:[#allocation4 + $0x10] sm:$0xff] %v3225
        %3258 = vst [vmem:[#allocation4 + $0x18] sm:$0xff] %v3226
        %3259 = vst [vmem:[#allocation4 + $0x20] sm:$0xff] %v3227
        %3260 = vst [vmem:[#allocation4 + $0x28] sm:$0xff] %v3228
        %3261 = vst [vmem:[#allocation4 + $0x30] sm:$0xff] %v3229
        %3262 = vst [vmem:[#allocation4 + $0x38] sm:$0xff] %v3230
        %3263 = vst [vmem:[#allocation4 + $0x40] sm:$0xff] %v3231
        %3264 = vst [vmem:[#allocation4 + $0x48] sm:$0xff] %v3232
        %3265 = vst [vmem:[#allocation4 + $0x50] sm:$0xff] %v3233
        %3266 = vst [vmem:[#allocation4 + $0x58] sm:$0xff] %v3234
        %3267 = vst [vmem:[#allocation4 + $0x60] sm:$0xff] %v3235
        %3268 = vst [vmem:[#allocation4 + $0x68] sm:$0xff] %v3236
        %3269 = vst [vmem:[#allocation4 + $0x70] sm:$0xff] %v3237
        %3270 = vst [vmem:[#allocation4 + $0x78] sm:$0xff] %v3238
        %3271 = vst [vmem:[#allocation4 + $0x80] sm:$0xff] %v3239
        %3272 = vst [vmem:[#allocation4 + $0x88] sm:$0xff] %v3240
        %3273 = vst [vmem:[#allocation4 + $0x90] sm:$0xff] %v3241
        %3274 = vst [vmem:[#allocation4 + $0x98] sm:$0xff] %v3242
        %3275 = vst [vmem:[#allocation4 + $0xa0] sm:$0xff] %v3243
        %3276 = vst [vmem:[#allocation4 + $0xa8] sm:$0xff] %v3244
        %3277 = vst [vmem:[#allocation4 + $0xb0] sm:$0xff] %v3245
        %3278 = vst [vmem:[#allocation4 + $0xb8] sm:$0xff] %v3246
        %3279 = vst [vmem:[#allocation4 + $0xc0] sm:$0xff] %v3247
        %3280 = vst [vmem:[#allocation4 + $0xc8] sm:$0xff] %v3248
        %3281 = vst [vmem:[#allocation4 + $0xd0] sm:$0xff] %v3249
        %3282 = vst [vmem:[#allocation4 + $0xd8] sm:$0xff] %v3250
        %3283 = vst [vmem:[#allocation4 + $0xe0] sm:$0xff] %v3251
        %3284 = vst [vmem:[#allocation4 + $0xe8] sm:$0xff] %v3252
        %3285 = vst [vmem:[#allocation4 + $0xf0] sm:$0xff] %v3253
        %3286 = vst [vmem:[#allocation4 + $0xf8] sm:$0xff] %v3254
        %v3287 = vld [vmem:[%s2546 + $0x2] sm:$0xff]
        %v3288 = vld [vmem:[%s2546 + $0xa] sm:$0xff]
        %v3289 = vld [vmem:[%s2546 + $0x1a] sm:$0xff]
        %v3290 = vld [vmem:[%s2546 + $0x22] sm:$0xff]
        %v3291 = vld [vmem:[%s2546 + $0x32] sm:$0xff]
        %v3292 = vld [vmem:[%s2546 + $0x3a] sm:$0xff]
        %v3293 = vld [vmem:[%s2546 + $0x4a] sm:$0xff]
        %v3294 = vld [vmem:[%s2546 + $0x52] sm:$0xff]
        %v3295 = vld [vmem:[%s2546 + $0x62] sm:$0xff]
        %v3296 = vld [vmem:[%s2546 + $0x6a] sm:$0xff]
        %v3297 = vld [vmem:[%s2546 + $0x7a] sm:$0xff]
        %v3298 = vld [vmem:[%s2546 + $0x82] sm:$0xff]
        %v3299 = vld [vmem:[%s2546 + $0x92] sm:$0xff]
        %v3300 = vld [vmem:[%s2546 + $0x9a] sm:$0xff]
        %v3301 = vld [vmem:[%s2546 + $0xaa] sm:$0xff]
        %v3302 = vld [vmem:[%s2546 + $0xb2] sm:$0xff]
        %v3303 = vld [vmem:[%s2546 + $0xc2] sm:$0xff]
        %v3304 = vld [vmem:[%s2546 + $0xca] sm:$0xff]
        %v3305 = vld [vmem:[%s2546 + $0xda] sm:$0xff]
        %v3306 = vld [vmem:[%s2546 + $0xe2] sm:$0xff]
        %v3307 = vld [vmem:[%s2546 + $0xf2] sm:$0xff]
        %v3308 = vld [vmem:[%s2546 + $0xfa] sm:$0xff]
        %v3309 = vld [vmem:[%s2546 + $0x10a] sm:$0xff]
        %v3310 = vld [vmem:[%s2546 + $0x112] sm:$0xff]
        %v3311 = vld [vmem:[%s2546 + $0x122] sm:$0xff]
        %v3312 = vld [vmem:[%s2546 + $0x12a] sm:$0xff]
        %v3313 = vld [vmem:[%s2546 + $0x13a] sm:$0xff]
        %v3314 = vld [vmem:[%s2546 + $0x142] sm:$0xff]
        %v3315 = vld [vmem:[%s2546 + $0x152] sm:$0xff]
        %v3316 = vld [vmem:[%s2546 + $0x15a] sm:$0xff]
        %v3317 = vld [vmem:[%s2546 + $0x16a] sm:$0xff]
        %v3318 = vld [vmem:[%s2546 + $0x172] sm:$0xff]
        %s3319 = scalar_lea.vmem %s1, 1024
        %v3320 = vld [vmem:[%s3319] sm:$0xff]
        %v3321 = vld [vmem:[%s3319 + $0x8] sm:$0xff]
        %v3322 = vld [vmem:[%s3319 + $0x10] sm:$0xff]
        %v3323 = vld [vmem:[%s3319 + $0x18] sm:$0xff]
        %v3324 = vld [vmem:[%s3319 + $0x20] sm:$0xff]
        %v3325 = vld [vmem:[%s3319 + $0x28] sm:$0xff]
        %v3326 = vld [vmem:[%s3319 + $0x30] sm:$0xff]
        %v3327 = vld [vmem:[%s3319 + $0x38] sm:$0xff]
        %v3328 = vld [vmem:[%s3319 + $0x40] sm:$0xff]
        %v3329 = vld [vmem:[%s3319 + $0x48] sm:$0xff]
        %v3330 = vld [vmem:[%s3319 + $0x50] sm:$0xff]
        %v3331 = vld [vmem:[%s3319 + $0x58] sm:$0xff]
        %v3332 = vld [vmem:[%s3319 + $0x60] sm:$0xff]
        %v3333 = vld [vmem:[%s3319 + $0x68] sm:$0xff]
        %v3334 = vld [vmem:[%s3319 + $0x70] sm:$0xff]
        %v3335 = vld [vmem:[%s3319 + $0x78] sm:$0xff]
        %3336 = vmatprep.subr.mxu0 0.0
        %3337 = vmatpush1.msra.mxu0 %v3335
        %3338 = vmatprep.subr.mxu0 0.0
        %3339 = vmatpush1.msra.mxu0 %v3334
        %3340 = vmatprep.subr.mxu0 0.0
        %3341 = vmatpush1.msra.mxu0 %v3333
        %3342 = vmatprep.subr.mxu0 0.0
        %3343 = vmatpush1.msra.mxu0 %v3332
        %3344 = vmatprep.subr.mxu0 0.0
        %3345 = vmatpush1.msra.mxu0 %v3331
        %3346 = vmatprep.subr.mxu0 0.0
        %3347 = vmatpush1.msra.mxu0 %v3330
        %3348 = vmatprep.subr.mxu0 0.0
        %3349 = vmatpush1.msra.mxu0 %v3329
        %3350 = vmatprep.subr.mxu0 0.0
        %3351 = vmatpush1.msra.mxu0 %v3328
        %3352 = vmatprep.subr.mxu0 0.0
        %3353 = vmatpush1.msra.mxu0 %v3327
        %3354 = vmatprep.subr.mxu0 0.0
        %3355 = vmatpush1.msra.mxu0 %v3326
        %3356 = vmatprep.subr.mxu0 0.0
        %3357 = vmatpush1.msra.mxu0 %v3325
        %3358 = vmatprep.subr.mxu0 0.0
        %3359 = vmatpush1.msra.mxu0 %v3324
        %3360 = vmatprep.subr.mxu0 0.0
        %3361 = vmatpush1.msra.mxu0 %v3323
        %3362 = vmatprep.subr.mxu0 0.0
        %3363 = vmatpush1.msra.mxu0 %v3322
        %3364 = vmatprep.subr.mxu0 0.0
        %3365 = vmatpush1.msra.mxu0 %v3321
        %3366 = vmatprep.subr.mxu0 0.0
        %3367 = vmatpush1.msra.mxu0 %v3320
        %3368 = vmatprep.subr.mxu0 0.0
        %3369 = vmatpush2.msra.mxu0 0.0
        %3370 = vmatprep.subr.mxu0 0.0
        %3371 = vmatpush2.msra.mxu0 0.0
        %3372 = vmatprep.subr.mxu0 0.0
        %3373 = vmatpush2.msra.mxu0 0.0
        %3374 = vmatprep.subr.mxu0 0.0
        %3375 = vmatpush2.msra.mxu0 0.0
        %3376 = vmatprep.subr.mxu0 0.0
        %3377 = vmatpush2.msra.mxu0 0.0
        %3378 = vmatprep.subr.mxu0 0.0
        %3379 = vmatpush2.msra.mxu0 0.0
        %3380 = vmatprep.subr.mxu0 0.0
        %3381 = vmatpush2.msra.mxu0 0.0
        %3382 = vmatprep.subr.mxu0 0.0
        %3383 = vmatpush2.msra.mxu0 0.0
        %3384 = vmatprep.subr.mxu0 0.0
        %3385 = vmatpush2.msra.mxu0 0.0
        %3386 = vmatprep.subr.mxu0 0.0
        %3387 = vmatpush2.msra.mxu0 0.0
        %3388 = vmatprep.subr.mxu0 0.0
        %3389 = vmatpush2.msra.mxu0 0.0
        %3390 = vmatprep.subr.mxu0 0.0
        %3391 = vmatpush2.msra.mxu0 0.0
        %3392 = vmatprep.subr.mxu0 0.0
        %3393 = vmatpush2.msra.mxu0 0.0
        %3394 = vmatprep.subr.mxu0 0.0
        %3395 = vmatpush2.msra.mxu0 0.0
        %3396 = vmatprep.subr.mxu0 0.0
        %3397 = vmatpush2.msra.mxu0 0.0
        %3398 = vmatprep.subr.mxu0 0.0
        %3399 = vmatpush2.msra.mxu0 0.0
        %3400 = vmatprep.mubr.f32.mxu0 0.0
        %3401 = vmatmul.mubr.f32.gmra.mxu0 %v3287
        %v3402 = vpop.f32.mrf.mxu0
        %v3403 = vadd.f32 0.0, %v3402
        %v3404 = vpop.f32.mrf.mxu0
        %3405 = vmatprep.mubr.f32.mxu0 0.0
        %3406 = vmatmul.mubr.f32.gmra.mxu0 %v3288
        %v3407 = vpop.f32.mrf.mxu0
        %v3408 = vadd.f32 0.0, %v3407
        %v3409 = vpop.f32.mrf.mxu0
        %3410 = vmatprep.mubr.f32.mxu0 0.0
        %3411 = vmatmul.mubr.f32.gmra.mxu0 %v3289
        %v3412 = vpop.f32.mrf.mxu0
        %v3413 = vadd.f32 0.0, %v3412
        %v3414 = vpop.f32.mrf.mxu0
        %3415 = vmatprep.mubr.f32.mxu0 0.0
        %3416 = vmatmul.mubr.f32.gmra.mxu0 %v3290
        %v3417 = vpop.f32.mrf.mxu0
        %v3418 = vadd.f32 0.0, %v3417
        %v3419 = vpop.f32.mrf.mxu0
        %3420 = vmatprep.mubr.f32.mxu0 0.0
        %3421 = vmatmul.mubr.f32.gmra.mxu0 %v3291
        %v3422 = vpop.f32.mrf.mxu0
        %v3423 = vadd.f32 0.0, %v3422
        %v3424 = vpop.f32.mrf.mxu0
        %3425 = vmatprep.mubr.f32.mxu0 0.0
        %3426 = vmatmul.mubr.f32.gmra.mxu0 %v3292
        %v3427 = vpop.f32.mrf.mxu0
        %v3428 = vadd.f32 0.0, %v3427
        %v3429 = vpop.f32.mrf.mxu0
        %3430 = vmatprep.mubr.f32.mxu0 0.0
        %3431 = vmatmul.mubr.f32.gmra.mxu0 %v3293
        %v3432 = vpop.f32.mrf.mxu0
        %v3433 = vadd.f32 0.0, %v3432
        %v3434 = vpop.f32.mrf.mxu0
        %3435 = vmatprep.mubr.f32.mxu0 0.0
        %3436 = vmatmul.mubr.f32.gmra.mxu0 %v3294
        %v3437 = vpop.f32.mrf.mxu0
        %v3438 = vadd.f32 0.0, %v3437
        %v3439 = vpop.f32.mrf.mxu0
        %3440 = vmatprep.mubr.f32.mxu0 0.0
        %3441 = vmatmul.mubr.f32.gmra.mxu0 %v3295
        %v3442 = vpop.f32.mrf.mxu0
        %v3443 = vadd.f32 0.0, %v3442
        %v3444 = vpop.f32.mrf.mxu0
        %3445 = vmatprep.mubr.f32.mxu0 0.0
        %3446 = vmatmul.mubr.f32.gmra.mxu0 %v3296
        %v3447 = vpop.f32.mrf.mxu0
        %v3448 = vadd.f32 0.0, %v3447
        %v3449 = vpop.f32.mrf.mxu0
        %3450 = vmatprep.mubr.f32.mxu0 0.0
        %3451 = vmatmul.mubr.f32.gmra.mxu0 %v3297
        %v3452 = vpop.f32.mrf.mxu0
        %v3453 = vadd.f32 0.0, %v3452
        %v3454 = vpop.f32.mrf.mxu0
        %3455 = vmatprep.mubr.f32.mxu0 0.0
        %3456 = vmatmul.mubr.f32.gmra.mxu0 %v3298
        %v3457 = vpop.f32.mrf.mxu0
        %v3458 = vadd.f32 0.0, %v3457
        %v3459 = vpop.f32.mrf.mxu0
        %3460 = vmatprep.mubr.f32.mxu0 0.0
        %3461 = vmatmul.mubr.f32.gmra.mxu0 %v3299
        %v3462 = vpop.f32.mrf.mxu0
        %v3463 = vadd.f32 0.0, %v3462
        %v3464 = vpop.f32.mrf.mxu0
        %3465 = vmatprep.mubr.f32.mxu0 0.0
        %3466 = vmatmul.mubr.f32.gmra.mxu0 %v3300
        %v3467 = vpop.f32.mrf.mxu0
        %v3468 = vadd.f32 0.0, %v3467
        %v3469 = vpop.f32.mrf.mxu0
        %3470 = vmatprep.mubr.f32.mxu0 0.0
        %3471 = vmatmul.mubr.f32.gmra.mxu0 %v3301
        %v3472 = vpop.f32.mrf.mxu0
        %v3473 = vadd.f32 0.0, %v3472
        %v3474 = vpop.f32.mrf.mxu0
        %3475 = vmatprep.mubr.f32.mxu0 0.0
        %3476 = vmatmul.mubr.f32.gmra.mxu0 %v3302
        %v3477 = vpop.f32.mrf.mxu0
        %v3478 = vadd.f32 0.0, %v3477
        %v3479 = vpop.f32.mrf.mxu0
        %3480 = vmatprep.mubr.f32.mxu0 0.0
        %3481 = vmatmul.mubr.f32.gmra.mxu0 %v3303
        %v3482 = vpop.f32.mrf.mxu0
        %v3483 = vadd.f32 0.0, %v3482
        %v3484 = vpop.f32.mrf.mxu0
        %3485 = vmatprep.mubr.f32.mxu0 0.0
        %3486 = vmatmul.mubr.f32.gmra.mxu0 %v3304
        %v3487 = vpop.f32.mrf.mxu0
        %v3488 = vadd.f32 0.0, %v3487
        %v3489 = vpop.f32.mrf.mxu0
        %3490 = vmatprep.mubr.f32.mxu0 0.0
        %3491 = vmatmul.mubr.f32.gmra.mxu0 %v3305
        %v3492 = vpop.f32.mrf.mxu0
        %v3493 = vadd.f32 0.0, %v3492
        %v3494 = vpop.f32.mrf.mxu0
        %3495 = vmatprep.mubr.f32.mxu0 0.0
        %3496 = vmatmul.mubr.f32.gmra.mxu0 %v3306
        %v3497 = vpop.f32.mrf.mxu0
        %v3498 = vadd.f32 0.0, %v3497
        %v3499 = vpop.f32.mrf.mxu0
        %3500 = vmatprep.mubr.f32.mxu0 0.0
        %3501 = vmatmul.mubr.f32.gmra.mxu0 %v3307
        %v3502 = vpop.f32.mrf.mxu0
        %v3503 = vadd.f32 0.0, %v3502
        %v3504 = vpop.f32.mrf.mxu0
        %3505 = vmatprep.mubr.f32.mxu0 0.0
        %3506 = vmatmul.mubr.f32.gmra.mxu0 %v3308
        %v3507 = vpop.f32.mrf.mxu0
        %v3508 = vadd.f32 0.0, %v3507
        %v3509 = vpop.f32.mrf.mxu0
        %3510 = vmatprep.mubr.f32.mxu0 0.0
        %3511 = vmatmul.mubr.f32.gmra.mxu0 %v3309
        %v3512 = vpop.f32.mrf.mxu0
        %v3513 = vadd.f32 0.0, %v3512
        %v3514 = vpop.f32.mrf.mxu0
        %3515 = vmatprep.mubr.f32.mxu0 0.0
        %3516 = vmatmul.mubr.f32.gmra.mxu0 %v3310
        %v3517 = vpop.f32.mrf.mxu0
        %v3518 = vadd.f32 0.0, %v3517
        %v3519 = vpop.f32.mrf.mxu0
        %3520 = vmatprep.mubr.f32.mxu0 0.0
        %3521 = vmatmul.mubr.f32.gmra.mxu0 %v3311
        %v3522 = vpop.f32.mrf.mxu0
        %v3523 = vadd.f32 0.0, %v3522
        %v3524 = vpop.f32.mrf.mxu0
        %3525 = vmatprep.mubr.f32.mxu0 0.0
        %3526 = vmatmul.mubr.f32.gmra.mxu0 %v3312
        %v3527 = vpop.f32.mrf.mxu0
        %v3528 = vadd.f32 0.0, %v3527
        %v3529 = vpop.f32.mrf.mxu0
        %3530 = vmatprep.mubr.f32.mxu0 0.0
        %3531 = vmatmul.mubr.f32.gmra.mxu0 %v3313
        %v3532 = vpop.f32.mrf.mxu0
        %v3533 = vadd.f32 0.0, %v3532
        %v3534 = vpop.f32.mrf.mxu0
        %3535 = vmatprep.mubr.f32.mxu0 0.0
        %3536 = vmatmul.mubr.f32.gmra.mxu0 %v3314
        %v3537 = vpop.f32.mrf.mxu0
        %v3538 = vadd.f32 0.0, %v3537
        %v3539 = vpop.f32.mrf.mxu0
        %3540 = vmatprep.mubr.f32.mxu0 0.0
        %3541 = vmatmul.mubr.f32.gmra.mxu0 %v3315
        %v3542 = vpop.f32.mrf.mxu0
        %v3543 = vadd.f32 0.0, %v3542
        %v3544 = vpop.f32.mrf.mxu0
        %3545 = vmatprep.mubr.f32.mxu0 0.0
        %3546 = vmatmul.mubr.f32.gmra.mxu0 %v3316
        %v3547 = vpop.f32.mrf.mxu0
        %v3548 = vadd.f32 0.0, %v3547
        %v3549 = vpop.f32.mrf.mxu0
        %3550 = vmatprep.mubr.f32.mxu0 0.0
        %3551 = vmatmul.mubr.f32.gmra.mxu0 %v3317
        %v3552 = vpop.f32.mrf.mxu0
        %v3553 = vadd.f32 0.0, %v3552
        %v3554 = vpop.f32.mrf.mxu0
        %3555 = vmatprep.mubr.f32.mxu0 0.0
        %3556 = vmatmul.mubr.f32.gmra.mxu0 %v3318
        %v3557 = vpop.f32.mrf.mxu0
        %v3558 = vadd.f32 0.0, %v3557
        %v3559 = vpop.f32.mrf.mxu0
        %3560 = vdwg.mxu0
        %v3561 = vld [vmem:[#allocation4] sm:$0xff]
        %v3562 = vld [vmem:[#allocation4 + $0x8] sm:$0xff]
        %v3563 = vld [vmem:[#allocation4 + $0x10] sm:$0xff]
        %v3564 = vld [vmem:[#allocation4 + $0x18] sm:$0xff]
        %v3565 = vld [vmem:[#allocation4 + $0x20] sm:$0xff]
        %v3566 = vld [vmem:[#allocation4 + $0x28] sm:$0xff]
        %v3567 = vld [vmem:[#allocation4 + $0x30] sm:$0xff]
        %v3568 = vld [vmem:[#allocation4 + $0x38] sm:$0xff]
        %v3569 = vld [vmem:[#allocation4 + $0x40] sm:$0xff]
        %v3570 = vld [vmem:[#allocation4 + $0x48] sm:$0xff]
        %v3571 = vld [vmem:[#allocation4 + $0x50] sm:$0xff]
        %v3572 = vld [vmem:[#allocation4 + $0x58] sm:$0xff]
        %v3573 = vld [vmem:[#allocation4 + $0x60] sm:$0xff]
        %v3574 = vld [vmem:[#allocation4 + $0x68] sm:$0xff]
        %v3575 = vld [vmem:[#allocation4 + $0x70] sm:$0xff]
        %v3576 = vld [vmem:[#allocation4 + $0x78] sm:$0xff]
        %v3577 = vld [vmem:[#allocation4 + $0x80] sm:$0xff]
        %v3578 = vld [vmem:[#allocation4 + $0x88] sm:$0xff]
        %v3579 = vld [vmem:[#allocation4 + $0x90] sm:$0xff]
        %v3580 = vld [vmem:[#allocation4 + $0x98] sm:$0xff]
        %v3581 = vld [vmem:[#allocation4 + $0xa0] sm:$0xff]
        %v3582 = vld [vmem:[#allocation4 + $0xa8] sm:$0xff]
        %v3583 = vld [vmem:[#allocation4 + $0xb0] sm:$0xff]
        %v3584 = vld [vmem:[#allocation4 + $0xb8] sm:$0xff]
        %v3585 = vld [vmem:[#allocation4 + $0xc0] sm:$0xff]
        %v3586 = vld [vmem:[#allocation4 + $0xc8] sm:$0xff]
        %v3587 = vld [vmem:[#allocation4 + $0xd0] sm:$0xff]
        %v3588 = vld [vmem:[#allocation4 + $0xd8] sm:$0xff]
        %v3589 = vld [vmem:[#allocation4 + $0xe0] sm:$0xff]
        %v3590 = vld [vmem:[#allocation4 + $0xe8] sm:$0xff]
        %v3591 = vld [vmem:[#allocation4 + $0xf0] sm:$0xff]
        %v3592 = vld [vmem:[#allocation4 + $0xf8] sm:$0xff]
        %v3593 = vadd.f32 %v3561, %v3403
        %v3594 = vadd.f32 %v3562, %v3408
        %v3595 = vadd.f32 %v3563, %v3413
        %v3596 = vadd.f32 %v3564, %v3418
        %v3597 = vadd.f32 %v3565, %v3423
        %v3598 = vadd.f32 %v3566, %v3428
        %v3599 = vadd.f32 %v3567, %v3433
        %v3600 = vadd.f32 %v3568, %v3438
        %v3601 = vadd.f32 %v3569, %v3443
        %v3602 = vadd.f32 %v3570, %v3448
        %v3603 = vadd.f32 %v3571, %v3453
        %v3604 = vadd.f32 %v3572, %v3458
        %v3605 = vadd.f32 %v3573, %v3463
        %v3606 = vadd.f32 %v3574, %v3468
        %v3607 = vadd.f32 %v3575, %v3473
        %v3608 = vadd.f32 %v3576, %v3478
        %v3609 = vadd.f32 %v3577, %v3483
        %v3610 = vadd.f32 %v3578, %v3488
        %v3611 = vadd.f32 %v3579, %v3493
        %v3612 = vadd.f32 %v3580, %v3498
        %v3613 = vadd.f32 %v3581, %v3503
        %v3614 = vadd.f32 %v3582, %v3508
        %v3615 = vadd.f32 %v3583, %v3513
        %v3616 = vadd.f32 %v3584, %v3518
        %v3617 = vadd.f32 %v3585, %v3523
        %v3618 = vadd.f32 %v3586, %v3528
        %v3619 = vadd.f32 %v3587, %v3533
        %v3620 = vadd.f32 %v3588, %v3538
        %v3621 = vadd.f32 %v3589, %v3543
        %v3622 = vadd.f32 %v3590, %v3548
        %v3623 = vadd.f32 %v3591, %v3553
        %v3624 = vadd.f32 %v3592, %v3558
        %3625 = vst [vmem:[#allocation4] sm:$0xff] %v3593
        %3626 = vst [vmem:[#allocation4 + $0x8] sm:$0xff] %v3594
        %3627 = vst [vmem:[#allocation4 + $0x10] sm:$0xff] %v3595
        %3628 = vst [vmem:[#allocation4 + $0x18] sm:$0xff] %v3596
        %3629 = vst [vmem:[#allocation4 + $0x20] sm:$0xff] %v3597
        %3630 = vst [vmem:[#allocation4 + $0x28] sm:$0xff] %v3598
        %3631 = vst [vmem:[#allocation4 + $0x30] sm:$0xff] %v3599
        %3632 = vst [vmem:[#allocation4 + $0x38] sm:$0xff] %v3600
        %3633 = vst [vmem:[#allocation4 + $0x40] sm:$0xff] %v3601
        %3634 = vst [vmem:[#allocation4 + $0x48] sm:$0xff] %v3602
        %3635 = vst [vmem:[#allocation4 + $0x50] sm:$0xff] %v3603
        %3636 = vst [vmem:[#allocation4 + $0x58] sm:$0xff] %v3604
        %3637 = vst [vmem:[#allocation4 + $0x60] sm:$0xff] %v3605
        %3638 = vst [vmem:[#allocation4 + $0x68] sm:$0xff] %v3606
        %3639 = vst [vmem:[#allocation4 + $0x70] sm:$0xff] %v3607
        %3640 = vst [vmem:[#allocation4 + $0x78] sm:$0xff] %v3608
        %3641 = vst [vmem:[#allocation4 + $0x80] sm:$0xff] %v3609
        %3642 = vst [vmem:[#allocation4 + $0x88] sm:$0xff] %v3610
        %3643 = vst [vmem:[#allocation4 + $0x90] sm:$0xff] %v3611
        %3644 = vst [vmem:[#allocation4 + $0x98] sm:$0xff] %v3612
        %3645 = vst [vmem:[#allocation4 + $0xa0] sm:$0xff] %v3613
        %3646 = vst [vmem:[#allocation4 + $0xa8] sm:$0xff] %v3614
        %3647 = vst [vmem:[#allocation4 + $0xb0] sm:$0xff] %v3615
        %3648 = vst [vmem:[#allocation4 + $0xb8] sm:$0xff] %v3616
        %3649 = vst [vmem:[#allocation4 + $0xc0] sm:$0xff] %v3617
        %3650 = vst [vmem:[#allocation4 + $0xc8] sm:$0xff] %v3618
        %3651 = vst [vmem:[#allocation4 + $0xd0] sm:$0xff] %v3619
        %3652 = vst [vmem:[#allocation4 + $0xd8] sm:$0xff] %v3620
        %3653 = vst [vmem:[#allocation4 + $0xe0] sm:$0xff] %v3621
        %3654 = vst [vmem:[#allocation4 + $0xe8] sm:$0xff] %v3622
        %3655 = vst [vmem:[#allocation4 + $0xf0] sm:$0xff] %v3623
        %3656 = vst [vmem:[#allocation4 + $0xf8] sm:$0xff] %v3624
        %v3657 = vld [vmem:[#allocation4] sm:$0xff]
        %v3658 = vld [vmem:[#allocation4 + $0x8] sm:$0xff]
        %v3659 = vld [vmem:[#allocation4 + $0x10] sm:$0xff]
        %v3660 = vld [vmem:[#allocation4 + $0x18] sm:$0xff]
        %v3661 = vld [vmem:[#allocation4 + $0x20] sm:$0xff]
        %v3662 = vld [vmem:[#allocation4 + $0x28] sm:$0xff]
        %v3663 = vld [vmem:[#allocation4 + $0x30] sm:$0xff]
        %v3664 = vld [vmem:[#allocation4 + $0x38] sm:$0xff]
        %v3665 = vld [vmem:[#allocation4 + $0x40] sm:$0xff]
        %v3666 = vld [vmem:[#allocation4 + $0x48] sm:$0xff]
        %v3667 = vld [vmem:[#allocation4 + $0x50] sm:$0xff]
        %v3668 = vld [vmem:[#allocation4 + $0x58] sm:$0xff]
        %v3669 = vld [vmem:[#allocation4 + $0x60] sm:$0xff]
        %v3670 = vld [vmem:[#allocation4 + $0x68] sm:$0xff]
        %v3671 = vld [vmem:[#allocation4 + $0x70] sm:$0xff]
        %v3672 = vld [vmem:[#allocation4 + $0x78] sm:$0xff]
        %v3673 = vld [vmem:[#allocation4 + $0x80] sm:$0xff]
        %v3674 = vld [vmem:[#allocation4 + $0x88] sm:$0xff]
        %v3675 = vld [vmem:[#allocation4 + $0x90] sm:$0xff]
        %v3676 = vld [vmem:[#allocation4 + $0x98] sm:$0xff]
        %v3677 = vld [vmem:[#allocation4 + $0xa0] sm:$0xff]
        %v3678 = vld [vmem:[#allocation4 + $0xa8] sm:$0xff]
        %v3679 = vld [vmem:[#allocation4 + $0xb0] sm:$0xff]
        %v3680 = vld [vmem:[#allocation4 + $0xb8] sm:$0xff]
        %v3681 = vld [vmem:[#allocation4 + $0xc0] sm:$0xff]
        %v3682 = vld [vmem:[#allocation4 + $0xc8] sm:$0xff]
        %v3683 = vld [vmem:[#allocation4 + $0xd0] sm:$0xff]
        %v3684 = vld [vmem:[#allocation4 + $0xd8] sm:$0xff]
        %v3685 = vld [vmem:[#allocation4 + $0xe0] sm:$0xff]
        %v3686 = vld [vmem:[#allocation4 + $0xe8] sm:$0xff]
        %v3687 = vld [vmem:[#allocation4 + $0xf0] sm:$0xff]
        %v3688 = vld [vmem:[#allocation4 + $0xf8] sm:$0xff]
        %v3689 = vld [vmem:[%s2] sm:$0x1]
        %v3691 = vlaneseq
        %v3692 = vshrl.u32 %v3691, 7
        %v3693 = vsub.s32 0, %v3692
        %v3694 = vrot.slane %v3689, %v3693
        %v3696 = vadd.f32 %v3657, %v3694
        %v3697 = vadd.f32 %v3658, %v3694
        %v3698 = vadd.f32 %v3659, %v3694
        %v3699 = vadd.f32 %v3660, %v3694
        %v3700 = vadd.f32 %v3661, %v3694
        %v3701 = vadd.f32 %v3662, %v3694
        %v3702 = vadd.f32 %v3663, %v3694
        %v3703 = vadd.f32 %v3664, %v3694
        %v3704 = vadd.f32 %v3665, %v3694
        %v3705 = vadd.f32 %v3666, %v3694
        %v3706 = vadd.f32 %v3667, %v3694
        %v3707 = vadd.f32 %v3668, %v3694
        %v3708 = vadd.f32 %v3669, %v3694
        %v3709 = vadd.f32 %v3670, %v3694
        %v3710 = vadd.f32 %v3671, %v3694
        %v3711 = vadd.f32 %v3672, %v3694
        %v3712 = vadd.f32 %v3673, %v3694
        %v3713 = vadd.f32 %v3674, %v3694
        %v3714 = vadd.f32 %v3675, %v3694
        %v3715 = vadd.f32 %v3676, %v3694
        %v3716 = vadd.f32 %v3677, %v3694
        %v3717 = vadd.f32 %v3678, %v3694
        %v3718 = vadd.f32 %v3679, %v3694
        %v3719 = vadd.f32 %v3680, %v3694
        %v3720 = vadd.f32 %v3681, %v3694
        %v3721 = vadd.f32 %v3682, %v3694
        %v3722 = vadd.f32 %v3683, %v3694
        %v3723 = vadd.f32 %v3684, %v3694
        %v3724 = vadd.f32 %v3685, %v3694
        %v3725 = vadd.f32 %v3686, %v3694
        %v3726 = vadd.f32 %v3687, %v3694
        %v3727 = vadd.f32 %v3688, %v3694
        %v3728 = vmax.f32 %v3696, 0.0
        %v3729 = vmax.f32 %v3697, 0.0
        %v3730 = vmax.f32 %v3698, 0.0
        %v3731 = vmax.f32 %v3699, 0.0
        %v3732 = vmax.f32 %v3700, 0.0
        %v3733 = vmax.f32 %v3701, 0.0
        %v3734 = vmax.f32 %v3702, 0.0
        %v3735 = vmax.f32 %v3703, 0.0
        %v3736 = vmax.f32 %v3704, 0.0
        %v3737 = vmax.f32 %v3705, 0.0
        %v3738 = vmax.f32 %v3706, 0.0
        %v3739 = vmax.f32 %v3707, 0.0
        %v3740 = vmax.f32 %v3708, 0.0
        %v3741 = vmax.f32 %v3709, 0.0
        %v3742 = vmax.f32 %v3710, 0.0
        %v3743 = vmax.f32 %v3711, 0.0
        %v3744 = vmax.f32 %v3712, 0.0
        %v3745 = vmax.f32 %v3713, 0.0
        %v3746 = vmax.f32 %v3714, 0.0
        %v3747 = vmax.f32 %v3715, 0.0
        %v3748 = vmax.f32 %v3716, 0.0
        %v3749 = vmax.f32 %v3717, 0.0
        %v3750 = vmax.f32 %v3718, 0.0
        %v3751 = vmax.f32 %v3719, 0.0
        %v3752 = vmax.f32 %v3720, 0.0
        %v3753 = vmax.f32 %v3721, 0.0
        %v3754 = vmax.f32 %v3722, 0.0
        %v3755 = vmax.f32 %v3723, 0.0
        %v3756 = vmax.f32 %v3724, 0.0
        %v3757 = vmax.f32 %v3725, 0.0
        %v3758 = vmax.f32 %v3726, 0.0
        %v3759 = vmax.f32 %v3727, 0.0
        %s3760 = scalar_lea.vmem [#allocation3], 24
        %3761 = vst [vmem:[%s3760 + $0x1] sm:$0xff] %v3728
        %3762 = vst [vmem:[%s3760 + $0x9] sm:$0xff] %v3729
        %3763 = vst [vmem:[%s3760 + $0x19] sm:$0xff] %v3730
        %3764 = vst [vmem:[%s3760 + $0x21] sm:$0xff] %v3731
        %3765 = vst [vmem:[%s3760 + $0x31] sm:$0xff] %v3732
        %3766 = vst [vmem:[%s3760 + $0x39] sm:$0xff] %v3733
        %3767 = vst [vmem:[%s3760 + $0x49] sm:$0xff] %v3734
        %3768 = vst [vmem:[%s3760 + $0x51] sm:$0xff] %v3735
        %3769 = vst [vmem:[%s3760 + $0x61] sm:$0xff] %v3736
        %3770 = vst [vmem:[%s3760 + $0x69] sm:$0xff] %v3737
        %3771 = vst [vmem:[%s3760 + $0x79] sm:$0xff] %v3738
        %3772 = vst [vmem:[%s3760 + $0x81] sm:$0xff] %v3739
        %3773 = vst [vmem:[%s3760 + $0x91] sm:$0xff] %v3740
        %3774 = vst [vmem:[%s3760 + $0x99] sm:$0xff] %v3741
        %3775 = vst [vmem:[%s3760 + $0xa9] sm:$0xff] %v3742
        %3776 = vst [vmem:[%s3760 + $0xb1] sm:$0xff] %v3743
        %3777 = vst [vmem:[%s3760 + $0xc1] sm:$0xff] %v3744
        %3778 = vst [vmem:[%s3760 + $0xc9] sm:$0xff] %v3745
        %3779 = vst [vmem:[%s3760 + $0xd9] sm:$0xff] %v3746
        %3780 = vst [vmem:[%s3760 + $0xe1] sm:$0xff] %v3747
        %3781 = vst [vmem:[%s3760 + $0xf1] sm:$0xff] %v3748
        %3782 = vst [vmem:[%s3760 + $0xf9] sm:$0xff] %v3749
        %3783 = vst [vmem:[%s3760 + $0x109] sm:$0xff] %v3750
        %3784 = vst [vmem:[%s3760 + $0x111] sm:$0xff] %v3751
        %3785 = vst [vmem:[%s3760 + $0x121] sm:$0xff] %v3752
        %3786 = vst [vmem:[%s3760 + $0x129] sm:$0xff] %v3753
        %3787 = vst [vmem:[%s3760 + $0x139] sm:$0xff] %v3754
        %3788 = vst [vmem:[%s3760 + $0x141] sm:$0xff] %v3755
        %3789 = vst [vmem:[%s3760 + $0x151] sm:$0xff] %v3756
        %3790 = vst [vmem:[%s3760 + $0x159] sm:$0xff] %v3757
        %3791 = vst [vmem:[%s3760 + $0x169] sm:$0xff] %v3758
        %3792 = vst [vmem:[%s3760 + $0x171] sm:$0xff] %v3759
        %v3793 = vld [vmem:[#allocation3] sm:$0xff]
        %v3794 = vld [vmem:[#allocation3 + $0x8] sm:$0xff]
        %v3795 = vld [vmem:[#allocation3 + $0x18] sm:$0xff]
        %v3796 = vld [vmem:[#allocation3 + $0x20] sm:$0xff]
        %v3797 = vld [vmem:[#allocation3 + $0x30] sm:$0xff]
        %v3798 = vld [vmem:[#allocation3 + $0x38] sm:$0xff]
        %v3799 = vld [vmem:[#allocation3 + $0x48] sm:$0xff]
        %v3800 = vld [vmem:[#allocation3 + $0x50] sm:$0xff]
        %v3801 = vld [vmem:[#allocation3 + $0x60] sm:$0xff]
        %v3802 = vld [vmem:[#allocation3 + $0x68] sm:$0xff]
        %v3803 = vld [vmem:[#allocation3 + $0x78] sm:$0xff]
        %v3804 = vld [vmem:[#allocation3 + $0x80] sm:$0xff]
        %v3805 = vld [vmem:[#allocation3 + $0x90] sm:$0xff]
        %v3806 = vld [vmem:[#allocation3 + $0x98] sm:$0xff]
        %v3807 = vld [vmem:[#allocation3 + $0xa8] sm:$0xff]
        %v3808 = vld [vmem:[#allocation3 + $0xb0] sm:$0xff]
        %v3809 = vld [vmem:[#allocation3 + $0xc0] sm:$0xff]
        %v3810 = vld [vmem:[#allocation3 + $0xc8] sm:$0xff]
        %v3811 = vld [vmem:[#allocation3 + $0xd8] sm:$0xff]
        %v3812 = vld [vmem:[#allocation3 + $0xe0] sm:$0xff]
        %v3813 = vld [vmem:[#allocation3 + $0xf0] sm:$0xff]
        %v3814 = vld [vmem:[#allocation3 + $0xf8] sm:$0xff]
        %v3815 = vld [vmem:[#allocation3 + $0x108] sm:$0xff]
        %v3816 = vld [vmem:[#allocation3 + $0x110] sm:$0xff]
        %v3817 = vld [vmem:[#allocation3 + $0x120] sm:$0xff]
        %v3818 = vld [vmem:[#allocation3 + $0x128] sm:$0xff]
        %v3819 = vld [vmem:[#allocation3 + $0x138] sm:$0xff]
        %v3820 = vld [vmem:[#allocation3 + $0x140] sm:$0xff]
        %v3821 = vld [vmem:[#allocation3 + $0x150] sm:$0xff]
        %v3822 = vld [vmem:[#allocation3 + $0x158] sm:$0xff]
        %v3823 = vld [vmem:[#allocation3 + $0x168] sm:$0xff]
        %v3824 = vld [vmem:[#allocation3 + $0x170] sm:$0xff]
        %v3825 = vld [vmem:[#allocation5] sm:$0xff]
        %v3826 = vld [vmem:[#allocation5 + $0x8] sm:$0xff]
        %v3827 = vld [vmem:[#allocation5 + $0x10] sm:$0xff]
        %v3828 = vld [vmem:[#allocation5 + $0x18] sm:$0xff]
        %v3829 = vld [vmem:[#allocation5 + $0x20] sm:$0xff]
        %v3830 = vld [vmem:[#allocation5 + $0x28] sm:$0xff]
        %v3831 = vld [vmem:[#allocation5 + $0x30] sm:$0xff]
        %v3832 = vld [vmem:[#allocation5 + $0x38] sm:$0xff]
        %v3833 = vld [vmem:[#allocation5 + $0x40] sm:$0xff]
        %v3834 = vld [vmem:[#allocation5 + $0x48] sm:$0xff]
        %v3835 = vld [vmem:[#allocation5 + $0x50] sm:$0xff]
        %v3836 = vld [vmem:[#allocation5 + $0x58] sm:$0xff]
        %v3837 = vld [vmem:[#allocation5 + $0x60] sm:$0xff]
        %v3838 = vld [vmem:[#allocation5 + $0x68] sm:$0xff]
        %v3839 = vld [vmem:[#allocation5 + $0x70] sm:$0xff]
        %v3840 = vld [vmem:[#allocation5 + $0x78] sm:$0xff]
        %3841 = vmatprep.subr.mxu0 0.0
        %3842 = vmatpush1.msra.mxu0 %v3840
        %3843 = vmatprep.subr.mxu0 0.0
        %3844 = vmatpush1.msra.mxu0 %v3839
        %3845 = vmatprep.subr.mxu0 0.0
        %3846 = vmatpush1.msra.mxu0 %v3838
        %3847 = vmatprep.subr.mxu0 0.0
        %3848 = vmatpush1.msra.mxu0 %v3837
        %3849 = vmatprep.subr.mxu0 0.0
        %3850 = vmatpush1.msra.mxu0 %v3836
        %3851 = vmatprep.subr.mxu0 0.0
        %3852 = vmatpush1.msra.mxu0 %v3835
        %3853 = vmatprep.subr.mxu0 0.0
        %3854 = vmatpush1.msra.mxu0 %v3834
        %3855 = vmatprep.subr.mxu0 0.0
        %3856 = vmatpush1.msra.mxu0 %v3833
        %3857 = vmatprep.subr.mxu0 0.0
        %3858 = vmatpush1.msra.mxu0 %v3832
        %3859 = vmatprep.subr.mxu0 0.0
        %3860 = vmatpush1.msra.mxu0 %v3831
        %3861 = vmatprep.subr.mxu0 0.0
        %3862 = vmatpush1.msra.mxu0 %v3830
        %3863 = vmatprep.subr.mxu0 0.0
        %3864 = vmatpush1.msra.mxu0 %v3829
        %3865 = vmatprep.subr.mxu0 0.0
        %3866 = vmatpush1.msra.mxu0 %v3828
        %3867 = vmatprep.subr.mxu0 0.0
        %3868 = vmatpush1.msra.mxu0 %v3827
        %3869 = vmatprep.subr.mxu0 0.0
        %3870 = vmatpush1.msra.mxu0 %v3826
        %3871 = vmatprep.subr.mxu0 0.0
        %3872 = vmatpush1.msra.mxu0 %v3825
        %3873 = vmatprep.subr.mxu0 0.0
        %3874 = vmatpush2.msra.mxu0 0.0
        %3875 = vmatprep.subr.mxu0 0.0
        %3876 = vmatpush2.msra.mxu0 0.0
        %3877 = vmatprep.subr.mxu0 0.0
        %3878 = vmatpush2.msra.mxu0 0.0
        %3879 = vmatprep.subr.mxu0 0.0
        %3880 = vmatpush2.msra.mxu0 0.0
        %3881 = vmatprep.subr.mxu0 0.0
        %3882 = vmatpush2.msra.mxu0 0.0
        %3883 = vmatprep.subr.mxu0 0.0
        %3884 = vmatpush2.msra.mxu0 0.0
        %3885 = vmatprep.subr.mxu0 0.0
        %3886 = vmatpush2.msra.mxu0 0.0
        %3887 = vmatprep.subr.mxu0 0.0
        %3888 = vmatpush2.msra.mxu0 0.0
        %3889 = vmatprep.subr.mxu0 0.0
        %3890 = vmatpush2.msra.mxu0 0.0
        %3891 = vmatprep.subr.mxu0 0.0
        %3892 = vmatpush2.msra.mxu0 0.0
        %3893 = vmatprep.subr.mxu0 0.0
        %3894 = vmatpush2.msra.mxu0 0.0
        %3895 = vmatprep.subr.mxu0 0.0
        %3896 = vmatpush2.msra.mxu0 0.0
        %3897 = vmatprep.subr.mxu0 0.0
        %3898 = vmatpush2.msra.mxu0 0.0
        %3899 = vmatprep.subr.mxu0 0.0
        %3900 = vmatpush2.msra.mxu0 0.0
        %3901 = vmatprep.subr.mxu0 0.0
        %3902 = vmatpush2.msra.mxu0 0.0
        %3903 = vmatprep.subr.mxu0 0.0
        %3904 = vmatpush2.msra.mxu0 0.0
        %3905 = vmatprep.mubr.f32.mxu0 0.0
        %3906 = vmatmul.mubr.f32.gmra.mxu0 %v3793
        %v3907 = vpop.f32.mrf.mxu0
        %v3908 = vadd.f32 0.0, %v3907
        %v3909 = vpop.f32.mrf.mxu0
        %3910 = vmatprep.mubr.f32.mxu0 0.0
        %3911 = vmatmul.mubr.f32.gmra.mxu0 %v3794
        %v3912 = vpop.f32.mrf.mxu0
        %v3913 = vadd.f32 0.0, %v3912
        %v3914 = vpop.f32.mrf.mxu0
        %3915 = vmatprep.mubr.f32.mxu0 0.0
        %3916 = vmatmul.mubr.f32.gmra.mxu0 %v3795
        %v3917 = vpop.f32.mrf.mxu0
        %v3918 = vadd.f32 0.0, %v3917
        %v3919 = vpop.f32.mrf.mxu0
        %3920 = vmatprep.mubr.f32.mxu0 0.0
        %3921 = vmatmul.mubr.f32.gmra.mxu0 %v3796
        %v3922 = vpop.f32.mrf.mxu0
        %v3923 = vadd.f32 0.0, %v3922
        %v3924 = vpop.f32.mrf.mxu0
        %3925 = vmatprep.mubr.f32.mxu0 0.0
        %3926 = vmatmul.mubr.f32.gmra.mxu0 %v3797
        %v3927 = vpop.f32.mrf.mxu0
        %v3928 = vadd.f32 0.0, %v3927
        %v3929 = vpop.f32.mrf.mxu0
        %3930 = vmatprep.mubr.f32.mxu0 0.0
        %3931 = vmatmul.mubr.f32.gmra.mxu0 %v3798
        %v3932 = vpop.f32.mrf.mxu0
        %v3933 = vadd.f32 0.0, %v3932
        %v3934 = vpop.f32.mrf.mxu0
        %3935 = vmatprep.mubr.f32.mxu0 0.0
        %3936 = vmatmul.mubr.f32.gmra.mxu0 %v3799
        %v3937 = vpop.f32.mrf.mxu0
        %v3938 = vadd.f32 0.0, %v3937
        %v3939 = vpop.f32.mrf.mxu0
        %3940 = vmatprep.mubr.f32.mxu0 0.0
        %3941 = vmatmul.mubr.f32.gmra.mxu0 %v3800
        %v3942 = vpop.f32.mrf.mxu0
        %v3943 = vadd.f32 0.0, %v3942
        %v3944 = vpop.f32.mrf.mxu0
        %3945 = vmatprep.mubr.f32.mxu0 0.0
        %3946 = vmatmul.mubr.f32.gmra.mxu0 %v3801
        %v3947 = vpop.f32.mrf.mxu0
        %v3948 = vadd.f32 0.0, %v3947
        %v3949 = vpop.f32.mrf.mxu0
        %3950 = vmatprep.mubr.f32.mxu0 0.0
        %3951 = vmatmul.mubr.f32.gmra.mxu0 %v3802
        %v3952 = vpop.f32.mrf.mxu0
        %v3953 = vadd.f32 0.0, %v3952
        %v3954 = vpop.f32.mrf.mxu0
        %3955 = vmatprep.mubr.f32.mxu0 0.0
        %3956 = vmatmul.mubr.f32.gmra.mxu0 %v3803
        %v3957 = vpop.f32.mrf.mxu0
        %v3958 = vadd.f32 0.0, %v3957
        %v3959 = vpop.f32.mrf.mxu0
        %3960 = vmatprep.mubr.f32.mxu0 0.0
        %3961 = vmatmul.mubr.f32.gmra.mxu0 %v3804
        %v3962 = vpop.f32.mrf.mxu0
        %v3963 = vadd.f32 0.0, %v3962
        %v3964 = vpop.f32.mrf.mxu0
        %3965 = vmatprep.mubr.f32.mxu0 0.0
        %3966 = vmatmul.mubr.f32.gmra.mxu0 %v3805
        %v3967 = vpop.f32.mrf.mxu0
        %v3968 = vadd.f32 0.0, %v3967
        %v3969 = vpop.f32.mrf.mxu0
        %3970 = vmatprep.mubr.f32.mxu0 0.0
        %3971 = vmatmul.mubr.f32.gmra.mxu0 %v3806
        %v3972 = vpop.f32.mrf.mxu0
        %v3973 = vadd.f32 0.0, %v3972
        %v3974 = vpop.f32.mrf.mxu0
        %3975 = vmatprep.mubr.f32.mxu0 0.0
        %3976 = vmatmul.mubr.f32.gmra.mxu0 %v3807
        %v3977 = vpop.f32.mrf.mxu0
        %v3978 = vadd.f32 0.0, %v3977
        %v3979 = vpop.f32.mrf.mxu0
        %3980 = vmatprep.mubr.f32.mxu0 0.0
        %3981 = vmatmul.mubr.f32.gmra.mxu0 %v3808
        %v3982 = vpop.f32.mrf.mxu0
        %v3983 = vadd.f32 0.0, %v3982
        %v3984 = vpop.f32.mrf.mxu0
        %3985 = vmatprep.mubr.f32.mxu0 0.0
        %3986 = vmatmul.mubr.f32.gmra.mxu0 %v3809
        %v3987 = vpop.f32.mrf.mxu0
        %v3988 = vadd.f32 0.0, %v3987
        %v3989 = vpop.f32.mrf.mxu0
        %3990 = vmatprep.mubr.f32.mxu0 0.0
        %3991 = vmatmul.mubr.f32.gmra.mxu0 %v3810
        %v3992 = vpop.f32.mrf.mxu0
        %v3993 = vadd.f32 0.0, %v3992
        %v3994 = vpop.f32.mrf.mxu0
        %3995 = vmatprep.mubr.f32.mxu0 0.0
        %3996 = vmatmul.mubr.f32.gmra.mxu0 %v3811
        %v3997 = vpop.f32.mrf.mxu0
        %v3998 = vadd.f32 0.0, %v3997
        %v3999 = vpop.f32.mrf.mxu0
        %4000 = vmatprep.mubr.f32.mxu0 0.0
        %4001 = vmatmul.mubr.f32.gmra.mxu0 %v3812
        %v4002 = vpop.f32.mrf.mxu0
        %v4003 = vadd.f32 0.0, %v4002
        %v4004 = vpop.f32.mrf.mxu0
        %4005 = vmatprep.mubr.f32.mxu0 0.0
        %4006 = vmatmul.mubr.f32.gmra.mxu0 %v3813
        %v4007 = vpop.f32.mrf.mxu0
        %v4008 = vadd.f32 0.0, %v4007
        %v4009 = vpop.f32.mrf.mxu0
        %4010 = vmatprep.mubr.f32.mxu0 0.0
        %4011 = vmatmul.mubr.f32.gmra.mxu0 %v3814
        %v4012 = vpop.f32.mrf.mxu0
        %v4013 = vadd.f32 0.0, %v4012
        %v4014 = vpop.f32.mrf.mxu0
        %4015 = vmatprep.mubr.f32.mxu0 0.0
        %4016 = vmatmul.mubr.f32.gmra.mxu0 %v3815
        %v4017 = vpop.f32.mrf.mxu0
        %v4018 = vadd.f32 0.0, %v4017
        %v4019 = vpop.f32.mrf.mxu0
        %4020 = vmatprep.mubr.f32.mxu0 0.0
        %4021 = vmatmul.mubr.f32.gmra.mxu0 %v3816
        %v4022 = vpop.f32.mrf.mxu0
        %v4023 = vadd.f32 0.0, %v4022
        %v4024 = vpop.f32.mrf.mxu0
        %4025 = vmatprep.mubr.f32.mxu0 0.0
        %4026 = vmatmul.mubr.f32.gmra.mxu0 %v3817
        %v4027 = vpop.f32.mrf.mxu0
        %v4028 = vadd.f32 0.0, %v4027
        %v4029 = vpop.f32.mrf.mxu0
        %4030 = vmatprep.mubr.f32.mxu0 0.0
        %4031 = vmatmul.mubr.f32.gmra.mxu0 %v3818
        %v4032 = vpop.f32.mrf.mxu0
        %v4033 = vadd.f32 0.0, %v4032
        %v4034 = vpop.f32.mrf.mxu0
        %4035 = vmatprep.mubr.f32.mxu0 0.0
        %4036 = vmatmul.mubr.f32.gmra.mxu0 %v3819
        %v4037 = vpop.f32.mrf.mxu0
        %v4038 = vadd.f32 0.0, %v4037
        %v4039 = vpop.f32.mrf.mxu0
        %4040 = vmatprep.mubr.f32.mxu0 0.0
        %4041 = vmatmul.mubr.f32.gmra.mxu0 %v3820
        %v4042 = vpop.f32.mrf.mxu0
        %v4043 = vadd.f32 0.0, %v4042
        %v4044 = vpop.f32.mrf.mxu0
        %4045 = vmatprep.mubr.f32.mxu0 0.0
        %4046 = vmatmul.mubr.f32.gmra.mxu0 %v3821
        %v4047 = vpop.f32.mrf.mxu0
        %v4048 = vadd.f32 0.0, %v4047
        %v4049 = vpop.f32.mrf.mxu0
        %4050 = vmatprep.mubr.f32.mxu0 0.0
        %4051 = vmatmul.mubr.f32.gmra.mxu0 %v3822
        %v4052 = vpop.f32.mrf.mxu0
        %v4053 = vadd.f32 0.0, %v4052
        %v4054 = vpop.f32.mrf.mxu0
        %4055 = vmatprep.mubr.f32.mxu0 0.0
        %4056 = vmatmul.mubr.f32.gmra.mxu0 %v3823
        %v4057 = vpop.f32.mrf.mxu0
        %v4058 = vadd.f32 0.0, %v4057
        %v4059 = vpop.f32.mrf.mxu0
        %4060 = vmatprep.mubr.f32.mxu0 0.0
        %4061 = vmatmul.mubr.f32.gmra.mxu0 %v3824
        %v4062 = vpop.f32.mrf.mxu0
        %v4063 = vadd.f32 0.0, %v4062
        %v4064 = vpop.f32.mrf.mxu0
        %4065 = vdwg.mxu0
        %4066 = vst [vmem:[#allocation4] sm:$0xff] %v3908
        %4067 = vst [vmem:[#allocation4 + $0x8] sm:$0xff] %v3913
        %4068 = vst [vmem:[#allocation4 + $0x10] sm:$0xff] %v3918
        %4069 = vst [vmem:[#allocation4 + $0x18] sm:$0xff] %v3923
        %4070 = vst [vmem:[#allocation4 + $0x20] sm:$0xff] %v3928
        %4071 = vst [vmem:[#allocation4 + $0x28] sm:$0xff] %v3933
        %4072 = vst [vmem:[#allocation4 + $0x30] sm:$0xff] %v3938
        %4073 = vst [vmem:[#allocation4 + $0x38] sm:$0xff] %v3943
        %4074 = vst [vmem:[#allocation4 + $0x40] sm:$0xff] %v3948
        %4075 = vst [vmem:[#allocation4 + $0x48] sm:$0xff] %v3953
        %4076 = vst [vmem:[#allocation4 + $0x50] sm:$0xff] %v3958
        %4077 = vst [vmem:[#allocation4 + $0x58] sm:$0xff] %v3963
        %4078 = vst [vmem:[#allocation4 + $0x60] sm:$0xff] %v3968
        %4079 = vst [vmem:[#allocation4 + $0x68] sm:$0xff] %v3973
        %4080 = vst [vmem:[#allocation4 + $0x70] sm:$0xff] %v3978
        %4081 = vst [vmem:[#allocation4 + $0x78] sm:$0xff] %v3983
        %4082 = vst [vmem:[#allocation4 + $0x80] sm:$0xff] %v3988
        %4083 = vst [vmem:[#allocation4 + $0x88] sm:$0xff] %v3993
        %4084 = vst [vmem:[#allocation4 + $0x90] sm:$0xff] %v3998
        %4085 = vst [vmem:[#allocation4 + $0x98] sm:$0xff] %v4003
        %4086 = vst [vmem:[#allocation4 + $0xa0] sm:$0xff] %v4008
        %4087 = vst [vmem:[#allocation4 + $0xa8] sm:$0xff] %v4013
        %4088 = vst [vmem:[#allocation4 + $0xb0] sm:$0xff] %v4018
        %4089 = vst [vmem:[#allocation4 + $0xb8] sm:$0xff] %v4023
        %4090 = vst [vmem:[#allocation4 + $0xc0] sm:$0xff] %v4028
        %4091 = vst [vmem:[#allocation4 + $0xc8] sm:$0xff] %v4033
        %4092 = vst [vmem:[#allocation4 + $0xd0] sm:$0xff] %v4038
        %4093 = vst [vmem:[#allocation4 + $0xd8] sm:$0xff] %v4043
        %4094 = vst [vmem:[#allocation4 + $0xe0] sm:$0xff] %v4048
        %4095 = vst [vmem:[#allocation4 + $0xe8] sm:$0xff] %v4053
        %4096 = vst [vmem:[#allocation4 + $0xf0] sm:$0xff] %v4058
        %4097 = vst [vmem:[#allocation4 + $0xf8] sm:$0xff] %v4063
        %v4098 = vld [vmem:[#allocation3 + $0x1] sm:$0xff]
        %v4099 = vld [vmem:[#allocation3 + $0x9] sm:$0xff]
        %v4100 = vld [vmem:[#allocation3 + $0x19] sm:$0xff]
        %v4101 = vld [vmem:[#allocation3 + $0x21] sm:$0xff]
        %v4102 = vld [vmem:[#allocation3 + $0x31] sm:$0xff]
        %v4103 = vld [vmem:[#allocation3 + $0x39] sm:$0xff]
        %v4104 = vld [vmem:[#allocation3 + $0x49] sm:$0xff]
        %v4105 = vld [vmem:[#allocation3 + $0x51] sm:$0xff]
        %v4106 = vld [vmem:[#allocation3 + $0x61] sm:$0xff]
        %v4107 = vld [vmem:[#allocation3 + $0x69] sm:$0xff]
        %v4108 = vld [vmem:[#allocation3 + $0x79] sm:$0xff]
        %v4109 = vld [vmem:[#allocation3 + $0x81] sm:$0xff]
        %v4110 = vld [vmem:[#allocation3 + $0x91] sm:$0xff]
        %v4111 = vld [vmem:[#allocation3 + $0x99] sm:$0xff]
        %v4112 = vld [vmem:[#allocation3 + $0xa9] sm:$0xff]
        %v4113 = vld [vmem:[#allocation3 + $0xb1] sm:$0xff]
        %v4114 = vld [vmem:[#allocation3 + $0xc1] sm:$0xff]
        %v4115 = vld [vmem:[#allocation3 + $0xc9] sm:$0xff]
        %v4116 = vld [vmem:[#allocation3 + $0xd9] sm:$0xff]
        %v4117 = vld [vmem:[#allocation3 + $0xe1] sm:$0xff]
        %v4118 = vld [vmem:[#allocation3 + $0xf1] sm:$0xff]
        %v4119 = vld [vmem:[#allocation3 + $0xf9] sm:$0xff]
        %v4120 = vld [vmem:[#allocation3 + $0x109] sm:$0xff]
        %v4121 = vld [vmem:[#allocation3 + $0x111] sm:$0xff]
        %v4122 = vld [vmem:[#allocation3 + $0x121] sm:$0xff]
        %v4123 = vld [vmem:[#allocation3 + $0x129] sm:$0xff]
        %v4124 = vld [vmem:[#allocation3 + $0x139] sm:$0xff]
        %v4125 = vld [vmem:[#allocation3 + $0x141] sm:$0xff]
        %v4126 = vld [vmem:[#allocation3 + $0x151] sm:$0xff]
        %v4127 = vld [vmem:[#allocation3 + $0x159] sm:$0xff]
        %v4128 = vld [vmem:[#allocation3 + $0x169] sm:$0xff]
        %v4129 = vld [vmem:[#allocation3 + $0x171] sm:$0xff]
        %s4130 = scalar_lea.vmem [#allocation5], 128
        %v4131 = vld [vmem:[%s4130] sm:$0xff]
        %v4132 = vld [vmem:[%s4130 + $0x8] sm:$0xff]
        %v4133 = vld [vmem:[%s4130 + $0x10] sm:$0xff]
        %v4134 = vld [vmem:[%s4130 + $0x18] sm:$0xff]
        %v4135 = vld [vmem:[%s4130 + $0x20] sm:$0xff]
        %v4136 = vld [vmem:[%s4130 + $0x28] sm:$0xff]
        %v4137 = vld [vmem:[%s4130 + $0x30] sm:$0xff]
        %v4138 = vld [vmem:[%s4130 + $0x38] sm:$0xff]
        %v4139 = vld [vmem:[%s4130 + $0x40] sm:$0xff]
        %v4140 = vld [vmem:[%s4130 + $0x48] sm:$0xff]
        %v4141 = vld [vmem:[%s4130 + $0x50] sm:$0xff]
        %v4142 = vld [vmem:[%s4130 + $0x58] sm:$0xff]
        %v4143 = vld [vmem:[%s4130 + $0x60] sm:$0xff]
        %v4144 = vld [vmem:[%s4130 + $0x68] sm:$0xff]
        %v4145 = vld [vmem:[%s4130 + $0x70] sm:$0xff]
        %v4146 = vld [vmem:[%s4130 + $0x78] sm:$0xff]
        %4147 = vmatprep.subr.mxu0 0.0
        %4148 = vmatpush1.msra.mxu0 %v4146
        %4149 = vmatprep.subr.mxu0 0.0
        %4150 = vmatpush1.msra.mxu0 %v4145
        %4151 = vmatprep.subr.mxu0 0.0
        %4152 = vmatpush1.msra.mxu0 %v4144
        %4153 = vmatprep.subr.mxu0 0.0
        %4154 = vmatpush1.msra.mxu0 %v4143
        %4155 = vmatprep.subr.mxu0 0.0
        %4156 = vmatpush1.msra.mxu0 %v4142
        %4157 = vmatprep.subr.mxu0 0.0
        %4158 = vmatpush1.msra.mxu0 %v4141
        %4159 = vmatprep.subr.mxu0 0.0
        %4160 = vmatpush1.msra.mxu0 %v4140
        %4161 = vmatprep.subr.mxu0 0.0
        %4162 = vmatpush1.msra.mxu0 %v4139
        %4163 = vmatprep.subr.mxu0 0.0
        %4164 = vmatpush1.msra.mxu0 %v4138
        %4165 = vmatprep.subr.mxu0 0.0
        %4166 = vmatpush1.msra.mxu0 %v4137
        %4167 = vmatprep.subr.mxu0 0.0
        %4168 = vmatpush1.msra.mxu0 %v4136
        %4169 = vmatprep.subr.mxu0 0.0
        %4170 = vmatpush1.msra.mxu0 %v4135
        %4171 = vmatprep.subr.mxu0 0.0
        %4172 = vmatpush1.msra.mxu0 %v4134
        %4173 = vmatprep.subr.mxu0 0.0
        %4174 = vmatpush1.msra.mxu0 %v4133
        %4175 = vmatprep.subr.mxu0 0.0
        %4176 = vmatpush1.msra.mxu0 %v4132
        %4177 = vmatprep.subr.mxu0 0.0
        %4178 = vmatpush1.msra.mxu0 %v4131
        %4179 = vmatprep.subr.mxu0 0.0
        %4180 = vmatpush2.msra.mxu0 0.0
        %4181 = vmatprep.subr.mxu0 0.0
        %4182 = vmatpush2.msra.mxu0 0.0
        %4183 = vmatprep.subr.mxu0 0.0
        %4184 = vmatpush2.msra.mxu0 0.0
        %4185 = vmatprep.subr.mxu0 0.0
        %4186 = vmatpush2.msra.mxu0 0.0
        %4187 = vmatprep.subr.mxu0 0.0
        %4188 = vmatpush2.msra.mxu0 0.0
        %4189 = vmatprep.subr.mxu0 0.0
        %4190 = vmatpush2.msra.mxu0 0.0
        %4191 = vmatprep.subr.mxu0 0.0
        %4192 = vmatpush2.msra.mxu0 0.0
        %4193 = vmatprep.subr.mxu0 0.0
        %4194 = vmatpush2.msra.mxu0 0.0
        %4195 = vmatprep.subr.mxu0 0.0
        %4196 = vmatpush2.msra.mxu0 0.0
        %4197 = vmatprep.subr.mxu0 0.0
        %4198 = vmatpush2.msra.mxu0 0.0
        %4199 = vmatprep.subr.mxu0 0.0
        %4200 = vmatpush2.msra.mxu0 0.0
        %4201 = vmatprep.subr.mxu0 0.0
        %4202 = vmatpush2.msra.mxu0 0.0
        %4203 = vmatprep.subr.mxu0 0.0
        %4204 = vmatpush2.msra.mxu0 0.0
        %4205 = vmatprep.subr.mxu0 0.0
        %4206 = vmatpush2.msra.mxu0 0.0
        %4207 = vmatprep.subr.mxu0 0.0
        %4208 = vmatpush2.msra.mxu0 0.0
        %4209 = vmatprep.subr.mxu0 0.0
        %4210 = vmatpush2.msra.mxu0 0.0
        %4211 = vmatprep.mubr.f32.mxu0 0.0
        %4212 = vmatmul.mubr.f32.gmra.mxu0 %v4098
        %v4213 = vpop.f32.mrf.mxu0
        %v4214 = vadd.f32 0.0, %v4213
        %v4215 = vpop.f32.mrf.mxu0
        %4216 = vmatprep.mubr.f32.mxu0 0.0
        %4217 = vmatmul.mubr.f32.gmra.mxu0 %v4099
        %v4218 = vpop.f32.mrf.mxu0
        %v4219 = vadd.f32 0.0, %v4218
        %v4220 = vpop.f32.mrf.mxu0
        %4221 = vmatprep.mubr.f32.mxu0 0.0
        %4222 = vmatmul.mubr.f32.gmra.mxu0 %v4100
        %v4223 = vpop.f32.mrf.mxu0
        %v4224 = vadd.f32 0.0, %v4223
        %v4225 = vpop.f32.mrf.mxu0
        %4226 = vmatprep.mubr.f32.mxu0 0.0
        %4227 = vmatmul.mubr.f32.gmra.mxu0 %v4101
        %v4228 = vpop.f32.mrf.mxu0
        %v4229 = vadd.f32 0.0, %v4228
        %v4230 = vpop.f32.mrf.mxu0
        %4231 = vmatprep.mubr.f32.mxu0 0.0
        %4232 = vmatmul.mubr.f32.gmra.mxu0 %v4102
        %v4233 = vpop.f32.mrf.mxu0
        %v4234 = vadd.f32 0.0, %v4233
        %v4235 = vpop.f32.mrf.mxu0
        %4236 = vmatprep.mubr.f32.mxu0 0.0
        %4237 = vmatmul.mubr.f32.gmra.mxu0 %v4103
        %v4238 = vpop.f32.mrf.mxu0
        %v4239 = vadd.f32 0.0, %v4238
        %v4240 = vpop.f32.mrf.mxu0
        %4241 = vmatprep.mubr.f32.mxu0 0.0
        %4242 = vmatmul.mubr.f32.gmra.mxu0 %v4104
        %v4243 = vpop.f32.mrf.mxu0
        %v4244 = vadd.f32 0.0, %v4243
        %v4245 = vpop.f32.mrf.mxu0
        %4246 = vmatprep.mubr.f32.mxu0 0.0
        %4247 = vmatmul.mubr.f32.gmra.mxu0 %v4105
        %v4248 = vpop.f32.mrf.mxu0
        %v4249 = vadd.f32 0.0, %v4248
        %v4250 = vpop.f32.mrf.mxu0
        %4251 = vmatprep.mubr.f32.mxu0 0.0
        %4252 = vmatmul.mubr.f32.gmra.mxu0 %v4106
        %v4253 = vpop.f32.mrf.mxu0
        %v4254 = vadd.f32 0.0, %v4253
        %v4255 = vpop.f32.mrf.mxu0
        %4256 = vmatprep.mubr.f32.mxu0 0.0
        %4257 = vmatmul.mubr.f32.gmra.mxu0 %v4107
        %v4258 = vpop.f32.mrf.mxu0
        %v4259 = vadd.f32 0.0, %v4258
        %v4260 = vpop.f32.mrf.mxu0
        %4261 = vmatprep.mubr.f32.mxu0 0.0
        %4262 = vmatmul.mubr.f32.gmra.mxu0 %v4108
        %v4263 = vpop.f32.mrf.mxu0
        %v4264 = vadd.f32 0.0, %v4263
        %v4265 = vpop.f32.mrf.mxu0
        %4266 = vmatprep.mubr.f32.mxu0 0.0
        %4267 = vmatmul.mubr.f32.gmra.mxu0 %v4109
        %v4268 = vpop.f32.mrf.mxu0
        %v4269 = vadd.f32 0.0, %v4268
        %v4270 = vpop.f32.mrf.mxu0
        %4271 = vmatprep.mubr.f32.mxu0 0.0
        %4272 = vmatmul.mubr.f32.gmra.mxu0 %v4110
        %v4273 = vpop.f32.mrf.mxu0
        %v4274 = vadd.f32 0.0, %v4273
        %v4275 = vpop.f32.mrf.mxu0
        %4276 = vmatprep.mubr.f32.mxu0 0.0
        %4277 = vmatmul.mubr.f32.gmra.mxu0 %v4111
        %v4278 = vpop.f32.mrf.mxu0
        %v4279 = vadd.f32 0.0, %v4278
        %v4280 = vpop.f32.mrf.mxu0
        %4281 = vmatprep.mubr.f32.mxu0 0.0
        %4282 = vmatmul.mubr.f32.gmra.mxu0 %v4112
        %v4283 = vpop.f32.mrf.mxu0
        %v4284 = vadd.f32 0.0, %v4283
        %v4285 = vpop.f32.mrf.mxu0
        %4286 = vmatprep.mubr.f32.mxu0 0.0
        %4287 = vmatmul.mubr.f32.gmra.mxu0 %v4113
        %v4288 = vpop.f32.mrf.mxu0
        %v4289 = vadd.f32 0.0, %v4288
        %v4290 = vpop.f32.mrf.mxu0
        %4291 = vmatprep.mubr.f32.mxu0 0.0
        %4292 = vmatmul.mubr.f32.gmra.mxu0 %v4114
        %v4293 = vpop.f32.mrf.mxu0
        %v4294 = vadd.f32 0.0, %v4293
        %v4295 = vpop.f32.mrf.mxu0
        %4296 = vmatprep.mubr.f32.mxu0 0.0
        %4297 = vmatmul.mubr.f32.gmra.mxu0 %v4115
        %v4298 = vpop.f32.mrf.mxu0
        %v4299 = vadd.f32 0.0, %v4298
        %v4300 = vpop.f32.mrf.mxu0
        %4301 = vmatprep.mubr.f32.mxu0 0.0
        %4302 = vmatmul.mubr.f32.gmra.mxu0 %v4116
        %v4303 = vpop.f32.mrf.mxu0
        %v4304 = vadd.f32 0.0, %v4303
        %v4305 = vpop.f32.mrf.mxu0
        %4306 = vmatprep.mubr.f32.mxu0 0.0
        %4307 = vmatmul.mubr.f32.gmra.mxu0 %v4117
        %v4308 = vpop.f32.mrf.mxu0
        %v4309 = vadd.f32 0.0, %v4308
        %v4310 = vpop.f32.mrf.mxu0
        %4311 = vmatprep.mubr.f32.mxu0 0.0
        %4312 = vmatmul.mubr.f32.gmra.mxu0 %v4118
        %v4313 = vpop.f32.mrf.mxu0
        %v4314 = vadd.f32 0.0, %v4313
        %v4315 = vpop.f32.mrf.mxu0
        %4316 = vmatprep.mubr.f32.mxu0 0.0
        %4317 = vmatmul.mubr.f32.gmra.mxu0 %v4119
        %v4318 = vpop.f32.mrf.mxu0
        %v4319 = vadd.f32 0.0, %v4318
        %v4320 = vpop.f32.mrf.mxu0
        %4321 = vmatprep.mubr.f32.mxu0 0.0
        %4322 = vmatmul.mubr.f32.gmra.mxu0 %v4120
        %v4323 = vpop.f32.mrf.mxu0
        %v4324 = vadd.f32 0.0, %v4323
        %v4325 = vpop.f32.mrf.mxu0
        %4326 = vmatprep.mubr.f32.mxu0 0.0
        %4327 = vmatmul.mubr.f32.gmra.mxu0 %v4121
        %v4328 = vpop.f32.mrf.mxu0
        %v4329 = vadd.f32 0.0, %v4328
        %v4330 = vpop.f32.mrf.mxu0
        %4331 = vmatprep.mubr.f32.mxu0 0.0
        %4332 = vmatmul.mubr.f32.gmra.mxu0 %v4122
        %v4333 = vpop.f32.mrf.mxu0
        %v4334 = vadd.f32 0.0, %v4333
        %v4335 = vpop.f32.mrf.mxu0
        %4336 = vmatprep.mubr.f32.mxu0 0.0
        %4337 = vmatmul.mubr.f32.gmra.mxu0 %v4123
        %v4338 = vpop.f32.mrf.mxu0
        %v4339 = vadd.f32 0.0, %v4338
        %v4340 = vpop.f32.mrf.mxu0
        %4341 = vmatprep.mubr.f32.mxu0 0.0
        %4342 = vmatmul.mubr.f32.gmra.mxu0 %v4124
        %v4343 = vpop.f32.mrf.mxu0
        %v4344 = vadd.f32 0.0, %v4343
        %v4345 = vpop.f32.mrf.mxu0
        %4346 = vmatprep.mubr.f32.mxu0 0.0
        %4347 = vmatmul.mubr.f32.gmra.mxu0 %v4125
        %v4348 = vpop.f32.mrf.mxu0
        %v4349 = vadd.f32 0.0, %v4348
        %v4350 = vpop.f32.mrf.mxu0
        %4351 = vmatprep.mubr.f32.mxu0 0.0
        %4352 = vmatmul.mubr.f32.gmra.mxu0 %v4126
        %v4353 = vpop.f32.mrf.mxu0
        %v4354 = vadd.f32 0.0, %v4353
        %v4355 = vpop.f32.mrf.mxu0
        %4356 = vmatprep.mubr.f32.mxu0 0.0
        %4357 = vmatmul.mubr.f32.gmra.mxu0 %v4127
        %v4358 = vpop.f32.mrf.mxu0
        %v4359 = vadd.f32 0.0, %v4358
        %v4360 = vpop.f32.mrf.mxu0
        %4361 = vmatprep.mubr.f32.mxu0 0.0
        %4362 = vmatmul.mubr.f32.gmra.mxu0 %v4128
        %v4363 = vpop.f32.mrf.mxu0
        %v4364 = vadd.f32 0.0, %v4363
        %v4365 = vpop.f32.mrf.mxu0
        %4366 = vmatprep.mubr.f32.mxu0 0.0
        %4367 = vmatmul.mubr.f32.gmra.mxu0 %v4129
        %v4368 = vpop.f32.mrf.mxu0
        %v4369 = vadd.f32 0.0, %v4368
        %v4370 = vpop.f32.mrf.mxu0
        %4371 = vdwg.mxu0
        %v4372 = vld [vmem:[#allocation4] sm:$0xff]
        %v4373 = vld [vmem:[#allocation4 + $0x8] sm:$0xff]
        %v4374 = vld [vmem:[#allocation4 + $0x10] sm:$0xff]
        %v4375 = vld [vmem:[#allocation4 + $0x18] sm:$0xff]
        %v4376 = vld [vmem:[#allocation4 + $0x20] sm:$0xff]
        %v4377 = vld [vmem:[#allocation4 + $0x28] sm:$0xff]
        %v4378 = vld [vmem:[#allocation4 + $0x30] sm:$0xff]
        %v4379 = vld [vmem:[#allocation4 + $0x38] sm:$0xff]
        %v4380 = vld [vmem:[#allocation4 + $0x40] sm:$0xff]
        %v4381 = vld [vmem:[#allocation4 + $0x48] sm:$0xff]
        %v4382 = vld [vmem:[#allocation4 + $0x50] sm:$0xff]
        %v4383 = vld [vmem:[#allocation4 + $0x58] sm:$0xff]
        %v4384 = vld [vmem:[#allocation4 + $0x60] sm:$0xff]
        %v4385 = vld [vmem:[#allocation4 + $0x68] sm:$0xff]
        %v4386 = vld [vmem:[#allocation4 + $0x70] sm:$0xff]
        %v4387 = vld [vmem:[#allocation4 + $0x78] sm:$0xff]
        %v4388 = vld [vmem:[#allocation4 + $0x80] sm:$0xff]
        %v4389 = vld [vmem:[#allocation4 + $0x88] sm:$0xff]
        %v4390 = vld [vmem:[#allocation4 + $0x90] sm:$0xff]
        %v4391 = vld [vmem:[#allocation4 + $0x98] sm:$0xff]
        %v4392 = vld [vmem:[#allocation4 + $0xa0] sm:$0xff]
        %v4393 = vld [vmem:[#allocation4 + $0xa8] sm:$0xff]
        %v4394 = vld [vmem:[#allocation4 + $0xb0] sm:$0xff]
        %v4395 = vld [vmem:[#allocation4 + $0xb8] sm:$0xff]
        %v4396 = vld [vmem:[#allocation4 + $0xc0] sm:$0xff]
        %v4397 = vld [vmem:[#allocation4 + $0xc8] sm:$0xff]
        %v4398 = vld [vmem:[#allocation4 + $0xd0] sm:$0xff]
        %v4399 = vld [vmem:[#allocation4 + $0xd8] sm:$0xff]
        %v4400 = vld [vmem:[#allocation4 + $0xe0] sm:$0xff]
        %v4401 = vld [vmem:[#allocation4 + $0xe8] sm:$0xff]
        %v4402 = vld [vmem:[#allocation4 + $0xf0] sm:$0xff]
        %v4403 = vld [vmem:[#allocation4 + $0xf8] sm:$0xff]
        %v4404 = vadd.f32 %v4372, %v4214
        %v4405 = vadd.f32 %v4373, %v4219
        %v4406 = vadd.f32 %v4374, %v4224
        %v4407 = vadd.f32 %v4375, %v4229
        %v4408 = vadd.f32 %v4376, %v4234
        %v4409 = vadd.f32 %v4377, %v4239
        %v4410 = vadd.f32 %v4378, %v4244
        %v4411 = vadd.f32 %v4379, %v4249
        %v4412 = vadd.f32 %v4380, %v4254
        %v4413 = vadd.f32 %v4381, %v4259
        %v4414 = vadd.f32 %v4382, %v4264
        %v4415 = vadd.f32 %v4383, %v4269
        %v4416 = vadd.f32 %v4384, %v4274
        %v4417 = vadd.f32 %v4385, %v4279
        %v4418 = vadd.f32 %v4386, %v4284
        %v4419 = vadd.f32 %v4387, %v4289
        %v4420 = vadd.f32 %v4388, %v4294
        %v4421 = vadd.f32 %v4389, %v4299
        %v4422 = vadd.f32 %v4390, %v4304
        %v4423 = vadd.f32 %v4391, %v4309
        %v4424 = vadd.f32 %v4392, %v4314
        %v4425 = vadd.f32 %v4393, %v4319
        %v4426 = vadd.f32 %v4394, %v4324
        %v4427 = vadd.f32 %v4395, %v4329
        %v4428 = vadd.f32 %v4396, %v4334
        %v4429 = vadd.f32 %v4397, %v4339
        %v4430 = vadd.f32 %v4398, %v4344
        %v4431 = vadd.f32 %v4399, %v4349
        %v4432 = vadd.f32 %v4400, %v4354
        %v4433 = vadd.f32 %v4401, %v4359
        %v4434 = vadd.f32 %v4402, %v4364
        %v4435 = vadd.f32 %v4403, %v4369
        %4436 = vst [vmem:[#allocation4] sm:$0xff] %v4404
        %4437 = vst [vmem:[#allocation4 + $0x8] sm:$0xff] %v4405
        %4438 = vst [vmem:[#allocation4 + $0x10] sm:$0xff] %v4406
        %4439 = vst [vmem:[#allocation4 + $0x18] sm:$0xff] %v4407
        %4440 = vst [vmem:[#allocation4 + $0x20] sm:$0xff] %v4408
        %4441 = vst [vmem:[#allocation4 + $0x28] sm:$0xff] %v4409
        %4442 = vst [vmem:[#allocation4 + $0x30] sm:$0xff] %v4410
        %4443 = vst [vmem:[#allocation4 + $0x38] sm:$0xff] %v4411
        %4444 = vst [vmem:[#allocation4 + $0x40] sm:$0xff] %v4412
        %4445 = vst [vmem:[#allocation4 + $0x48] sm:$0xff] %v4413
        %4446 = vst [vmem:[#allocation4 + $0x50] sm:$0xff] %v4414
        %4447 = vst [vmem:[#allocation4 + $0x58] sm:$0xff] %v4415
        %4448 = vst [vmem:[#allocation4 + $0x60] sm:$0xff] %v4416
        %4449 = vst [vmem:[#allocation4 + $0x68] sm:$0xff] %v4417
        %4450 = vst [vmem:[#allocation4 + $0x70] sm:$0xff] %v4418
        %4451 = vst [vmem:[#allocation4 + $0x78] sm:$0xff] %v4419
        %4452 = vst [vmem:[#allocation4 + $0x80] sm:$0xff] %v4420
        %4453 = vst [vmem:[#allocation4 + $0x88] sm:$0xff] %v4421
        %4454 = vst [vmem:[#allocation4 + $0x90] sm:$0xff] %v4422
        %4455 = vst [vmem:[#allocation4 + $0x98] sm:$0xff] %v4423
        %4456 = vst [vmem:[#allocation4 + $0xa0] sm:$0xff] %v4424
        %4457 = vst [vmem:[#allocation4 + $0xa8] sm:$0xff] %v4425
        %4458 = vst [vmem:[#allocation4 + $0xb0] sm:$0xff] %v4426
        %4459 = vst [vmem:[#allocation4 + $0xb8] sm:$0xff] %v4427
        %4460 = vst [vmem:[#allocation4 + $0xc0] sm:$0xff] %v4428
        %4461 = vst [vmem:[#allocation4 + $0xc8] sm:$0xff] %v4429
        %4462 = vst [vmem:[#allocation4 + $0xd0] sm:$0xff] %v4430
        %4463 = vst [vmem:[#allocation4 + $0xd8] sm:$0xff] %v4431
        %4464 = vst [vmem:[#allocation4 + $0xe0] sm:$0xff] %v4432
        %4465 = vst [vmem:[#allocation4 + $0xe8] sm:$0xff] %v4433
        %4466 = vst [vmem:[#allocation4 + $0xf0] sm:$0xff] %v4434
        %4467 = vst [vmem:[#allocation4 + $0xf8] sm:$0xff] %v4435
        %v4468 = vld [vmem:[#allocation3 + $0x2] sm:$0xff]
        %v4469 = vld [vmem:[#allocation3 + $0xa] sm:$0xff]
        %v4470 = vld [vmem:[#allocation3 + $0x1a] sm:$0xff]
        %v4471 = vld [vmem:[#allocation3 + $0x22] sm:$0xff]
        %v4472 = vld [vmem:[#allocation3 + $0x32] sm:$0xff]
        %v4473 = vld [vmem:[#allocation3 + $0x3a] sm:$0xff]
        %v4474 = vld [vmem:[#allocation3 + $0x4a] sm:$0xff]
        %v4475 = vld [vmem:[#allocation3 + $0x52] sm:$0xff]
        %v4476 = vld [vmem:[#allocation3 + $0x62] sm:$0xff]
        %v4477 = vld [vmem:[#allocation3 + $0x6a] sm:$0xff]
        %v4478 = vld [vmem:[#allocation3 + $0x7a] sm:$0xff]
        %v4479 = vld [vmem:[#allocation3 + $0x82] sm:$0xff]
        %v4480 = vld [vmem:[#allocation3 + $0x92] sm:$0xff]
        %v4481 = vld [vmem:[#allocation3 + $0x9a] sm:$0xff]
        %v4482 = vld [vmem:[#allocation3 + $0xaa] sm:$0xff]
        %v4483 = vld [vmem:[#allocation3 + $0xb2] sm:$0xff]
        %v4484 = vld [vmem:[#allocation3 + $0xc2] sm:$0xff]
        %v4485 = vld [vmem:[#allocation3 + $0xca] sm:$0xff]
        %v4486 = vld [vmem:[#allocation3 + $0xda] sm:$0xff]
        %v4487 = vld [vmem:[#allocation3 + $0xe2] sm:$0xff]
        %v4488 = vld [vmem:[#allocation3 + $0xf2] sm:$0xff]
        %v4489 = vld [vmem:[#allocation3 + $0xfa] sm:$0xff]
        %v4490 = vld [vmem:[#allocation3 + $0x10a] sm:$0xff]
        %v4491 = vld [vmem:[#allocation3 + $0x112] sm:$0xff]
        %v4492 = vld [vmem:[#allocation3 + $0x122] sm:$0xff]
        %v4493 = vld [vmem:[#allocation3 + $0x12a] sm:$0xff]
        %v4494 = vld [vmem:[#allocation3 + $0x13a] sm:$0xff]
        %v4495 = vld [vmem:[#allocation3 + $0x142] sm:$0xff]
        %v4496 = vld [vmem:[#allocation3 + $0x152] sm:$0xff]
        %v4497 = vld [vmem:[#allocation3 + $0x15a] sm:$0xff]
        %v4498 = vld [vmem:[#allocation3 + $0x16a] sm:$0xff]
        %v4499 = vld [vmem:[#allocation3 + $0x172] sm:$0xff]
        %s4500 = scalar_lea.vmem [#allocation5], 256
        %v4501 = vld [vmem:[%s4500] sm:$0xff]
        %v4502 = vld [vmem:[%s4500 + $0x8] sm:$0xff]
        %v4503 = vld [vmem:[%s4500 + $0x10] sm:$0xff]
        %v4504 = vld [vmem:[%s4500 + $0x18] sm:$0xff]
        %v4505 = vld [vmem:[%s4500 + $0x20] sm:$0xff]
        %v4506 = vld [vmem:[%s4500 + $0x28] sm:$0xff]
        %v4507 = vld [vmem:[%s4500 + $0x30] sm:$0xff]
        %v4508 = vld [vmem:[%s4500 + $0x38] sm:$0xff]
        %v4509 = vld [vmem:[%s4500 + $0x40] sm:$0xff]
        %v4510 = vld [vmem:[%s4500 + $0x48] sm:$0xff]
        %v4511 = vld [vmem:[%s4500 + $0x50] sm:$0xff]
        %v4512 = vld [vmem:[%s4500 + $0x58] sm:$0xff]
        %v4513 = vld [vmem:[%s4500 + $0x60] sm:$0xff]
        %v4514 = vld [vmem:[%s4500 + $0x68] sm:$0xff]
        %v4515 = vld [vmem:[%s4500 + $0x70] sm:$0xff]
        %v4516 = vld [vmem:[%s4500 + $0x78] sm:$0xff]
        %4517 = vmatprep.subr.mxu0 0.0
        %4518 = vmatpush1.msra.mxu0 %v4516
        %4519 = vmatprep.subr.mxu0 0.0
        %4520 = vmatpush1.msra.mxu0 %v4515
        %4521 = vmatprep.subr.mxu0 0.0
        %4522 = vmatpush1.msra.mxu0 %v4514
        %4523 = vmatprep.subr.mxu0 0.0
        %4524 = vmatpush1.msra.mxu0 %v4513
        %4525 = vmatprep.subr.mxu0 0.0
        %4526 = vmatpush1.msra.mxu0 %v4512
        %4527 = vmatprep.subr.mxu0 0.0
        %4528 = vmatpush1.msra.mxu0 %v4511
        %4529 = vmatprep.subr.mxu0 0.0
        %4530 = vmatpush1.msra.mxu0 %v4510
        %4531 = vmatprep.subr.mxu0 0.0
        %4532 = vmatpush1.msra.mxu0 %v4509
        %4533 = vmatprep.subr.mxu0 0.0
        %4534 = vmatpush1.msra.mxu0 %v4508
        %4535 = vmatprep.subr.mxu0 0.0
        %4536 = vmatpush1.msra.mxu0 %v4507
        %4537 = vmatprep.subr.mxu0 0.0
        %4538 = vmatpush1.msra.mxu0 %v4506
        %4539 = vmatprep.subr.mxu0 0.0
        %4540 = vmatpush1.msra.mxu0 %v4505
        %4541 = vmatprep.subr.mxu0 0.0
        %4542 = vmatpush1.msra.mxu0 %v4504
        %4543 = vmatprep.subr.mxu0 0.0
        %4544 = vmatpush1.msra.mxu0 %v4503
        %4545 = vmatprep.subr.mxu0 0.0
        %4546 = vmatpush1.msra.mxu0 %v4502
        %4547 = vmatprep.subr.mxu0 0.0
        %4548 = vmatpush1.msra.mxu0 %v4501
        %4549 = vmatprep.subr.mxu0 0.0
        %4550 = vmatpush2.msra.mxu0 0.0
        %4551 = vmatprep.subr.mxu0 0.0
        %4552 = vmatpush2.msra.mxu0 0.0
        %4553 = vmatprep.subr.mxu0 0.0
        %4554 = vmatpush2.msra.mxu0 0.0
        %4555 = vmatprep.subr.mxu0 0.0
        %4556 = vmatpush2.msra.mxu0 0.0
        %4557 = vmatprep.subr.mxu0 0.0
        %4558 = vmatpush2.msra.mxu0 0.0
        %4559 = vmatprep.subr.mxu0 0.0
        %4560 = vmatpush2.msra.mxu0 0.0
        %4561 = vmatprep.subr.mxu0 0.0
        %4562 = vmatpush2.msra.mxu0 0.0
        %4563 = vmatprep.subr.mxu0 0.0
        %4564 = vmatpush2.msra.mxu0 0.0
        %4565 = vmatprep.subr.mxu0 0.0
        %4566 = vmatpush2.msra.mxu0 0.0
        %4567 = vmatprep.subr.mxu0 0.0
        %4568 = vmatpush2.msra.mxu0 0.0
        %4569 = vmatprep.subr.mxu0 0.0
        %4570 = vmatpush2.msra.mxu0 0.0
        %4571 = vmatprep.subr.mxu0 0.0
        %4572 = vmatpush2.msra.mxu0 0.0
        %4573 = vmatprep.subr.mxu0 0.0
        %4574 = vmatpush2.msra.mxu0 0.0
        %4575 = vmatprep.subr.mxu0 0.0
        %4576 = vmatpush2.msra.mxu0 0.0
        %4577 = vmatprep.subr.mxu0 0.0
        %4578 = vmatpush2.msra.mxu0 0.0
        %4579 = vmatprep.subr.mxu0 0.0
        %4580 = vmatpush2.msra.mxu0 0.0
        %4581 = vmatprep.mubr.f32.mxu0 0.0
        %4582 = vmatmul.mubr.f32.gmra.mxu0 %v4468
        %v4583 = vpop.f32.mrf.mxu0
        %v4584 = vadd.f32 0.0, %v4583
        %v4585 = vpop.f32.mrf.mxu0
        %4586 = vmatprep.mubr.f32.mxu0 0.0
        %4587 = vmatmul.mubr.f32.gmra.mxu0 %v4469
        %v4588 = vpop.f32.mrf.mxu0
        %v4589 = vadd.f32 0.0, %v4588
        %v4590 = vpop.f32.mrf.mxu0
        %4591 = vmatprep.mubr.f32.mxu0 0.0
        %4592 = vmatmul.mubr.f32.gmra.mxu0 %v4470
        %v4593 = vpop.f32.mrf.mxu0
        %v4594 = vadd.f32 0.0, %v4593
        %v4595 = vpop.f32.mrf.mxu0
        %4596 = vmatprep.mubr.f32.mxu0 0.0
        %4597 = vmatmul.mubr.f32.gmra.mxu0 %v4471
        %v4598 = vpop.f32.mrf.mxu0
        %v4599 = vadd.f32 0.0, %v4598
        %v4600 = vpop.f32.mrf.mxu0
        %4601 = vmatprep.mubr.f32.mxu0 0.0
        %4602 = vmatmul.mubr.f32.gmra.mxu0 %v4472
        %v4603 = vpop.f32.mrf.mxu0
        %v4604 = vadd.f32 0.0, %v4603
        %v4605 = vpop.f32.mrf.mxu0
        %4606 = vmatprep.mubr.f32.mxu0 0.0
        %4607 = vmatmul.mubr.f32.gmra.mxu0 %v4473
        %v4608 = vpop.f32.mrf.mxu0
        %v4609 = vadd.f32 0.0, %v4608
        %v4610 = vpop.f32.mrf.mxu0
        %4611 = vmatprep.mubr.f32.mxu0 0.0
        %4612 = vmatmul.mubr.f32.gmra.mxu0 %v4474
        %v4613 = vpop.f32.mrf.mxu0
        %v4614 = vadd.f32 0.0, %v4613
        %v4615 = vpop.f32.mrf.mxu0
        %4616 = vmatprep.mubr.f32.mxu0 0.0
        %4617 = vmatmul.mubr.f32.gmra.mxu0 %v4475
        %v4618 = vpop.f32.mrf.mxu0
        %v4619 = vadd.f32 0.0, %v4618
        %v4620 = vpop.f32.mrf.mxu0
        %4621 = vmatprep.mubr.f32.mxu0 0.0
        %4622 = vmatmul.mubr.f32.gmra.mxu0 %v4476
        %v4623 = vpop.f32.mrf.mxu0
        %v4624 = vadd.f32 0.0, %v4623
        %v4625 = vpop.f32.mrf.mxu0
        %4626 = vmatprep.mubr.f32.mxu0 0.0
        %4627 = vmatmul.mubr.f32.gmra.mxu0 %v4477
        %v4628 = vpop.f32.mrf.mxu0
        %v4629 = vadd.f32 0.0, %v4628
        %v4630 = vpop.f32.mrf.mxu0
        %4631 = vmatprep.mubr.f32.mxu0 0.0
        %4632 = vmatmul.mubr.f32.gmra.mxu0 %v4478
        %v4633 = vpop.f32.mrf.mxu0
        %v4634 = vadd.f32 0.0, %v4633
        %v4635 = vpop.f32.mrf.mxu0
        %4636 = vmatprep.mubr.f32.mxu0 0.0
        %4637 = vmatmul.mubr.f32.gmra.mxu0 %v4479
        %v4638 = vpop.f32.mrf.mxu0
        %v4639 = vadd.f32 0.0, %v4638
        %v4640 = vpop.f32.mrf.mxu0
        %4641 = vmatprep.mubr.f32.mxu0 0.0
        %4642 = vmatmul.mubr.f32.gmra.mxu0 %v4480
        %v4643 = vpop.f32.mrf.mxu0
        %v4644 = vadd.f32 0.0, %v4643
        %v4645 = vpop.f32.mrf.mxu0
        %4646 = vmatprep.mubr.f32.mxu0 0.0
        %4647 = vmatmul.mubr.f32.gmra.mxu0 %v4481
        %v4648 = vpop.f32.mrf.mxu0
        %v4649 = vadd.f32 0.0, %v4648
        %v4650 = vpop.f32.mrf.mxu0
        %4651 = vmatprep.mubr.f32.mxu0 0.0
        %4652 = vmatmul.mubr.f32.gmra.mxu0 %v4482
        %v4653 = vpop.f32.mrf.mxu0
        %v4654 = vadd.f32 0.0, %v4653
        %v4655 = vpop.f32.mrf.mxu0
        %4656 = vmatprep.mubr.f32.mxu0 0.0
        %4657 = vmatmul.mubr.f32.gmra.mxu0 %v4483
        %v4658 = vpop.f32.mrf.mxu0
        %v4659 = vadd.f32 0.0, %v4658
        %v4660 = vpop.f32.mrf.mxu0
        %4661 = vmatprep.mubr.f32.mxu0 0.0
        %4662 = vmatmul.mubr.f32.gmra.mxu0 %v4484
        %v4663 = vpop.f32.mrf.mxu0
        %v4664 = vadd.f32 0.0, %v4663
        %v4665 = vpop.f32.mrf.mxu0
        %4666 = vmatprep.mubr.f32.mxu0 0.0
        %4667 = vmatmul.mubr.f32.gmra.mxu0 %v4485
        %v4668 = vpop.f32.mrf.mxu0
        %v4669 = vadd.f32 0.0, %v4668
        %v4670 = vpop.f32.mrf.mxu0
        %4671 = vmatprep.mubr.f32.mxu0 0.0
        %4672 = vmatmul.mubr.f32.gmra.mxu0 %v4486
        %v4673 = vpop.f32.mrf.mxu0
        %v4674 = vadd.f32 0.0, %v4673
        %v4675 = vpop.f32.mrf.mxu0
        %4676 = vmatprep.mubr.f32.mxu0 0.0
        %4677 = vmatmul.mubr.f32.gmra.mxu0 %v4487
        %v4678 = vpop.f32.mrf.mxu0
        %v4679 = vadd.f32 0.0, %v4678
        %v4680 = vpop.f32.mrf.mxu0
        %4681 = vmatprep.mubr.f32.mxu0 0.0
        %4682 = vmatmul.mubr.f32.gmra.mxu0 %v4488
        %v4683 = vpop.f32.mrf.mxu0
        %v4684 = vadd.f32 0.0, %v4683
        %v4685 = vpop.f32.mrf.mxu0
        %4686 = vmatprep.mubr.f32.mxu0 0.0
        %4687 = vmatmul.mubr.f32.gmra.mxu0 %v4489
        %v4688 = vpop.f32.mrf.mxu0
        %v4689 = vadd.f32 0.0, %v4688
        %v4690 = vpop.f32.mrf.mxu0
        %4691 = vmatprep.mubr.f32.mxu0 0.0
        %4692 = vmatmul.mubr.f32.gmra.mxu0 %v4490
        %v4693 = vpop.f32.mrf.mxu0
        %v4694 = vadd.f32 0.0, %v4693
        %v4695 = vpop.f32.mrf.mxu0
        %4696 = vmatprep.mubr.f32.mxu0 0.0
        %4697 = vmatmul.mubr.f32.gmra.mxu0 %v4491
        %v4698 = vpop.f32.mrf.mxu0
        %v4699 = vadd.f32 0.0, %v4698
        %v4700 = vpop.f32.mrf.mxu0
        %4701 = vmatprep.mubr.f32.mxu0 0.0
        %4702 = vmatmul.mubr.f32.gmra.mxu0 %v4492
        %v4703 = vpop.f32.mrf.mxu0
        %v4704 = vadd.f32 0.0, %v4703
        %v4705 = vpop.f32.mrf.mxu0
        %4706 = vmatprep.mubr.f32.mxu0 0.0
        %4707 = vmatmul.mubr.f32.gmra.mxu0 %v4493
        %v4708 = vpop.f32.mrf.mxu0
        %v4709 = vadd.f32 0.0, %v4708
        %v4710 = vpop.f32.mrf.mxu0
        %4711 = vmatprep.mubr.f32.mxu0 0.0
        %4712 = vmatmul.mubr.f32.gmra.mxu0 %v4494
        %v4713 = vpop.f32.mrf.mxu0
        %v4714 = vadd.f32 0.0, %v4713
        %v4715 = vpop.f32.mrf.mxu0
        %4716 = vmatprep.mubr.f32.mxu0 0.0
        %4717 = vmatmul.mubr.f32.gmra.mxu0 %v4495
        %v4718 = vpop.f32.mrf.mxu0
        %v4719 = vadd.f32 0.0, %v4718
        %v4720 = vpop.f32.mrf.mxu0
        %4721 = vmatprep.mubr.f32.mxu0 0.0
        %4722 = vmatmul.mubr.f32.gmra.mxu0 %v4496
        %v4723 = vpop.f32.mrf.mxu0
        %v4724 = vadd.f32 0.0, %v4723
        %v4725 = vpop.f32.mrf.mxu0
        %4726 = vmatprep.mubr.f32.mxu0 0.0
        %4727 = vmatmul.mubr.f32.gmra.mxu0 %v4497
        %v4728 = vpop.f32.mrf.mxu0
        %v4729 = vadd.f32 0.0, %v4728
        %v4730 = vpop.f32.mrf.mxu0
        %4731 = vmatprep.mubr.f32.mxu0 0.0
        %4732 = vmatmul.mubr.f32.gmra.mxu0 %v4498
        %v4733 = vpop.f32.mrf.mxu0
        %v4734 = vadd.f32 0.0, %v4733
        %v4735 = vpop.f32.mrf.mxu0
        %4736 = vmatprep.mubr.f32.mxu0 0.0
        %4737 = vmatmul.mubr.f32.gmra.mxu0 %v4499
        %v4738 = vpop.f32.mrf.mxu0
        %v4739 = vadd.f32 0.0, %v4738
        %v4740 = vpop.f32.mrf.mxu0
        %4741 = vdwg.mxu0
        %v4742 = vld [vmem:[#allocation4] sm:$0xff]
        %v4743 = vld [vmem:[#allocation4 + $0x8] sm:$0xff]
        %v4744 = vld [vmem:[#allocation4 + $0x10] sm:$0xff]
        %v4745 = vld [vmem:[#allocation4 + $0x18] sm:$0xff]
        %v4746 = vld [vmem:[#allocation4 + $0x20] sm:$0xff]
        %v4747 = vld [vmem:[#allocation4 + $0x28] sm:$0xff]
        %v4748 = vld [vmem:[#allocation4 + $0x30] sm:$0xff]
        %v4749 = vld [vmem:[#allocation4 + $0x38] sm:$0xff]
        %v4750 = vld [vmem:[#allocation4 + $0x40] sm:$0xff]
        %v4751 = vld [vmem:[#allocation4 + $0x48] sm:$0xff]
        %v4752 = vld [vmem:[#allocation4 + $0x50] sm:$0xff]
        %v4753 = vld [vmem:[#allocation4 + $0x58] sm:$0xff]
        %v4754 = vld [vmem:[#allocation4 + $0x60] sm:$0xff]
        %v4755 = vld [vmem:[#allocation4 + $0x68] sm:$0xff]
        %v4756 = vld [vmem:[#allocation4 + $0x70] sm:$0xff]
        %v4757 = vld [vmem:[#allocation4 + $0x78] sm:$0xff]
        %v4758 = vld [vmem:[#allocation4 + $0x80] sm:$0xff]
        %v4759 = vld [vmem:[#allocation4 + $0x88] sm:$0xff]
        %v4760 = vld [vmem:[#allocation4 + $0x90] sm:$0xff]
        %v4761 = vld [vmem:[#allocation4 + $0x98] sm:$0xff]
        %v4762 = vld [vmem:[#allocation4 + $0xa0] sm:$0xff]
        %v4763 = vld [vmem:[#allocation4 + $0xa8] sm:$0xff]
        %v4764 = vld [vmem:[#allocation4 + $0xb0] sm:$0xff]
        %v4765 = vld [vmem:[#allocation4 + $0xb8] sm:$0xff]
        %v4766 = vld [vmem:[#allocation4 + $0xc0] sm:$0xff]
        %v4767 = vld [vmem:[#allocation4 + $0xc8] sm:$0xff]
        %v4768 = vld [vmem:[#allocation4 + $0xd0] sm:$0xff]
        %v4769 = vld [vmem:[#allocation4 + $0xd8] sm:$0xff]
        %v4770 = vld [vmem:[#allocation4 + $0xe0] sm:$0xff]
        %v4771 = vld [vmem:[#allocation4 + $0xe8] sm:$0xff]
        %v4772 = vld [vmem:[#allocation4 + $0xf0] sm:$0xff]
        %v4773 = vld [vmem:[#allocation4 + $0xf8] sm:$0xff]
        %v4774 = vadd.f32 %v4742, %v4584
        %v4775 = vadd.f32 %v4743, %v4589
        %v4776 = vadd.f32 %v4744, %v4594
        %v4777 = vadd.f32 %v4745, %v4599
        %v4778 = vadd.f32 %v4746, %v4604
        %v4779 = vadd.f32 %v4747, %v4609
        %v4780 = vadd.f32 %v4748, %v4614
        %v4781 = vadd.f32 %v4749, %v4619
        %v4782 = vadd.f32 %v4750, %v4624
        %v4783 = vadd.f32 %v4751, %v4629
        %v4784 = vadd.f32 %v4752, %v4634
        %v4785 = vadd.f32 %v4753, %v4639
        %v4786 = vadd.f32 %v4754, %v4644
        %v4787 = vadd.f32 %v4755, %v4649
        %v4788 = vadd.f32 %v4756, %v4654
        %v4789 = vadd.f32 %v4757, %v4659
        %v4790 = vadd.f32 %v4758, %v4664
        %v4791 = vadd.f32 %v4759, %v4669
        %v4792 = vadd.f32 %v4760, %v4674
        %v4793 = vadd.f32 %v4761, %v4679
        %v4794 = vadd.f32 %v4762, %v4684
        %v4795 = vadd.f32 %v4763, %v4689
        %v4796 = vadd.f32 %v4764, %v4694
        %v4797 = vadd.f32 %v4765, %v4699
        %v4798 = vadd.f32 %v4766, %v4704
        %v4799 = vadd.f32 %v4767, %v4709
        %v4800 = vadd.f32 %v4768, %v4714
        %v4801 = vadd.f32 %v4769, %v4719
        %v4802 = vadd.f32 %v4770, %v4724
        %v4803 = vadd.f32 %v4771, %v4729
        %v4804 = vadd.f32 %v4772, %v4734
        %v4805 = vadd.f32 %v4773, %v4739
        %4806 = vst [vmem:[#allocation4] sm:$0xff] %v4774
        %4807 = vst [vmem:[#allocation4 + $0x8] sm:$0xff] %v4775
        %4808 = vst [vmem:[#allocation4 + $0x10] sm:$0xff] %v4776
        %4809 = vst [vmem:[#allocation4 + $0x18] sm:$0xff] %v4777
        %4810 = vst [vmem:[#allocation4 + $0x20] sm:$0xff] %v4778
        %4811 = vst [vmem:[#allocation4 + $0x28] sm:$0xff] %v4779
        %4812 = vst [vmem:[#allocation4 + $0x30] sm:$0xff] %v4780
        %4813 = vst [vmem:[#allocation4 + $0x38] sm:$0xff] %v4781
        %4814 = vst [vmem:[#allocation4 + $0x40] sm:$0xff] %v4782
        %4815 = vst [vmem:[#allocation4 + $0x48] sm:$0xff] %v4783
        %4816 = vst [vmem:[#allocation4 + $0x50] sm:$0xff] %v4784
        %4817 = vst [vmem:[#allocation4 + $0x58] sm:$0xff] %v4785
        %4818 = vst [vmem:[#allocation4 + $0x60] sm:$0xff] %v4786
        %4819 = vst [vmem:[#allocation4 + $0x68] sm:$0xff] %v4787
        %4820 = vst [vmem:[#allocation4 + $0x70] sm:$0xff] %v4788
        %4821 = vst [vmem:[#allocation4 + $0x78] sm:$0xff] %v4789
        %4822 = vst [vmem:[#allocation4 + $0x80] sm:$0xff] %v4790
        %4823 = vst [vmem:[#allocation4 + $0x88] sm:$0xff] %v4791
        %4824 = vst [vmem:[#allocation4 + $0x90] sm:$0xff] %v4792
        %4825 = vst [vmem:[#allocation4 + $0x98] sm:$0xff] %v4793
        %4826 = vst [vmem:[#allocation4 + $0xa0] sm:$0xff] %v4794
        %4827 = vst [vmem:[#allocation4 + $0xa8] sm:$0xff] %v4795
        %4828 = vst [vmem:[#allocation4 + $0xb0] sm:$0xff] %v4796
        %4829 = vst [vmem:[#allocation4 + $0xb8] sm:$0xff] %v4797
        %4830 = vst [vmem:[#allocation4 + $0xc0] sm:$0xff] %v4798
        %4831 = vst [vmem:[#allocation4 + $0xc8] sm:$0xff] %v4799
        %4832 = vst [vmem:[#allocation4 + $0xd0] sm:$0xff] %v4800
        %4833 = vst [vmem:[#allocation4 + $0xd8] sm:$0xff] %v4801
        %4834 = vst [vmem:[#allocation4 + $0xe0] sm:$0xff] %v4802
        %4835 = vst [vmem:[#allocation4 + $0xe8] sm:$0xff] %v4803
        %4836 = vst [vmem:[#allocation4 + $0xf0] sm:$0xff] %v4804
        %4837 = vst [vmem:[#allocation4 + $0xf8] sm:$0xff] %v4805
        %v4838 = vld [vmem:[%s3760] sm:$0xff]
        %v4839 = vld [vmem:[%s3760 + $0x8] sm:$0xff]
        %v4840 = vld [vmem:[%s3760 + $0x18] sm:$0xff]
        %v4841 = vld [vmem:[%s3760 + $0x20] sm:$0xff]
        %v4842 = vld [vmem:[%s3760 + $0x30] sm:$0xff]
        %v4843 = vld [vmem:[%s3760 + $0x38] sm:$0xff]
        %v4844 = vld [vmem:[%s3760 + $0x48] sm:$0xff]
        %v4845 = vld [vmem:[%s3760 + $0x50] sm:$0xff]
        %v4846 = vld [vmem:[%s3760 + $0x60] sm:$0xff]
        %v4847 = vld [vmem:[%s3760 + $0x68] sm:$0xff]
        %v4848 = vld [vmem:[%s3760 + $0x78] sm:$0xff]
        %v4849 = vld [vmem:[%s3760 + $0x80] sm:$0xff]
        %v4850 = vld [vmem:[%s3760 + $0x90] sm:$0xff]
        %v4851 = vld [vmem:[%s3760 + $0x98] sm:$0xff]
        %v4852 = vld [vmem:[%s3760 + $0xa8] sm:$0xff]
        %v4853 = vld [vmem:[%s3760 + $0xb0] sm:$0xff]
        %v4854 = vld [vmem:[%s3760 + $0xc0] sm:$0xff]
        %v4855 = vld [vmem:[%s3760 + $0xc8] sm:$0xff]
        %v4856 = vld [vmem:[%s3760 + $0xd8] sm:$0xff]
        %v4857 = vld [vmem:[%s3760 + $0xe0] sm:$0xff]
        %v4858 = vld [vmem:[%s3760 + $0xf0] sm:$0xff]
        %v4859 = vld [vmem:[%s3760 + $0xf8] sm:$0xff]
        %v4860 = vld [vmem:[%s3760 + $0x108] sm:$0xff]
        %v4861 = vld [vmem:[%s3760 + $0x110] sm:$0xff]
        %v4862 = vld [vmem:[%s3760 + $0x120] sm:$0xff]
        %v4863 = vld [vmem:[%s3760 + $0x128] sm:$0xff]
        %v4864 = vld [vmem:[%s3760 + $0x138] sm:$0xff]
        %v4865 = vld [vmem:[%s3760 + $0x140] sm:$0xff]
        %v4866 = vld [vmem:[%s3760 + $0x150] sm:$0xff]
        %v4867 = vld [vmem:[%s3760 + $0x158] sm:$0xff]
        %v4868 = vld [vmem:[%s3760 + $0x168] sm:$0xff]
        %v4869 = vld [vmem:[%s3760 + $0x170] sm:$0xff]
        %s4870 = scalar_lea.vmem [#allocation5], 384
        %v4871 = vld [vmem:[%s4870] sm:$0xff]
        %v4872 = vld [vmem:[%s4870 + $0x8] sm:$0xff]
        %v4873 = vld [vmem:[%s4870 + $0x10] sm:$0xff]
        %v4874 = vld [vmem:[%s4870 + $0x18] sm:$0xff]
        %v4875 = vld [vmem:[%s4870 + $0x20] sm:$0xff]
        %v4876 = vld [vmem:[%s4870 + $0x28] sm:$0xff]
        %v4877 = vld [vmem:[%s4870 + $0x30] sm:$0xff]
        %v4878 = vld [vmem:[%s4870 + $0x38] sm:$0xff]
        %v4879 = vld [vmem:[%s4870 + $0x40] sm:$0xff]
        %v4880 = vld [vmem:[%s4870 + $0x48] sm:$0xff]
        %v4881 = vld [vmem:[%s4870 + $0x50] sm:$0xff]
        %v4882 = vld [vmem:[%s4870 + $0x58] sm:$0xff]
        %v4883 = vld [vmem:[%s4870 + $0x60] sm:$0xff]
        %v4884 = vld [vmem:[%s4870 + $0x68] sm:$0xff]
        %v4885 = vld [vmem:[%s4870 + $0x70] sm:$0xff]
        %v4886 = vld [vmem:[%s4870 + $0x78] sm:$0xff]
        %4887 = vmatprep.subr.mxu0 0.0
        %4888 = vmatpush1.msra.mxu0 %v4886
        %4889 = vmatprep.subr.mxu0 0.0
        %4890 = vmatpush1.msra.mxu0 %v4885
        %4891 = vmatprep.subr.mxu0 0.0
        %4892 = vmatpush1.msra.mxu0 %v4884
        %4893 = vmatprep.subr.mxu0 0.0
        %4894 = vmatpush1.msra.mxu0 %v4883
        %4895 = vmatprep.subr.mxu0 0.0
        %4896 = vmatpush1.msra.mxu0 %v4882
        %4897 = vmatprep.subr.mxu0 0.0
        %4898 = vmatpush1.msra.mxu0 %v4881
        %4899 = vmatprep.subr.mxu0 0.0
        %4900 = vmatpush1.msra.mxu0 %v4880
        %4901 = vmatprep.subr.mxu0 0.0
        %4902 = vmatpush1.msra.mxu0 %v4879
        %4903 = vmatprep.subr.mxu0 0.0
        %4904 = vmatpush1.msra.mxu0 %v4878
        %4905 = vmatprep.subr.mxu0 0.0
        %4906 = vmatpush1.msra.mxu0 %v4877
        %4907 = vmatprep.subr.mxu0 0.0
        %4908 = vmatpush1.msra.mxu0 %v4876
        %4909 = vmatprep.subr.mxu0 0.0
        %4910 = vmatpush1.msra.mxu0 %v4875
        %4911 = vmatprep.subr.mxu0 0.0
        %4912 = vmatpush1.msra.mxu0 %v4874
        %4913 = vmatprep.subr.mxu0 0.0
        %4914 = vmatpush1.msra.mxu0 %v4873
        %4915 = vmatprep.subr.mxu0 0.0
        %4916 = vmatpush1.msra.mxu0 %v4872
        %4917 = vmatprep.subr.mxu0 0.0
        %4918 = vmatpush1.msra.mxu0 %v4871
        %4919 = vmatprep.subr.mxu0 0.0
        %4920 = vmatpush2.msra.mxu0 0.0
        %4921 = vmatprep.subr.mxu0 0.0
        %4922 = vmatpush2.msra.mxu0 0.0
        %4923 = vmatprep.subr.mxu0 0.0
        %4924 = vmatpush2.msra.mxu0 0.0
        %4925 = vmatprep.subr.mxu0 0.0
        %4926 = vmatpush2.msra.mxu0 0.0
        %4927 = vmatprep.subr.mxu0 0.0
        %4928 = vmatpush2.msra.mxu0 0.0
        %4929 = vmatprep.subr.mxu0 0.0
        %4930 = vmatpush2.msra.mxu0 0.0
        %4931 = vmatprep.subr.mxu0 0.0
        %4932 = vmatpush2.msra.mxu0 0.0
        %4933 = vmatprep.subr.mxu0 0.0
        %4934 = vmatpush2.msra.mxu0 0.0
        %4935 = vmatprep.subr.mxu0 0.0
        %4936 = vmatpush2.msra.mxu0 0.0
        %4937 = vmatprep.subr.mxu0 0.0
        %4938 = vmatpush2.msra.mxu0 0.0
        %4939 = vmatprep.subr.mxu0 0.0
        %4940 = vmatpush2.msra.mxu0 0.0
        %4941 = vmatprep.subr.mxu0 0.0
        %4942 = vmatpush2.msra.mxu0 0.0
        %4943 = vmatprep.subr.mxu0 0.0
        %4944 = vmatpush2.msra.mxu0 0.0
        %4945 = vmatprep.subr.mxu0 0.0
        %4946 = vmatpush2.msra.mxu0 0.0
        %4947 = vmatprep.subr.mxu0 0.0
        %4948 = vmatpush2.msra.mxu0 0.0
        %4949 = vmatprep.subr.mxu0 0.0
        %4950 = vmatpush2.msra.mxu0 0.0
        %4951 = vmatprep.mubr.f32.mxu0 0.0
        %4952 = vmatmul.mubr.f32.gmra.mxu0 %v4838
        %v4953 = vpop.f32.mrf.mxu0
        %v4954 = vadd.f32 0.0, %v4953
        %v4955 = vpop.f32.mrf.mxu0
        %4956 = vmatprep.mubr.f32.mxu0 0.0
        %4957 = vmatmul.mubr.f32.gmra.mxu0 %v4839
        %v4958 = vpop.f32.mrf.mxu0
        %v4959 = vadd.f32 0.0, %v4958
        %v4960 = vpop.f32.mrf.mxu0
        %4961 = vmatprep.mubr.f32.mxu0 0.0
        %4962 = vmatmul.mubr.f32.gmra.mxu0 %v4840
        %v4963 = vpop.f32.mrf.mxu0
        %v4964 = vadd.f32 0.0, %v4963
        %v4965 = vpop.f32.mrf.mxu0
        %4966 = vmatprep.mubr.f32.mxu0 0.0
        %4967 = vmatmul.mubr.f32.gmra.mxu0 %v4841
        %v4968 = vpop.f32.mrf.mxu0
        %v4969 = vadd.f32 0.0, %v4968
        %v4970 = vpop.f32.mrf.mxu0
        %4971 = vmatprep.mubr.f32.mxu0 0.0
        %4972 = vmatmul.mubr.f32.gmra.mxu0 %v4842
        %v4973 = vpop.f32.mrf.mxu0
        %v4974 = vadd.f32 0.0, %v4973
        %v4975 = vpop.f32.mrf.mxu0
        %4976 = vmatprep.mubr.f32.mxu0 0.0
        %4977 = vmatmul.mubr.f32.gmra.mxu0 %v4843
        %v4978 = vpop.f32.mrf.mxu0
        %v4979 = vadd.f32 0.0, %v4978
        %v4980 = vpop.f32.mrf.mxu0
        %4981 = vmatprep.mubr.f32.mxu0 0.0
        %4982 = vmatmul.mubr.f32.gmra.mxu0 %v4844
        %v4983 = vpop.f32.mrf.mxu0
        %v4984 = vadd.f32 0.0, %v4983
        %v4985 = vpop.f32.mrf.mxu0
        %4986 = vmatprep.mubr.f32.mxu0 0.0
        %4987 = vmatmul.mubr.f32.gmra.mxu0 %v4845
        %v4988 = vpop.f32.mrf.mxu0
        %v4989 = vadd.f32 0.0, %v4988
        %v4990 = vpop.f32.mrf.mxu0
        %4991 = vmatprep.mubr.f32.mxu0 0.0
        %4992 = vmatmul.mubr.f32.gmra.mxu0 %v4846
        %v4993 = vpop.f32.mrf.mxu0
        %v4994 = vadd.f32 0.0, %v4993
        %v4995 = vpop.f32.mrf.mxu0
        %4996 = vmatprep.mubr.f32.mxu0 0.0
        %4997 = vmatmul.mubr.f32.gmra.mxu0 %v4847
        %v4998 = vpop.f32.mrf.mxu0
        %v4999 = vadd.f32 0.0, %v4998
        %v5000 = vpop.f32.mrf.mxu0
        %5001 = vmatprep.mubr.f32.mxu0 0.0
        %5002 = vmatmul.mubr.f32.gmra.mxu0 %v4848
        %v5003 = vpop.f32.mrf.mxu0
        %v5004 = vadd.f32 0.0, %v5003
        %v5005 = vpop.f32.mrf.mxu0
        %5006 = vmatprep.mubr.f32.mxu0 0.0
        %5007 = vmatmul.mubr.f32.gmra.mxu0 %v4849
        %v5008 = vpop.f32.mrf.mxu0
        %v5009 = vadd.f32 0.0, %v5008
        %v5010 = vpop.f32.mrf.mxu0
        %5011 = vmatprep.mubr.f32.mxu0 0.0
        %5012 = vmatmul.mubr.f32.gmra.mxu0 %v4850
        %v5013 = vpop.f32.mrf.mxu0
        %v5014 = vadd.f32 0.0, %v5013
        %v5015 = vpop.f32.mrf.mxu0
        %5016 = vmatprep.mubr.f32.mxu0 0.0
        %5017 = vmatmul.mubr.f32.gmra.mxu0 %v4851
        %v5018 = vpop.f32.mrf.mxu0
        %v5019 = vadd.f32 0.0, %v5018
        %v5020 = vpop.f32.mrf.mxu0
        %5021 = vmatprep.mubr.f32.mxu0 0.0
        %5022 = vmatmul.mubr.f32.gmra.mxu0 %v4852
        %v5023 = vpop.f32.mrf.mxu0
        %v5024 = vadd.f32 0.0, %v5023
        %v5025 = vpop.f32.mrf.mxu0
        %5026 = vmatprep.mubr.f32.mxu0 0.0
        %5027 = vmatmul.mubr.f32.gmra.mxu0 %v4853
        %v5028 = vpop.f32.mrf.mxu0
        %v5029 = vadd.f32 0.0, %v5028
        %v5030 = vpop.f32.mrf.mxu0
        %5031 = vmatprep.mubr.f32.mxu0 0.0
        %5032 = vmatmul.mubr.f32.gmra.mxu0 %v4854
        %v5033 = vpop.f32.mrf.mxu0
        %v5034 = vadd.f32 0.0, %v5033
        %v5035 = vpop.f32.mrf.mxu0
        %5036 = vmatprep.mubr.f32.mxu0 0.0
        %5037 = vmatmul.mubr.f32.gmra.mxu0 %v4855
        %v5038 = vpop.f32.mrf.mxu0
        %v5039 = vadd.f32 0.0, %v5038
        %v5040 = vpop.f32.mrf.mxu0
        %5041 = vmatprep.mubr.f32.mxu0 0.0
        %5042 = vmatmul.mubr.f32.gmra.mxu0 %v4856
        %v5043 = vpop.f32.mrf.mxu0
        %v5044 = vadd.f32 0.0, %v5043
        %v5045 = vpop.f32.mrf.mxu0
        %5046 = vmatprep.mubr.f32.mxu0 0.0
        %5047 = vmatmul.mubr.f32.gmra.mxu0 %v4857
        %v5048 = vpop.f32.mrf.mxu0
        %v5049 = vadd.f32 0.0, %v5048
        %v5050 = vpop.f32.mrf.mxu0
        %5051 = vmatprep.mubr.f32.mxu0 0.0
        %5052 = vmatmul.mubr.f32.gmra.mxu0 %v4858
        %v5053 = vpop.f32.mrf.mxu0
        %v5054 = vadd.f32 0.0, %v5053
        %v5055 = vpop.f32.mrf.mxu0
        %5056 = vmatprep.mubr.f32.mxu0 0.0
        %5057 = vmatmul.mubr.f32.gmra.mxu0 %v4859
        %v5058 = vpop.f32.mrf.mxu0
        %v5059 = vadd.f32 0.0, %v5058
        %v5060 = vpop.f32.mrf.mxu0
        %5061 = vmatprep.mubr.f32.mxu0 0.0
        %5062 = vmatmul.mubr.f32.gmra.mxu0 %v4860
        %v5063 = vpop.f32.mrf.mxu0
        %v5064 = vadd.f32 0.0, %v5063
        %v5065 = vpop.f32.mrf.mxu0
        %5066 = vmatprep.mubr.f32.mxu0 0.0
        %5067 = vmatmul.mubr.f32.gmra.mxu0 %v4861
        %v5068 = vpop.f32.mrf.mxu0
        %v5069 = vadd.f32 0.0, %v5068
        %v5070 = vpop.f32.mrf.mxu0
        %5071 = vmatprep.mubr.f32.mxu0 0.0
        %5072 = vmatmul.mubr.f32.gmra.mxu0 %v4862
        %v5073 = vpop.f32.mrf.mxu0
        %v5074 = vadd.f32 0.0, %v5073
        %v5075 = vpop.f32.mrf.mxu0
        %5076 = vmatprep.mubr.f32.mxu0 0.0
        %5077 = vmatmul.mubr.f32.gmra.mxu0 %v4863
        %v5078 = vpop.f32.mrf.mxu0
        %v5079 = vadd.f32 0.0, %v5078
        %v5080 = vpop.f32.mrf.mxu0
        %5081 = vmatprep.mubr.f32.mxu0 0.0
        %5082 = vmatmul.mubr.f32.gmra.mxu0 %v4864
        %v5083 = vpop.f32.mrf.mxu0
        %v5084 = vadd.f32 0.0, %v5083
        %v5085 = vpop.f32.mrf.mxu0
        %5086 = vmatprep.mubr.f32.mxu0 0.0
        %5087 = vmatmul.mubr.f32.gmra.mxu0 %v4865
        %v5088 = vpop.f32.mrf.mxu0
        %v5089 = vadd.f32 0.0, %v5088
        %v5090 = vpop.f32.mrf.mxu0
        %5091 = vmatprep.mubr.f32.mxu0 0.0
        %5092 = vmatmul.mubr.f32.gmra.mxu0 %v4866
        %v5093 = vpop.f32.mrf.mxu0
        %v5094 = vadd.f32 0.0, %v5093
        %v5095 = vpop.f32.mrf.mxu0
        %5096 = vmatprep.mubr.f32.mxu0 0.0
        %5097 = vmatmul.mubr.f32.gmra.mxu0 %v4867
        %v5098 = vpop.f32.mrf.mxu0
        %v5099 = vadd.f32 0.0, %v5098
        %v5100 = vpop.f32.mrf.mxu0
        %5101 = vmatprep.mubr.f32.mxu0 0.0
        %5102 = vmatmul.mubr.f32.gmra.mxu0 %v4868
        %v5103 = vpop.f32.mrf.mxu0
        %v5104 = vadd.f32 0.0, %v5103
        %v5105 = vpop.f32.mrf.mxu0
        %5106 = vmatprep.mubr.f32.mxu0 0.0
        %5107 = vmatmul.mubr.f32.gmra.mxu0 %v4869
        %v5108 = vpop.f32.mrf.mxu0
        %v5109 = vadd.f32 0.0, %v5108
        %v5110 = vpop.f32.mrf.mxu0
        %5111 = vdwg.mxu0
        %v5112 = vld [vmem:[#allocation4] sm:$0xff]
        %v5113 = vld [vmem:[#allocation4 + $0x8] sm:$0xff]
        %v5114 = vld [vmem:[#allocation4 + $0x10] sm:$0xff]
        %v5115 = vld [vmem:[#allocation4 + $0x18] sm:$0xff]
        %v5116 = vld [vmem:[#allocation4 + $0x20] sm:$0xff]
        %v5117 = vld [vmem:[#allocation4 + $0x28] sm:$0xff]
        %v5118 = vld [vmem:[#allocation4 + $0x30] sm:$0xff]
        %v5119 = vld [vmem:[#allocation4 + $0x38] sm:$0xff]
        %v5120 = vld [vmem:[#allocation4 + $0x40] sm:$0xff]
        %v5121 = vld [vmem:[#allocation4 + $0x48] sm:$0xff]
        %v5122 = vld [vmem:[#allocation4 + $0x50] sm:$0xff]
        %v5123 = vld [vmem:[#allocation4 + $0x58] sm:$0xff]
        %v5124 = vld [vmem:[#allocation4 + $0x60] sm:$0xff]
        %v5125 = vld [vmem:[#allocation4 + $0x68] sm:$0xff]
        %v5126 = vld [vmem:[#allocation4 + $0x70] sm:$0xff]
        %v5127 = vld [vmem:[#allocation4 + $0x78] sm:$0xff]
        %v5128 = vld [vmem:[#allocation4 + $0x80] sm:$0xff]
        %v5129 = vld [vmem:[#allocation4 + $0x88] sm:$0xff]
        %v5130 = vld [vmem:[#allocation4 + $0x90] sm:$0xff]
        %v5131 = vld [vmem:[#allocation4 + $0x98] sm:$0xff]
        %v5132 = vld [vmem:[#allocation4 + $0xa0] sm:$0xff]
        %v5133 = vld [vmem:[#allocation4 + $0xa8] sm:$0xff]
        %v5134 = vld [vmem:[#allocation4 + $0xb0] sm:$0xff]
        %v5135 = vld [vmem:[#allocation4 + $0xb8] sm:$0xff]
        %v5136 = vld [vmem:[#allocation4 + $0xc0] sm:$0xff]
        %v5137 = vld [vmem:[#allocation4 + $0xc8] sm:$0xff]
        %v5138 = vld [vmem:[#allocation4 + $0xd0] sm:$0xff]
        %v5139 = vld [vmem:[#allocation4 + $0xd8] sm:$0xff]
        %v5140 = vld [vmem:[#allocation4 + $0xe0] sm:$0xff]
        %v5141 = vld [vmem:[#allocation4 + $0xe8] sm:$0xff]
        %v5142 = vld [vmem:[#allocation4 + $0xf0] sm:$0xff]
        %v5143 = vld [vmem:[#allocation4 + $0xf8] sm:$0xff]
        %v5144 = vadd.f32 %v5112, %v4954
        %v5145 = vadd.f32 %v5113, %v4959
        %v5146 = vadd.f32 %v5114, %v4964
        %v5147 = vadd.f32 %v5115, %v4969
        %v5148 = vadd.f32 %v5116, %v4974
        %v5149 = vadd.f32 %v5117, %v4979
        %v5150 = vadd.f32 %v5118, %v4984
        %v5151 = vadd.f32 %v5119, %v4989
        %v5152 = vadd.f32 %v5120, %v4994
        %v5153 = vadd.f32 %v5121, %v4999
        %v5154 = vadd.f32 %v5122, %v5004
        %v5155 = vadd.f32 %v5123, %v5009
        %v5156 = vadd.f32 %v5124, %v5014
        %v5157 = vadd.f32 %v5125, %v5019
        %v5158 = vadd.f32 %v5126, %v5024
        %v5159 = vadd.f32 %v5127, %v5029
        %v5160 = vadd.f32 %v5128, %v5034
        %v5161 = vadd.f32 %v5129, %v5039
        %v5162 = vadd.f32 %v5130, %v5044
        %v5163 = vadd.f32 %v5131, %v5049
        %v5164 = vadd.f32 %v5132, %v5054
        %v5165 = vadd.f32 %v5133, %v5059
        %v5166 = vadd.f32 %v5134, %v5064
        %v5167 = vadd.f32 %v5135, %v5069
        %v5168 = vadd.f32 %v5136, %v5074
        %v5169 = vadd.f32 %v5137, %v5079
        %v5170 = vadd.f32 %v5138, %v5084
        %v5171 = vadd.f32 %v5139, %v5089
        %v5172 = vadd.f32 %v5140, %v5094
        %v5173 = vadd.f32 %v5141, %v5099
        %v5174 = vadd.f32 %v5142, %v5104
        %v5175 = vadd.f32 %v5143, %v5109
        %5176 = vst [vmem:[#allocation4] sm:$0xff] %v5144
        %5177 = vst [vmem:[#allocation4 + $0x8] sm:$0xff] %v5145
        %5178 = vst [vmem:[#allocation4 + $0x10] sm:$0xff] %v5146
        %5179 = vst [vmem:[#allocation4 + $0x18] sm:$0xff] %v5147
        %5180 = vst [vmem:[#allocation4 + $0x20] sm:$0xff] %v5148
        %5181 = vst [vmem:[#allocation4 + $0x28] sm:$0xff] %v5149
        %5182 = vst [vmem:[#allocation4 + $0x30] sm:$0xff] %v5150
        %5183 = vst [vmem:[#allocation4 + $0x38] sm:$0xff] %v5151
        %5184 = vst [vmem:[#allocation4 + $0x40] sm:$0xff] %v5152
        %5185 = vst [vmem:[#allocation4 + $0x48] sm:$0xff] %v5153
        %5186 = vst [vmem:[#allocation4 + $0x50] sm:$0xff] %v5154
        %5187 = vst [vmem:[#allocation4 + $0x58] sm:$0xff] %v5155
        %5188 = vst [vmem:[#allocation4 + $0x60] sm:$0xff] %v5156
        %5189 = vst [vmem:[#allocation4 + $0x68] sm:$0xff] %v5157
        %5190 = vst [vmem:[#allocation4 + $0x70] sm:$0xff] %v5158
        %5191 = vst [vmem:[#allocation4 + $0x78] sm:$0xff] %v5159
        %5192 = vst [vmem:[#allocation4 + $0x80] sm:$0xff] %v5160
        %5193 = vst [vmem:[#allocation4 + $0x88] sm:$0xff] %v5161
        %5194 = vst [vmem:[#allocation4 + $0x90] sm:$0xff] %v5162
        %5195 = vst [vmem:[#allocation4 + $0x98] sm:$0xff] %v5163
        %5196 = vst [vmem:[#allocation4 + $0xa0] sm:$0xff] %v5164
        %5197 = vst [vmem:[#allocation4 + $0xa8] sm:$0xff] %v5165
        %5198 = vst [vmem:[#allocation4 + $0xb0] sm:$0xff] %v5166
        %5199 = vst [vmem:[#allocation4 + $0xb8] sm:$0xff] %v5167
        %5200 = vst [vmem:[#allocation4 + $0xc0] sm:$0xff] %v5168
        %5201 = vst [vmem:[#allocation4 + $0xc8] sm:$0xff] %v5169
        %5202 = vst [vmem:[#allocation4 + $0xd0] sm:$0xff] %v5170
        %5203 = vst [vmem:[#allocation4 + $0xd8] sm:$0xff] %v5171
        %5204 = vst [vmem:[#allocation4 + $0xe0] sm:$0xff] %v5172
        %5205 = vst [vmem:[#allocation4 + $0xe8] sm:$0xff] %v5173
        %5206 = vst [vmem:[#allocation4 + $0xf0] sm:$0xff] %v5174
        %5207 = vst [vmem:[#allocation4 + $0xf8] sm:$0xff] %v5175
        %v5208 = vld [vmem:[%s3760 + $0x1] sm:$0xff]
        %v5209 = vld [vmem:[%s3760 + $0x9] sm:$0xff]
        %v5210 = vld [vmem:[%s3760 + $0x19] sm:$0xff]
        %v5211 = vld [vmem:[%s3760 + $0x21] sm:$0xff]
        %v5212 = vld [vmem:[%s3760 + $0x31] sm:$0xff]
        %v5213 = vld [vmem:[%s3760 + $0x39] sm:$0xff]
        %v5214 = vld [vmem:[%s3760 + $0x49] sm:$0xff]
        %v5215 = vld [vmem:[%s3760 + $0x51] sm:$0xff]
        %v5216 = vld [vmem:[%s3760 + $0x61] sm:$0xff]
        %v5217 = vld [vmem:[%s3760 + $0x69] sm:$0xff]
        %v5218 = vld [vmem:[%s3760 + $0x79] sm:$0xff]
        %v5219 = vld [vmem:[%s3760 + $0x81] sm:$0xff]
        %v5220 = vld [vmem:[%s3760 + $0x91] sm:$0xff]
        %v5221 = vld [vmem:[%s3760 + $0x99] sm:$0xff]
        %v5222 = vld [vmem:[%s3760 + $0xa9] sm:$0xff]
        %v5223 = vld [vmem:[%s3760 + $0xb1] sm:$0xff]
        %v5224 = vld [vmem:[%s3760 + $0xc1] sm:$0xff]
        %v5225 = vld [vmem:[%s3760 + $0xc9] sm:$0xff]
        %v5226 = vld [vmem:[%s3760 + $0xd9] sm:$0xff]
        %v5227 = vld [vmem:[%s3760 + $0xe1] sm:$0xff]
        %v5228 = vld [vmem:[%s3760 + $0xf1] sm:$0xff]
        %v5229 = vld [vmem:[%s3760 + $0xf9] sm:$0xff]
        %v5230 = vld [vmem:[%s3760 + $0x109] sm:$0xff]
        %v5231 = vld [vmem:[%s3760 + $0x111] sm:$0xff]
        %v5232 = vld [vmem:[%s3760 + $0x121] sm:$0xff]
        %v5233 = vld [vmem:[%s3760 + $0x129] sm:$0xff]
        %v5234 = vld [vmem:[%s3760 + $0x139] sm:$0xff]
        %v5235 = vld [vmem:[%s3760 + $0x141] sm:$0xff]
        %v5236 = vld [vmem:[%s3760 + $0x151] sm:$0xff]
        %v5237 = vld [vmem:[%s3760 + $0x159] sm:$0xff]
        %v5238 = vld [vmem:[%s3760 + $0x169] sm:$0xff]
        %v5239 = vld [vmem:[%s3760 + $0x171] sm:$0xff]
        %s5240 = scalar_lea.vmem [#allocation5], 512
        %v5241 = vld [vmem:[%s5240] sm:$0xff]
        %v5242 = vld [vmem:[%s5240 + $0x8] sm:$0xff]
        %v5243 = vld [vmem:[%s5240 + $0x10] sm:$0xff]
        %v5244 = vld [vmem:[%s5240 + $0x18] sm:$0xff]
        %v5245 = vld [vmem:[%s5240 + $0x20] sm:$0xff]
        %v5246 = vld [vmem:[%s5240 + $0x28] sm:$0xff]
        %v5247 = vld [vmem:[%s5240 + $0x30] sm:$0xff]
        %v5248 = vld [vmem:[%s5240 + $0x38] sm:$0xff]
        %v5249 = vld [vmem:[%s5240 + $0x40] sm:$0xff]
        %v5250 = vld [vmem:[%s5240 + $0x48] sm:$0xff]
        %v5251 = vld [vmem:[%s5240 + $0x50] sm:$0xff]
        %v5252 = vld [vmem:[%s5240 + $0x58] sm:$0xff]
        %v5253 = vld [vmem:[%s5240 + $0x60] sm:$0xff]
        %v5254 = vld [vmem:[%s5240 + $0x68] sm:$0xff]
        %v5255 = vld [vmem:[%s5240 + $0x70] sm:$0xff]
        %v5256 = vld [vmem:[%s5240 + $0x78] sm:$0xff]
        %5257 = vmatprep.subr.mxu0 0.0
        %5258 = vmatpush1.msra.mxu0 %v5256
        %5259 = vmatprep.subr.mxu0 0.0
        %5260 = vmatpush1.msra.mxu0 %v5255
        %5261 = vmatprep.subr.mxu0 0.0
        %5262 = vmatpush1.msra.mxu0 %v5254
        %5263 = vmatprep.subr.mxu0 0.0
        %5264 = vmatpush1.msra.mxu0 %v5253
        %5265 = vmatprep.subr.mxu0 0.0
        %5266 = vmatpush1.msra.mxu0 %v5252
        %5267 = vmatprep.subr.mxu0 0.0
        %5268 = vmatpush1.msra.mxu0 %v5251
        %5269 = vmatprep.subr.mxu0 0.0
        %5270 = vmatpush1.msra.mxu0 %v5250
        %5271 = vmatprep.subr.mxu0 0.0
        %5272 = vmatpush1.msra.mxu0 %v5249
        %5273 = vmatprep.subr.mxu0 0.0
        %5274 = vmatpush1.msra.mxu0 %v5248
        %5275 = vmatprep.subr.mxu0 0.0
        %5276 = vmatpush1.msra.mxu0 %v5247
        %5277 = vmatprep.subr.mxu0 0.0
        %5278 = vmatpush1.msra.mxu0 %v5246
        %5279 = vmatprep.subr.mxu0 0.0
        %5280 = vmatpush1.msra.mxu0 %v5245
        %5281 = vmatprep.subr.mxu0 0.0
        %5282 = vmatpush1.msra.mxu0 %v5244
        %5283 = vmatprep.subr.mxu0 0.0
        %5284 = vmatpush1.msra.mxu0 %v5243
        %5285 = vmatprep.subr.mxu0 0.0
        %5286 = vmatpush1.msra.mxu0 %v5242
        %5287 = vmatprep.subr.mxu0 0.0
        %5288 = vmatpush1.msra.mxu0 %v5241
        %5289 = vmatprep.subr.mxu0 0.0
        %5290 = vmatpush2.msra.mxu0 0.0
        %5291 = vmatprep.subr.mxu0 0.0
        %5292 = vmatpush2.msra.mxu0 0.0
        %5293 = vmatprep.subr.mxu0 0.0
        %5294 = vmatpush2.msra.mxu0 0.0
        %5295 = vmatprep.subr.mxu0 0.0
        %5296 = vmatpush2.msra.mxu0 0.0
        %5297 = vmatprep.subr.mxu0 0.0
        %5298 = vmatpush2.msra.mxu0 0.0
        %5299 = vmatprep.subr.mxu0 0.0
        %5300 = vmatpush2.msra.mxu0 0.0
        %5301 = vmatprep.subr.mxu0 0.0
        %5302 = vmatpush2.msra.mxu0 0.0
        %5303 = vmatprep.subr.mxu0 0.0
        %5304 = vmatpush2.msra.mxu0 0.0
        %5305 = vmatprep.subr.mxu0 0.0
        %5306 = vmatpush2.msra.mxu0 0.0
        %5307 = vmatprep.subr.mxu0 0.0
        %5308 = vmatpush2.msra.mxu0 0.0
        %5309 = vmatprep.subr.mxu0 0.0
        %5310 = vmatpush2.msra.mxu0 0.0
        %5311 = vmatprep.subr.mxu0 0.0
        %5312 = vmatpush2.msra.mxu0 0.0
        %5313 = vmatprep.subr.mxu0 0.0
        %5314 = vmatpush2.msra.mxu0 0.0
        %5315 = vmatprep.subr.mxu0 0.0
        %5316 = vmatpush2.msra.mxu0 0.0
        %5317 = vmatprep.subr.mxu0 0.0
        %5318 = vmatpush2.msra.mxu0 0.0
        %5319 = vmatprep.subr.mxu0 0.0
        %5320 = vmatpush2.msra.mxu0 0.0
        %5321 = vmatprep.mubr.f32.mxu0 0.0
        %5322 = vmatmul.mubr.f32.gmra.mxu0 %v5208
        %v5323 = vpop.f32.mrf.mxu0
        %v5324 = vadd.f32 0.0, %v5323
        %v5325 = vpop.f32.mrf.mxu0
        %5326 = vmatprep.mubr.f32.mxu0 0.0
        %5327 = vmatmul.mubr.f32.gmra.mxu0 %v5209
        %v5328 = vpop.f32.mrf.mxu0
        %v5329 = vadd.f32 0.0, %v5328
        %v5330 = vpop.f32.mrf.mxu0
        %5331 = vmatprep.mubr.f32.mxu0 0.0
        %5332 = vmatmul.mubr.f32.gmra.mxu0 %v5210
        %v5333 = vpop.f32.mrf.mxu0
        %v5334 = vadd.f32 0.0, %v5333
        %v5335 = vpop.f32.mrf.mxu0
        %5336 = vmatprep.mubr.f32.mxu0 0.0
        %5337 = vmatmul.mubr.f32.gmra.mxu0 %v5211
        %v5338 = vpop.f32.mrf.mxu0
        %v5339 = vadd.f32 0.0, %v5338
        %v5340 = vpop.f32.mrf.mxu0
        %5341 = vmatprep.mubr.f32.mxu0 0.0
        %5342 = vmatmul.mubr.f32.gmra.mxu0 %v5212
        %v5343 = vpop.f32.mrf.mxu0
        %v5344 = vadd.f32 0.0, %v5343
        %v5345 = vpop.f32.mrf.mxu0
        %5346 = vmatprep.mubr.f32.mxu0 0.0
        %5347 = vmatmul.mubr.f32.gmra.mxu0 %v5213
        %v5348 = vpop.f32.mrf.mxu0
        %v5349 = vadd.f32 0.0, %v5348
        %v5350 = vpop.f32.mrf.mxu0
        %5351 = vmatprep.mubr.f32.mxu0 0.0
        %5352 = vmatmul.mubr.f32.gmra.mxu0 %v5214
        %v5353 = vpop.f32.mrf.mxu0
        %v5354 = vadd.f32 0.0, %v5353
        %v5355 = vpop.f32.mrf.mxu0
        %5356 = vmatprep.mubr.f32.mxu0 0.0
        %5357 = vmatmul.mubr.f32.gmra.mxu0 %v5215
        %v5358 = vpop.f32.mrf.mxu0
        %v5359 = vadd.f32 0.0, %v5358
        %v5360 = vpop.f32.mrf.mxu0
        %5361 = vmatprep.mubr.f32.mxu0 0.0
        %5362 = vmatmul.mubr.f32.gmra.mxu0 %v5216
        %v5363 = vpop.f32.mrf.mxu0
        %v5364 = vadd.f32 0.0, %v5363
        %v5365 = vpop.f32.mrf.mxu0
        %5366 = vmatprep.mubr.f32.mxu0 0.0
        %5367 = vmatmul.mubr.f32.gmra.mxu0 %v5217
        %v5368 = vpop.f32.mrf.mxu0
        %v5369 = vadd.f32 0.0, %v5368
        %v5370 = vpop.f32.mrf.mxu0
        %5371 = vmatprep.mubr.f32.mxu0 0.0
        %5372 = vmatmul.mubr.f32.gmra.mxu0 %v5218
        %v5373 = vpop.f32.mrf.mxu0
        %v5374 = vadd.f32 0.0, %v5373
        %v5375 = vpop.f32.mrf.mxu0
        %5376 = vmatprep.mubr.f32.mxu0 0.0
        %5377 = vmatmul.mubr.f32.gmra.mxu0 %v5219
        %v5378 = vpop.f32.mrf.mxu0
        %v5379 = vadd.f32 0.0, %v5378
        %v5380 = vpop.f32.mrf.mxu0
        %5381 = vmatprep.mubr.f32.mxu0 0.0
        %5382 = vmatmul.mubr.f32.gmra.mxu0 %v5220
        %v5383 = vpop.f32.mrf.mxu0
        %v5384 = vadd.f32 0.0, %v5383
        %v5385 = vpop.f32.mrf.mxu0
        %5386 = vmatprep.mubr.f32.mxu0 0.0
        %5387 = vmatmul.mubr.f32.gmra.mxu0 %v5221
        %v5388 = vpop.f32.mrf.mxu0
        %v5389 = vadd.f32 0.0, %v5388
        %v5390 = vpop.f32.mrf.mxu0
        %5391 = vmatprep.mubr.f32.mxu0 0.0
        %5392 = vmatmul.mubr.f32.gmra.mxu0 %v5222
        %v5393 = vpop.f32.mrf.mxu0
        %v5394 = vadd.f32 0.0, %v5393
        %v5395 = vpop.f32.mrf.mxu0
        %5396 = vmatprep.mubr.f32.mxu0 0.0
        %5397 = vmatmul.mubr.f32.gmra.mxu0 %v5223
        %v5398 = vpop.f32.mrf.mxu0
        %v5399 = vadd.f32 0.0, %v5398
        %v5400 = vpop.f32.mrf.mxu0
        %5401 = vmatprep.mubr.f32.mxu0 0.0
        %5402 = vmatmul.mubr.f32.gmra.mxu0 %v5224
        %v5403 = vpop.f32.mrf.mxu0
        %v5404 = vadd.f32 0.0, %v5403
        %v5405 = vpop.f32.mrf.mxu0
        %5406 = vmatprep.mubr.f32.mxu0 0.0
        %5407 = vmatmul.mubr.f32.gmra.mxu0 %v5225
        %v5408 = vpop.f32.mrf.mxu0
        %v5409 = vadd.f32 0.0, %v5408
        %v5410 = vpop.f32.mrf.mxu0
        %5411 = vmatprep.mubr.f32.mxu0 0.0
        %5412 = vmatmul.mubr.f32.gmra.mxu0 %v5226
        %v5413 = vpop.f32.mrf.mxu0
        %v5414 = vadd.f32 0.0, %v5413
        %v5415 = vpop.f32.mrf.mxu0
        %5416 = vmatprep.mubr.f32.mxu0 0.0
        %5417 = vmatmul.mubr.f32.gmra.mxu0 %v5227
        %v5418 = vpop.f32.mrf.mxu0
        %v5419 = vadd.f32 0.0, %v5418
        %v5420 = vpop.f32.mrf.mxu0
        %5421 = vmatprep.mubr.f32.mxu0 0.0
        %5422 = vmatmul.mubr.f32.gmra.mxu0 %v5228
        %v5423 = vpop.f32.mrf.mxu0
        %v5424 = vadd.f32 0.0, %v5423
        %v5425 = vpop.f32.mrf.mxu0
        %5426 = vmatprep.mubr.f32.mxu0 0.0
        %5427 = vmatmul.mubr.f32.gmra.mxu0 %v5229
        %v5428 = vpop.f32.mrf.mxu0
        %v5429 = vadd.f32 0.0, %v5428
        %v5430 = vpop.f32.mrf.mxu0
        %5431 = vmatprep.mubr.f32.mxu0 0.0
        %5432 = vmatmul.mubr.f32.gmra.mxu0 %v5230
        %v5433 = vpop.f32.mrf.mxu0
        %v5434 = vadd.f32 0.0, %v5433
        %v5435 = vpop.f32.mrf.mxu0
        %5436 = vmatprep.mubr.f32.mxu0 0.0
        %5437 = vmatmul.mubr.f32.gmra.mxu0 %v5231
        %v5438 = vpop.f32.mrf.mxu0
        %v5439 = vadd.f32 0.0, %v5438
        %v5440 = vpop.f32.mrf.mxu0
        %5441 = vmatprep.mubr.f32.mxu0 0.0
        %5442 = vmatmul.mubr.f32.gmra.mxu0 %v5232
        %v5443 = vpop.f32.mrf.mxu0
        %v5444 = vadd.f32 0.0, %v5443
        %v5445 = vpop.f32.mrf.mxu0
        %5446 = vmatprep.mubr.f32.mxu0 0.0
        %5447 = vmatmul.mubr.f32.gmra.mxu0 %v5233
        %v5448 = vpop.f32.mrf.mxu0
        %v5449 = vadd.f32 0.0, %v5448
        %v5450 = vpop.f32.mrf.mxu0
        %5451 = vmatprep.mubr.f32.mxu0 0.0
        %5452 = vmatmul.mubr.f32.gmra.mxu0 %v5234
        %v5453 = vpop.f32.mrf.mxu0
        %v5454 = vadd.f32 0.0, %v5453
        %v5455 = vpop.f32.mrf.mxu0
        %5456 = vmatprep.mubr.f32.mxu0 0.0
        %5457 = vmatmul.mubr.f32.gmra.mxu0 %v5235
        %v5458 = vpop.f32.mrf.mxu0
        %v5459 = vadd.f32 0.0, %v5458
        %v5460 = vpop.f32.mrf.mxu0
        %5461 = vmatprep.mubr.f32.mxu0 0.0
        %5462 = vmatmul.mubr.f32.gmra.mxu0 %v5236
        %v5463 = vpop.f32.mrf.mxu0
        %v5464 = vadd.f32 0.0, %v5463
        %v5465 = vpop.f32.mrf.mxu0
        %5466 = vmatprep.mubr.f32.mxu0 0.0
        %5467 = vmatmul.mubr.f32.gmra.mxu0 %v5237
        %v5468 = vpop.f32.mrf.mxu0
        %v5469 = vadd.f32 0.0, %v5468
        %v5470 = vpop.f32.mrf.mxu0
        %5471 = vmatprep.mubr.f32.mxu0 0.0
        %5472 = vmatmul.mubr.f32.gmra.mxu0 %v5238
        %v5473 = vpop.f32.mrf.mxu0
        %v5474 = vadd.f32 0.0, %v5473
        %v5475 = vpop.f32.mrf.mxu0
        %5476 = vmatprep.mubr.f32.mxu0 0.0
        %5477 = vmatmul.mubr.f32.gmra.mxu0 %v5239
        %v5478 = vpop.f32.mrf.mxu0
        %v5479 = vadd.f32 0.0, %v5478
        %v5480 = vpop.f32.mrf.mxu0
        %5481 = vdwg.mxu0
        %v5482 = vld [vmem:[#allocation4] sm:$0xff]
        %v5483 = vld [vmem:[#allocation4 + $0x8] sm:$0xff]
        %v5484 = vld [vmem:[#allocation4 + $0x10] sm:$0xff]
        %v5485 = vld [vmem:[#allocation4 + $0x18] sm:$0xff]
        %v5486 = vld [vmem:[#allocation4 + $0x20] sm:$0xff]
        %v5487 = vld [vmem:[#allocation4 + $0x28] sm:$0xff]
        %v5488 = vld [vmem:[#allocation4 + $0x30] sm:$0xff]
        %v5489 = vld [vmem:[#allocation4 + $0x38] sm:$0xff]
        %v5490 = vld [vmem:[#allocation4 + $0x40] sm:$0xff]
        %v5491 = vld [vmem:[#allocation4 + $0x48] sm:$0xff]
        %v5492 = vld [vmem:[#allocation4 + $0x50] sm:$0xff]
        %v5493 = vld [vmem:[#allocation4 + $0x58] sm:$0xff]
        %v5494 = vld [vmem:[#allocation4 + $0x60] sm:$0xff]
        %v5495 = vld [vmem:[#allocation4 + $0x68] sm:$0xff]
        %v5496 = vld [vmem:[#allocation4 + $0x70] sm:$0xff]
        %v5497 = vld [vmem:[#allocation4 + $0x78] sm:$0xff]
        %v5498 = vld [vmem:[#allocation4 + $0x80] sm:$0xff]
        %v5499 = vld [vmem:[#allocation4 + $0x88] sm:$0xff]
        %v5500 = vld [vmem:[#allocation4 + $0x90] sm:$0xff]
        %v5501 = vld [vmem:[#allocation4 + $0x98] sm:$0xff]
        %v5502 = vld [vmem:[#allocation4 + $0xa0] sm:$0xff]
        %v5503 = vld [vmem:[#allocation4 + $0xa8] sm:$0xff]
        %v5504 = vld [vmem:[#allocation4 + $0xb0] sm:$0xff]
        %v5505 = vld [vmem:[#allocation4 + $0xb8] sm:$0xff]
        %v5506 = vld [vmem:[#allocation4 + $0xc0] sm:$0xff]
        %v5507 = vld [vmem:[#allocation4 + $0xc8] sm:$0xff]
        %v5508 = vld [vmem:[#allocation4 + $0xd0] sm:$0xff]
        %v5509 = vld [vmem:[#allocation4 + $0xd8] sm:$0xff]
        %v5510 = vld [vmem:[#allocation4 + $0xe0] sm:$0xff]
        %v5511 = vld [vmem:[#allocation4 + $0xe8] sm:$0xff]
        %v5512 = vld [vmem:[#allocation4 + $0xf0] sm:$0xff]
        %v5513 = vld [vmem:[#allocation4 + $0xf8] sm:$0xff]
        %v5514 = vadd.f32 %v5482, %v5324
        %v5515 = vadd.f32 %v5483, %v5329
        %v5516 = vadd.f32 %v5484, %v5334
        %v5517 = vadd.f32 %v5485, %v5339
        %v5518 = vadd.f32 %v5486, %v5344
        %v5519 = vadd.f32 %v5487, %v5349
        %v5520 = vadd.f32 %v5488, %v5354
        %v5521 = vadd.f32 %v5489, %v5359
        %v5522 = vadd.f32 %v5490, %v5364
        %v5523 = vadd.f32 %v5491, %v5369
        %v5524 = vadd.f32 %v5492, %v5374
        %v5525 = vadd.f32 %v5493, %v5379
        %v5526 = vadd.f32 %v5494, %v5384
        %v5527 = vadd.f32 %v5495, %v5389
        %v5528 = vadd.f32 %v5496, %v5394
        %v5529 = vadd.f32 %v5497, %v5399
        %v5530 = vadd.f32 %v5498, %v5404
        %v5531 = vadd.f32 %v5499, %v5409
        %v5532 = vadd.f32 %v5500, %v5414
        %v5533 = vadd.f32 %v5501, %v5419
        %v5534 = vadd.f32 %v5502, %v5424
        %v5535 = vadd.f32 %v5503, %v5429
        %v5536 = vadd.f32 %v5504, %v5434
        %v5537 = vadd.f32 %v5505, %v5439
        %v5538 = vadd.f32 %v5506, %v5444
        %v5539 = vadd.f32 %v5507, %v5449
        %v5540 = vadd.f32 %v5508, %v5454
        %v5541 = vadd.f32 %v5509, %v5459
        %v5542 = vadd.f32 %v5510, %v5464
        %v5543 = vadd.f32 %v5511, %v5469
        %v5544 = vadd.f32 %v5512, %v5474
        %v5545 = vadd.f32 %v5513, %v5479
        %5546 = vst [vmem:[#allocation4] sm:$0xff] %v5514
        %5547 = vst [vmem:[#allocation4 + $0x8] sm:$0xff] %v5515
        %5548 = vst [vmem:[#allocation4 + $0x10] sm:$0xff] %v5516
        %5549 = vst [vmem:[#allocation4 + $0x18] sm:$0xff] %v5517
        %5550 = vst [vmem:[#allocation4 + $0x20] sm:$0xff] %v5518
        %5551 = vst [vmem:[#allocation4 + $0x28] sm:$0xff] %v5519
        %5552 = vst [vmem:[#allocation4 + $0x30] sm:$0xff] %v5520
        %5553 = vst [vmem:[#allocation4 + $0x38] sm:$0xff] %v5521
        %5554 = vst [vmem:[#allocation4 + $0x40] sm:$0xff] %v5522
        %5555 = vst [vmem:[#allocation4 + $0x48] sm:$0xff] %v5523
        %5556 = vst [vmem:[#allocation4 + $0x50] sm:$0xff] %v5524
        %5557 = vst [vmem:[#allocation4 + $0x58] sm:$0xff] %v5525
        %5558 = vst [vmem:[#allocation4 + $0x60] sm:$0xff] %v5526
        %5559 = vst [vmem:[#allocation4 + $0x68] sm:$0xff] %v5527
        %5560 = vst [vmem:[#allocation4 + $0x70] sm:$0xff] %v5528
        %5561 = vst [vmem:[#allocation4 + $0x78] sm:$0xff] %v5529
        %5562 = vst [vmem:[#allocation4 + $0x80] sm:$0xff] %v5530
        %5563 = vst [vmem:[#allocation4 + $0x88] sm:$0xff] %v5531
        %5564 = vst [vmem:[#allocation4 + $0x90] sm:$0xff] %v5532
        %5565 = vst [vmem:[#allocation4 + $0x98] sm:$0xff] %v5533
        %5566 = vst [vmem:[#allocation4 + $0xa0] sm:$0xff] %v5534
        %5567 = vst [vmem:[#allocation4 + $0xa8] sm:$0xff] %v5535
        %5568 = vst [vmem:[#allocation4 + $0xb0] sm:$0xff] %v5536
        %5569 = vst [vmem:[#allocation4 + $0xb8] sm:$0xff] %v5537
        %5570 = vst [vmem:[#allocation4 + $0xc0] sm:$0xff] %v5538
        %5571 = vst [vmem:[#allocation4 + $0xc8] sm:$0xff] %v5539
        %5572 = vst [vmem:[#allocation4 + $0xd0] sm:$0xff] %v5540
        %5573 = vst [vmem:[#allocation4 + $0xd8] sm:$0xff] %v5541
        %5574 = vst [vmem:[#allocation4 + $0xe0] sm:$0xff] %v5542
        %5575 = vst [vmem:[#allocation4 + $0xe8] sm:$0xff] %v5543
        %5576 = vst [vmem:[#allocation4 + $0xf0] sm:$0xff] %v5544
        %5577 = vst [vmem:[#allocation4 + $0xf8] sm:$0xff] %v5545
        %v5578 = vld [vmem:[%s3760 + $0x2] sm:$0xff]
        %v5579 = vld [vmem:[%s3760 + $0xa] sm:$0xff]
        %v5580 = vld [vmem:[%s3760 + $0x1a] sm:$0xff]
        %v5581 = vld [vmem:[%s3760 + $0x22] sm:$0xff]
        %v5582 = vld [vmem:[%s3760 + $0x32] sm:$0xff]
        %v5583 = vld [vmem:[%s3760 + $0x3a] sm:$0xff]
        %v5584 = vld [vmem:[%s3760 + $0x4a] sm:$0xff]
        %v5585 = vld [vmem:[%s3760 + $0x52] sm:$0xff]
        %v5586 = vld [vmem:[%s3760 + $0x62] sm:$0xff]
        %v5587 = vld [vmem:[%s3760 + $0x6a] sm:$0xff]
        %v5588 = vld [vmem:[%s3760 + $0x7a] sm:$0xff]
        %v5589 = vld [vmem:[%s3760 + $0x82] sm:$0xff]
        %v5590 = vld [vmem:[%s3760 + $0x92] sm:$0xff]
        %v5591 = vld [vmem:[%s3760 + $0x9a] sm:$0xff]
        %v5592 = vld [vmem:[%s3760 + $0xaa] sm:$0xff]
        %v5593 = vld [vmem:[%s3760 + $0xb2] sm:$0xff]
        %v5594 = vld [vmem:[%s3760 + $0xc2] sm:$0xff]
        %v5595 = vld [vmem:[%s3760 + $0xca] sm:$0xff]
        %v5596 = vld [vmem:[%s3760 + $0xda] sm:$0xff]
        %v5597 = vld [vmem:[%s3760 + $0xe2] sm:$0xff]
        %v5598 = vld [vmem:[%s3760 + $0xf2] sm:$0xff]
        %v5599 = vld [vmem:[%s3760 + $0xfa] sm:$0xff]
        %v5600 = vld [vmem:[%s3760 + $0x10a] sm:$0xff]
        %v5601 = vld [vmem:[%s3760 + $0x112] sm:$0xff]
        %v5602 = vld [vmem:[%s3760 + $0x122] sm:$0xff]
        %v5603 = vld [vmem:[%s3760 + $0x12a] sm:$0xff]
        %v5604 = vld [vmem:[%s3760 + $0x13a] sm:$0xff]
        %v5605 = vld [vmem:[%s3760 + $0x142] sm:$0xff]
        %v5606 = vld [vmem:[%s3760 + $0x152] sm:$0xff]
        %v5607 = vld [vmem:[%s3760 + $0x15a] sm:$0xff]
        %v5608 = vld [vmem:[%s3760 + $0x16a] sm:$0xff]
        %v5609 = vld [vmem:[%s3760 + $0x172] sm:$0xff]
        %s5610 = scalar_lea.vmem [#allocation5], 640
        %v5611 = vld [vmem:[%s5610] sm:$0xff]
        %v5612 = vld [vmem:[%s5610 + $0x8] sm:$0xff]
        %v5613 = vld [vmem:[%s5610 + $0x10] sm:$0xff]
        %v5614 = vld [vmem:[%s5610 + $0x18] sm:$0xff]
        %v5615 = vld [vmem:[%s5610 + $0x20] sm:$0xff]
        %v5616 = vld [vmem:[%s5610 + $0x28] sm:$0xff]
        %v5617 = vld [vmem:[%s5610 + $0x30] sm:$0xff]
        %v5618 = vld [vmem:[%s5610 + $0x38] sm:$0xff]
        %v5619 = vld [vmem:[%s5610 + $0x40] sm:$0xff]
        %v5620 = vld [vmem:[%s5610 + $0x48] sm:$0xff]
        %v5621 = vld [vmem:[%s5610 + $0x50] sm:$0xff]
        %v5622 = vld [vmem:[%s5610 + $0x58] sm:$0xff]
        %v5623 = vld [vmem:[%s5610 + $0x60] sm:$0xff]
        %v5624 = vld [vmem:[%s5610 + $0x68] sm:$0xff]
        %v5625 = vld [vmem:[%s5610 + $0x70] sm:$0xff]
        %v5626 = vld [vmem:[%s5610 + $0x78] sm:$0xff]
        %5627 = vmatprep.subr.mxu0 0.0
        %5628 = vmatpush1.msra.mxu0 %v5626
        %5629 = vmatprep.subr.mxu0 0.0
        %5630 = vmatpush1.msra.mxu0 %v5625
        %5631 = vmatprep.subr.mxu0 0.0
        %5632 = vmatpush1.msra.mxu0 %v5624
        %5633 = vmatprep.subr.mxu0 0.0
        %5634 = vmatpush1.msra.mxu0 %v5623
        %5635 = vmatprep.subr.mxu0 0.0
        %5636 = vmatpush1.msra.mxu0 %v5622
        %5637 = vmatprep.subr.mxu0 0.0
        %5638 = vmatpush1.msra.mxu0 %v5621
        %5639 = vmatprep.subr.mxu0 0.0
        %5640 = vmatpush1.msra.mxu0 %v5620
        %5641 = vmatprep.subr.mxu0 0.0
        %5642 = vmatpush1.msra.mxu0 %v5619
        %5643 = vmatprep.subr.mxu0 0.0
        %5644 = vmatpush1.msra.mxu0 %v5618
        %5645 = vmatprep.subr.mxu0 0.0
        %5646 = vmatpush1.msra.mxu0 %v5617
        %5647 = vmatprep.subr.mxu0 0.0
        %5648 = vmatpush1.msra.mxu0 %v5616
        %5649 = vmatprep.subr.mxu0 0.0
        %5650 = vmatpush1.msra.mxu0 %v5615
        %5651 = vmatprep.subr.mxu0 0.0
        %5652 = vmatpush1.msra.mxu0 %v5614
        %5653 = vmatprep.subr.mxu0 0.0
        %5654 = vmatpush1.msra.mxu0 %v5613
        %5655 = vmatprep.subr.mxu0 0.0
        %5656 = vmatpush1.msra.mxu0 %v5612
        %5657 = vmatprep.subr.mxu0 0.0
        %5658 = vmatpush1.msra.mxu0 %v5611
        %5659 = vmatprep.subr.mxu0 0.0
        %5660 = vmatpush2.msra.mxu0 0.0
        %5661 = vmatprep.subr.mxu0 0.0
        %5662 = vmatpush2.msra.mxu0 0.0
        %5663 = vmatprep.subr.mxu0 0.0
        %5664 = vmatpush2.msra.mxu0 0.0
        %5665 = vmatprep.subr.mxu0 0.0
        %5666 = vmatpush2.msra.mxu0 0.0
        %5667 = vmatprep.subr.mxu0 0.0
        %5668 = vmatpush2.msra.mxu0 0.0
        %5669 = vmatprep.subr.mxu0 0.0
        %5670 = vmatpush2.msra.mxu0 0.0
        %5671 = vmatprep.subr.mxu0 0.0
        %5672 = vmatpush2.msra.mxu0 0.0
        %5673 = vmatprep.subr.mxu0 0.0
        %5674 = vmatpush2.msra.mxu0 0.0
        %5675 = vmatprep.subr.mxu0 0.0
        %5676 = vmatpush2.msra.mxu0 0.0
        %5677 = vmatprep.subr.mxu0 0.0
        %5678 = vmatpush2.msra.mxu0 0.0
        %5679 = vmatprep.subr.mxu0 0.0
        %5680 = vmatpush2.msra.mxu0 0.0
        %5681 = vmatprep.subr.mxu0 0.0
        %5682 = vmatpush2.msra.mxu0 0.0
        %5683 = vmatprep.subr.mxu0 0.0
        %5684 = vmatpush2.msra.mxu0 0.0
        %5685 = vmatprep.subr.mxu0 0.0
        %5686 = vmatpush2.msra.mxu0 0.0
        %5687 = vmatprep.subr.mxu0 0.0
        %5688 = vmatpush2.msra.mxu0 0.0
        %5689 = vmatprep.subr.mxu0 0.0
        %5690 = vmatpush2.msra.mxu0 0.0
        %5691 = vmatprep.mubr.f32.mxu0 0.0
        %5692 = vmatmul.mubr.f32.gmra.mxu0 %v5578
        %v5693 = vpop.f32.mrf.mxu0
        %v5694 = vadd.f32 0.0, %v5693
        %v5695 = vpop.f32.mrf.mxu0
        %5696 = vmatprep.mubr.f32.mxu0 0.0
        %5697 = vmatmul.mubr.f32.gmra.mxu0 %v5579
        %v5698 = vpop.f32.mrf.mxu0
        %v5699 = vadd.f32 0.0, %v5698
        %v5700 = vpop.f32.mrf.mxu0
        %5701 = vmatprep.mubr.f32.mxu0 0.0
        %5702 = vmatmul.mubr.f32.gmra.mxu0 %v5580
        %v5703 = vpop.f32.mrf.mxu0
        %v5704 = vadd.f32 0.0, %v5703
        %v5705 = vpop.f32.mrf.mxu0
        %5706 = vmatprep.mubr.f32.mxu0 0.0
        %5707 = vmatmul.mubr.f32.gmra.mxu0 %v5581
        %v5708 = vpop.f32.mrf.mxu0
        %v5709 = vadd.f32 0.0, %v5708
        %v5710 = vpop.f32.mrf.mxu0
        %5711 = vmatprep.mubr.f32.mxu0 0.0
        %5712 = vmatmul.mubr.f32.gmra.mxu0 %v5582
        %v5713 = vpop.f32.mrf.mxu0
        %v5714 = vadd.f32 0.0, %v5713
        %v5715 = vpop.f32.mrf.mxu0
        %5716 = vmatprep.mubr.f32.mxu0 0.0
        %5717 = vmatmul.mubr.f32.gmra.mxu0 %v5583
        %v5718 = vpop.f32.mrf.mxu0
        %v5719 = vadd.f32 0.0, %v5718
        %v5720 = vpop.f32.mrf.mxu0
        %5721 = vmatprep.mubr.f32.mxu0 0.0
        %5722 = vmatmul.mubr.f32.gmra.mxu0 %v5584
        %v5723 = vpop.f32.mrf.mxu0
        %v5724 = vadd.f32 0.0, %v5723
        %v5725 = vpop.f32.mrf.mxu0
        %5726 = vmatprep.mubr.f32.mxu0 0.0
        %5727 = vmatmul.mubr.f32.gmra.mxu0 %v5585
        %v5728 = vpop.f32.mrf.mxu0
        %v5729 = vadd.f32 0.0, %v5728
        %v5730 = vpop.f32.mrf.mxu0
        %5731 = vmatprep.mubr.f32.mxu0 0.0
        %5732 = vmatmul.mubr.f32.gmra.mxu0 %v5586
        %v5733 = vpop.f32.mrf.mxu0
        %v5734 = vadd.f32 0.0, %v5733
        %v5735 = vpop.f32.mrf.mxu0
        %5736 = vmatprep.mubr.f32.mxu0 0.0
        %5737 = vmatmul.mubr.f32.gmra.mxu0 %v5587
        %v5738 = vpop.f32.mrf.mxu0
        %v5739 = vadd.f32 0.0, %v5738
        %v5740 = vpop.f32.mrf.mxu0
        %5741 = vmatprep.mubr.f32.mxu0 0.0
        %5742 = vmatmul.mubr.f32.gmra.mxu0 %v5588
        %v5743 = vpop.f32.mrf.mxu0
        %v5744 = vadd.f32 0.0, %v5743
        %v5745 = vpop.f32.mrf.mxu0
        %5746 = vmatprep.mubr.f32.mxu0 0.0
        %5747 = vmatmul.mubr.f32.gmra.mxu0 %v5589
        %v5748 = vpop.f32.mrf.mxu0
        %v5749 = vadd.f32 0.0, %v5748
        %v5750 = vpop.f32.mrf.mxu0
        %5751 = vmatprep.mubr.f32.mxu0 0.0
        %5752 = vmatmul.mubr.f32.gmra.mxu0 %v5590
        %v5753 = vpop.f32.mrf.mxu0
        %v5754 = vadd.f32 0.0, %v5753
        %v5755 = vpop.f32.mrf.mxu0
        %5756 = vmatprep.mubr.f32.mxu0 0.0
        %5757 = vmatmul.mubr.f32.gmra.mxu0 %v5591
        %v5758 = vpop.f32.mrf.mxu0
        %v5759 = vadd.f32 0.0, %v5758
        %v5760 = vpop.f32.mrf.mxu0
        %5761 = vmatprep.mubr.f32.mxu0 0.0
        %5762 = vmatmul.mubr.f32.gmra.mxu0 %v5592
        %v5763 = vpop.f32.mrf.mxu0
        %v5764 = vadd.f32 0.0, %v5763
        %v5765 = vpop.f32.mrf.mxu0
        %5766 = vmatprep.mubr.f32.mxu0 0.0
        %5767 = vmatmul.mubr.f32.gmra.mxu0 %v5593
        %v5768 = vpop.f32.mrf.mxu0
        %v5769 = vadd.f32 0.0, %v5768
        %v5770 = vpop.f32.mrf.mxu0
        %5771 = vmatprep.mubr.f32.mxu0 0.0
        %5772 = vmatmul.mubr.f32.gmra.mxu0 %v5594
        %v5773 = vpop.f32.mrf.mxu0
        %v5774 = vadd.f32 0.0, %v5773
        %v5775 = vpop.f32.mrf.mxu0
        %5776 = vmatprep.mubr.f32.mxu0 0.0
        %5777 = vmatmul.mubr.f32.gmra.mxu0 %v5595
        %v5778 = vpop.f32.mrf.mxu0
        %v5779 = vadd.f32 0.0, %v5778
        %v5780 = vpop.f32.mrf.mxu0
        %5781 = vmatprep.mubr.f32.mxu0 0.0
        %5782 = vmatmul.mubr.f32.gmra.mxu0 %v5596
        %v5783 = vpop.f32.mrf.mxu0
        %v5784 = vadd.f32 0.0, %v5783
        %v5785 = vpop.f32.mrf.mxu0
        %5786 = vmatprep.mubr.f32.mxu0 0.0
        %5787 = vmatmul.mubr.f32.gmra.mxu0 %v5597
        %v5788 = vpop.f32.mrf.mxu0
        %v5789 = vadd.f32 0.0, %v5788
        %v5790 = vpop.f32.mrf.mxu0
        %5791 = vmatprep.mubr.f32.mxu0 0.0
        %5792 = vmatmul.mubr.f32.gmra.mxu0 %v5598
        %v5793 = vpop.f32.mrf.mxu0
        %v5794 = vadd.f32 0.0, %v5793
        %v5795 = vpop.f32.mrf.mxu0
        %5796 = vmatprep.mubr.f32.mxu0 0.0
        %5797 = vmatmul.mubr.f32.gmra.mxu0 %v5599
        %v5798 = vpop.f32.mrf.mxu0
        %v5799 = vadd.f32 0.0, %v5798
        %v5800 = vpop.f32.mrf.mxu0
        %5801 = vmatprep.mubr.f32.mxu0 0.0
        %5802 = vmatmul.mubr.f32.gmra.mxu0 %v5600
        %v5803 = vpop.f32.mrf.mxu0
        %v5804 = vadd.f32 0.0, %v5803
        %v5805 = vpop.f32.mrf.mxu0
        %5806 = vmatprep.mubr.f32.mxu0 0.0
        %5807 = vmatmul.mubr.f32.gmra.mxu0 %v5601
        %v5808 = vpop.f32.mrf.mxu0
        %v5809 = vadd.f32 0.0, %v5808
        %v5810 = vpop.f32.mrf.mxu0
        %5811 = vmatprep.mubr.f32.mxu0 0.0
        %5812 = vmatmul.mubr.f32.gmra.mxu0 %v5602
        %v5813 = vpop.f32.mrf.mxu0
        %v5814 = vadd.f32 0.0, %v5813
        %v5815 = vpop.f32.mrf.mxu0
        %5816 = vmatprep.mubr.f32.mxu0 0.0
        %5817 = vmatmul.mubr.f32.gmra.mxu0 %v5603
        %v5818 = vpop.f32.mrf.mxu0
        %v5819 = vadd.f32 0.0, %v5818
        %v5820 = vpop.f32.mrf.mxu0
        %5821 = vmatprep.mubr.f32.mxu0 0.0
        %5822 = vmatmul.mubr.f32.gmra.mxu0 %v5604
        %v5823 = vpop.f32.mrf.mxu0
        %v5824 = vadd.f32 0.0, %v5823
        %v5825 = vpop.f32.mrf.mxu0
        %5826 = vmatprep.mubr.f32.mxu0 0.0
        %5827 = vmatmul.mubr.f32.gmra.mxu0 %v5605
        %v5828 = vpop.f32.mrf.mxu0
        %v5829 = vadd.f32 0.0, %v5828
        %v5830 = vpop.f32.mrf.mxu0
        %5831 = vmatprep.mubr.f32.mxu0 0.0
        %5832 = vmatmul.mubr.f32.gmra.mxu0 %v5606
        %v5833 = vpop.f32.mrf.mxu0
        %v5834 = vadd.f32 0.0, %v5833
        %v5835 = vpop.f32.mrf.mxu0
        %5836 = vmatprep.mubr.f32.mxu0 0.0
        %5837 = vmatmul.mubr.f32.gmra.mxu0 %v5607
        %v5838 = vpop.f32.mrf.mxu0
        %v5839 = vadd.f32 0.0, %v5838
        %v5840 = vpop.f32.mrf.mxu0
        %5841 = vmatprep.mubr.f32.mxu0 0.0
        %5842 = vmatmul.mubr.f32.gmra.mxu0 %v5608
        %v5843 = vpop.f32.mrf.mxu0
        %v5844 = vadd.f32 0.0, %v5843
        %v5845 = vpop.f32.mrf.mxu0
        %5846 = vmatprep.mubr.f32.mxu0 0.0
        %5847 = vmatmul.mubr.f32.gmra.mxu0 %v5609
        %v5848 = vpop.f32.mrf.mxu0
        %v5849 = vadd.f32 0.0, %v5848
        %v5850 = vpop.f32.mrf.mxu0
        %5851 = vdwg.mxu0
        %v5852 = vld [vmem:[#allocation4] sm:$0xff]
        %v5853 = vld [vmem:[#allocation4 + $0x8] sm:$0xff]
        %v5854 = vld [vmem:[#allocation4 + $0x10] sm:$0xff]
        %v5855 = vld [vmem:[#allocation4 + $0x18] sm:$0xff]
        %v5856 = vld [vmem:[#allocation4 + $0x20] sm:$0xff]
        %v5857 = vld [vmem:[#allocation4 + $0x28] sm:$0xff]
        %v5858 = vld [vmem:[#allocation4 + $0x30] sm:$0xff]
        %v5859 = vld [vmem:[#allocation4 + $0x38] sm:$0xff]
        %v5860 = vld [vmem:[#allocation4 + $0x40] sm:$0xff]
        %v5861 = vld [vmem:[#allocation4 + $0x48] sm:$0xff]
        %v5862 = vld [vmem:[#allocation4 + $0x50] sm:$0xff]
        %v5863 = vld [vmem:[#allocation4 + $0x58] sm:$0xff]
        %v5864 = vld [vmem:[#allocation4 + $0x60] sm:$0xff]
        %v5865 = vld [vmem:[#allocation4 + $0x68] sm:$0xff]
        %v5866 = vld [vmem:[#allocation4 + $0x70] sm:$0xff]
        %v5867 = vld [vmem:[#allocation4 + $0x78] sm:$0xff]
        %v5868 = vld [vmem:[#allocation4 + $0x80] sm:$0xff]
        %v5869 = vld [vmem:[#allocation4 + $0x88] sm:$0xff]
        %v5870 = vld [vmem:[#allocation4 + $0x90] sm:$0xff]
        %v5871 = vld [vmem:[#allocation4 + $0x98] sm:$0xff]
        %v5872 = vld [vmem:[#allocation4 + $0xa0] sm:$0xff]
        %v5873 = vld [vmem:[#allocation4 + $0xa8] sm:$0xff]
        %v5874 = vld [vmem:[#allocation4 + $0xb0] sm:$0xff]
        %v5875 = vld [vmem:[#allocation4 + $0xb8] sm:$0xff]
        %v5876 = vld [vmem:[#allocation4 + $0xc0] sm:$0xff]
        %v5877 = vld [vmem:[#allocation4 + $0xc8] sm:$0xff]
        %v5878 = vld [vmem:[#allocation4 + $0xd0] sm:$0xff]
        %v5879 = vld [vmem:[#allocation4 + $0xd8] sm:$0xff]
        %v5880 = vld [vmem:[#allocation4 + $0xe0] sm:$0xff]
        %v5881 = vld [vmem:[#allocation4 + $0xe8] sm:$0xff]
        %v5882 = vld [vmem:[#allocation4 + $0xf0] sm:$0xff]
        %v5883 = vld [vmem:[#allocation4 + $0xf8] sm:$0xff]
        %v5884 = vadd.f32 %v5852, %v5694
        %v5885 = vadd.f32 %v5853, %v5699
        %v5886 = vadd.f32 %v5854, %v5704
        %v5887 = vadd.f32 %v5855, %v5709
        %v5888 = vadd.f32 %v5856, %v5714
        %v5889 = vadd.f32 %v5857, %v5719
        %v5890 = vadd.f32 %v5858, %v5724
        %v5891 = vadd.f32 %v5859, %v5729
        %v5892 = vadd.f32 %v5860, %v5734
        %v5893 = vadd.f32 %v5861, %v5739
        %v5894 = vadd.f32 %v5862, %v5744
        %v5895 = vadd.f32 %v5863, %v5749
        %v5896 = vadd.f32 %v5864, %v5754
        %v5897 = vadd.f32 %v5865, %v5759
        %v5898 = vadd.f32 %v5866, %v5764
        %v5899 = vadd.f32 %v5867, %v5769
        %v5900 = vadd.f32 %v5868, %v5774
        %v5901 = vadd.f32 %v5869, %v5779
        %v5902 = vadd.f32 %v5870, %v5784
        %v5903 = vadd.f32 %v5871, %v5789
        %v5904 = vadd.f32 %v5872, %v5794
        %v5905 = vadd.f32 %v5873, %v5799
        %v5906 = vadd.f32 %v5874, %v5804
        %v5907 = vadd.f32 %v5875, %v5809
        %v5908 = vadd.f32 %v5876, %v5814
        %v5909 = vadd.f32 %v5877, %v5819
        %v5910 = vadd.f32 %v5878, %v5824
        %v5911 = vadd.f32 %v5879, %v5829
        %v5912 = vadd.f32 %v5880, %v5834
        %v5913 = vadd.f32 %v5881, %v5839
        %v5914 = vadd.f32 %v5882, %v5844
        %v5915 = vadd.f32 %v5883, %v5849
        %5916 = vst [vmem:[#allocation4] sm:$0xff] %v5884
        %5917 = vst [vmem:[#allocation4 + $0x8] sm:$0xff] %v5885
        %5918 = vst [vmem:[#allocation4 + $0x10] sm:$0xff] %v5886
        %5919 = vst [vmem:[#allocation4 + $0x18] sm:$0xff] %v5887
        %5920 = vst [vmem:[#allocation4 + $0x20] sm:$0xff] %v5888
        %5921 = vst [vmem:[#allocation4 + $0x28] sm:$0xff] %v5889
        %5922 = vst [vmem:[#allocation4 + $0x30] sm:$0xff] %v5890
        %5923 = vst [vmem:[#allocation4 + $0x38] sm:$0xff] %v5891
        %5924 = vst [vmem:[#allocation4 + $0x40] sm:$0xff] %v5892
        %5925 = vst [vmem:[#allocation4 + $0x48] sm:$0xff] %v5893
        %5926 = vst [vmem:[#allocation4 + $0x50] sm:$0xff] %v5894
        %5927 = vst [vmem:[#allocation4 + $0x58] sm:$0xff] %v5895
        %5928 = vst [vmem:[#allocation4 + $0x60] sm:$0xff] %v5896
        %5929 = vst [vmem:[#allocation4 + $0x68] sm:$0xff] %v5897
        %5930 = vst [vmem:[#allocation4 + $0x70] sm:$0xff] %v5898
        %5931 = vst [vmem:[#allocation4 + $0x78] sm:$0xff] %v5899
        %5932 = vst [vmem:[#allocation4 + $0x80] sm:$0xff] %v5900
        %5933 = vst [vmem:[#allocation4 + $0x88] sm:$0xff] %v5901
        %5934 = vst [vmem:[#allocation4 + $0x90] sm:$0xff] %v5902
        %5935 = vst [vmem:[#allocation4 + $0x98] sm:$0xff] %v5903
        %5936 = vst [vmem:[#allocation4 + $0xa0] sm:$0xff] %v5904
        %5937 = vst [vmem:[#allocation4 + $0xa8] sm:$0xff] %v5905
        %5938 = vst [vmem:[#allocation4 + $0xb0] sm:$0xff] %v5906
        %5939 = vst [vmem:[#allocation4 + $0xb8] sm:$0xff] %v5907
        %5940 = vst [vmem:[#allocation4 + $0xc0] sm:$0xff] %v5908
        %5941 = vst [vmem:[#allocation4 + $0xc8] sm:$0xff] %v5909
        %5942 = vst [vmem:[#allocation4 + $0xd0] sm:$0xff] %v5910
        %5943 = vst [vmem:[#allocation4 + $0xd8] sm:$0xff] %v5911
        %5944 = vst [vmem:[#allocation4 + $0xe0] sm:$0xff] %v5912
        %5945 = vst [vmem:[#allocation4 + $0xe8] sm:$0xff] %v5913
        %5946 = vst [vmem:[#allocation4 + $0xf0] sm:$0xff] %v5914
        %5947 = vst [vmem:[#allocation4 + $0xf8] sm:$0xff] %v5915
        %s5948 = scalar_lea.vmem [#allocation3], 48
        %v5949 = vld [vmem:[%s5948] sm:$0xff]
        %v5950 = vld [vmem:[%s5948 + $0x8] sm:$0xff]
        %v5951 = vld [vmem:[%s5948 + $0x18] sm:$0xff]
        %v5952 = vld [vmem:[%s5948 + $0x20] sm:$0xff]
        %v5953 = vld [vmem:[%s5948 + $0x30] sm:$0xff]
        %v5954 = vld [vmem:[%s5948 + $0x38] sm:$0xff]
        %v5955 = vld [vmem:[%s5948 + $0x48] sm:$0xff]
        %v5956 = vld [vmem:[%s5948 + $0x50] sm:$0xff]
        %v5957 = vld [vmem:[%s5948 + $0x60] sm:$0xff]
        %v5958 = vld [vmem:[%s5948 + $0x68] sm:$0xff]
        %v5959 = vld [vmem:[%s5948 + $0x78] sm:$0xff]
        %v5960 = vld [vmem:[%s5948 + $0x80] sm:$0xff]
        %v5961 = vld [vmem:[%s5948 + $0x90] sm:$0xff]
        %v5962 = vld [vmem:[%s5948 + $0x98] sm:$0xff]
        %v5963 = vld [vmem:[%s5948 + $0xa8] sm:$0xff]
        %v5964 = vld [vmem:[%s5948 + $0xb0] sm:$0xff]
        %v5965 = vld [vmem:[%s5948 + $0xc0] sm:$0xff]
        %v5966 = vld [vmem:[%s5948 + $0xc8] sm:$0xff]
        %v5967 = vld [vmem:[%s5948 + $0xd8] sm:$0xff]
        %v5968 = vld [vmem:[%s5948 + $0xe0] sm:$0xff]
        %v5969 = vld [vmem:[%s5948 + $0xf0] sm:$0xff]
        %v5970 = vld [vmem:[%s5948 + $0xf8] sm:$0xff]
        %v5971 = vld [vmem:[%s5948 + $0x108] sm:$0xff]
        %v5972 = vld [vmem:[%s5948 + $0x110] sm:$0xff]
        %v5973 = vld [vmem:[%s5948 + $0x120] sm:$0xff]
        %v5974 = vld [vmem:[%s5948 + $0x128] sm:$0xff]
        %v5975 = vld [vmem:[%s5948 + $0x138] sm:$0xff]
        %v5976 = vld [vmem:[%s5948 + $0x140] sm:$0xff]
        %v5977 = vld [vmem:[%s5948 + $0x150] sm:$0xff]
        %v5978 = vld [vmem:[%s5948 + $0x158] sm:$0xff]
        %v5979 = vld [vmem:[%s5948 + $0x168] sm:$0xff]
        %v5980 = vld [vmem:[%s5948 + $0x170] sm:$0xff]
        %s5981 = scalar_lea.vmem [#allocation5], 768
        %v5982 = vld [vmem:[%s5981] sm:$0xff]
        %v5983 = vld [vmem:[%s5981 + $0x8] sm:$0xff]
        %v5984 = vld [vmem:[%s5981 + $0x10] sm:$0xff]
        %v5985 = vld [vmem:[%s5981 + $0x18] sm:$0xff]
        %v5986 = vld [vmem:[%s5981 + $0x20] sm:$0xff]
        %v5987 = vld [vmem:[%s5981 + $0x28] sm:$0xff]
        %v5988 = vld [vmem:[%s5981 + $0x30] sm:$0xff]
        %v5989 = vld [vmem:[%s5981 + $0x38] sm:$0xff]
        %v5990 = vld [vmem:[%s5981 + $0x40] sm:$0xff]
        %v5991 = vld [vmem:[%s5981 + $0x48] sm:$0xff]
        %v5992 = vld [vmem:[%s5981 + $0x50] sm:$0xff]
        %v5993 = vld [vmem:[%s5981 + $0x58] sm:$0xff]
        %v5994 = vld [vmem:[%s5981 + $0x60] sm:$0xff]
        %v5995 = vld [vmem:[%s5981 + $0x68] sm:$0xff]
        %v5996 = vld [vmem:[%s5981 + $0x70] sm:$0xff]
        %v5997 = vld [vmem:[%s5981 + $0x78] sm:$0xff]
        %5998 = vmatprep.subr.mxu0 0.0
        %5999 = vmatpush1.msra.mxu0 %v5997
        %6000 = vmatprep.subr.mxu0 0.0
        %6001 = vmatpush1.msra.mxu0 %v5996
        %6002 = vmatprep.subr.mxu0 0.0
        %6003 = vmatpush1.msra.mxu0 %v5995
        %6004 = vmatprep.subr.mxu0 0.0
        %6005 = vmatpush1.msra.mxu0 %v5994
        %6006 = vmatprep.subr.mxu0 0.0
        %6007 = vmatpush1.msra.mxu0 %v5993
        %6008 = vmatprep.subr.mxu0 0.0
        %6009 = vmatpush1.msra.mxu0 %v5992
        %6010 = vmatprep.subr.mxu0 0.0
        %6011 = vmatpush1.msra.mxu0 %v5991
        %6012 = vmatprep.subr.mxu0 0.0
        %6013 = vmatpush1.msra.mxu0 %v5990
        %6014 = vmatprep.subr.mxu0 0.0
        %6015 = vmatpush1.msra.mxu0 %v5989
        %6016 = vmatprep.subr.mxu0 0.0
        %6017 = vmatpush1.msra.mxu0 %v5988
        %6018 = vmatprep.subr.mxu0 0.0
        %6019 = vmatpush1.msra.mxu0 %v5987
        %6020 = vmatprep.subr.mxu0 0.0
        %6021 = vmatpush1.msra.mxu0 %v5986
        %6022 = vmatprep.subr.mxu0 0.0
        %6023 = vmatpush1.msra.mxu0 %v5985
        %6024 = vmatprep.subr.mxu0 0.0
        %6025 = vmatpush1.msra.mxu0 %v5984
        %6026 = vmatprep.subr.mxu0 0.0
        %6027 = vmatpush1.msra.mxu0 %v5983
        %6028 = vmatprep.subr.mxu0 0.0
        %6029 = vmatpush1.msra.mxu0 %v5982
        %6030 = vmatprep.subr.mxu0 0.0
        %6031 = vmatpush2.msra.mxu0 0.0
        %6032 = vmatprep.subr.mxu0 0.0
        %6033 = vmatpush2.msra.mxu0 0.0
        %6034 = vmatprep.subr.mxu0 0.0
        %6035 = vmatpush2.msra.mxu0 0.0
        %6036 = vmatprep.subr.mxu0 0.0
        %6037 = vmatpush2.msra.mxu0 0.0
        %6038 = vmatprep.subr.mxu0 0.0
        %6039 = vmatpush2.msra.mxu0 0.0
        %6040 = vmatprep.subr.mxu0 0.0
        %6041 = vmatpush2.msra.mxu0 0.0
        %6042 = vmatprep.subr.mxu0 0.0
        %6043 = vmatpush2.msra.mxu0 0.0
        %6044 = vmatprep.subr.mxu0 0.0
        %6045 = vmatpush2.msra.mxu0 0.0
        %6046 = vmatprep.subr.mxu0 0.0
        %6047 = vmatpush2.msra.mxu0 0.0
        %6048 = vmatprep.subr.mxu0 0.0
        %6049 = vmatpush2.msra.mxu0 0.0
        %6050 = vmatprep.subr.mxu0 0.0
        %6051 = vmatpush2.msra.mxu0 0.0
        %6052 = vmatprep.subr.mxu0 0.0
        %6053 = vmatpush2.msra.mxu0 0.0
        %6054 = vmatprep.subr.mxu0 0.0
        %6055 = vmatpush2.msra.mxu0 0.0
        %6056 = vmatprep.subr.mxu0 0.0
        %6057 = vmatpush2.msra.mxu0 0.0
        %6058 = vmatprep.subr.mxu0 0.0
        %6059 = vmatpush2.msra.mxu0 0.0
        %6060 = vmatprep.subr.mxu0 0.0
        %6061 = vmatpush2.msra.mxu0 0.0
        %6062 = vmatprep.mubr.f32.mxu0 0.0
        %6063 = vmatmul.mubr.f32.gmra.mxu0 %v5949
        %v6064 = vpop.f32.mrf.mxu0
        %v6065 = vadd.f32 0.0, %v6064
        %v6066 = vpop.f32.mrf.mxu0
        %6067 = vmatprep.mubr.f32.mxu0 0.0
        %6068 = vmatmul.mubr.f32.gmra.mxu0 %v5950
        %v6069 = vpop.f32.mrf.mxu0
        %v6070 = vadd.f32 0.0, %v6069
        %v6071 = vpop.f32.mrf.mxu0
        %6072 = vmatprep.mubr.f32.mxu0 0.0
        %6073 = vmatmul.mubr.f32.gmra.mxu0 %v5951
        %v6074 = vpop.f32.mrf.mxu0
        %v6075 = vadd.f32 0.0, %v6074
        %v6076 = vpop.f32.mrf.mxu0
        %6077 = vmatprep.mubr.f32.mxu0 0.0
        %6078 = vmatmul.mubr.f32.gmra.mxu0 %v5952
        %v6079 = vpop.f32.mrf.mxu0
        %v6080 = vadd.f32 0.0, %v6079
        %v6081 = vpop.f32.mrf.mxu0
        %6082 = vmatprep.mubr.f32.mxu0 0.0
        %6083 = vmatmul.mubr.f32.gmra.mxu0 %v5953
        %v6084 = vpop.f32.mrf.mxu0
        %v6085 = vadd.f32 0.0, %v6084
        %v6086 = vpop.f32.mrf.mxu0
        %6087 = vmatprep.mubr.f32.mxu0 0.0
        %6088 = vmatmul.mubr.f32.gmra.mxu0 %v5954
        %v6089 = vpop.f32.mrf.mxu0
        %v6090 = vadd.f32 0.0, %v6089
        %v6091 = vpop.f32.mrf.mxu0
        %6092 = vmatprep.mubr.f32.mxu0 0.0
        %6093 = vmatmul.mubr.f32.gmra.mxu0 %v5955
        %v6094 = vpop.f32.mrf.mxu0
        %v6095 = vadd.f32 0.0, %v6094
        %v6096 = vpop.f32.mrf.mxu0
        %6097 = vmatprep.mubr.f32.mxu0 0.0
        %6098 = vmatmul.mubr.f32.gmra.mxu0 %v5956
        %v6099 = vpop.f32.mrf.mxu0
        %v6100 = vadd.f32 0.0, %v6099
        %v6101 = vpop.f32.mrf.mxu0
        %6102 = vmatprep.mubr.f32.mxu0 0.0
        %6103 = vmatmul.mubr.f32.gmra.mxu0 %v5957
        %v6104 = vpop.f32.mrf.mxu0
        %v6105 = vadd.f32 0.0, %v6104
        %v6106 = vpop.f32.mrf.mxu0
        %6107 = vmatprep.mubr.f32.mxu0 0.0
        %6108 = vmatmul.mubr.f32.gmra.mxu0 %v5958
        %v6109 = vpop.f32.mrf.mxu0
        %v6110 = vadd.f32 0.0, %v6109
        %v6111 = vpop.f32.mrf.mxu0
        %6112 = vmatprep.mubr.f32.mxu0 0.0
        %6113 = vmatmul.mubr.f32.gmra.mxu0 %v5959
        %v6114 = vpop.f32.mrf.mxu0
        %v6115 = vadd.f32 0.0, %v6114
        %v6116 = vpop.f32.mrf.mxu0
        %6117 = vmatprep.mubr.f32.mxu0 0.0
        %6118 = vmatmul.mubr.f32.gmra.mxu0 %v5960
        %v6119 = vpop.f32.mrf.mxu0
        %v6120 = vadd.f32 0.0, %v6119
        %v6121 = vpop.f32.mrf.mxu0
        %6122 = vmatprep.mubr.f32.mxu0 0.0
        %6123 = vmatmul.mubr.f32.gmra.mxu0 %v5961
        %v6124 = vpop.f32.mrf.mxu0
        %v6125 = vadd.f32 0.0, %v6124
        %v6126 = vpop.f32.mrf.mxu0
        %6127 = vmatprep.mubr.f32.mxu0 0.0
        %6128 = vmatmul.mubr.f32.gmra.mxu0 %v5962
        %v6129 = vpop.f32.mrf.mxu0
        %v6130 = vadd.f32 0.0, %v6129
        %v6131 = vpop.f32.mrf.mxu0
        %6132 = vmatprep.mubr.f32.mxu0 0.0
        %6133 = vmatmul.mubr.f32.gmra.mxu0 %v5963
        %v6134 = vpop.f32.mrf.mxu0
        %v6135 = vadd.f32 0.0, %v6134
        %v6136 = vpop.f32.mrf.mxu0
        %6137 = vmatprep.mubr.f32.mxu0 0.0
        %6138 = vmatmul.mubr.f32.gmra.mxu0 %v5964
        %v6139 = vpop.f32.mrf.mxu0
        %v6140 = vadd.f32 0.0, %v6139
        %v6141 = vpop.f32.mrf.mxu0
        %6142 = vmatprep.mubr.f32.mxu0 0.0
        %6143 = vmatmul.mubr.f32.gmra.mxu0 %v5965
        %v6144 = vpop.f32.mrf.mxu0
        %v6145 = vadd.f32 0.0, %v6144
        %v6146 = vpop.f32.mrf.mxu0
        %6147 = vmatprep.mubr.f32.mxu0 0.0
        %6148 = vmatmul.mubr.f32.gmra.mxu0 %v5966
        %v6149 = vpop.f32.mrf.mxu0
        %v6150 = vadd.f32 0.0, %v6149
        %v6151 = vpop.f32.mrf.mxu0
        %6152 = vmatprep.mubr.f32.mxu0 0.0
        %6153 = vmatmul.mubr.f32.gmra.mxu0 %v5967
        %v6154 = vpop.f32.mrf.mxu0
        %v6155 = vadd.f32 0.0, %v6154
        %v6156 = vpop.f32.mrf.mxu0
        %6157 = vmatprep.mubr.f32.mxu0 0.0
        %6158 = vmatmul.mubr.f32.gmra.mxu0 %v5968
        %v6159 = vpop.f32.mrf.mxu0
        %v6160 = vadd.f32 0.0, %v6159
        %v6161 = vpop.f32.mrf.mxu0
        %6162 = vmatprep.mubr.f32.mxu0 0.0
        %6163 = vmatmul.mubr.f32.gmra.mxu0 %v5969
        %v6164 = vpop.f32.mrf.mxu0
        %v6165 = vadd.f32 0.0, %v6164
        %v6166 = vpop.f32.mrf.mxu0
        %6167 = vmatprep.mubr.f32.mxu0 0.0
        %6168 = vmatmul.mubr.f32.gmra.mxu0 %v5970
        %v6169 = vpop.f32.mrf.mxu0
        %v6170 = vadd.f32 0.0, %v6169
        %v6171 = vpop.f32.mrf.mxu0
        %6172 = vmatprep.mubr.f32.mxu0 0.0
        %6173 = vmatmul.mubr.f32.gmra.mxu0 %v5971
        %v6174 = vpop.f32.mrf.mxu0
        %v6175 = vadd.f32 0.0, %v6174
        %v6176 = vpop.f32.mrf.mxu0
        %6177 = vmatprep.mubr.f32.mxu0 0.0
        %6178 = vmatmul.mubr.f32.gmra.mxu0 %v5972
        %v6179 = vpop.f32.mrf.mxu0
        %v6180 = vadd.f32 0.0, %v6179
        %v6181 = vpop.f32.mrf.mxu0
        %6182 = vmatprep.mubr.f32.mxu0 0.0
        %6183 = vmatmul.mubr.f32.gmra.mxu0 %v5973
        %v6184 = vpop.f32.mrf.mxu0
        %v6185 = vadd.f32 0.0, %v6184
        %v6186 = vpop.f32.mrf.mxu0
        %6187 = vmatprep.mubr.f32.mxu0 0.0
        %6188 = vmatmul.mubr.f32.gmra.mxu0 %v5974
        %v6189 = vpop.f32.mrf.mxu0
        %v6190 = vadd.f32 0.0, %v6189
        %v6191 = vpop.f32.mrf.mxu0
        %6192 = vmatprep.mubr.f32.mxu0 0.0
        %6193 = vmatmul.mubr.f32.gmra.mxu0 %v5975
        %v6194 = vpop.f32.mrf.mxu0
        %v6195 = vadd.f32 0.0, %v6194
        %v6196 = vpop.f32.mrf.mxu0
        %6197 = vmatprep.mubr.f32.mxu0 0.0
        %6198 = vmatmul.mubr.f32.gmra.mxu0 %v5976
        %v6199 = vpop.f32.mrf.mxu0
        %v6200 = vadd.f32 0.0, %v6199
        %v6201 = vpop.f32.mrf.mxu0
        %6202 = vmatprep.mubr.f32.mxu0 0.0
        %6203 = vmatmul.mubr.f32.gmra.mxu0 %v5977
        %v6204 = vpop.f32.mrf.mxu0
        %v6205 = vadd.f32 0.0, %v6204
        %v6206 = vpop.f32.mrf.mxu0
        %6207 = vmatprep.mubr.f32.mxu0 0.0
        %6208 = vmatmul.mubr.f32.gmra.mxu0 %v5978
        %v6209 = vpop.f32.mrf.mxu0
        %v6210 = vadd.f32 0.0, %v6209
        %v6211 = vpop.f32.mrf.mxu0
        %6212 = vmatprep.mubr.f32.mxu0 0.0
        %6213 = vmatmul.mubr.f32.gmra.mxu0 %v5979
        %v6214 = vpop.f32.mrf.mxu0
        %v6215 = vadd.f32 0.0, %v6214
        %v6216 = vpop.f32.mrf.mxu0
        %6217 = vmatprep.mubr.f32.mxu0 0.0
        %6218 = vmatmul.mubr.f32.gmra.mxu0 %v5980
        %v6219 = vpop.f32.mrf.mxu0
        %v6220 = vadd.f32 0.0, %v6219
        %v6221 = vpop.f32.mrf.mxu0
        %6222 = vdwg.mxu0
        %v6223 = vld [vmem:[#allocation4] sm:$0xff]
        %v6224 = vld [vmem:[#allocation4 + $0x8] sm:$0xff]
        %v6225 = vld [vmem:[#allocation4 + $0x10] sm:$0xff]
        %v6226 = vld [vmem:[#allocation4 + $0x18] sm:$0xff]
        %v6227 = vld [vmem:[#allocation4 + $0x20] sm:$0xff]
        %v6228 = vld [vmem:[#allocation4 + $0x28] sm:$0xff]
        %v6229 = vld [vmem:[#allocation4 + $0x30] sm:$0xff]
        %v6230 = vld [vmem:[#allocation4 + $0x38] sm:$0xff]
        %v6231 = vld [vmem:[#allocation4 + $0x40] sm:$0xff]
        %v6232 = vld [vmem:[#allocation4 + $0x48] sm:$0xff]
        %v6233 = vld [vmem:[#allocation4 + $0x50] sm:$0xff]
        %v6234 = vld [vmem:[#allocation4 + $0x58] sm:$0xff]
        %v6235 = vld [vmem:[#allocation4 + $0x60] sm:$0xff]
        %v6236 = vld [vmem:[#allocation4 + $0x68] sm:$0xff]
        %v6237 = vld [vmem:[#allocation4 + $0x70] sm:$0xff]
        %v6238 = vld [vmem:[#allocation4 + $0x78] sm:$0xff]
        %v6239 = vld [vmem:[#allocation4 + $0x80] sm:$0xff]
        %v6240 = vld [vmem:[#allocation4 + $0x88] sm:$0xff]
        %v6241 = vld [vmem:[#allocation4 + $0x90] sm:$0xff]
        %v6242 = vld [vmem:[#allocation4 + $0x98] sm:$0xff]
        %v6243 = vld [vmem:[#allocation4 + $0xa0] sm:$0xff]
        %v6244 = vld [vmem:[#allocation4 + $0xa8] sm:$0xff]
        %v6245 = vld [vmem:[#allocation4 + $0xb0] sm:$0xff]
        %v6246 = vld [vmem:[#allocation4 + $0xb8] sm:$0xff]
        %v6247 = vld [vmem:[#allocation4 + $0xc0] sm:$0xff]
        %v6248 = vld [vmem:[#allocation4 + $0xc8] sm:$0xff]
        %v6249 = vld [vmem:[#allocation4 + $0xd0] sm:$0xff]
        %v6250 = vld [vmem:[#allocation4 + $0xd8] sm:$0xff]
        %v6251 = vld [vmem:[#allocation4 + $0xe0] sm:$0xff]
        %v6252 = vld [vmem:[#allocation4 + $0xe8] sm:$0xff]
        %v6253 = vld [vmem:[#allocation4 + $0xf0] sm:$0xff]
        %v6254 = vld [vmem:[#allocation4 + $0xf8] sm:$0xff]
        %v6255 = vadd.f32 %v6223, %v6065
        %v6256 = vadd.f32 %v6224, %v6070
        %v6257 = vadd.f32 %v6225, %v6075
        %v6258 = vadd.f32 %v6226, %v6080
        %v6259 = vadd.f32 %v6227, %v6085
        %v6260 = vadd.f32 %v6228, %v6090
        %v6261 = vadd.f32 %v6229, %v6095
        %v6262 = vadd.f32 %v6230, %v6100
        %v6263 = vadd.f32 %v6231, %v6105
        %v6264 = vadd.f32 %v6232, %v6110
        %v6265 = vadd.f32 %v6233, %v6115
        %v6266 = vadd.f32 %v6234, %v6120
        %v6267 = vadd.f32 %v6235, %v6125
        %v6268 = vadd.f32 %v6236, %v6130
        %v6269 = vadd.f32 %v6237, %v6135
        %v6270 = vadd.f32 %v6238, %v6140
        %v6271 = vadd.f32 %v6239, %v6145
        %v6272 = vadd.f32 %v6240, %v6150
        %v6273 = vadd.f32 %v6241, %v6155
        %v6274 = vadd.f32 %v6242, %v6160
        %v6275 = vadd.f32 %v6243, %v6165
        %v6276 = vadd.f32 %v6244, %v6170
        %v6277 = vadd.f32 %v6245, %v6175
        %v6278 = vadd.f32 %v6246, %v6180
        %v6279 = vadd.f32 %v6247, %v6185
        %v6280 = vadd.f32 %v6248, %v6190
        %v6281 = vadd.f32 %v6249, %v6195
        %v6282 = vadd.f32 %v6250, %v6200
        %v6283 = vadd.f32 %v6251, %v6205
        %v6284 = vadd.f32 %v6252, %v6210
        %v6285 = vadd.f32 %v6253, %v6215
        %v6286 = vadd.f32 %v6254, %v6220
        %6287 = vst [vmem:[#allocation4] sm:$0xff] %v6255
        %6288 = vst [vmem:[#allocation4 + $0x8] sm:$0xff] %v6256
        %6289 = vst [vmem:[#allocation4 + $0x10] sm:$0xff] %v6257
        %6290 = vst [vmem:[#allocation4 + $0x18] sm:$0xff] %v6258
        %6291 = vst [vmem:[#allocation4 + $0x20] sm:$0xff] %v6259
        %6292 = vst [vmem:[#allocation4 + $0x28] sm:$0xff] %v6260
        %6293 = vst [vmem:[#allocation4 + $0x30] sm:$0xff] %v6261
        %6294 = vst [vmem:[#allocation4 + $0x38] sm:$0xff] %v6262
        %6295 = vst [vmem:[#allocation4 + $0x40] sm:$0xff] %v6263
        %6296 = vst [vmem:[#allocation4 + $0x48] sm:$0xff] %v6264
        %6297 = vst [vmem:[#allocation4 + $0x50] sm:$0xff] %v6265
        %6298 = vst [vmem:[#allocation4 + $0x58] sm:$0xff] %v6266
        %6299 = vst [vmem:[#allocation4 + $0x60] sm:$0xff] %v6267
        %6300 = vst [vmem:[#allocation4 + $0x68] sm:$0xff] %v6268
        %6301 = vst [vmem:[#allocation4 + $0x70] sm:$0xff] %v6269
        %6302 = vst [vmem:[#allocation4 + $0x78] sm:$0xff] %v6270
        %6303 = vst [vmem:[#allocation4 + $0x80] sm:$0xff] %v6271
        %6304 = vst [vmem:[#allocation4 + $0x88] sm:$0xff] %v6272
        %6305 = vst [vmem:[#allocation4 + $0x90] sm:$0xff] %v6273
        %6306 = vst [vmem:[#allocation4 + $0x98] sm:$0xff] %v6274
        %6307 = vst [vmem:[#allocation4 + $0xa0] sm:$0xff] %v6275
        %6308 = vst [vmem:[#allocation4 + $0xa8] sm:$0xff] %v6276
        %6309 = vst [vmem:[#allocation4 + $0xb0] sm:$0xff] %v6277
        %6310 = vst [vmem:[#allocation4 + $0xb8] sm:$0xff] %v6278
        %6311 = vst [vmem:[#allocation4 + $0xc0] sm:$0xff] %v6279
        %6312 = vst [vmem:[#allocation4 + $0xc8] sm:$0xff] %v6280
        %6313 = vst [vmem:[#allocation4 + $0xd0] sm:$0xff] %v6281
        %6314 = vst [vmem:[#allocation4 + $0xd8] sm:$0xff] %v6282
        %6315 = vst [vmem:[#allocation4 + $0xe0] sm:$0xff] %v6283
        %6316 = vst [vmem:[#allocation4 + $0xe8] sm:$0xff] %v6284
        %6317 = vst [vmem:[#allocation4 + $0xf0] sm:$0xff] %v6285
        %6318 = vst [vmem:[#allocation4 + $0xf8] sm:$0xff] %v6286
        %v6319 = vld [vmem:[%s5948 + $0x1] sm:$0xff]
        %v6320 = vld [vmem:[%s5948 + $0x9] sm:$0xff]
        %v6321 = vld [vmem:[%s5948 + $0x19] sm:$0xff]
        %v6322 = vld [vmem:[%s5948 + $0x21] sm:$0xff]
        %v6323 = vld [vmem:[%s5948 + $0x31] sm:$0xff]
        %v6324 = vld [vmem:[%s5948 + $0x39] sm:$0xff]
        %v6325 = vld [vmem:[%s5948 + $0x49] sm:$0xff]
        %v6326 = vld [vmem:[%s5948 + $0x51] sm:$0xff]
        %v6327 = vld [vmem:[%s5948 + $0x61] sm:$0xff]
        %v6328 = vld [vmem:[%s5948 + $0x69] sm:$0xff]
        %v6329 = vld [vmem:[%s5948 + $0x79] sm:$0xff]
        %v6330 = vld [vmem:[%s5948 + $0x81] sm:$0xff]
        %v6331 = vld [vmem:[%s5948 + $0x91] sm:$0xff]
        %v6332 = vld [vmem:[%s5948 + $0x99] sm:$0xff]
        %v6333 = vld [vmem:[%s5948 + $0xa9] sm:$0xff]
        %v6334 = vld [vmem:[%s5948 + $0xb1] sm:$0xff]
        %v6335 = vld [vmem:[%s5948 + $0xc1] sm:$0xff]
        %v6336 = vld [vmem:[%s5948 + $0xc9] sm:$0xff]
        %v6337 = vld [vmem:[%s5948 + $0xd9] sm:$0xff]
        %v6338 = vld [vmem:[%s5948 + $0xe1] sm:$0xff]
        %v6339 = vld [vmem:[%s5948 + $0xf1] sm:$0xff]
        %v6340 = vld [vmem:[%s5948 + $0xf9] sm:$0xff]
        %v6341 = vld [vmem:[%s5948 + $0x109] sm:$0xff]
        %v6342 = vld [vmem:[%s5948 + $0x111] sm:$0xff]
        %v6343 = vld [vmem:[%s5948 + $0x121] sm:$0xff]
        %v6344 = vld [vmem:[%s5948 + $0x129] sm:$0xff]
        %v6345 = vld [vmem:[%s5948 + $0x139] sm:$0xff]
        %v6346 = vld [vmem:[%s5948 + $0x141] sm:$0xff]
        %v6347 = vld [vmem:[%s5948 + $0x151] sm:$0xff]
        %v6348 = vld [vmem:[%s5948 + $0x159] sm:$0xff]
        %v6349 = vld [vmem:[%s5948 + $0x169] sm:$0xff]
        %v6350 = vld [vmem:[%s5948 + $0x171] sm:$0xff]
        %s6351 = scalar_lea.vmem [#allocation5], 896
        %v6352 = vld [vmem:[%s6351] sm:$0xff]
        %v6353 = vld [vmem:[%s6351 + $0x8] sm:$0xff]
        %v6354 = vld [vmem:[%s6351 + $0x10] sm:$0xff]
        %v6355 = vld [vmem:[%s6351 + $0x18] sm:$0xff]
        %v6356 = vld [vmem:[%s6351 + $0x20] sm:$0xff]
        %v6357 = vld [vmem:[%s6351 + $0x28] sm:$0xff]
        %v6358 = vld [vmem:[%s6351 + $0x30] sm:$0xff]
        %v6359 = vld [vmem:[%s6351 + $0x38] sm:$0xff]
        %v6360 = vld [vmem:[%s6351 + $0x40] sm:$0xff]
        %v6361 = vld [vmem:[%s6351 + $0x48] sm:$0xff]
        %v6362 = vld [vmem:[%s6351 + $0x50] sm:$0xff]
        %v6363 = vld [vmem:[%s6351 + $0x58] sm:$0xff]
        %v6364 = vld [vmem:[%s6351 + $0x60] sm:$0xff]
        %v6365 = vld [vmem:[%s6351 + $0x68] sm:$0xff]
        %v6366 = vld [vmem:[%s6351 + $0x70] sm:$0xff]
        %v6367 = vld [vmem:[%s6351 + $0x78] sm:$0xff]
        %6368 = vmatprep.subr.mxu0 0.0
        %6369 = vmatpush1.msra.mxu0 %v6367
        %6370 = vmatprep.subr.mxu0 0.0
        %6371 = vmatpush1.msra.mxu0 %v6366
        %6372 = vmatprep.subr.mxu0 0.0
        %6373 = vmatpush1.msra.mxu0 %v6365
        %6374 = vmatprep.subr.mxu0 0.0
        %6375 = vmatpush1.msra.mxu0 %v6364
        %6376 = vmatprep.subr.mxu0 0.0
        %6377 = vmatpush1.msra.mxu0 %v6363
        %6378 = vmatprep.subr.mxu0 0.0
        %6379 = vmatpush1.msra.mxu0 %v6362
        %6380 = vmatprep.subr.mxu0 0.0
        %6381 = vmatpush1.msra.mxu0 %v6361
        %6382 = vmatprep.subr.mxu0 0.0
        %6383 = vmatpush1.msra.mxu0 %v6360
        %6384 = vmatprep.subr.mxu0 0.0
        %6385 = vmatpush1.msra.mxu0 %v6359
        %6386 = vmatprep.subr.mxu0 0.0
        %6387 = vmatpush1.msra.mxu0 %v6358
        %6388 = vmatprep.subr.mxu0 0.0
        %6389 = vmatpush1.msra.mxu0 %v6357
        %6390 = vmatprep.subr.mxu0 0.0
        %6391 = vmatpush1.msra.mxu0 %v6356
        %6392 = vmatprep.subr.mxu0 0.0
        %6393 = vmatpush1.msra.mxu0 %v6355
        %6394 = vmatprep.subr.mxu0 0.0
        %6395 = vmatpush1.msra.mxu0 %v6354
        %6396 = vmatprep.subr.mxu0 0.0
        %6397 = vmatpush1.msra.mxu0 %v6353
        %6398 = vmatprep.subr.mxu0 0.0
        %6399 = vmatpush1.msra.mxu0 %v6352
        %6400 = vmatprep.subr.mxu0 0.0
        %6401 = vmatpush2.msra.mxu0 0.0
        %6402 = vmatprep.subr.mxu0 0.0
        %6403 = vmatpush2.msra.mxu0 0.0
        %6404 = vmatprep.subr.mxu0 0.0
        %6405 = vmatpush2.msra.mxu0 0.0
        %6406 = vmatprep.subr.mxu0 0.0
        %6407 = vmatpush2.msra.mxu0 0.0
        %6408 = vmatprep.subr.mxu0 0.0
        %6409 = vmatpush2.msra.mxu0 0.0
        %6410 = vmatprep.subr.mxu0 0.0
        %6411 = vmatpush2.msra.mxu0 0.0
        %6412 = vmatprep.subr.mxu0 0.0
        %6413 = vmatpush2.msra.mxu0 0.0
        %6414 = vmatprep.subr.mxu0 0.0
        %6415 = vmatpush2.msra.mxu0 0.0
        %6416 = vmatprep.subr.mxu0 0.0
        %6417 = vmatpush2.msra.mxu0 0.0
        %6418 = vmatprep.subr.mxu0 0.0
        %6419 = vmatpush2.msra.mxu0 0.0
        %6420 = vmatprep.subr.mxu0 0.0
        %6421 = vmatpush2.msra.mxu0 0.0
        %6422 = vmatprep.subr.mxu0 0.0
        %6423 = vmatpush2.msra.mxu0 0.0
        %6424 = vmatprep.subr.mxu0 0.0
        %6425 = vmatpush2.msra.mxu0 0.0
        %6426 = vmatprep.subr.mxu0 0.0
        %6427 = vmatpush2.msra.mxu0 0.0
        %6428 = vmatprep.subr.mxu0 0.0
        %6429 = vmatpush2.msra.mxu0 0.0
        %6430 = vmatprep.subr.mxu0 0.0
        %6431 = vmatpush2.msra.mxu0 0.0
        %6432 = vmatprep.mubr.f32.mxu0 0.0
        %6433 = vmatmul.mubr.f32.gmra.mxu0 %v6319
        %v6434 = vpop.f32.mrf.mxu0
        %v6435 = vadd.f32 0.0, %v6434
        %v6436 = vpop.f32.mrf.mxu0
        %6437 = vmatprep.mubr.f32.mxu0 0.0
        %6438 = vmatmul.mubr.f32.gmra.mxu0 %v6320
        %v6439 = vpop.f32.mrf.mxu0
        %v6440 = vadd.f32 0.0, %v6439
        %v6441 = vpop.f32.mrf.mxu0
        %6442 = vmatprep.mubr.f32.mxu0 0.0
        %6443 = vmatmul.mubr.f32.gmra.mxu0 %v6321
        %v6444 = vpop.f32.mrf.mxu0
        %v6445 = vadd.f32 0.0, %v6444
        %v6446 = vpop.f32.mrf.mxu0
        %6447 = vmatprep.mubr.f32.mxu0 0.0
        %6448 = vmatmul.mubr.f32.gmra.mxu0 %v6322
        %v6449 = vpop.f32.mrf.mxu0
        %v6450 = vadd.f32 0.0, %v6449
        %v6451 = vpop.f32.mrf.mxu0
        %6452 = vmatprep.mubr.f32.mxu0 0.0
        %6453 = vmatmul.mubr.f32.gmra.mxu0 %v6323
        %v6454 = vpop.f32.mrf.mxu0
        %v6455 = vadd.f32 0.0, %v6454
        %v6456 = vpop.f32.mrf.mxu0
        %6457 = vmatprep.mubr.f32.mxu0 0.0
        %6458 = vmatmul.mubr.f32.gmra.mxu0 %v6324
        %v6459 = vpop.f32.mrf.mxu0
        %v6460 = vadd.f32 0.0, %v6459
        %v6461 = vpop.f32.mrf.mxu0
        %6462 = vmatprep.mubr.f32.mxu0 0.0
        %6463 = vmatmul.mubr.f32.gmra.mxu0 %v6325
        %v6464 = vpop.f32.mrf.mxu0
        %v6465 = vadd.f32 0.0, %v6464
        %v6466 = vpop.f32.mrf.mxu0
        %6467 = vmatprep.mubr.f32.mxu0 0.0
        %6468 = vmatmul.mubr.f32.gmra.mxu0 %v6326
        %v6469 = vpop.f32.mrf.mxu0
        %v6470 = vadd.f32 0.0, %v6469
        %v6471 = vpop.f32.mrf.mxu0
        %6472 = vmatprep.mubr.f32.mxu0 0.0
        %6473 = vmatmul.mubr.f32.gmra.mxu0 %v6327
        %v6474 = vpop.f32.mrf.mxu0
        %v6475 = vadd.f32 0.0, %v6474
        %v6476 = vpop.f32.mrf.mxu0
        %6477 = vmatprep.mubr.f32.mxu0 0.0
        %6478 = vmatmul.mubr.f32.gmra.mxu0 %v6328
        %v6479 = vpop.f32.mrf.mxu0
        %v6480 = vadd.f32 0.0, %v6479
        %v6481 = vpop.f32.mrf.mxu0
        %6482 = vmatprep.mubr.f32.mxu0 0.0
        %6483 = vmatmul.mubr.f32.gmra.mxu0 %v6329
        %v6484 = vpop.f32.mrf.mxu0
        %v6485 = vadd.f32 0.0, %v6484
        %v6486 = vpop.f32.mrf.mxu0
        %6487 = vmatprep.mubr.f32.mxu0 0.0
        %6488 = vmatmul.mubr.f32.gmra.mxu0 %v6330
        %v6489 = vpop.f32.mrf.mxu0
        %v6490 = vadd.f32 0.0, %v6489
        %v6491 = vpop.f32.mrf.mxu0
        %6492 = vmatprep.mubr.f32.mxu0 0.0
        %6493 = vmatmul.mubr.f32.gmra.mxu0 %v6331
        %v6494 = vpop.f32.mrf.mxu0
        %v6495 = vadd.f32 0.0, %v6494
        %v6496 = vpop.f32.mrf.mxu0
        %6497 = vmatprep.mubr.f32.mxu0 0.0
        %6498 = vmatmul.mubr.f32.gmra.mxu0 %v6332
        %v6499 = vpop.f32.mrf.mxu0
        %v6500 = vadd.f32 0.0, %v6499
        %v6501 = vpop.f32.mrf.mxu0
        %6502 = vmatprep.mubr.f32.mxu0 0.0
        %6503 = vmatmul.mubr.f32.gmra.mxu0 %v6333
        %v6504 = vpop.f32.mrf.mxu0
        %v6505 = vadd.f32 0.0, %v6504
        %v6506 = vpop.f32.mrf.mxu0
        %6507 = vmatprep.mubr.f32.mxu0 0.0
        %6508 = vmatmul.mubr.f32.gmra.mxu0 %v6334
        %v6509 = vpop.f32.mrf.mxu0
        %v6510 = vadd.f32 0.0, %v6509
        %v6511 = vpop.f32.mrf.mxu0
        %6512 = vmatprep.mubr.f32.mxu0 0.0
        %6513 = vmatmul.mubr.f32.gmra.mxu0 %v6335
        %v6514 = vpop.f32.mrf.mxu0
        %v6515 = vadd.f32 0.0, %v6514
        %v6516 = vpop.f32.mrf.mxu0
        %6517 = vmatprep.mubr.f32.mxu0 0.0
        %6518 = vmatmul.mubr.f32.gmra.mxu0 %v6336
        %v6519 = vpop.f32.mrf.mxu0
        %v6520 = vadd.f32 0.0, %v6519
        %v6521 = vpop.f32.mrf.mxu0
        %6522 = vmatprep.mubr.f32.mxu0 0.0
        %6523 = vmatmul.mubr.f32.gmra.mxu0 %v6337
        %v6524 = vpop.f32.mrf.mxu0
        %v6525 = vadd.f32 0.0, %v6524
        %v6526 = vpop.f32.mrf.mxu0
        %6527 = vmatprep.mubr.f32.mxu0 0.0
        %6528 = vmatmul.mubr.f32.gmra.mxu0 %v6338
        %v6529 = vpop.f32.mrf.mxu0
        %v6530 = vadd.f32 0.0, %v6529
        %v6531 = vpop.f32.mrf.mxu0
        %6532 = vmatprep.mubr.f32.mxu0 0.0
        %6533 = vmatmul.mubr.f32.gmra.mxu0 %v6339
        %v6534 = vpop.f32.mrf.mxu0
        %v6535 = vadd.f32 0.0, %v6534
        %v6536 = vpop.f32.mrf.mxu0
        %6537 = vmatprep.mubr.f32.mxu0 0.0
        %6538 = vmatmul.mubr.f32.gmra.mxu0 %v6340
        %v6539 = vpop.f32.mrf.mxu0
        %v6540 = vadd.f32 0.0, %v6539
        %v6541 = vpop.f32.mrf.mxu0
        %6542 = vmatprep.mubr.f32.mxu0 0.0
        %6543 = vmatmul.mubr.f32.gmra.mxu0 %v6341
        %v6544 = vpop.f32.mrf.mxu0
        %v6545 = vadd.f32 0.0, %v6544
        %v6546 = vpop.f32.mrf.mxu0
        %6547 = vmatprep.mubr.f32.mxu0 0.0
        %6548 = vmatmul.mubr.f32.gmra.mxu0 %v6342
        %v6549 = vpop.f32.mrf.mxu0
        %v6550 = vadd.f32 0.0, %v6549
        %v6551 = vpop.f32.mrf.mxu0
        %6552 = vmatprep.mubr.f32.mxu0 0.0
        %6553 = vmatmul.mubr.f32.gmra.mxu0 %v6343
        %v6554 = vpop.f32.mrf.mxu0
        %v6555 = vadd.f32 0.0, %v6554
        %v6556 = vpop.f32.mrf.mxu0
        %6557 = vmatprep.mubr.f32.mxu0 0.0
        %6558 = vmatmul.mubr.f32.gmra.mxu0 %v6344
        %v6559 = vpop.f32.mrf.mxu0
        %v6560 = vadd.f32 0.0, %v6559
        %v6561 = vpop.f32.mrf.mxu0
        %6562 = vmatprep.mubr.f32.mxu0 0.0
        %6563 = vmatmul.mubr.f32.gmra.mxu0 %v6345
        %v6564 = vpop.f32.mrf.mxu0
        %v6565 = vadd.f32 0.0, %v6564
        %v6566 = vpop.f32.mrf.mxu0
        %6567 = vmatprep.mubr.f32.mxu0 0.0
        %6568 = vmatmul.mubr.f32.gmra.mxu0 %v6346
        %v6569 = vpop.f32.mrf.mxu0
        %v6570 = vadd.f32 0.0, %v6569
        %v6571 = vpop.f32.mrf.mxu0
        %6572 = vmatprep.mubr.f32.mxu0 0.0
        %6573 = vmatmul.mubr.f32.gmra.mxu0 %v6347
        %v6574 = vpop.f32.mrf.mxu0
        %v6575 = vadd.f32 0.0, %v6574
        %v6576 = vpop.f32.mrf.mxu0
        %6577 = vmatprep.mubr.f32.mxu0 0.0
        %6578 = vmatmul.mubr.f32.gmra.mxu0 %v6348
        %v6579 = vpop.f32.mrf.mxu0
        %v6580 = vadd.f32 0.0, %v6579
        %v6581 = vpop.f32.mrf.mxu0
        %6582 = vmatprep.mubr.f32.mxu0 0.0
        %6583 = vmatmul.mubr.f32.gmra.mxu0 %v6349
        %v6584 = vpop.f32.mrf.mxu0
        %v6585 = vadd.f32 0.0, %v6584
        %v6586 = vpop.f32.mrf.mxu0
        %6587 = vmatprep.mubr.f32.mxu0 0.0
        %6588 = vmatmul.mubr.f32.gmra.mxu0 %v6350
        %v6589 = vpop.f32.mrf.mxu0
        %v6590 = vadd.f32 0.0, %v6589
        %v6591 = vpop.f32.mrf.mxu0
        %6592 = vdwg.mxu0
        %v6593 = vld [vmem:[#allocation4] sm:$0xff]
        %v6594 = vld [vmem:[#allocation4 + $0x8] sm:$0xff]
        %v6595 = vld [vmem:[#allocation4 + $0x10] sm:$0xff]
        %v6596 = vld [vmem:[#allocation4 + $0x18] sm:$0xff]
        %v6597 = vld [vmem:[#allocation4 + $0x20] sm:$0xff]
        %v6598 = vld [vmem:[#allocation4 + $0x28] sm:$0xff]
        %v6599 = vld [vmem:[#allocation4 + $0x30] sm:$0xff]
        %v6600 = vld [vmem:[#allocation4 + $0x38] sm:$0xff]
        %v6601 = vld [vmem:[#allocation4 + $0x40] sm:$0xff]
        %v6602 = vld [vmem:[#allocation4 + $0x48] sm:$0xff]
        %v6603 = vld [vmem:[#allocation4 + $0x50] sm:$0xff]
        %v6604 = vld [vmem:[#allocation4 + $0x58] sm:$0xff]
        %v6605 = vld [vmem:[#allocation4 + $0x60] sm:$0xff]
        %v6606 = vld [vmem:[#allocation4 + $0x68] sm:$0xff]
        %v6607 = vld [vmem:[#allocation4 + $0x70] sm:$0xff]
        %v6608 = vld [vmem:[#allocation4 + $0x78] sm:$0xff]
        %v6609 = vld [vmem:[#allocation4 + $0x80] sm:$0xff]
        %v6610 = vld [vmem:[#allocation4 + $0x88] sm:$0xff]
        %v6611 = vld [vmem:[#allocation4 + $0x90] sm:$0xff]
        %v6612 = vld [vmem:[#allocation4 + $0x98] sm:$0xff]
        %v6613 = vld [vmem:[#allocation4 + $0xa0] sm:$0xff]
        %v6614 = vld [vmem:[#allocation4 + $0xa8] sm:$0xff]
        %v6615 = vld [vmem:[#allocation4 + $0xb0] sm:$0xff]
        %v6616 = vld [vmem:[#allocation4 + $0xb8] sm:$0xff]
        %v6617 = vld [vmem:[#allocation4 + $0xc0] sm:$0xff]
        %v6618 = vld [vmem:[#allocation4 + $0xc8] sm:$0xff]
        %v6619 = vld [vmem:[#allocation4 + $0xd0] sm:$0xff]
        %v6620 = vld [vmem:[#allocation4 + $0xd8] sm:$0xff]
        %v6621 = vld [vmem:[#allocation4 + $0xe0] sm:$0xff]
        %v6622 = vld [vmem:[#allocation4 + $0xe8] sm:$0xff]
        %v6623 = vld [vmem:[#allocation4 + $0xf0] sm:$0xff]
        %v6624 = vld [vmem:[#allocation4 + $0xf8] sm:$0xff]
        %v6625 = vadd.f32 %v6593, %v6435
        %v6626 = vadd.f32 %v6594, %v6440
        %v6627 = vadd.f32 %v6595, %v6445
        %v6628 = vadd.f32 %v6596, %v6450
        %v6629 = vadd.f32 %v6597, %v6455
        %v6630 = vadd.f32 %v6598, %v6460
        %v6631 = vadd.f32 %v6599, %v6465
        %v6632 = vadd.f32 %v6600, %v6470
        %v6633 = vadd.f32 %v6601, %v6475
        %v6634 = vadd.f32 %v6602, %v6480
        %v6635 = vadd.f32 %v6603, %v6485
        %v6636 = vadd.f32 %v6604, %v6490
        %v6637 = vadd.f32 %v6605, %v6495
        %v6638 = vadd.f32 %v6606, %v6500
        %v6639 = vadd.f32 %v6607, %v6505
        %v6640 = vadd.f32 %v6608, %v6510
        %v6641 = vadd.f32 %v6609, %v6515
        %v6642 = vadd.f32 %v6610, %v6520
        %v6643 = vadd.f32 %v6611, %v6525
        %v6644 = vadd.f32 %v6612, %v6530
        %v6645 = vadd.f32 %v6613, %v6535
        %v6646 = vadd.f32 %v6614, %v6540
        %v6647 = vadd.f32 %v6615, %v6545
        %v6648 = vadd.f32 %v6616, %v6550
        %v6649 = vadd.f32 %v6617, %v6555
        %v6650 = vadd.f32 %v6618, %v6560
        %v6651 = vadd.f32 %v6619, %v6565
        %v6652 = vadd.f32 %v6620, %v6570
        %v6653 = vadd.f32 %v6621, %v6575
        %v6654 = vadd.f32 %v6622, %v6580
        %v6655 = vadd.f32 %v6623, %v6585
        %v6656 = vadd.f32 %v6624, %v6590
        %6657 = vst [vmem:[#allocation4] sm:$0xff] %v6625
        %6658 = vst [vmem:[#allocation4 + $0x8] sm:$0xff] %v6626
        %6659 = vst [vmem:[#allocation4 + $0x10] sm:$0xff] %v6627
        %6660 = vst [vmem:[#allocation4 + $0x18] sm:$0xff] %v6628
        %6661 = vst [vmem:[#allocation4 + $0x20] sm:$0xff] %v6629
        %6662 = vst [vmem:[#allocation4 + $0x28] sm:$0xff] %v6630
        %6663 = vst [vmem:[#allocation4 + $0x30] sm:$0xff] %v6631
        %6664 = vst [vmem:[#allocation4 + $0x38] sm:$0xff] %v6632
        %6665 = vst [vmem:[#allocation4 + $0x40] sm:$0xff] %v6633
        %6666 = vst [vmem:[#allocation4 + $0x48] sm:$0xff] %v6634
        %6667 = vst [vmem:[#allocation4 + $0x50] sm:$0xff] %v6635
        %6668 = vst [vmem:[#allocation4 + $0x58] sm:$0xff] %v6636
        %6669 = vst [vmem:[#allocation4 + $0x60] sm:$0xff] %v6637
        %6670 = vst [vmem:[#allocation4 + $0x68] sm:$0xff] %v6638
        %6671 = vst [vmem:[#allocation4 + $0x70] sm:$0xff] %v6639
        %6672 = vst [vmem:[#allocation4 + $0x78] sm:$0xff] %v6640
        %6673 = vst [vmem:[#allocation4 + $0x80] sm:$0xff] %v6641
        %6674 = vst [vmem:[#allocation4 + $0x88] sm:$0xff] %v6642
        %6675 = vst [vmem:[#allocation4 + $0x90] sm:$0xff] %v6643
        %6676 = vst [vmem:[#allocation4 + $0x98] sm:$0xff] %v6644
        %6677 = vst [vmem:[#allocation4 + $0xa0] sm:$0xff] %v6645
        %6678 = vst [vmem:[#allocation4 + $0xa8] sm:$0xff] %v6646
        %6679 = vst [vmem:[#allocation4 + $0xb0] sm:$0xff] %v6647
        %6680 = vst [vmem:[#allocation4 + $0xb8] sm:$0xff] %v6648
        %6681 = vst [vmem:[#allocation4 + $0xc0] sm:$0xff] %v6649
        %6682 = vst [vmem:[#allocation4 + $0xc8] sm:$0xff] %v6650
        %6683 = vst [vmem:[#allocation4 + $0xd0] sm:$0xff] %v6651
        %6684 = vst [vmem:[#allocation4 + $0xd8] sm:$0xff] %v6652
        %6685 = vst [vmem:[#allocation4 + $0xe0] sm:$0xff] %v6653
        %6686 = vst [vmem:[#allocation4 + $0xe8] sm:$0xff] %v6654
        %6687 = vst [vmem:[#allocation4 + $0xf0] sm:$0xff] %v6655
        %6688 = vst [vmem:[#allocation4 + $0xf8] sm:$0xff] %v6656
        %v6689 = vld [vmem:[%s5948 + $0x2] sm:$0xff]
        %v6690 = vld [vmem:[%s5948 + $0xa] sm:$0xff]
        %v6691 = vld [vmem:[%s5948 + $0x1a] sm:$0xff]
        %v6692 = vld [vmem:[%s5948 + $0x22] sm:$0xff]
        %v6693 = vld [vmem:[%s5948 + $0x32] sm:$0xff]
        %v6694 = vld [vmem:[%s5948 + $0x3a] sm:$0xff]
        %v6695 = vld [vmem:[%s5948 + $0x4a] sm:$0xff]
        %v6696 = vld [vmem:[%s5948 + $0x52] sm:$0xff]
        %v6697 = vld [vmem:[%s5948 + $0x62] sm:$0xff]
        %v6698 = vld [vmem:[%s5948 + $0x6a] sm:$0xff]
        %v6699 = vld [vmem:[%s5948 + $0x7a] sm:$0xff]
        %v6700 = vld [vmem:[%s5948 + $0x82] sm:$0xff]
        %v6701 = vld [vmem:[%s5948 + $0x92] sm:$0xff]
        %v6702 = vld [vmem:[%s5948 + $0x9a] sm:$0xff]
        %v6703 = vld [vmem:[%s5948 + $0xaa] sm:$0xff]
        %v6704 = vld [vmem:[%s5948 + $0xb2] sm:$0xff]
        %v6705 = vld [vmem:[%s5948 + $0xc2] sm:$0xff]
        %v6706 = vld [vmem:[%s5948 + $0xca] sm:$0xff]
        %v6707 = vld [vmem:[%s5948 + $0xda] sm:$0xff]
        %v6708 = vld [vmem:[%s5948 + $0xe2] sm:$0xff]
        %v6709 = vld [vmem:[%s5948 + $0xf2] sm:$0xff]
        %v6710 = vld [vmem:[%s5948 + $0xfa] sm:$0xff]
        %v6711 = vld [vmem:[%s5948 + $0x10a] sm:$0xff]
        %v6712 = vld [vmem:[%s5948 + $0x112] sm:$0xff]
        %v6713 = vld [vmem:[%s5948 + $0x122] sm:$0xff]
        %v6714 = vld [vmem:[%s5948 + $0x12a] sm:$0xff]
        %v6715 = vld [vmem:[%s5948 + $0x13a] sm:$0xff]
        %v6716 = vld [vmem:[%s5948 + $0x142] sm:$0xff]
        %v6717 = vld [vmem:[%s5948 + $0x152] sm:$0xff]
        %v6718 = vld [vmem:[%s5948 + $0x15a] sm:$0xff]
        %v6719 = vld [vmem:[%s5948 + $0x16a] sm:$0xff]
        %v6720 = vld [vmem:[%s5948 + $0x172] sm:$0xff]
        %s6721 = scalar_lea.vmem [#allocation5], 1024
        %v6722 = vld [vmem:[%s6721] sm:$0xff]
        %v6723 = vld [vmem:[%s6721 + $0x8] sm:$0xff]
        %v6724 = vld [vmem:[%s6721 + $0x10] sm:$0xff]
        %v6725 = vld [vmem:[%s6721 + $0x18] sm:$0xff]
        %v6726 = vld [vmem:[%s6721 + $0x20] sm:$0xff]
        %v6727 = vld [vmem:[%s6721 + $0x28] sm:$0xff]
        %v6728 = vld [vmem:[%s6721 + $0x30] sm:$0xff]
        %v6729 = vld [vmem:[%s6721 + $0x38] sm:$0xff]
        %v6730 = vld [vmem:[%s6721 + $0x40] sm:$0xff]
        %v6731 = vld [vmem:[%s6721 + $0x48] sm:$0xff]
        %v6732 = vld [vmem:[%s6721 + $0x50] sm:$0xff]
        %v6733 = vld [vmem:[%s6721 + $0x58] sm:$0xff]
        %v6734 = vld [vmem:[%s6721 + $0x60] sm:$0xff]
        %v6735 = vld [vmem:[%s6721 + $0x68] sm:$0xff]
        %v6736 = vld [vmem:[%s6721 + $0x70] sm:$0xff]
        %v6737 = vld [vmem:[%s6721 + $0x78] sm:$0xff]
        %6738 = vmatprep.subr.mxu0 0.0
        %6739 = vmatpush1.msra.mxu0 %v6737
        %6740 = vmatprep.subr.mxu0 0.0
        %6741 = vmatpush1.msra.mxu0 %v6736
        %6742 = vmatprep.subr.mxu0 0.0
        %6743 = vmatpush1.msra.mxu0 %v6735
        %6744 = vmatprep.subr.mxu0 0.0
        %6745 = vmatpush1.msra.mxu0 %v6734
        %6746 = vmatprep.subr.mxu0 0.0
        %6747 = vmatpush1.msra.mxu0 %v6733
        %6748 = vmatprep.subr.mxu0 0.0
        %6749 = vmatpush1.msra.mxu0 %v6732
        %6750 = vmatprep.subr.mxu0 0.0
        %6751 = vmatpush1.msra.mxu0 %v6731
        %6752 = vmatprep.subr.mxu0 0.0
        %6753 = vmatpush1.msra.mxu0 %v6730
        %6754 = vmatprep.subr.mxu0 0.0
        %6755 = vmatpush1.msra.mxu0 %v6729
        %6756 = vmatprep.subr.mxu0 0.0
        %6757 = vmatpush1.msra.mxu0 %v6728
        %6758 = vmatprep.subr.mxu0 0.0
        %6759 = vmatpush1.msra.mxu0 %v6727
        %6760 = vmatprep.subr.mxu0 0.0
        %6761 = vmatpush1.msra.mxu0 %v6726
        %6762 = vmatprep.subr.mxu0 0.0
        %6763 = vmatpush1.msra.mxu0 %v6725
        %6764 = vmatprep.subr.mxu0 0.0
        %6765 = vmatpush1.msra.mxu0 %v6724
        %6766 = vmatprep.subr.mxu0 0.0
        %6767 = vmatpush1.msra.mxu0 %v6723
        %6768 = vmatprep.subr.mxu0 0.0
        %6769 = vmatpush1.msra.mxu0 %v6722
        %6770 = vmatprep.subr.mxu0 0.0
        %6771 = vmatpush2.msra.mxu0 0.0
        %6772 = vmatprep.subr.mxu0 0.0
        %6773 = vmatpush2.msra.mxu0 0.0
        %6774 = vmatprep.subr.mxu0 0.0
        %6775 = vmatpush2.msra.mxu0 0.0
        %6776 = vmatprep.subr.mxu0 0.0
        %6777 = vmatpush2.msra.mxu0 0.0
        %6778 = vmatprep.subr.mxu0 0.0
        %6779 = vmatpush2.msra.mxu0 0.0
        %6780 = vmatprep.subr.mxu0 0.0
        %6781 = vmatpush2.msra.mxu0 0.0
        %6782 = vmatprep.subr.mxu0 0.0
        %6783 = vmatpush2.msra.mxu0 0.0
        %6784 = vmatprep.subr.mxu0 0.0
        %6785 = vmatpush2.msra.mxu0 0.0
        %6786 = vmatprep.subr.mxu0 0.0
        %6787 = vmatpush2.msra.mxu0 0.0
        %6788 = vmatprep.subr.mxu0 0.0
        %6789 = vmatpush2.msra.mxu0 0.0
        %6790 = vmatprep.subr.mxu0 0.0
        %6791 = vmatpush2.msra.mxu0 0.0
        %6792 = vmatprep.subr.mxu0 0.0
        %6793 = vmatpush2.msra.mxu0 0.0
        %6794 = vmatprep.subr.mxu0 0.0
        %6795 = vmatpush2.msra.mxu0 0.0
        %6796 = vmatprep.subr.mxu0 0.0
        %6797 = vmatpush2.msra.mxu0 0.0
        %6798 = vmatprep.subr.mxu0 0.0
        %6799 = vmatpush2.msra.mxu0 0.0
        %6800 = vmatprep.subr.mxu0 0.0
        %6801 = vmatpush2.msra.mxu0 0.0
        %6802 = vmatprep.mubr.f32.mxu0 0.0
        %6803 = vmatmul.mubr.f32.gmra.mxu0 %v6689
        %v6804 = vpop.f32.mrf.mxu0
        %v6805 = vadd.f32 0.0, %v6804
        %v6806 = vpop.f32.mrf.mxu0
        %6807 = vmatprep.mubr.f32.mxu0 0.0
        %6808 = vmatmul.mubr.f32.gmra.mxu0 %v6690
        %v6809 = vpop.f32.mrf.mxu0
        %v6810 = vadd.f32 0.0, %v6809
        %v6811 = vpop.f32.mrf.mxu0
        %6812 = vmatprep.mubr.f32.mxu0 0.0
        %6813 = vmatmul.mubr.f32.gmra.mxu0 %v6691
        %v6814 = vpop.f32.mrf.mxu0
        %v6815 = vadd.f32 0.0, %v6814
        %v6816 = vpop.f32.mrf.mxu0
        %6817 = vmatprep.mubr.f32.mxu0 0.0
        %6818 = vmatmul.mubr.f32.gmra.mxu0 %v6692
        %v6819 = vpop.f32.mrf.mxu0
        %v6820 = vadd.f32 0.0, %v6819
        %v6821 = vpop.f32.mrf.mxu0
        %6822 = vmatprep.mubr.f32.mxu0 0.0
        %6823 = vmatmul.mubr.f32.gmra.mxu0 %v6693
        %v6824 = vpop.f32.mrf.mxu0
        %v6825 = vadd.f32 0.0, %v6824
        %v6826 = vpop.f32.mrf.mxu0
        %6827 = vmatprep.mubr.f32.mxu0 0.0
        %6828 = vmatmul.mubr.f32.gmra.mxu0 %v6694
        %v6829 = vpop.f32.mrf.mxu0
        %v6830 = vadd.f32 0.0, %v6829
        %v6831 = vpop.f32.mrf.mxu0
        %6832 = vmatprep.mubr.f32.mxu0 0.0
        %6833 = vmatmul.mubr.f32.gmra.mxu0 %v6695
        %v6834 = vpop.f32.mrf.mxu0
        %v6835 = vadd.f32 0.0, %v6834
        %v6836 = vpop.f32.mrf.mxu0
        %6837 = vmatprep.mubr.f32.mxu0 0.0
        %6838 = vmatmul.mubr.f32.gmra.mxu0 %v6696
        %v6839 = vpop.f32.mrf.mxu0
        %v6840 = vadd.f32 0.0, %v6839
        %v6841 = vpop.f32.mrf.mxu0
        %6842 = vmatprep.mubr.f32.mxu0 0.0
        %6843 = vmatmul.mubr.f32.gmra.mxu0 %v6697
        %v6844 = vpop.f32.mrf.mxu0
        %v6845 = vadd.f32 0.0, %v6844
        %v6846 = vpop.f32.mrf.mxu0
        %6847 = vmatprep.mubr.f32.mxu0 0.0
        %6848 = vmatmul.mubr.f32.gmra.mxu0 %v6698
        %v6849 = vpop.f32.mrf.mxu0
        %v6850 = vadd.f32 0.0, %v6849
        %v6851 = vpop.f32.mrf.mxu0
        %6852 = vmatprep.mubr.f32.mxu0 0.0
        %6853 = vmatmul.mubr.f32.gmra.mxu0 %v6699
        %v6854 = vpop.f32.mrf.mxu0
        %v6855 = vadd.f32 0.0, %v6854
        %v6856 = vpop.f32.mrf.mxu0
        %6857 = vmatprep.mubr.f32.mxu0 0.0
        %6858 = vmatmul.mubr.f32.gmra.mxu0 %v6700
        %v6859 = vpop.f32.mrf.mxu0
        %v6860 = vadd.f32 0.0, %v6859
        %v6861 = vpop.f32.mrf.mxu0
        %6862 = vmatprep.mubr.f32.mxu0 0.0
        %6863 = vmatmul.mubr.f32.gmra.mxu0 %v6701
        %v6864 = vpop.f32.mrf.mxu0
        %v6865 = vadd.f32 0.0, %v6864
        %v6866 = vpop.f32.mrf.mxu0
        %6867 = vmatprep.mubr.f32.mxu0 0.0
        %6868 = vmatmul.mubr.f32.gmra.mxu0 %v6702
        %v6869 = vpop.f32.mrf.mxu0
        %v6870 = vadd.f32 0.0, %v6869
        %v6871 = vpop.f32.mrf.mxu0
        %6872 = vmatprep.mubr.f32.mxu0 0.0
        %6873 = vmatmul.mubr.f32.gmra.mxu0 %v6703
        %v6874 = vpop.f32.mrf.mxu0
        %v6875 = vadd.f32 0.0, %v6874
        %v6876 = vpop.f32.mrf.mxu0
        %6877 = vmatprep.mubr.f32.mxu0 0.0
        %6878 = vmatmul.mubr.f32.gmra.mxu0 %v6704
        %v6879 = vpop.f32.mrf.mxu0
        %v6880 = vadd.f32 0.0, %v6879
        %v6881 = vpop.f32.mrf.mxu0
        %6882 = vmatprep.mubr.f32.mxu0 0.0
        %6883 = vmatmul.mubr.f32.gmra.mxu0 %v6705
        %v6884 = vpop.f32.mrf.mxu0
        %v6885 = vadd.f32 0.0, %v6884
        %v6886 = vpop.f32.mrf.mxu0
        %6887 = vmatprep.mubr.f32.mxu0 0.0
        %6888 = vmatmul.mubr.f32.gmra.mxu0 %v6706
        %v6889 = vpop.f32.mrf.mxu0
        %v6890 = vadd.f32 0.0, %v6889
        %v6891 = vpop.f32.mrf.mxu0
        %6892 = vmatprep.mubr.f32.mxu0 0.0
        %6893 = vmatmul.mubr.f32.gmra.mxu0 %v6707
        %v6894 = vpop.f32.mrf.mxu0
        %v6895 = vadd.f32 0.0, %v6894
        %v6896 = vpop.f32.mrf.mxu0
        %6897 = vmatprep.mubr.f32.mxu0 0.0
        %6898 = vmatmul.mubr.f32.gmra.mxu0 %v6708
        %v6899 = vpop.f32.mrf.mxu0
        %v6900 = vadd.f32 0.0, %v6899
        %v6901 = vpop.f32.mrf.mxu0
        %6902 = vmatprep.mubr.f32.mxu0 0.0
        %6903 = vmatmul.mubr.f32.gmra.mxu0 %v6709
        %v6904 = vpop.f32.mrf.mxu0
        %v6905 = vadd.f32 0.0, %v6904
        %v6906 = vpop.f32.mrf.mxu0
        %6907 = vmatprep.mubr.f32.mxu0 0.0
        %6908 = vmatmul.mubr.f32.gmra.mxu0 %v6710
        %v6909 = vpop.f32.mrf.mxu0
        %v6910 = vadd.f32 0.0, %v6909
        %v6911 = vpop.f32.mrf.mxu0
        %6912 = vmatprep.mubr.f32.mxu0 0.0
        %6913 = vmatmul.mubr.f32.gmra.mxu0 %v6711
        %v6914 = vpop.f32.mrf.mxu0
        %v6915 = vadd.f32 0.0, %v6914
        %v6916 = vpop.f32.mrf.mxu0
        %6917 = vmatprep.mubr.f32.mxu0 0.0
        %6918 = vmatmul.mubr.f32.gmra.mxu0 %v6712
        %v6919 = vpop.f32.mrf.mxu0
        %v6920 = vadd.f32 0.0, %v6919
        %v6921 = vpop.f32.mrf.mxu0
        %6922 = vmatprep.mubr.f32.mxu0 0.0
        %6923 = vmatmul.mubr.f32.gmra.mxu0 %v6713
        %v6924 = vpop.f32.mrf.mxu0
        %v6925 = vadd.f32 0.0, %v6924
        %v6926 = vpop.f32.mrf.mxu0
        %6927 = vmatprep.mubr.f32.mxu0 0.0
        %6928 = vmatmul.mubr.f32.gmra.mxu0 %v6714
        %v6929 = vpop.f32.mrf.mxu0
        %v6930 = vadd.f32 0.0, %v6929
        %v6931 = vpop.f32.mrf.mxu0
        %6932 = vmatprep.mubr.f32.mxu0 0.0
        %6933 = vmatmul.mubr.f32.gmra.mxu0 %v6715
        %v6934 = vpop.f32.mrf.mxu0
        %v6935 = vadd.f32 0.0, %v6934
        %v6936 = vpop.f32.mrf.mxu0
        %6937 = vmatprep.mubr.f32.mxu0 0.0
        %6938 = vmatmul.mubr.f32.gmra.mxu0 %v6716
        %v6939 = vpop.f32.mrf.mxu0
        %v6940 = vadd.f32 0.0, %v6939
        %v6941 = vpop.f32.mrf.mxu0
        %6942 = vmatprep.mubr.f32.mxu0 0.0
        %6943 = vmatmul.mubr.f32.gmra.mxu0 %v6717
        %v6944 = vpop.f32.mrf.mxu0
        %v6945 = vadd.f32 0.0, %v6944
        %v6946 = vpop.f32.mrf.mxu0
        %6947 = vmatprep.mubr.f32.mxu0 0.0
        %6948 = vmatmul.mubr.f32.gmra.mxu0 %v6718
        %v6949 = vpop.f32.mrf.mxu0
        %v6950 = vadd.f32 0.0, %v6949
        %v6951 = vpop.f32.mrf.mxu0
        %6952 = vmatprep.mubr.f32.mxu0 0.0
        %6953 = vmatmul.mubr.f32.gmra.mxu0 %v6719
        %v6954 = vpop.f32.mrf.mxu0
        %v6955 = vadd.f32 0.0, %v6954
        %v6956 = vpop.f32.mrf.mxu0
        %6957 = vmatprep.mubr.f32.mxu0 0.0
        %6958 = vmatmul.mubr.f32.gmra.mxu0 %v6720
        %v6959 = vpop.f32.mrf.mxu0
        %v6960 = vadd.f32 0.0, %v6959
        %v6961 = vpop.f32.mrf.mxu0
        %6962 = vdwg.mxu0
        %v6963 = vld [vmem:[#allocation4] sm:$0xff]
        %v6964 = vld [vmem:[#allocation4 + $0x8] sm:$0xff]
        %v6965 = vld [vmem:[#allocation4 + $0x10] sm:$0xff]
        %v6966 = vld [vmem:[#allocation4 + $0x18] sm:$0xff]
        %v6967 = vld [vmem:[#allocation4 + $0x20] sm:$0xff]
        %v6968 = vld [vmem:[#allocation4 + $0x28] sm:$0xff]
        %v6969 = vld [vmem:[#allocation4 + $0x30] sm:$0xff]
        %v6970 = vld [vmem:[#allocation4 + $0x38] sm:$0xff]
        %v6971 = vld [vmem:[#allocation4 + $0x40] sm:$0xff]
        %v6972 = vld [vmem:[#allocation4 + $0x48] sm:$0xff]
        %v6973 = vld [vmem:[#allocation4 + $0x50] sm:$0xff]
        %v6974 = vld [vmem:[#allocation4 + $0x58] sm:$0xff]
        %v6975 = vld [vmem:[#allocation4 + $0x60] sm:$0xff]
        %v6976 = vld [vmem:[#allocation4 + $0x68] sm:$0xff]
        %v6977 = vld [vmem:[#allocation4 + $0x70] sm:$0xff]
        %v6978 = vld [vmem:[#allocation4 + $0x78] sm:$0xff]
        %v6979 = vld [vmem:[#allocation4 + $0x80] sm:$0xff]
        %v6980 = vld [vmem:[#allocation4 + $0x88] sm:$0xff]
        %v6981 = vld [vmem:[#allocation4 + $0x90] sm:$0xff]
        %v6982 = vld [vmem:[#allocation4 + $0x98] sm:$0xff]
        %v6983 = vld [vmem:[#allocation4 + $0xa0] sm:$0xff]
        %v6984 = vld [vmem:[#allocation4 + $0xa8] sm:$0xff]
        %v6985 = vld [vmem:[#allocation4 + $0xb0] sm:$0xff]
        %v6986 = vld [vmem:[#allocation4 + $0xb8] sm:$0xff]
        %v6987 = vld [vmem:[#allocation4 + $0xc0] sm:$0xff]
        %v6988 = vld [vmem:[#allocation4 + $0xc8] sm:$0xff]
        %v6989 = vld [vmem:[#allocation4 + $0xd0] sm:$0xff]
        %v6990 = vld [vmem:[#allocation4 + $0xd8] sm:$0xff]
        %v6991 = vld [vmem:[#allocation4 + $0xe0] sm:$0xff]
        %v6992 = vld [vmem:[#allocation4 + $0xe8] sm:$0xff]
        %v6993 = vld [vmem:[#allocation4 + $0xf0] sm:$0xff]
        %v6994 = vld [vmem:[#allocation4 + $0xf8] sm:$0xff]
        %v6995 = vadd.f32 %v6963, %v6805
        %v6996 = vadd.f32 %v6964, %v6810
        %v6997 = vadd.f32 %v6965, %v6815
        %v6998 = vadd.f32 %v6966, %v6820
        %v6999 = vadd.f32 %v6967, %v6825
        %v7000 = vadd.f32 %v6968, %v6830
        %v7001 = vadd.f32 %v6969, %v6835
        %v7002 = vadd.f32 %v6970, %v6840
        %v7003 = vadd.f32 %v6971, %v6845
        %v7004 = vadd.f32 %v6972, %v6850
        %v7005 = vadd.f32 %v6973, %v6855
        %v7006 = vadd.f32 %v6974, %v6860
        %v7007 = vadd.f32 %v6975, %v6865
        %v7008 = vadd.f32 %v6976, %v6870
        %v7009 = vadd.f32 %v6977, %v6875
        %v7010 = vadd.f32 %v6978, %v6880
        %v7011 = vadd.f32 %v6979, %v6885
        %v7012 = vadd.f32 %v6980, %v6890
        %v7013 = vadd.f32 %v6981, %v6895
        %v7014 = vadd.f32 %v6982, %v6900
        %v7015 = vadd.f32 %v6983, %v6905
        %v7016 = vadd.f32 %v6984, %v6910
        %v7017 = vadd.f32 %v6985, %v6915
        %v7018 = vadd.f32 %v6986, %v6920
        %v7019 = vadd.f32 %v6987, %v6925
        %v7020 = vadd.f32 %v6988, %v6930
        %v7021 = vadd.f32 %v6989, %v6935
        %v7022 = vadd.f32 %v6990, %v6940
        %v7023 = vadd.f32 %v6991, %v6945
        %v7024 = vadd.f32 %v6992, %v6950
        %v7025 = vadd.f32 %v6993, %v6955
        %v7026 = vadd.f32 %v6994, %v6960
        %7027 = vst [vmem:[#allocation4] sm:$0xff] %v6995
        %7028 = vst [vmem:[#allocation4 + $0x8] sm:$0xff] %v6996
        %7029 = vst [vmem:[#allocation4 + $0x10] sm:$0xff] %v6997
        %7030 = vst [vmem:[#allocation4 + $0x18] sm:$0xff] %v6998
        %7031 = vst [vmem:[#allocation4 + $0x20] sm:$0xff] %v6999
        %7032 = vst [vmem:[#allocation4 + $0x28] sm:$0xff] %v7000
        %7033 = vst [vmem:[#allocation4 + $0x30] sm:$0xff] %v7001
        %7034 = vst [vmem:[#allocation4 + $0x38] sm:$0xff] %v7002
        %7035 = vst [vmem:[#allocation4 + $0x40] sm:$0xff] %v7003
        %7036 = vst [vmem:[#allocation4 + $0x48] sm:$0xff] %v7004
        %7037 = vst [vmem:[#allocation4 + $0x50] sm:$0xff] %v7005
        %7038 = vst [vmem:[#allocation4 + $0x58] sm:$0xff] %v7006
        %7039 = vst [vmem:[#allocation4 + $0x60] sm:$0xff] %v7007
        %7040 = vst [vmem:[#allocation4 + $0x68] sm:$0xff] %v7008
        %7041 = vst [vmem:[#allocation4 + $0x70] sm:$0xff] %v7009
        %7042 = vst [vmem:[#allocation4 + $0x78] sm:$0xff] %v7010
        %7043 = vst [vmem:[#allocation4 + $0x80] sm:$0xff] %v7011
        %7044 = vst [vmem:[#allocation4 + $0x88] sm:$0xff] %v7012
        %7045 = vst [vmem:[#allocation4 + $0x90] sm:$0xff] %v7013
        %7046 = vst [vmem:[#allocation4 + $0x98] sm:$0xff] %v7014
        %7047 = vst [vmem:[#allocation4 + $0xa0] sm:$0xff] %v7015
        %7048 = vst [vmem:[#allocation4 + $0xa8] sm:$0xff] %v7016
        %7049 = vst [vmem:[#allocation4 + $0xb0] sm:$0xff] %v7017
        %7050 = vst [vmem:[#allocation4 + $0xb8] sm:$0xff] %v7018
        %7051 = vst [vmem:[#allocation4 + $0xc0] sm:$0xff] %v7019
        %7052 = vst [vmem:[#allocation4 + $0xc8] sm:$0xff] %v7020
        %7053 = vst [vmem:[#allocation4 + $0xd0] sm:$0xff] %v7021
        %7054 = vst [vmem:[#allocation4 + $0xd8] sm:$0xff] %v7022
        %7055 = vst [vmem:[#allocation4 + $0xe0] sm:$0xff] %v7023
        %7056 = vst [vmem:[#allocation4 + $0xe8] sm:$0xff] %v7024
        %7057 = vst [vmem:[#allocation4 + $0xf0] sm:$0xff] %v7025
        %7058 = vst [vmem:[#allocation4 + $0xf8] sm:$0xff] %v7026
        %v7059 = vld [vmem:[#allocation4] sm:$0xff]
        %v7060 = vld [vmem:[#allocation4 + $0x8] sm:$0xff]
        %v7061 = vld [vmem:[#allocation4 + $0x10] sm:$0xff]
        %v7062 = vld [vmem:[#allocation4 + $0x18] sm:$0xff]
        %v7063 = vld [vmem:[#allocation4 + $0x20] sm:$0xff]
        %v7064 = vld [vmem:[#allocation4 + $0x28] sm:$0xff]
        %v7065 = vld [vmem:[#allocation4 + $0x30] sm:$0xff]
        %v7066 = vld [vmem:[#allocation4 + $0x38] sm:$0xff]
        %v7067 = vld [vmem:[#allocation4 + $0x40] sm:$0xff]
        %v7068 = vld [vmem:[#allocation4 + $0x48] sm:$0xff]
        %v7069 = vld [vmem:[#allocation4 + $0x50] sm:$0xff]
        %v7070 = vld [vmem:[#allocation4 + $0x58] sm:$0xff]
        %v7071 = vld [vmem:[#allocation4 + $0x60] sm:$0xff]
        %v7072 = vld [vmem:[#allocation4 + $0x68] sm:$0xff]
        %v7073 = vld [vmem:[#allocation4 + $0x70] sm:$0xff]
        %v7074 = vld [vmem:[#allocation4 + $0x78] sm:$0xff]
        %v7075 = vld [vmem:[#allocation4 + $0x80] sm:$0xff]
        %v7076 = vld [vmem:[#allocation4 + $0x88] sm:$0xff]
        %v7077 = vld [vmem:[#allocation4 + $0x90] sm:$0xff]
        %v7078 = vld [vmem:[#allocation4 + $0x98] sm:$0xff]
        %v7079 = vld [vmem:[#allocation4 + $0xa0] sm:$0xff]
        %v7080 = vld [vmem:[#allocation4 + $0xa8] sm:$0xff]
        %v7081 = vld [vmem:[#allocation4 + $0xb0] sm:$0xff]
        %v7082 = vld [vmem:[#allocation4 + $0xb8] sm:$0xff]
        %v7083 = vld [vmem:[#allocation4 + $0xc0] sm:$0xff]
        %v7084 = vld [vmem:[#allocation4 + $0xc8] sm:$0xff]
        %v7085 = vld [vmem:[#allocation4 + $0xd0] sm:$0xff]
        %v7086 = vld [vmem:[#allocation4 + $0xd8] sm:$0xff]
        %v7087 = vld [vmem:[#allocation4 + $0xe0] sm:$0xff]
        %v7088 = vld [vmem:[#allocation4 + $0xe8] sm:$0xff]
        %v7089 = vld [vmem:[#allocation4 + $0xf0] sm:$0xff]
        %v7090 = vld [vmem:[#allocation4 + $0xf8] sm:$0xff]
        %v7091 = vld [vmem:[%s4] sm:$0x1]
        %v7093 = vlaneseq
        %v7094 = vshrl.u32 %v7093, 7
        %v7095 = vsub.s32 0, %v7094
        %v7096 = vrot.slane %v7091, %v7095
        %v7098 = vadd.f32 %v7059, %v7096
        %v7099 = vadd.f32 %v7060, %v7096
        %v7100 = vadd.f32 %v7061, %v7096
        %v7101 = vadd.f32 %v7062, %v7096
        %v7102 = vadd.f32 %v7063, %v7096
        %v7103 = vadd.f32 %v7064, %v7096
        %v7104 = vadd.f32 %v7065, %v7096
        %v7105 = vadd.f32 %v7066, %v7096
        %v7106 = vadd.f32 %v7067, %v7096
        %v7107 = vadd.f32 %v7068, %v7096
        %v7108 = vadd.f32 %v7069, %v7096
        %v7109 = vadd.f32 %v7070, %v7096
        %v7110 = vadd.f32 %v7071, %v7096
        %v7111 = vadd.f32 %v7072, %v7096
        %v7112 = vadd.f32 %v7073, %v7096
        %v7113 = vadd.f32 %v7074, %v7096
        %v7114 = vadd.f32 %v7075, %v7096
        %v7115 = vadd.f32 %v7076, %v7096
        %v7116 = vadd.f32 %v7077, %v7096
        %v7117 = vadd.f32 %v7078, %v7096
        %v7118 = vadd.f32 %v7079, %v7096
        %v7119 = vadd.f32 %v7080, %v7096
        %v7120 = vadd.f32 %v7081, %v7096
        %v7121 = vadd.f32 %v7082, %v7096
        %v7122 = vadd.f32 %v7083, %v7096
        %v7123 = vadd.f32 %v7084, %v7096
        %v7124 = vadd.f32 %v7085, %v7096
        %v7125 = vadd.f32 %v7086, %v7096
        %v7126 = vadd.f32 %v7087, %v7096
        %v7127 = vadd.f32 %v7088, %v7096
        %v7128 = vadd.f32 %v7089, %v7096
        %v7129 = vadd.f32 %v7090, %v7096
        %v7130 = vmax.f32 %v7098, 0.0
        %v7131 = vmax.f32 %v7099, 0.0
        %v7132 = vmax.f32 %v7100, 0.0
        %v7133 = vmax.f32 %v7101, 0.0
        %v7134 = vmax.f32 %v7102, 0.0
        %v7135 = vmax.f32 %v7103, 0.0
        %v7136 = vmax.f32 %v7104, 0.0
        %v7137 = vmax.f32 %v7105, 0.0
        %v7138 = vmax.f32 %v7106, 0.0
        %v7139 = vmax.f32 %v7107, 0.0
        %v7140 = vmax.f32 %v7108, 0.0
        %v7141 = vmax.f32 %v7109, 0.0
        %v7142 = vmax.f32 %v7110, 0.0
        %v7143 = vmax.f32 %v7111, 0.0
        %v7144 = vmax.f32 %v7112, 0.0
        %v7145 = vmax.f32 %v7113, 0.0
        %v7146 = vmax.f32 %v7114, 0.0
        %v7147 = vmax.f32 %v7115, 0.0
        %v7148 = vmax.f32 %v7116, 0.0
        %v7149 = vmax.f32 %v7117, 0.0
        %v7150 = vmax.f32 %v7118, 0.0
        %v7151 = vmax.f32 %v7119, 0.0
        %v7152 = vmax.f32 %v7120, 0.0
        %v7153 = vmax.f32 %v7121, 0.0
        %v7154 = vmax.f32 %v7122, 0.0
        %v7155 = vmax.f32 %v7123, 0.0
        %v7156 = vmax.f32 %v7124, 0.0
        %v7157 = vmax.f32 %v7125, 0.0
        %v7158 = vmax.f32 %v7126, 0.0
        %v7159 = vmax.f32 %v7127, 0.0
        %v7160 = vmax.f32 %v7128, 0.0
        %v7161 = vmax.f32 %v7129, 0.0
        %7162 = vst [vmem:[%s239] sm:$0xff] %v7130
        %7163 = vst [vmem:[%s239 + $0x8] sm:$0xff] %v7131
        %7164 = vst [vmem:[%s239 + $0x10] sm:$0xff] %v7132
        %7165 = vst [vmem:[%s239 + $0x18] sm:$0xff] %v7133
        %7166 = vst [vmem:[%s239 + $0x20] sm:$0xff] %v7134
        %7167 = vst [vmem:[%s239 + $0x28] sm:$0xff] %v7135
        %7168 = vst [vmem:[%s239 + $0x30] sm:$0xff] %v7136
        %7169 = vst [vmem:[%s239 + $0x38] sm:$0xff] %v7137
        %7170 = vst [vmem:[%s239 + $0x40] sm:$0xff] %v7138
        %7171 = vst [vmem:[%s239 + $0x48] sm:$0xff] %v7139
        %7172 = vst [vmem:[%s239 + $0x50] sm:$0xff] %v7140
        %7173 = vst [vmem:[%s239 + $0x58] sm:$0xff] %v7141
        %7174 = vst [vmem:[%s239 + $0x60] sm:$0xff] %v7142
        %7175 = vst [vmem:[%s239 + $0x68] sm:$0xff] %v7143
        %7176 = vst [vmem:[%s239 + $0x70] sm:$0xff] %v7144
        %7177 = vst [vmem:[%s239 + $0x78] sm:$0xff] %v7145
        %7178 = vst [vmem:[%s239 + $0x80] sm:$0xff] %v7146
        %7179 = vst [vmem:[%s239 + $0x88] sm:$0xff] %v7147
        %7180 = vst [vmem:[%s239 + $0x90] sm:$0xff] %v7148
        %7181 = vst [vmem:[%s239 + $0x98] sm:$0xff] %v7149
        %7182 = vst [vmem:[%s239 + $0xa0] sm:$0xff] %v7150
        %7183 = vst [vmem:[%s239 + $0xa8] sm:$0xff] %v7151
        %7184 = vst [vmem:[%s239 + $0xb0] sm:$0xff] %v7152
        %7185 = vst [vmem:[%s239 + $0xb8] sm:$0xff] %v7153
        %7186 = vst [vmem:[%s239 + $0xc0] sm:$0xff] %v7154
        %7187 = vst [vmem:[%s239 + $0xc8] sm:$0xff] %v7155
        %7188 = vst [vmem:[%s239 + $0xd0] sm:$0xff] %v7156
        %7189 = vst [vmem:[%s239 + $0xd8] sm:$0xff] %v7157
        %7190 = vst [vmem:[%s239 + $0xe0] sm:$0xff] %v7158
        %7191 = vst [vmem:[%s239 + $0xe8] sm:$0xff] %v7159
        %7192 = vst [vmem:[%s239 + $0xf0] sm:$0xff] %v7160
        %7193 = vst [vmem:[%s239 + $0xf8] sm:$0xff] %v7161
        %p7194 = scmp.lt.s32.totalorder %s17, 1
        %s7195 = scalar_select %p7194, %s17, 1
        %s7196 = smul.addr %s7195, 32
        %s7197 = smul.addr %s7196, 8
        %s7198 = scalar_lea.vmem %s5, %s7197
        // Predicated region
        $region45: #{double_conv_pallas.1} parent=39 // pred_check
          %p7199 = pneg %p145
        $region46: #{double_conv_pallas.1} parent=39 // pred_check_branch
          %7201 = sbr.rel (%p7199) target = $region48
        $region47: #{double_conv_pallas.1} parent=39 // pred_region
          _
        $region48: #{double_conv_pallas.1} parent=39 // pred_fallthru
          _
      $region40: #{double_conv_pallas.1} parent=5 // pred_fallthru
        _
      %p7202 = scmp.le.s32.totalorder 2, %s12
      // Predicated region
      $region49: #{double_conv_pallas.1} parent=5 // pred_check
        %p7203 = pneg %p7202
      $region50: #{double_conv_pallas.1} parent=5 // pred_check_branch
        %7205 = sbr.rel (%p7203) target = $region52
      $region51: #{double_conv_pallas.1} parent=5 // pred_region
        %s7206 = ssub.s32 %s12, 2
        // Predicated region
        $region53: #{double_conv_pallas.1} parent=51 // pred_check
          %p7207 = pneg %p151
        $region54: #{double_conv_pallas.1} parent=51 // pred_check_branch
          %7209 = sbr.rel (%p7207) target = $region56
        $region55: #{double_conv_pallas.1} parent=51 // pred_region
          %p7210 = scmp.lt.s32.totalorder %s18, 1
          %s7211 = scalar_select %p7210, %s18, 1
          %s7212 = smul.addr %s7211, 32
          %s7213 = smul.addr %s7212, 8
          %s7214 = scalar_lea.vmem %s5, %s7213
        $region56: #{double_conv_pallas.1} parent=51 // pred_fallthru
          _
      $region52: #{double_conv_pallas.1} parent=5 // pred_fallthru
        _
    $region6: #{double_conv_pallas.1} parent=1 // loop_footer
      %s16 = sadd.s32 1, %s12
    $region7: #{double_conv_pallas.1} parent=1 // loop_footer_branch
      %11 = sbr.rel target = $region3
    $region8: #{double_conv_pallas.1} parent=1 // loop_exit
      _
    %7215 = vsyncpa [#allocation6], 1
    %s7216 = scalar_lea.sflag [#allocation6], 1
    %7217 = vsyncpa %s7216, 1

</llo_original>
